<compile_context>
chip_gen: v7x
topology: tpu7x:2x2x1
jax: 0.10.0
libtpu: 0.0.40
codegen_flags: <defaults>
</compile_context>

<pallas_src>
import functools
import math

import jax
import jax.numpy as jnp
from jax.experimental import pallas as pl
from jax.experimental.pallas import tpu as pltpu

_BN_EPS = 1e-5
_LRELU_SLOPE = 0.2


def _round_up(x, m):
    return (x + m - 1) // m * m


def _make_conv_kernel(n_tap_rows, n_tap_cols, row_pitch, span, coutp, act_slope):
    """Conv-as-shifted-matmul kernel (one batch element per grid step).

    x_ref     : (n_rows, cin_k)  bf16 — flattened (H*W, C) padded image (maybe space-to-depth'd)
    w_ref     : (n_taps, cin_k, coutp) bf16 — per-tap weight matrices
    scale_ref : (1, coutp) f32  — folded BatchNorm scale (ones if no norm)
    shift_ref : (1, coutp) f32  — folded BatchNorm shift + conv bias
    o_ref     : (span, coutp)   — outputs in the padded row-pitch geometry (lane-dense)
    """

    def kernel(x_ref, w_ref, scale_ref, shift_ref, o_ref):
        acc = None
        for a in range(n_tap_rows):
            for b in range(n_tap_cols):
                off = a * row_pitch + b
                lhs = x_ref[off:off + span, :]                       # bf16, VMEM-resident
                part = jnp.dot(lhs, w_ref[a * n_tap_cols + b],
                               preferred_element_type=jnp.float32)   # MXU, f32 accumulate
                acc = part if acc is None else acc + part
        y = acc * scale_ref[...] + shift_ref[...]                    # folded bias + BN (f32)
        if act_slope is not None:
            y = jnp.where(y >= 0.0, y, act_slope * y)                # LeakyReLU(0.2)
        o_ref[...] = y.astype(o_ref.dtype)

    return kernel


def _conv4x4_layer(x, w, b, bn, *, stride, act_slope, out_dtype):
    """One discriminator stage: Conv2d(k=4, stride, pad=2) [+ BN eval] [+ LeakyReLU].

    x : (N, H, W, Cc) activations; channels padded to a multiple of 128 (extra lanes are 0).
    w : (Cout, Cin_real, 4, 4) PyTorch conv weight, Cin_real <= Cc.      b : (Cout,)
    bn: None or dict(gamma, beta, mean, var) — eval-mode running stats (folded).
    Returns ((N, Ho, Wo, Coutp), Cout) with real channels in [:Cout], rest exactly zero.
    """
    N, H, W, cc = x.shape
    cout, cin_real, kh, kw = w.shape
    assert (kh, kw) == (4, 4) and cin_real <= cc
    coutp = max(128, _round_up(cout, 128))          # lane-dense output channels

    # -------- fold conv bias + eval-mode BatchNorm into per-channel scale/shift --------
    if bn is None:
        scale = jnp.ones((cout,), jnp.float32)
        shift = b.astype(jnp.float32)
    else:
        s = bn["gamma"] / jnp.sqrt(bn["var"] + _BN_EPS)
        scale = s.astype(jnp.float32)
        shift = (bn["beta"] + s * (b - bn["mean"])).astype(jnp.float32)
    scale = jnp.pad(scale, (0, coutp - cout)).reshape(1, coutp)
    shift = jnp.pad(shift, (0, coutp - cout)).reshape(1, coutp)

    # zero-pad weight input channels up to the carried (lane-padded) channel count
    w_p = jnp.pad(w.astype(jnp.float32), ((0, 0), (0, cc - cin_real), (0, 0), (0, 0)))

    if stride == 2:
        # stride-2 4x4 conv == stride-1 2x2 conv on the space-to-depth image (4*Cc channels)
        ho, wo = H // 2 + 1, W // 2 + 1
        wo_p = _round_up(wo, 8)                      # 8-aligned output rows per image row
        hb, wb = ho + 1, wo_p + 1                    # 2x2 block grid actually consumed
        hp, wp = 2 * hb, 2 * wb
        xp = jnp.pad(x, ((0, 0), (2, hp - H - 2), (2, wp - W - 2), (0, 0)))
        xs = xp.reshape(N, hb, 2, wb, 2, cc).transpose(0, 1, 3, 2, 4, 5)
        x_flat = xs.reshape(N, hb * wb, 4 * cc)
        # w[co,ci,ky=2ty+r,kx=2tx+s] -> w2[ty*2+tx, (r*2+s)*Cc+ci, co]
        w2 = w_p.reshape(cout, cc, 2, 2, 2, 2).transpose(2, 4, 3, 5, 1, 0)
        w2 = w2.reshape(4, 4 * cc, cout)
        taps_h = taps_w = 2
        row_pitch = wb
    else:
        ho, wo = H + 1, W + 1
        wo_p = _round_up(wo, 8)
        hp, wp = H + 4, wo_p + 3
        xp = jnp.pad(x, ((0, 0), (2, 2), (2, wp - W - 2), (0, 0)))
        x_flat = xp.reshape(N, hp * wp, cc)
        w2 = w_p.transpose(2, 3, 1, 0).reshape(16, cc, cout)   # tap = ky*4+kx
        taps_h = taps_w = 4
        row_pitch = wp

    w2 = jnp.pad(w2, ((0, 0), (0, 0), (0, coutp - cout))).astype(jnp.bfloat16)
    x_flat = x_flat.astype(jnp.bfloat16)             # bf16 MXU operands, half the DMA bytes

    cin_k = x_flat.shape[-1]
    n_rows = x_flat.shape[1]
    span = (ho - 1) * row_pitch + wo_p               # output rows in padded geometry

    out = pl.pallas_call(
        _make_conv_kernel(taps_h, taps_w, row_pitch, span, coutp, act_slope),
        out_shape=jax.ShapeDtypeStruct((N, span, coutp), out_dtype),
        grid=(N,),
        in_specs=[
            pl.BlockSpec((pl.Squeezed(), n_rows, cin_k), lambda n: (n, 0, 0)),
            pl.BlockSpec((taps_h * taps_w, cin_k, coutp), lambda n: (0, 0, 0)),
            pl.BlockSpec((1, coutp), lambda n: (0, 0)),
            pl.BlockSpec((1, coutp), lambda n: (0, 0)),
        ],
        out_specs=pl.BlockSpec((pl.Squeezed(), span, coutp), lambda n: (n, 0, 0)),
        compiler_params=pltpu.CompilerParams(
            dimension_semantics=("parallel",)),      # megacore splits the batch
    )(x_flat, w2, scale, shift)

    # back to (N, Ho, Wo, Coutp): valid outputs live at row i*row_pitch + j, j < Wo
    out = jnp.pad(out, ((0, 0), (0, ho * row_pitch - span), (0, 0)))
    out = out.reshape(N, ho, row_pitch, coutp)[:, :, :wo, :]
    return out, cout


def nlayer_discriminator_forward(x_nchw, params, use_sigmoid=False,
                                 get_interm_feat=False):
    """NLayerDiscriminator forward. Input/output layout: NCHW (like PyTorch)."""
    x = jnp.transpose(x_nchw, (0, 2, 3, 1)).astype(jnp.bfloat16)   # NHWC between all stages
    n = len(params)
    feats = []
    for i, layer in enumerate(params):
        last = i == n - 1
        x, cout = _conv4x4_layer(
            x, layer["w"], layer["b"], layer["bn"],
            stride=layer["stride"],
            act_slope=None if last else _LRELU_SLOPE,
            out_dtype=jnp.float32 if last else jnp.bfloat16)
        if get_interm_feat:
            feats.append(jnp.transpose(x[..., :cout], (0, 3, 1, 2)).astype(jnp.float32))
    y = jnp.transpose(x[..., :1], (0, 3, 1, 2)).astype(jnp.float32)  # PatchGAN logits
    if use_sigmoid:
        y = jax.nn.sigmoid(y)
        if get_interm_feat:
            feats.append(y)
    return feats if get_interm_feat else y


def init_params(key, input_nc, ndf=64, n_layers=3):
    """Deterministic synthetic parameters matching NLayerDiscriminator's layer layout."""
    cfg = [(input_nc, ndf, 2, False)]                # (cin, cout, stride, has_bn)
    nf = ndf
    for _ in range(1, n_layers):
        nf_prev, nf = nf, min(nf * 2, 512)
        cfg.append((nf_prev, nf, 2, True))
    nf_prev, nf = nf, min(nf * 2, 512)
    cfg.append((nf_prev, nf, 1, True))
    cfg.append((nf, 1, 1, False))

    params = []
    for (cin, cout, stride, has_bn), k in zip(cfg, jax.random.split(key, len(cfg))):
        k1, k2, k3, k4, k5, k6 = jax.random.split(k, 6)
        s = 1.0 / math.sqrt(cin * 16.0)              # PyTorch conv fan-in scaling
        layer = {
            "w": jax.random.uniform(k1, (cout, cin, 4, 4), jnp.float32, -s, s),
            "b": jax.random.uniform(k2, (cout,), jnp.float32, -s, s),
            "stride": stride,
            "bn": None,
        }
        if has_bn:                                   # eval-mode running stats
            layer["bn"] = {
                "gamma": 1.0 + 0.1 * jax.random.normal(k3, (cout,), jnp.float32),
                "beta": 0.1 * jax.random.normal(k4, (cout,), jnp.float32),
                "mean": 0.1 * jax.random.normal(k5, (cout,), jnp.float32),
                "var": 1.0 + 0.5 * jax.random.uniform(k6, (cout,), jnp.float32),
            }
        params.append(layer)
    return params


if __name__ == "__main__":
    key = jax.random.PRNGKey(0)
    kx, kp = jax.random.split(key)

    N, input_nc, H, W = 2, 4, 16, 16
    ndf, n_layers = 16, 3

    x = jax.random.normal(kx, (N, input_nc, H, W), dtype=jnp.float32)   # NCHW like PyTorch
    params = init_params(kp, input_nc, ndf=ndf, n_layers=n_layers)

    fwd = jax.jit(functools.partial(nlayer_discriminator_forward, params=params))
    out = fwd(x)
    jax.block_until_ready(out)

    # spatial: 16 -s2-> 9 -s2-> 5 -s2-> 3 -s1-> 4 -s1-> 5 ; channels -> 1
    assert out.shape == (N, 1, 5, 5), out.shape
    assert out.dtype == jnp.float32
    print("KERNEL_OK")
</pallas_src>

<mosaic_0001>
module attributes {stable_mosaic.version = 11 : i64} {
  func.func @kernel(%arg0: i32, %arg1: memref<1x170x16xbf16, #tpu.memory_space<vmem>>, %arg2: memref<4x16x128xbf16, #tpu.memory_space<vmem>>, %arg3: memref<1x128xf32, #tpu.memory_space<vmem>>, %arg4: memref<1x128xf32, #tpu.memory_space<vmem>>, %arg5: memref<1x152x128xbf16, #tpu.memory_space<vmem>>) attributes {dimension_semantics = [#tpu.dimension_semantics<parallel>], iteration_bounds = array<i64: 2>, scalar_prefetch = 0 : i64, scratch_operands = 0 : i64, tpu.core_type = #tpu.core_type<tc>, window_params = [{transform_indices = @transform_0, window_bounds = array<i64: 1, 170, 16>}, {pipeline_mode = #tpu.pipeline_mode<synchronous>, transform_indices = @transform_1, window_bounds = array<i64: 4, 16, 128>}, {pipeline_mode = #tpu.pipeline_mode<synchronous>, transform_indices = @transform_2, window_bounds = array<i64: 1, 128>}, {pipeline_mode = #tpu.pipeline_mode<synchronous>, transform_indices = @transform_3, window_bounds = array<i64: 1, 128>}, {transform_indices = @transform_4, window_bounds = array<i64: 1, 152, 128>}]} {
    %c0 = arith.constant 0 : index
    %c0_0 = arith.constant 0 : index
    %c0_1 = arith.constant 0 : index
    %0 = vector.load %arg1[%c0, %c0_0, %c0_1] : memref<1x170x16xbf16, #tpu.memory_space<vmem>>, vector<1x152x16xbf16>
    %1 = vector.shape_cast %0 : vector<1x152x16xbf16> to vector<152x16xbf16>
    %c0_2 = arith.constant 0 : index
    %c0_3 = arith.constant 0 : index
    %c0_4 = arith.constant 0 : index
    %2 = vector.load %arg2[%c0_2, %c0_3, %c0_4] : memref<4x16x128xbf16, #tpu.memory_space<vmem>>, vector<1x16x128xbf16>
    %3 = vector.shape_cast %2 : vector<1x16x128xbf16> to vector<16x128xbf16>
    %cst = arith.constant dense<0.000000e+00> : vector<152x128xf32>
    %4 = tpu.matmul %1, %3, %cst {dimension_numbers = #tpu.dot_dimension_numbers<[1], [0], [0], [1], [0, 0, 1, 1], [], []>} : vector<152x16xbf16>, vector<16x128xbf16>, vector<152x128xf32> -> vector<152x128xf32>
    %c0_5 = arith.constant 0 : index
    %c1 = arith.constant 1 : index
    %c0_6 = arith.constant 0 : index
    %5 = vector.load %arg1[%c0_5, %c1, %c0_6] : memref<1x170x16xbf16, #tpu.memory_space<vmem>>, vector<1x152x16xbf16>
    %6 = vector.shape_cast %5 : vector<1x152x16xbf16> to vector<152x16xbf16>
    %c1_7 = arith.constant 1 : index
    %c0_8 = arith.constant 0 : index
    %c0_9 = arith.constant 0 : index
    %7 = vector.load %arg2[%c1_7, %c0_8, %c0_9] : memref<4x16x128xbf16, #tpu.memory_space<vmem>>, vector<1x16x128xbf16>
    %8 = vector.shape_cast %7 : vector<1x16x128xbf16> to vector<16x128xbf16>
    %cst_10 = arith.constant dense<0.000000e+00> : vector<152x128xf32>
    %9 = tpu.matmul %6, %8, %cst_10 {dimension_numbers = #tpu.dot_dimension_numbers<[1], [0], [0], [1], [0, 0, 1, 1], [], []>} : vector<152x16xbf16>, vector<16x128xbf16>, vector<152x128xf32> -> vector<152x128xf32>
    %10 = arith.addf %4, %9 : vector<152x128xf32>
    %c0_11 = arith.constant 0 : index
    %c17 = arith.constant 17 : index
    %c0_12 = arith.constant 0 : index
    %11 = vector.load %arg1[%c0_11, %c17, %c0_12] : memref<1x170x16xbf16, #tpu.memory_space<vmem>>, vector<1x152x16xbf16>
    %12 = vector.shape_cast %11 : vector<1x152x16xbf16> to vector<152x16xbf16>
    %c2 = arith.constant 2 : index
    %c0_13 = arith.constant 0 : index
    %c0_14 = arith.constant 0 : index
    %13 = vector.load %arg2[%c2, %c0_13, %c0_14] : memref<4x16x128xbf16, #tpu.memory_space<vmem>>, vector<1x16x128xbf16>
    %14 = vector.shape_cast %13 : vector<1x16x128xbf16> to vector<16x128xbf16>
    %cst_15 = arith.constant dense<0.000000e+00> : vector<152x128xf32>
    %15 = tpu.matmul %12, %14, %cst_15 {dimension_numbers = #tpu.dot_dimension_numbers<[1], [0], [0], [1], [0, 0, 1, 1], [], []>} : vector<152x16xbf16>, vector<16x128xbf16>, vector<152x128xf32> -> vector<152x128xf32>
    %16 = arith.addf %10, %15 : vector<152x128xf32>
    %c0_16 = arith.constant 0 : index
    %c18 = arith.constant 18 : index
    %c0_17 = arith.constant 0 : index
    %17 = vector.load %arg1[%c0_16, %c18, %c0_17] : memref<1x170x16xbf16, #tpu.memory_space<vmem>>, vector<1x152x16xbf16>
    %18 = vector.shape_cast %17 : vector<1x152x16xbf16> to vector<152x16xbf16>
    %c3 = arith.constant 3 : index
    %c0_18 = arith.constant 0 : index
    %c0_19 = arith.constant 0 : index
    %19 = vector.load %arg2[%c3, %c0_18, %c0_19] : memref<4x16x128xbf16, #tpu.memory_space<vmem>>, vector<1x16x128xbf16>
    %20 = vector.shape_cast %19 : vector<1x16x128xbf16> to vector<16x128xbf16>
    %cst_20 = arith.constant dense<0.000000e+00> : vector<152x128xf32>
    %21 = tpu.matmul %18, %20, %cst_20 {dimension_numbers = #tpu.dot_dimension_numbers<[1], [0], [0], [1], [0, 0, 1, 1], [], []>} : vector<152x16xbf16>, vector<16x128xbf16>, vector<152x128xf32> -> vector<152x128xf32>
    %22 = arith.addf %16, %21 : vector<152x128xf32>
    %c0_21 = arith.constant 0 : index
    %c0_22 = arith.constant 0 : index
    %23 = vector.load %arg3[%c0_21, %c0_22] : memref<1x128xf32, #tpu.memory_space<vmem>>, vector<1x128xf32>
    %24 = vector.broadcast %23 : vector<1x128xf32> to vector<152x128xf32>
    %25 = arith.mulf %22, %24 : vector<152x128xf32>
    %c0_23 = arith.constant 0 : index
    %c0_24 = arith.constant 0 : index
    %26 = vector.load %arg4[%c0_23, %c0_24] : memref<1x128xf32, #tpu.memory_space<vmem>>, vector<1x128xf32>
    %27 = vector.broadcast %26 : vector<1x128xf32> to vector<152x128xf32>
    %28 = arith.addf %25, %27 : vector<152x128xf32>
    %cst_25 = arith.constant 0.000000e+00 : f32
    %29 = vector.broadcast %cst_25 : f32 to vector<152x128xf32>
    %30 = arith.cmpf oge, %28, %29 : vector<152x128xf32>
    %cst_26 = arith.constant 2.000000e-01 : f32
    %31 = vector.broadcast %cst_26 : f32 to vector<152x128xf32>
    %32 = arith.mulf %31, %28 : vector<152x128xf32>
    %33 = arith.select %30, %28, %32 : vector<152x128xi1>, vector<152x128xf32>
    %34 = arith.truncf %33 : vector<152x128xf32> to vector<152x128xbf16>
    %c0_27 = arith.constant 0 : index
    %c0_28 = arith.constant 0 : index
    %c0_29 = arith.constant 0 : index
    %35 = vector.load %arg5[%c0_27, %c0_28, %c0_29] : memref<1x152x128xbf16, #tpu.memory_space<vmem>>, vector<1x152x128xbf16>
    %36 = vector.shape_cast %35 : vector<1x152x128xbf16> to vector<152x128xbf16>
    %37 = vector.shape_cast %34 : vector<152x128xbf16> to vector<1x152x128xbf16>
    tpu.vector_store %arg5[%c0_27, %c0_28, %c0_29], %37 {strides = array<i32>} : memref<1x152x128xbf16, #tpu.memory_space<vmem>>, vector<1x152x128xbf16>,
    return
  }
  func.func @transform_0(%arg0: i32) -> (i32, i32, i32) {
    %c0_i32 = arith.constant 0 : i32
    %c0_i32_0 = arith.constant 0 : i32
    %c0_i32_1 = arith.constant 0 : i32
    return %arg0, %c0_i32, %c0_i32_0 : i32, i32, i32
  }
  func.func @transform_1(%arg0: i32) -> (i32, i32, i32) {
    %c0_i32 = arith.constant 0 : i32
    %c0_i32_0 = arith.constant 0 : i32
    %c0_i32_1 = arith.constant 0 : i32
    %c0_i32_2 = arith.constant 0 : i32
    return %c0_i32, %c0_i32_0, %c0_i32_1 : i32, i32, i32
  }
  func.func @transform_2(%arg0: i32) -> (i32, i32) {
    %c0_i32 = arith.constant 0 : i32
    %c0_i32_0 = arith.constant 0 : i32
    %c0_i32_1 = arith.constant 0 : i32
    return %c0_i32, %c0_i32_0 : i32, i32
  }
  func.func @transform_3(%arg0: i32) -> (i32, i32) {
    %c0_i32 = arith.constant 0 : i32
    %c0_i32_0 = arith.constant 0 : i32
    %c0_i32_1 = arith.constant 0 : i32
    return %c0_i32, %c0_i32_0 : i32, i32
  }
  func.func @transform_4(%arg0: i32) -> (i32, i32, i32) {
    %c0_i32 = arith.constant 0 : i32
    %c0_i32_0 = arith.constant 0 : i32
    %c0_i32_1 = arith.constant 0 : i32
    return %arg0, %c0_i32, %c0_i32_0 : i32, i32, i32
  }
}

module attributes {stable_mosaic.version = 11 : i64} {
  func.func @kernel(%arg0: i32, %arg1: memref<1x54x512xbf16, #tpu.memory_space<vmem>>, %arg2: memref<4x512x128xbf16, #tpu.memory_space<vmem>>, %arg3: memref<1x128xf32, #tpu.memory_space<vmem>>, %arg4: memref<1x128xf32, #tpu.memory_space<vmem>>, %arg5: memref<1x44x128xbf16, #tpu.memory_space<vmem>>) attributes {dimension_semantics = [#tpu.dimension_semantics<parallel>], iteration_bounds = array<i64: 2>, scalar_prefetch = 0 : i64, scratch_operands = 0 : i64, tpu.core_type = #tpu.core_type<tc>, window_params = [{transform_indices = @transform_0, window_bounds = array<i64: 1, 54, 512>}, {pipeline_mode = #tpu.pipeline_mode<synchronous>, transform_indices = @transform_1, window_bounds = array<i64: 4, 512, 128>}, {pipeline_mode = #tpu.pipeline_mode<synchronous>, transform_indices = @transform_2, window_bounds = array<i64: 1, 128>}, {pipeline_mode = #tpu.pipeline_mode<synchronous>, transform_indices = @transform_3, window_bounds = array<i64: 1, 128>}, {transform_indices = @transform_4, window_bounds = array<i64: 1, 44, 128>}]} {
    %c0 = arith.constant 0 : index
    %c0_0 = arith.constant 0 : index
    %c0_1 = arith.constant 0 : index
    %0 = vector.load %arg1[%c0, %c0_0, %c0_1] : memref<1x54x512xbf16, #tpu.memory_space<vmem>>, vector<1x44x512xbf16>
    %1 = vector.shape_cast %0 : vector<1x44x512xbf16> to vector<44x512xbf16>
    %c0_2 = arith.constant 0 : index
    %c0_3 = arith.constant 0 : index
    %c0_4 = arith.constant 0 : index
    %2 = vector.load %arg2[%c0_2, %c0_3, %c0_4] : memref<4x512x128xbf16, #tpu.memory_space<vmem>>, vector<1x512x128xbf16>
    %3 = vector.shape_cast %2 : vector<1x512x128xbf16> to vector<512x128xbf16>
    %cst = arith.constant dense<0.000000e+00> : vector<44x128xf32>
    %4 = tpu.matmul %1, %3, %cst {dimension_numbers = #tpu.dot_dimension_numbers<[1], [0], [0], [1], [0, 0, 1, 1], [], []>} : vector<44x512xbf16>, vector<512x128xbf16>, vector<44x128xf32> -> vector<44x128xf32>
    %c0_5 = arith.constant 0 : index
    %c1 = arith.constant 1 : index
    %c0_6 = arith.constant 0 : index
    %5 = vector.load %arg1[%c0_5, %c1, %c0_6] : memref<1x54x512xbf16, #tpu.memory_space<vmem>>, vector<1x44x512xbf16>
    %6 = vector.shape_cast %5 : vector<1x44x512xbf16> to vector<44x512xbf16>
    %c1_7 = arith.constant 1 : index
    %c0_8 = arith.constant 0 : index
    %c0_9 = arith.constant 0 : index
    %7 = vector.load %arg2[%c1_7, %c0_8, %c0_9] : memref<4x512x128xbf16, #tpu.memory_space<vmem>>, vector<1x512x128xbf16>
    %8 = vector.shape_cast %7 : vector<1x512x128xbf16> to vector<512x128xbf16>
    %cst_10 = arith.constant dense<0.000000e+00> : vector<44x128xf32>
    %9 = tpu.matmul %6, %8, %cst_10 {dimension_numbers = #tpu.dot_dimension_numbers<[1], [0], [0], [1], [0, 0, 1, 1], [], []>} : vector<44x512xbf16>, vector<512x128xbf16>, vector<44x128xf32> -> vector<44x128xf32>
    %10 = arith.addf %4, %9 : vector<44x128xf32>
    %c0_11 = arith.constant 0 : index
    %c9 = arith.constant 9 : index
    %c0_12 = arith.constant 0 : index
    %11 = vector.load %arg1[%c0_11, %c9, %c0_12] : memref<1x54x512xbf16, #tpu.memory_space<vmem>>, vector<1x44x512xbf16>
    %12 = vector.shape_cast %11 : vector<1x44x512xbf16> to vector<44x512xbf16>
    %c2 = arith.constant 2 : index
    %c0_13 = arith.constant 0 : index
    %c0_14 = arith.constant 0 : index
    %13 = vector.load %arg2[%c2, %c0_13, %c0_14] : memref<4x512x128xbf16, #tpu.memory_space<vmem>>, vector<1x512x128xbf16>
    %14 = vector.shape_cast %13 : vector<1x512x128xbf16> to vector<512x128xbf16>
    %cst_15 = arith.constant dense<0.000000e+00> : vector<44x128xf32>
    %15 = tpu.matmul %12, %14, %cst_15 {dimension_numbers = #tpu.dot_dimension_numbers<[1], [0], [0], [1], [0, 0, 1, 1], [], []>} : vector<44x512xbf16>, vector<512x128xbf16>, vector<44x128xf32> -> vector<44x128xf32>
    %16 = arith.addf %10, %15 : vector<44x128xf32>
    %c0_16 = arith.constant 0 : index
    %c10 = arith.constant 10 : index
    %c0_17 = arith.constant 0 : index
    %17 = vector.load %arg1[%c0_16, %c10, %c0_17] : memref<1x54x512xbf16, #tpu.memory_space<vmem>>, vector<1x44x512xbf16>
    %18 = vector.shape_cast %17 : vector<1x44x512xbf16> to vector<44x512xbf16>
    %c3 = arith.constant 3 : index
    %c0_18 = arith.constant 0 : index
    %c0_19 = arith.constant 0 : index
    %19 = vector.load %arg2[%c3, %c0_18, %c0_19] : memref<4x512x128xbf16, #tpu.memory_space<vmem>>, vector<1x512x128xbf16>
    %20 = vector.shape_cast %19 : vector<1x512x128xbf16> to vector<512x128xbf16>
    %cst_20 = arith.constant dense<0.000000e+00> : vector<44x128xf32>
    %21 = tpu.matmul %18, %20, %cst_20 {dimension_numbers = #tpu.dot_dimension_numbers<[1], [0], [0], [1], [0, 0, 1, 1], [], []>} : vector<44x512xbf16>, vector<512x128xbf16>, vector<44x128xf32> -> vector<44x128xf32>
    %22 = arith.addf %16, %21 : vector<44x128xf32>
    %c0_21 = arith.constant 0 : index
    %c0_22 = arith.constant 0 : index
    %23 = vector.load %arg3[%c0_21, %c0_22] : memref<1x128xf32, #tpu.memory_space<vmem>>, vector<1x128xf32>
    %24 = vector.broadcast %23 : vector<1x128xf32> to vector<44x128xf32>
    %25 = arith.mulf %22, %24 : vector<44x128xf32>
    %c0_23 = arith.constant 0 : index
    %c0_24 = arith.constant 0 : index
    %26 = vector.load %arg4[%c0_23, %c0_24] : memref<1x128xf32, #tpu.memory_space<vmem>>, vector<1x128xf32>
    %27 = vector.broadcast %26 : vector<1x128xf32> to vector<44x128xf32>
    %28 = arith.addf %25, %27 : vector<44x128xf32>
    %cst_25 = arith.constant 0.000000e+00 : f32
    %29 = vector.broadcast %cst_25 : f32 to vector<44x128xf32>
    %30 = arith.cmpf oge, %28, %29 : vector<44x128xf32>
    %cst_26 = arith.constant 2.000000e-01 : f32
    %31 = vector.broadcast %cst_26 : f32 to vector<44x128xf32>
    %32 = arith.mulf %31, %28 : vector<44x128xf32>
    %33 = arith.select %30, %28, %32 : vector<44x128xi1>, vector<44x128xf32>
    %34 = arith.truncf %33 : vector<44x128xf32> to vector<44x128xbf16>
    %c0_27 = arith.constant 0 : index
    %c0_28 = arith.constant 0 : index
    %c0_29 = arith.constant 0 : index
    %35 = vector.load %arg5[%c0_27, %c0_28, %c0_29] : memref<1x44x128xbf16, #tpu.memory_space<vmem>>, vector<1x44x128xbf16>
    %36 = vector.shape_cast %35 : vector<1x44x128xbf16> to vector<44x128xbf16>
    %37 = vector.shape_cast %34 : vector<44x128xbf16> to vector<1x44x128xbf16>
    tpu.vector_store %arg5[%c0_27, %c0_28, %c0_29], %37 {strides = array<i32>} : memref<1x44x128xbf16, #tpu.memory_space<vmem>>, vector<1x44x128xbf16>,
    return
  }
  func.func @transform_0(%arg0: i32) -> (i32, i32, i32) {
    %c0_i32 = arith.constant 0 : i32
    %c0_i32_0 = arith.constant 0 : i32
    %c0_i32_1 = arith.constant 0 : i32
    return %arg0, %c0_i32, %c0_i32_0 : i32, i32, i32
  }
  func.func @transform_1(%arg0: i32) -> (i32, i32, i32) {
    %c0_i32 = arith.constant 0 : i32
    %c0_i32_0 = arith.constant 0 : i32
    %c0_i32_1 = arith.constant 0 : i32
    %c0_i32_2 = arith.constant 0 : i32
    return %c0_i32, %c0_i32_0, %c0_i32_1 : i32, i32, i32
  }
  func.func @transform_2(%arg0: i32) -> (i32, i32) {
    %c0_i32 = arith.constant 0 : i32
    %c0_i32_0 = arith.constant 0 : i32
    %c0_i32_1 = arith.constant 0 : i32
    return %c0_i32, %c0_i32_0 : i32, i32
  }
  func.func @transform_3(%arg0: i32) -> (i32, i32) {
    %c0_i32 = arith.constant 0 : i32
    %c0_i32_0 = arith.constant 0 : i32
    %c0_i32_1 = arith.constant 0 : i32
    return %c0_i32, %c0_i32_0 : i32, i32
  }
  func.func @transform_4(%arg0: i32) -> (i32, i32, i32) {
    %c0_i32 = arith.constant 0 : i32
    %c0_i32_0 = arith.constant 0 : i32
    %c0_i32_1 = arith.constant 0 : i32
    return %arg0, %c0_i32, %c0_i32_0 : i32, i32, i32
  }
}

module attributes {stable_mosaic.version = 11 : i64} {
  func.func @kernel(%arg0: i32, %arg1: memref<1x36x512xbf16, #tpu.memory_space<vmem>>, %arg2: memref<4x512x128xbf16, #tpu.memory_space<vmem>>, %arg3: memref<1x128xf32, #tpu.memory_space<vmem>>, %arg4: memref<1x128xf32, #tpu.memory_space<vmem>>, %arg5: memref<1x26x128xbf16, #tpu.memory_space<vmem>>) attributes {dimension_semantics = [#tpu.dimension_semantics<parallel>], iteration_bounds = array<i64: 2>, scalar_prefetch = 0 : i64, scratch_operands = 0 : i64, tpu.core_type = #tpu.core_type<tc>, window_params = [{transform_indices = @transform_0, window_bounds = array<i64: 1, 36, 512>}, {pipeline_mode = #tpu.pipeline_mode<synchronous>, transform_indices = @transform_1, window_bounds = array<i64: 4, 512, 128>}, {pipeline_mode = #tpu.pipeline_mode<synchronous>, transform_indices = @transform_2, window_bounds = array<i64: 1, 128>}, {pipeline_mode = #tpu.pipeline_mode<synchronous>, transform_indices = @transform_3, window_bounds = array<i64: 1, 128>}, {transform_indices = @transform_4, window_bounds = array<i64: 1, 26, 128>}]} {
    %c0 = arith.constant 0 : index
    %c0_0 = arith.constant 0 : index
    %c0_1 = arith.constant 0 : index
    %0 = vector.load %arg1[%c0, %c0_0, %c0_1] : memref<1x36x512xbf16, #tpu.memory_space<vmem>>, vector<1x26x512xbf16>
    %1 = vector.shape_cast %0 : vector<1x26x512xbf16> to vector<26x512xbf16>
    %c0_2 = arith.constant 0 : index
    %c0_3 = arith.constant 0 : index
    %c0_4 = arith.constant 0 : index
    %2 = vector.load %arg2[%c0_2, %c0_3, %c0_4] : memref<4x512x128xbf16, #tpu.memory_space<vmem>>, vector<1x512x128xbf16>
    %3 = vector.shape_cast %2 : vector<1x512x128xbf16> to vector<512x128xbf16>
    %cst = arith.constant dense<0.000000e+00> : vector<26x128xf32>
    %4 = tpu.matmul %1, %3, %cst {dimension_numbers = #tpu.dot_dimension_numbers<[1], [0], [0], [1], [0, 0, 1, 1], [], []>} : vector<26x512xbf16>, vector<512x128xbf16>, vector<26x128xf32> -> vector<26x128xf32>
    %c0_5 = arith.constant 0 : index
    %c1 = arith.constant 1 : index
    %c0_6 = arith.constant 0 : index
    %5 = vector.load %arg1[%c0_5, %c1, %c0_6] : memref<1x36x512xbf16, #tpu.memory_space<vmem>>, vector<1x26x512xbf16>
    %6 = vector.shape_cast %5 : vector<1x26x512xbf16> to vector<26x512xbf16>
    %c1_7 = arith.constant 1 : index
    %c0_8 = arith.constant 0 : index
    %c0_9 = arith.constant 0 : index
    %7 = vector.load %arg2[%c1_7, %c0_8, %c0_9] : memref<4x512x128xbf16, #tpu.memory_space<vmem>>, vector<1x512x128xbf16>
    %8 = vector.shape_cast %7 : vector<1x512x128xbf16> to vector<512x128xbf16>
    %cst_10 = arith.constant dense<0.000000e+00> : vector<26x128xf32>
    %9 = tpu.matmul %6, %8, %cst_10 {dimension_numbers = #tpu.dot_dimension_numbers<[1], [0], [0], [1], [0, 0, 1, 1], [], []>} : vector<26x512xbf16>, vector<512x128xbf16>, vector<26x128xf32> -> vector<26x128xf32>
    %10 = arith.addf %4, %9 : vector<26x128xf32>
    %c0_11 = arith.constant 0 : index
    %c9 = arith.constant 9 : index
    %c0_12 = arith.constant 0 : index
    %11 = vector.load %arg1[%c0_11, %c9, %c0_12] : memref<1x36x512xbf16, #tpu.memory_space<vmem>>, vector<1x26x512xbf16>
    %12 = vector.shape_cast %11 : vector<1x26x512xbf16> to vector<26x512xbf16>
    %c2 = arith.constant 2 : index
    %c0_13 = arith.constant 0 : index
    %c0_14 = arith.constant 0 : index
    %13 = vector.load %arg2[%c2, %c0_13, %c0_14] : memref<4x512x128xbf16, #tpu.memory_space<vmem>>, vector<1x512x128xbf16>
    %14 = vector.shape_cast %13 : vector<1x512x128xbf16> to vector<512x128xbf16>
    %cst_15 = arith.constant dense<0.000000e+00> : vector<26x128xf32>
    %15 = tpu.matmul %12, %14, %cst_15 {dimension_numbers = #tpu.dot_dimension_numbers<[1], [0], [0], [1], [0, 0, 1, 1], [], []>} : vector<26x512xbf16>, vector<512x128xbf16>, vector<26x128xf32> -> vector<26x128xf32>
    %16 = arith.addf %10, %15 : vector<26x128xf32>
    %c0_16 = arith.constant 0 : index
    %c10 = arith.constant 10 : index
    %c0_17 = arith.constant 0 : index
    %17 = vector.load %arg1[%c0_16, %c10, %c0_17] : memref<1x36x512xbf16, #tpu.memory_space<vmem>>, vector<1x26x512xbf16>
    %18 = vector.shape_cast %17 : vector<1x26x512xbf16> to vector<26x512xbf16>
    %c3 = arith.constant 3 : index
    %c0_18 = arith.constant 0 : index
    %c0_19 = arith.constant 0 : index
    %19 = vector.load %arg2[%c3, %c0_18, %c0_19] : memref<4x512x128xbf16, #tpu.memory_space<vmem>>, vector<1x512x128xbf16>
    %20 = vector.shape_cast %19 : vector<1x512x128xbf16> to vector<512x128xbf16>
    %cst_20 = arith.constant dense<0.000000e+00> : vector<26x128xf32>
    %21 = tpu.matmul %18, %20, %cst_20 {dimension_numbers = #tpu.dot_dimension_numbers<[1], [0], [0], [1], [0, 0, 1, 1], [], []>} : vector<26x512xbf16>, vector<512x128xbf16>, vector<26x128xf32> -> vector<26x128xf32>
    %22 = arith.addf %16, %21 : vector<26x128xf32>
    %c0_21 = arith.constant 0 : index
    %c0_22 = arith.constant 0 : index
    %23 = vector.load %arg3[%c0_21, %c0_22] : memref<1x128xf32, #tpu.memory_space<vmem>>, vector<1x128xf32>
    %24 = vector.broadcast %23 : vector<1x128xf32> to vector<26x128xf32>
    %25 = arith.mulf %22, %24 : vector<26x128xf32>
    %c0_23 = arith.constant 0 : index
    %c0_24 = arith.constant 0 : index
    %26 = vector.load %arg4[%c0_23, %c0_24] : memref<1x128xf32, #tpu.memory_space<vmem>>, vector<1x128xf32>
    %27 = vector.broadcast %26 : vector<1x128xf32> to vector<26x128xf32>
    %28 = arith.addf %25, %27 : vector<26x128xf32>
    %cst_25 = arith.constant 0.000000e+00 : f32
    %29 = vector.broadcast %cst_25 : f32 to vector<26x128xf32>
    %30 = arith.cmpf oge, %28, %29 : vector<26x128xf32>
    %cst_26 = arith.constant 2.000000e-01 : f32
    %31 = vector.broadcast %cst_26 : f32 to vector<26x128xf32>
    %32 = arith.mulf %31, %28 : vector<26x128xf32>
    %33 = arith.select %30, %28, %32 : vector<26x128xi1>, vector<26x128xf32>
    %34 = arith.truncf %33 : vector<26x128xf32> to vector<26x128xbf16>
    %c0_27 = arith.constant 0 : index
    %c0_28 = arith.constant 0 : index
    %c0_29 = arith.constant 0 : index
    %35 = vector.load %arg5[%c0_27, %c0_28, %c0_29] : memref<1x26x128xbf16, #tpu.memory_space<vmem>>, vector<1x26x128xbf16>
    %36 = vector.shape_cast %35 : vector<1x26x128xbf16> to vector<26x128xbf16>
    %37 = vector.shape_cast %34 : vector<26x128xbf16> to vector<1x26x128xbf16>
    tpu.vector_store %arg5[%c0_27, %c0_28, %c0_29], %37 {strides = array<i32>} : memref<1x26x128xbf16, #tpu.memory_space<vmem>>, vector<1x26x128xbf16>,
    return
  }
  func.func @transform_0(%arg0: i32) -> (i32, i32, i32) {
    %c0_i32 = arith.constant 0 : i32
    %c0_i32_0 = arith.constant 0 : i32
    %c0_i32_1 = arith.constant 0 : i32
    return %arg0, %c0_i32, %c0_i32_0 : i32, i32, i32
  }
  func.func @transform_1(%arg0: i32) -> (i32, i32, i32) {
    %c0_i32 = arith.constant 0 : i32
    %c0_i32_0 = arith.constant 0 : i32
    %c0_i32_1 = arith.constant 0 : i32
    %c0_i32_2 = arith.constant 0 : i32
    return %c0_i32, %c0_i32_0, %c0_i32_1 : i32, i32, i32
  }
  func.func @transform_2(%arg0: i32) -> (i32, i32) {
    %c0_i32 = arith.constant 0 : i32
    %c0_i32_0 = arith.constant 0 : i32
    %c0_i32_1 = arith.constant 0 : i32
    return %c0_i32, %c0_i32_0 : i32, i32
  }
  func.func @transform_3(%arg0: i32) -> (i32, i32) {
    %c0_i32 = arith.constant 0 : i32
    %c0_i32_0 = arith.constant 0 : i32
    %c0_i32_1 = arith.constant 0 : i32
    return %c0_i32, %c0_i32_0 : i32, i32
  }
  func.func @transform_4(%arg0: i32) -> (i32, i32, i32) {
    %c0_i32 = arith.constant 0 : i32
    %c0_i32_0 = arith.constant 0 : i32
    %c0_i32_1 = arith.constant 0 : i32
    return %arg0, %c0_i32, %c0_i32_0 : i32, i32, i32
  }
}

module attributes {stable_mosaic.version = 11 : i64} {
  func.func @kernel(%arg0: i32, %arg1: memref<1x77x128xbf16, #tpu.memory_space<vmem>>, %arg2: memref<16x128x128xbf16, #tpu.memory_space<vmem>>, %arg3: memref<1x128xf32, #tpu.memory_space<vmem>>, %arg4: memref<1x128xf32, #tpu.memory_space<vmem>>, %arg5: memref<1x41x128xbf16, #tpu.memory_space<vmem>>) attributes {dimension_semantics = [#tpu.dimension_semantics<parallel>], iteration_bounds = array<i64: 2>, scalar_prefetch = 0 : i64, scratch_operands = 0 : i64, tpu.core_type = #tpu.core_type<tc>, window_params = [{transform_indices = @transform_0, window_bounds = array<i64: 1, 77, 128>}, {pipeline_mode = #tpu.pipeline_mode<synchronous>, transform_indices = @transform_1, window_bounds = array<i64: 16, 128, 128>}, {pipeline_mode = #tpu.pipeline_mode<synchronous>, transform_indices = @transform_2, window_bounds = array<i64: 1, 128>}, {pipeline_mode = #tpu.pipeline_mode<synchronous>, transform_indices = @transform_3, window_bounds = array<i64: 1, 128>}, {transform_indices = @transform_4, window_bounds = array<i64: 1, 41, 128>}]} {
    %c0 = arith.constant 0 : index
    %c0_0 = arith.constant 0 : index
    %c0_1 = arith.constant 0 : index
    %0 = vector.load %arg1[%c0, %c0_0, %c0_1] : memref<1x77x128xbf16, #tpu.memory_space<vmem>>, vector<1x41x128xbf16>
    %1 = vector.shape_cast %0 : vector<1x41x128xbf16> to vector<41x128xbf16>
    %c0_2 = arith.constant 0 : index
    %c0_3 = arith.constant 0 : index
    %c0_4 = arith.constant 0 : index
    %2 = vector.load %arg2[%c0_2, %c0_3, %c0_4] : memref<16x128x128xbf16, #tpu.memory_space<vmem>>, vector<1x128x128xbf16>
    %3 = vector.shape_cast %2 : vector<1x128x128xbf16> to vector<128x128xbf16>
    %cst = arith.constant dense<0.000000e+00> : vector<41x128xf32>
    %4 = tpu.matmul %1, %3, %cst {dimension_numbers = #tpu.dot_dimension_numbers<[1], [0], [0], [1], [0, 0, 1, 1], [], []>} : vector<41x128xbf16>, vector<128x128xbf16>, vector<41x128xf32> -> vector<41x128xf32>
    %c0_5 = arith.constant 0 : index
    %c1 = arith.constant 1 : index
    %c0_6 = arith.constant 0 : index
    %5 = vector.load %arg1[%c0_5, %c1, %c0_6] : memref<1x77x128xbf16, #tpu.memory_space<vmem>>, vector<1x41x128xbf16>
    %6 = vector.shape_cast %5 : vector<1x41x128xbf16> to vector<41x128xbf16>
    %c1_7 = arith.constant 1 : index
    %c0_8 = arith.constant 0 : index
    %c0_9 = arith.constant 0 : index
    %7 = vector.load %arg2[%c1_7, %c0_8, %c0_9] : memref<16x128x128xbf16, #tpu.memory_space<vmem>>, vector<1x128x128xbf16>
    %8 = vector.shape_cast %7 : vector<1x128x128xbf16> to vector<128x128xbf16>
    %cst_10 = arith.constant dense<0.000000e+00> : vector<41x128xf32>
    %9 = tpu.matmul %6, %8, %cst_10 {dimension_numbers = #tpu.dot_dimension_numbers<[1], [0], [0], [1], [0, 0, 1, 1], [], []>} : vector<41x128xbf16>, vector<128x128xbf16>, vector<41x128xf32> -> vector<41x128xf32>
    %10 = arith.addf %4, %9 : vector<41x128xf32>
    %c0_11 = arith.constant 0 : index
    %c2 = arith.constant 2 : index
    %c0_12 = arith.constant 0 : index
    %11 = vector.load %arg1[%c0_11, %c2, %c0_12] : memref<1x77x128xbf16, #tpu.memory_space<vmem>>, vector<1x41x128xbf16>
    %12 = vector.shape_cast %11 : vector<1x41x128xbf16> to vector<41x128xbf16>
    %c2_13 = arith.constant 2 : index
    %c0_14 = arith.constant 0 : index
    %c0_15 = arith.constant 0 : index
    %13 = vector.load %arg2[%c2_13, %c0_14, %c0_15] : memref<16x128x128xbf16, #tpu.memory_space<vmem>>, vector<1x128x128xbf16>
    %14 = vector.shape_cast %13 : vector<1x128x128xbf16> to vector<128x128xbf16>
    %cst_16 = arith.constant dense<0.000000e+00> : vector<41x128xf32>
    %15 = tpu.matmul %12, %14, %cst_16 {dimension_numbers = #tpu.dot_dimension_numbers<[1], [0], [0], [1], [0, 0, 1, 1], [], []>} : vector<41x128xbf16>, vector<128x128xbf16>, vector<41x128xf32> -> vector<41x128xf32>
    %16 = arith.addf %10, %15 : vector<41x128xf32>
    %c0_17 = arith.constant 0 : index
    %c3 = arith.constant 3 : index
    %c0_18 = arith.constant 0 : index
    %17 = vector.load %arg1[%c0_17, %c3, %c0_18] : memref<1x77x128xbf16, #tpu.memory_space<vmem>>, vector<1x41x128xbf16>
    %18 = vector.shape_cast %17 : vector<1x41x128xbf16> to vector<41x128xbf16>
    %c3_19 = arith.constant 3 : index
    %c0_20 = arith.constant 0 : index
    %c0_21 = arith.constant 0 : index
    %19 = vector.load %arg2[%c3_19, %c0_20, %c0_21] : memref<16x128x128xbf16, #tpu.memory_space<vmem>>, vector<1x128x128xbf16>
    %20 = vector.shape_cast %19 : vector<1x128x128xbf16> to vector<128x128xbf16>
    %cst_22 = arith.constant dense<0.000000e+00> : vector<41x128xf32>
    %21 = tpu.matmul %18, %20, %cst_22 {dimension_numbers = #tpu.dot_dimension_numbers<[1], [0], [0], [1], [0, 0, 1, 1], [], []>} : vector<41x128xbf16>, vector<128x128xbf16>, vector<41x128xf32> -> vector<41x128xf32>
    %22 = arith.addf %16, %21 : vector<41x128xf32>
    %c0_23 = arith.constant 0 : index
    %c11 = arith.constant 11 : index
    %c0_24 = arith.constant 0 : index
    %23 = vector.load %arg1[%c0_23, %c11, %c0_24] : memref<1x77x128xbf16, #tpu.memory_space<vmem>>, vector<1x41x128xbf16>
    %24 = vector.shape_cast %23 : vector<1x41x128xbf16> to vector<41x128xbf16>
    %c4 = arith.constant 4 : index
    %c0_25 = arith.constant 0 : index
    %c0_26 = arith.constant 0 : index
    %25 = vector.load %arg2[%c4, %c0_25, %c0_26] : memref<16x128x128xbf16, #tpu.memory_space<vmem>>, vector<1x128x128xbf16>
    %26 = vector.shape_cast %25 : vector<1x128x128xbf16> to vector<128x128xbf16>
    %cst_27 = arith.constant dense<0.000000e+00> : vector<41x128xf32>
    %27 = tpu.matmul %24, %26, %cst_27 {dimension_numbers = #tpu.dot_dimension_numbers<[1], [0], [0], [1], [0, 0, 1, 1], [], []>} : vector<41x128xbf16>, vector<128x128xbf16>, vector<41x128xf32> -> vector<41x128xf32>
    %28 = arith.addf %22, %27 : vector<41x128xf32>
    %c0_28 = arith.constant 0 : index
    %c12 = arith.constant 12 : index
    %c0_29 = arith.constant 0 : index
    %29 = vector.load %arg1[%c0_28, %c12, %c0_29] : memref<1x77x128xbf16, #tpu.memory_space<vmem>>, vector<1x41x128xbf16>
    %30 = vector.shape_cast %29 : vector<1x41x128xbf16> to vector<41x128xbf16>
    %c5 = arith.constant 5 : index
    %c0_30 = arith.constant 0 : index
    %c0_31 = arith.constant 0 : index
    %31 = vector.load %arg2[%c5, %c0_30, %c0_31] : memref<16x128x128xbf16, #tpu.memory_space<vmem>>, vector<1x128x128xbf16>
    %32 = vector.shape_cast %31 : vector<1x128x128xbf16> to vector<128x128xbf16>
    %cst_32 = arith.constant dense<0.000000e+00> : vector<41x128xf32>
    %33 = tpu.matmul %30, %32, %cst_32 {dimension_numbers = #tpu.dot_dimension_numbers<[1], [0], [0], [1], [0, 0, 1, 1], [], []>} : vector<41x128xbf16>, vector<128x128xbf16>, vector<41x128xf32> -> vector<41x128xf32>
    %34 = arith.addf %28, %33 : vector<41x128xf32>
    %c0_33 = arith.constant 0 : index
    %c13 = arith.constant 13 : index
    %c0_34 = arith.constant 0 : index
    %35 = vector.load %arg1[%c0_33, %c13, %c0_34] : memref<1x77x128xbf16, #tpu.memory_space<vmem>>, vector<1x41x128xbf16>
    %36 = vector.shape_cast %35 : vector<1x41x128xbf16> to vector<41x128xbf16>
    %c6 = arith.constant 6 : index
    %c0_35 = arith.constant 0 : index
    %c0_36 = arith.constant 0 : index
    %37 = vector.load %arg2[%c6, %c0_35, %c0_36] : memref<16x128x128xbf16, #tpu.memory_space<vmem>>, vector<1x128x128xbf16>
    %38 = vector.shape_cast %37 : vector<1x128x128xbf16> to vector<128x128xbf16>
    %cst_37 = arith.constant dense<0.000000e+00> : vector<41x128xf32>
    %39 = tpu.matmul %36, %38, %cst_37 {dimension_numbers = #tpu.dot_dimension_numbers<[1], [0], [0], [1], [0, 0, 1, 1], [], []>} : vector<41x128xbf16>, vector<128x128xbf16>, vector<41x128xf32> -> vector<41x128xf32>
    %40 = arith.addf %34, %39 : vector<41x128xf32>
    %c0_38 = arith.constant 0 : index
    %c14 = arith.constant 14 : index
    %c0_39 = arith.constant 0 : index
    %41 = vector.load %arg1[%c0_38, %c14, %c0_39] : memref<1x77x128xbf16, #tpu.memory_space<vmem>>, vector<1x41x128xbf16>
    %42 = vector.shape_cast %41 : vector<1x41x128xbf16> to vector<41x128xbf16>
    %c7 = arith.constant 7 : index
    %c0_40 = arith.constant 0 : index
    %c0_41 = arith.constant 0 : index
    %43 = vector.load %arg2[%c7, %c0_40, %c0_41] : memref<16x128x128xbf16, #tpu.memory_space<vmem>>, vector<1x128x128xbf16>
    %44 = vector.shape_cast %43 : vector<1x128x128xbf16> to vector<128x128xbf16>
    %cst_42 = arith.constant dense<0.000000e+00> : vector<41x128xf32>
    %45 = tpu.matmul %42, %44, %cst_42 {dimension_numbers = #tpu.dot_dimension_numbers<[1], [0], [0], [1], [0, 0, 1, 1], [], []>} : vector<41x128xbf16>, vector<128x128xbf16>, vector<41x128xf32> -> vector<41x128xf32>
    %46 = arith.addf %40, %45 : vector<41x128xf32>
    %c0_43 = arith.constant 0 : index
    %c22 = arith.constant 22 : index
    %c0_44 = arith.constant 0 : index
    %47 = vector.load %arg1[%c0_43, %c22, %c0_44] : memref<1x77x128xbf16, #tpu.memory_space<vmem>>, vector<1x41x128xbf16>
    %48 = vector.shape_cast %47 : vector<1x41x128xbf16> to vector<41x128xbf16>
    %c8 = arith.constant 8 : index
    %c0_45 = arith.constant 0 : index
    %c0_46 = arith.constant 0 : index
    %49 = vector.load %arg2[%c8, %c0_45, %c0_46] : memref<16x128x128xbf16, #tpu.memory_space<vmem>>, vector<1x128x128xbf16>
    %50 = vector.shape_cast %49 : vector<1x128x128xbf16> to vector<128x128xbf16>
    %cst_47 = arith.constant dense<0.000000e+00> : vector<41x128xf32>
    %51 = tpu.matmul %48, %50, %cst_47 {dimension_numbers = #tpu.dot_dimension_numbers<[1], [0], [0], [1], [0, 0, 1, 1], [], []>} : vector<41x128xbf16>, vector<128x128xbf16>, vector<41x128xf32> -> vector<41x128xf32>
    %52 = arith.addf %46, %51 : vector<41x128xf32>
    %c0_48 = arith.constant 0 : index
    %c23 = arith.constant 23 : index
    %c0_49 = arith.constant 0 : index
    %53 = vector.load %arg1[%c0_48, %c23, %c0_49] : memref<1x77x128xbf16, #tpu.memory_space<vmem>>, vector<1x41x128xbf16>
    %54 = vector.shape_cast %53 : vector<1x41x128xbf16> to vector<41x128xbf16>
    %c9 = arith.constant 9 : index
    %c0_50 = arith.constant 0 : index
    %c0_51 = arith.constant 0 : index
    %55 = vector.load %arg2[%c9, %c0_50, %c0_51] : memref<16x128x128xbf16, #tpu.memory_space<vmem>>, vector<1x128x128xbf16>
    %56 = vector.shape_cast %55 : vector<1x128x128xbf16> to vector<128x128xbf16>
    %cst_52 = arith.constant dense<0.000000e+00> : vector<41x128xf32>
    %57 = tpu.matmul %54, %56, %cst_52 {dimension_numbers = #tpu.dot_dimension_numbers<[1], [0], [0], [1], [0, 0, 1, 1], [], []>} : vector<41x128xbf16>, vector<128x128xbf16>, vector<41x128xf32> -> vector<41x128xf32>
    %58 = arith.addf %52, %57 : vector<41x128xf32>
    %c0_53 = arith.constant 0 : index
    %c24 = arith.constant 24 : index
    %c0_54 = arith.constant 0 : index
    %59 = vector.load %arg1[%c0_53, %c24, %c0_54] : memref<1x77x128xbf16, #tpu.memory_space<vmem>>, vector<1x41x128xbf16>
    %60 = vector.shape_cast %59 : vector<1x41x128xbf16> to vector<41x128xbf16>
    %c10 = arith.constant 10 : index
    %c0_55 = arith.constant 0 : index
    %c0_56 = arith.constant 0 : index
    %61 = vector.load %arg2[%c10, %c0_55, %c0_56] : memref<16x128x128xbf16, #tpu.memory_space<vmem>>, vector<1x128x128xbf16>
    %62 = vector.shape_cast %61 : vector<1x128x128xbf16> to vector<128x128xbf16>
    %cst_57 = arith.constant dense<0.000000e+00> : vector<41x128xf32>
    %63 = tpu.matmul %60, %62, %cst_57 {dimension_numbers = #tpu.dot_dimension_numbers<[1], [0], [0], [1], [0, 0, 1, 1], [], []>} : vector<41x128xbf16>, vector<128x128xbf16>, vector<41x128xf32> -> vector<41x128xf32>
    %64 = arith.addf %58, %63 : vector<41x128xf32>
    %c0_58 = arith.constant 0 : index
    %c25 = arith.constant 25 : index
    %c0_59 = arith.constant 0 : index
    %65 = vector.load %arg1[%c0_58, %c25, %c0_59] : memref<1x77x128xbf16, #tpu.memory_space<vmem>>, vector<1x41x128xbf16>
    %66 = vector.shape_cast %65 : vector<1x41x128xbf16> to vector<41x128xbf16>
    %c11_60 = arith.constant 11 : index
    %c0_61 = arith.constant 0 : index
    %c0_62 = arith.constant 0 : index
    %67 = vector.load %arg2[%c11_60, %c0_61, %c0_62] : memref<16x128x128xbf16, #tpu.memory_space<vmem>>, vector<1x128x128xbf16>
    %68 = vector.shape_cast %67 : vector<1x128x128xbf16> to vector<128x128xbf16>
    %cst_63 = arith.constant dense<0.000000e+00> : vector<41x128xf32>
    %69 = tpu.matmul %66, %68, %cst_63 {dimension_numbers = #tpu.dot_dimension_numbers<[1], [0], [0], [1], [0, 0, 1, 1], [], []>} : vector<41x128xbf16>, vector<128x128xbf16>, vector<41x128xf32> -> vector<41x128xf32>
    %70 = arith.addf %64, %69 : vector<41x128xf32>
    %c0_64 = arith.constant 0 : index
    %c33 = arith.constant 33 : index
    %c0_65 = arith.constant 0 : index
    %71 = vector.load %arg1[%c0_64, %c33, %c0_65] : memref<1x77x128xbf16, #tpu.memory_space<vmem>>, vector<1x41x128xbf16>
    %72 = vector.shape_cast %71 : vector<1x41x128xbf16> to vector<41x128xbf16>
    %c12_66 = arith.constant 12 : index
    %c0_67 = arith.constant 0 : index
    %c0_68 = arith.constant 0 : index
    %73 = vector.load %arg2[%c12_66, %c0_67, %c0_68] : memref<16x128x128xbf16, #tpu.memory_space<vmem>>, vector<1x128x128xbf16>
    %74 = vector.shape_cast %73 : vector<1x128x128xbf16> to vector<128x128xbf16>
    %cst_69 = arith.constant dense<0.000000e+00> : vector<41x128xf32>
    %75 = tpu.matmul %72, %74, %cst_69 {dimension_numbers = #tpu.dot_dimension_numbers<[1], [0], [0], [1], [0, 0, 1, 1], [], []>} : vector<41x128xbf16>, vector<128x128xbf16>, vector<41x128xf32> -> vector<41x128xf32>
    %76 = arith.addf %70, %75 : vector<41x128xf32>
    %c0_70 = arith.constant 0 : index
    %c34 = arith.constant 34 : index
    %c0_71 = arith.constant 0 : index
    %77 = vector.load %arg1[%c0_70, %c34, %c0_71] : memref<1x77x128xbf16, #tpu.memory_space<vmem>>, vector<1x41x128xbf16>
    %78 = vector.shape_cast %77 : vector<1x41x128xbf16> to vector<41x128xbf16>
    %c13_72 = arith.constant 13 : index
    %c0_73 = arith.constant 0 : index
    %c0_74 = arith.constant 0 : index
    %79 = vector.load %arg2[%c13_72, %c0_73, %c0_74] : memref<16x128x128xbf16, #tpu.memory_space<vmem>>, vector<1x128x128xbf16>
    %80 = vector.shape_cast %79 : vector<1x128x128xbf16> to vector<128x128xbf16>
    %cst_75 = arith.constant dense<0.000000e+00> : vector<41x128xf32>
    %81 = tpu.matmul %78, %80, %cst_75 {dimension_numbers = #tpu.dot_dimension_numbers<[1], [0], [0], [1], [0, 0, 1, 1], [], []>} : vector<41x128xbf16>, vector<128x128xbf16>, vector<41x128xf32> -> vector<41x128xf32>
    %82 = arith.addf %76, %81 : vector<41x128xf32>
    %c0_76 = arith.constant 0 : index
    %c35 = arith.constant 35 : index
    %c0_77 = arith.constant 0 : index
    %83 = vector.load %arg1[%c0_76, %c35, %c0_77] : memref<1x77x128xbf16, #tpu.memory_space<vmem>>, vector<1x41x128xbf16>
    %84 = vector.shape_cast %83 : vector<1x41x128xbf16> to vector<41x128xbf16>
    %c14_78 = arith.constant 14 : index
    %c0_79 = arith.constant 0 : index
    %c0_80 = arith.constant 0 : index
    %85 = vector.load %arg2[%c14_78, %c0_79, %c0_80] : memref<16x128x128xbf16, #tpu.memory_space<vmem>>, vector<1x128x128xbf16>
    %86 = vector.shape_cast %85 : vector<1x128x128xbf16> to vector<128x128xbf16>
    %cst_81 = arith.constant dense<0.000000e+00> : vector<41x128xf32>
    %87 = tpu.matmul %84, %86, %cst_81 {dimension_numbers = #tpu.dot_dimension_numbers<[1], [0], [0], [1], [0, 0, 1, 1], [], []>} : vector<41x128xbf16>, vector<128x128xbf16>, vector<41x128xf32> -> vector<41x128xf32>
    %88 = arith.addf %82, %87 : vector<41x128xf32>
    %c0_82 = arith.constant 0 : index
    %c36 = arith.constant 36 : index
    %c0_83 = arith.constant 0 : index
    %89 = vector.load %arg1[%c0_82, %c36, %c0_83] : memref<1x77x128xbf16, #tpu.memory_space<vmem>>, vector<1x41x128xbf16>
    %90 = vector.shape_cast %89 : vector<1x41x128xbf16> to vector<41x128xbf16>
    %c15 = arith.constant 15 : index
    %c0_84 = arith.constant 0 : index
    %c0_85 = arith.constant 0 : index
    %91 = vector.load %arg2[%c15, %c0_84, %c0_85] : memref<16x128x128xbf16, #tpu.memory_space<vmem>>, vector<1x128x128xbf16>
    %92 = vector.shape_cast %91 : vector<1x128x128xbf16> to vector<128x128xbf16>
    %cst_86 = arith.constant dense<0.000000e+00> : vector<41x128xf32>
    %93 = tpu.matmul %90, %92, %cst_86 {dimension_numbers = #tpu.dot_dimension_numbers<[1], [0], [0], [1], [0, 0, 1, 1], [], []>} : vector<41x128xbf16>, vector<128x128xbf16>, vector<41x128xf32> -> vector<41x128xf32>
    %94 = arith.addf %88, %93 : vector<41x128xf32>
    %c0_87 = arith.constant 0 : index
    %c0_88 = arith.constant 0 : index
    %95 = vector.load %arg3[%c0_87, %c0_88] : memref<1x128xf32, #tpu.memory_space<vmem>>, vector<1x128xf32>
    %96 = vector.broadcast %95 : vector<1x128xf32> to vector<41x128xf32>
    %97 = arith.mulf %94, %96 : vector<41x128xf32>
    %c0_89 = arith.constant 0 : index
    %c0_90 = arith.constant 0 : index
    %98 = vector.load %arg4[%c0_89, %c0_90] : memref<1x128xf32, #tpu.memory_space<vmem>>, vector<1x128xf32>
    %99 = vector.broadcast %98 : vector<1x128xf32> to vector<41x128xf32>
    %100 = arith.addf %97, %99 : vector<41x128xf32>
    %cst_91 = arith.constant 0.000000e+00 : f32
    %101 = vector.broadcast %cst_91 : f32 to vector<41x128xf32>
    %102 = arith.cmpf oge, %100, %101 : vector<41x128xf32>
    %cst_92 = arith.constant 2.000000e-01 : f32
    %103 = vector.broadcast %cst_92 : f32 to vector<41x128xf32>
    %104 = arith.mulf %103, %100 : vector<41x128xf32>
    %105 = arith.select %102, %100, %104 : vector<41x128xi1>, vector<41x128xf32>
    %106 = arith.truncf %105 : vector<41x128xf32> to vector<41x128xbf16>
    %c0_93 = arith.constant 0 : index
    %c0_94 = arith.constant 0 : index
    %c0_95 = arith.constant 0 : index
    %107 = vector.load %arg5[%c0_93, %c0_94, %c0_95] : memref<1x41x128xbf16, #tpu.memory_space<vmem>>, vector<1x41x128xbf16>
    %108 = vector.shape_cast %107 : vector<1x41x128xbf16> to vector<41x128xbf16>
    %109 = vector.shape_cast %106 : vector<41x128xbf16> to vector<1x41x128xbf16>
    tpu.vector_store %arg5[%c0_93, %c0_94, %c0_95], %109 {strides = array<i32>} : memref<1x41x128xbf16, #tpu.memory_space<vmem>>, vector<1x41x128xbf16>,
    return
  }
  func.func @transform_0(%arg0: i32) -> (i32, i32, i32) {
    %c0_i32 = arith.constant 0 : i32
    %c0_i32_0 = arith.constant 0 : i32
    %c0_i32_1 = arith.constant 0 : i32
    return %arg0, %c0_i32, %c0_i32_0 : i32, i32, i32
  }
  func.func @transform_1(%arg0: i32) -> (i32, i32, i32) {
    %c0_i32 = arith.constant 0 : i32
    %c0_i32_0 = arith.constant 0 : i32
    %c0_i32_1 = arith.constant 0 : i32
    %c0_i32_2 = arith.constant 0 : i32
    return %c0_i32, %c0_i32_0, %c0_i32_1 : i32, i32, i32
  }
  func.func @transform_2(%arg0: i32) -> (i32, i32) {
    %c0_i32 = arith.constant 0 : i32
    %c0_i32_0 = arith.constant 0 : i32
    %c0_i32_1 = arith.constant 0 : i32
    return %c0_i32, %c0_i32_0 : i32, i32
  }
  func.func @transform_3(%arg0: i32) -> (i32, i32) {
    %c0_i32 = arith.constant 0 : i32
    %c0_i32_0 = arith.constant 0 : i32
    %c0_i32_1 = arith.constant 0 : i32
    return %c0_i32, %c0_i32_0 : i32, i32
  }
  func.func @transform_4(%arg0: i32) -> (i32, i32, i32) {
    %c0_i32 = arith.constant 0 : i32
    %c0_i32_0 = arith.constant 0 : i32
    %c0_i32_1 = arith.constant 0 : i32
    return %arg0, %c0_i32, %c0_i32_0 : i32, i32, i32
  }
}

module attributes {stable_mosaic.version = 11 : i64} {
  func.func @kernel(%arg0: i32, %arg1: memref<1x88x128xbf16, #tpu.memory_space<vmem>>, %arg2: memref<16x128x128xbf16, #tpu.memory_space<vmem>>, %arg3: memref<1x128xf32, #tpu.memory_space<vmem>>, %arg4: memref<1x128xf32, #tpu.memory_space<vmem>>, %arg5: memref<1x52x128xf32, #tpu.memory_space<vmem>>) attributes {dimension_semantics = [#tpu.dimension_semantics<parallel>], iteration_bounds = array<i64: 2>, scalar_prefetch = 0 : i64, scratch_operands = 0 : i64, tpu.core_type = #tpu.core_type<tc>, window_params = [{transform_indices = @transform_0, window_bounds = array<i64: 1, 88, 128>}, {pipeline_mode = #tpu.pipeline_mode<synchronous>, transform_indices = @transform_1, window_bounds = array<i64: 16, 128, 128>}, {pipeline_mode = #tpu.pipeline_mode<synchronous>, transform_indices = @transform_2, window_bounds = array<i64: 1, 128>}, {pipeline_mode = #tpu.pipeline_mode<synchronous>, transform_indices = @transform_3, window_bounds = array<i64: 1, 128>}, {transform_indices = @transform_4, window_bounds = array<i64: 1, 52, 128>}]} {
    %c0 = arith.constant 0 : index
    %c0_0 = arith.constant 0 : index
    %c0_1 = arith.constant 0 : index
    %0 = vector.load %arg1[%c0, %c0_0, %c0_1] : memref<1x88x128xbf16, #tpu.memory_space<vmem>>, vector<1x52x128xbf16>
    %1 = vector.shape_cast %0 : vector<1x52x128xbf16> to vector<52x128xbf16>
    %c0_2 = arith.constant 0 : index
    %c0_3 = arith.constant 0 : index
    %c0_4 = arith.constant 0 : index
    %2 = vector.load %arg2[%c0_2, %c0_3, %c0_4] : memref<16x128x128xbf16, #tpu.memory_space<vmem>>, vector<1x128x128xbf16>
    %3 = vector.shape_cast %2 : vector<1x128x128xbf16> to vector<128x128xbf16>
    %cst = arith.constant dense<0.000000e+00> : vector<52x128xf32>
    %4 = tpu.matmul %1, %3, %cst {dimension_numbers = #tpu.dot_dimension_numbers<[1], [0], [0], [1], [0, 0, 1, 1], [], []>} : vector<52x128xbf16>, vector<128x128xbf16>, vector<52x128xf32> -> vector<52x128xf32>
    %c0_5 = arith.constant 0 : index
    %c1 = arith.constant 1 : index
    %c0_6 = arith.constant 0 : index
    %5 = vector.load %arg1[%c0_5, %c1, %c0_6] : memref<1x88x128xbf16, #tpu.memory_space<vmem>>, vector<1x52x128xbf16>
    %6 = vector.shape_cast %5 : vector<1x52x128xbf16> to vector<52x128xbf16>
    %c1_7 = arith.constant 1 : index
    %c0_8 = arith.constant 0 : index
    %c0_9 = arith.constant 0 : index
    %7 = vector.load %arg2[%c1_7, %c0_8, %c0_9] : memref<16x128x128xbf16, #tpu.memory_space<vmem>>, vector<1x128x128xbf16>
    %8 = vector.shape_cast %7 : vector<1x128x128xbf16> to vector<128x128xbf16>
    %cst_10 = arith.constant dense<0.000000e+00> : vector<52x128xf32>
    %9 = tpu.matmul %6, %8, %cst_10 {dimension_numbers = #tpu.dot_dimension_numbers<[1], [0], [0], [1], [0, 0, 1, 1], [], []>} : vector<52x128xbf16>, vector<128x128xbf16>, vector<52x128xf32> -> vector<52x128xf32>
    %10 = arith.addf %4, %9 : vector<52x128xf32>
    %c0_11 = arith.constant 0 : index
    %c2 = arith.constant 2 : index
    %c0_12 = arith.constant 0 : index
    %11 = vector.load %arg1[%c0_11, %c2, %c0_12] : memref<1x88x128xbf16, #tpu.memory_space<vmem>>, vector<1x52x128xbf16>
    %12 = vector.shape_cast %11 : vector<1x52x128xbf16> to vector<52x128xbf16>
    %c2_13 = arith.constant 2 : index
    %c0_14 = arith.constant 0 : index
    %c0_15 = arith.constant 0 : index
    %13 = vector.load %arg2[%c2_13, %c0_14, %c0_15] : memref<16x128x128xbf16, #tpu.memory_space<vmem>>, vector<1x128x128xbf16>
    %14 = vector.shape_cast %13 : vector<1x128x128xbf16> to vector<128x128xbf16>
    %cst_16 = arith.constant dense<0.000000e+00> : vector<52x128xf32>
    %15 = tpu.matmul %12, %14, %cst_16 {dimension_numbers = #tpu.dot_dimension_numbers<[1], [0], [0], [1], [0, 0, 1, 1], [], []>} : vector<52x128xbf16>, vector<128x128xbf16>, vector<52x128xf32> -> vector<52x128xf32>
    %16 = arith.addf %10, %15 : vector<52x128xf32>
    %c0_17 = arith.constant 0 : index
    %c3 = arith.constant 3 : index
    %c0_18 = arith.constant 0 : index
    %17 = vector.load %arg1[%c0_17, %c3, %c0_18] : memref<1x88x128xbf16, #tpu.memory_space<vmem>>, vector<1x52x128xbf16>
    %18 = vector.shape_cast %17 : vector<1x52x128xbf16> to vector<52x128xbf16>
    %c3_19 = arith.constant 3 : index
    %c0_20 = arith.constant 0 : index
    %c0_21 = arith.constant 0 : index
    %19 = vector.load %arg2[%c3_19, %c0_20, %c0_21] : memref<16x128x128xbf16, #tpu.memory_space<vmem>>, vector<1x128x128xbf16>
    %20 = vector.shape_cast %19 : vector<1x128x128xbf16> to vector<128x128xbf16>
    %cst_22 = arith.constant dense<0.000000e+00> : vector<52x128xf32>
    %21 = tpu.matmul %18, %20, %cst_22 {dimension_numbers = #tpu.dot_dimension_numbers<[1], [0], [0], [1], [0, 0, 1, 1], [], []>} : vector<52x128xbf16>, vector<128x128xbf16>, vector<52x128xf32> -> vector<52x128xf32>
    %22 = arith.addf %16, %21 : vector<52x128xf32>
    %c0_23 = arith.constant 0 : index
    %c11 = arith.constant 11 : index
    %c0_24 = arith.constant 0 : index
    %23 = vector.load %arg1[%c0_23, %c11, %c0_24] : memref<1x88x128xbf16, #tpu.memory_space<vmem>>, vector<1x52x128xbf16>
    %24 = vector.shape_cast %23 : vector<1x52x128xbf16> to vector<52x128xbf16>
    %c4 = arith.constant 4 : index
    %c0_25 = arith.constant 0 : index
    %c0_26 = arith.constant 0 : index
    %25 = vector.load %arg2[%c4, %c0_25, %c0_26] : memref<16x128x128xbf16, #tpu.memory_space<vmem>>, vector<1x128x128xbf16>
    %26 = vector.shape_cast %25 : vector<1x128x128xbf16> to vector<128x128xbf16>
    %cst_27 = arith.constant dense<0.000000e+00> : vector<52x128xf32>
    %27 = tpu.matmul %24, %26, %cst_27 {dimension_numbers = #tpu.dot_dimension_numbers<[1], [0], [0], [1], [0, 0, 1, 1], [], []>} : vector<52x128xbf16>, vector<128x128xbf16>, vector<52x128xf32> -> vector<52x128xf32>
    %28 = arith.addf %22, %27 : vector<52x128xf32>
    %c0_28 = arith.constant 0 : index
    %c12 = arith.constant 12 : index
    %c0_29 = arith.constant 0 : index
    %29 = vector.load %arg1[%c0_28, %c12, %c0_29] : memref<1x88x128xbf16, #tpu.memory_space<vmem>>, vector<1x52x128xbf16>
    %30 = vector.shape_cast %29 : vector<1x52x128xbf16> to vector<52x128xbf16>
    %c5 = arith.constant 5 : index
    %c0_30 = arith.constant 0 : index
    %c0_31 = arith.constant 0 : index
    %31 = vector.load %arg2[%c5, %c0_30, %c0_31] : memref<16x128x128xbf16, #tpu.memory_space<vmem>>, vector<1x128x128xbf16>
    %32 = vector.shape_cast %31 : vector<1x128x128xbf16> to vector<128x128xbf16>
    %cst_32 = arith.constant dense<0.000000e+00> : vector<52x128xf32>
    %33 = tpu.matmul %30, %32, %cst_32 {dimension_numbers = #tpu.dot_dimension_numbers<[1], [0], [0], [1], [0, 0, 1, 1], [], []>} : vector<52x128xbf16>, vector<128x128xbf16>, vector<52x128xf32> -> vector<52x128xf32>
    %34 = arith.addf %28, %33 : vector<52x128xf32>
    %c0_33 = arith.constant 0 : index
    %c13 = arith.constant 13 : index
    %c0_34 = arith.constant 0 : index
    %35 = vector.load %arg1[%c0_33, %c13, %c0_34] : memref<1x88x128xbf16, #tpu.memory_space<vmem>>, vector<1x52x128xbf16>
    %36 = vector.shape_cast %35 : vector<1x52x128xbf16> to vector<52x128xbf16>
    %c6 = arith.constant 6 : index
    %c0_35 = arith.constant 0 : index
    %c0_36 = arith.constant 0 : index
    %37 = vector.load %arg2[%c6, %c0_35, %c0_36] : memref<16x128x128xbf16, #tpu.memory_space<vmem>>, vector<1x128x128xbf16>
    %38 = vector.shape_cast %37 : vector<1x128x128xbf16> to vector<128x128xbf16>
    %cst_37 = arith.constant dense<0.000000e+00> : vector<52x128xf32>
    %39 = tpu.matmul %36, %38, %cst_37 {dimension_numbers = #tpu.dot_dimension_numbers<[1], [0], [0], [1], [0, 0, 1, 1], [], []>} : vector<52x128xbf16>, vector<128x128xbf16>, vector<52x128xf32> -> vector<52x128xf32>
    %40 = arith.addf %34, %39 : vector<52x128xf32>
    %c0_38 = arith.constant 0 : index
    %c14 = arith.constant 14 : index
    %c0_39 = arith.constant 0 : index
    %41 = vector.load %arg1[%c0_38, %c14, %c0_39] : memref<1x88x128xbf16, #tpu.memory_space<vmem>>, vector<1x52x128xbf16>
    %42 = vector.shape_cast %41 : vector<1x52x128xbf16> to vector<52x128xbf16>
    %c7 = arith.constant 7 : index
    %c0_40 = arith.constant 0 : index
    %c0_41 = arith.constant 0 : index
    %43 = vector.load %arg2[%c7, %c0_40, %c0_41] : memref<16x128x128xbf16, #tpu.memory_space<vmem>>, vector<1x128x128xbf16>
    %44 = vector.shape_cast %43 : vector<1x128x128xbf16> to vector<128x128xbf16>
    %cst_42 = arith.constant dense<0.000000e+00> : vector<52x128xf32>
    %45 = tpu.matmul %42, %44, %cst_42 {dimension_numbers = #tpu.dot_dimension_numbers<[1], [0], [0], [1], [0, 0, 1, 1], [], []>} : vector<52x128xbf16>, vector<128x128xbf16>, vector<52x128xf32> -> vector<52x128xf32>
    %46 = arith.addf %40, %45 : vector<52x128xf32>
    %c0_43 = arith.constant 0 : index
    %c22 = arith.constant 22 : index
    %c0_44 = arith.constant 0 : index
    %47 = vector.load %arg1[%c0_43, %c22, %c0_44] : memref<1x88x128xbf16, #tpu.memory_space<vmem>>, vector<1x52x128xbf16>
    %48 = vector.shape_cast %47 : vector<1x52x128xbf16> to vector<52x128xbf16>
    %c8 = arith.constant 8 : index
    %c0_45 = arith.constant 0 : index
    %c0_46 = arith.constant 0 : index
    %49 = vector.load %arg2[%c8, %c0_45, %c0_46] : memref<16x128x128xbf16, #tpu.memory_space<vmem>>, vector<1x128x128xbf16>
    %50 = vector.shape_cast %49 : vector<1x128x128xbf16> to vector<128x128xbf16>
    %cst_47 = arith.constant dense<0.000000e+00> : vector<52x128xf32>
    %51 = tpu.matmul %48, %50, %cst_47 {dimension_numbers = #tpu.dot_dimension_numbers<[1], [0], [0], [1], [0, 0, 1, 1], [], []>} : vector<52x128xbf16>, vector<128x128xbf16>, vector<52x128xf32> -> vector<52x128xf32>
    %52 = arith.addf %46, %51 : vector<52x128xf32>
    %c0_48 = arith.constant 0 : index
    %c23 = arith.constant 23 : index
    %c0_49 = arith.constant 0 : index
    %53 = vector.load %arg1[%c0_48, %c23, %c0_49] : memref<1x88x128xbf16, #tpu.memory_space<vmem>>, vector<1x52x128xbf16>
    %54 = vector.shape_cast %53 : vector<1x52x128xbf16> to vector<52x128xbf16>
    %c9 = arith.constant 9 : index
    %c0_50 = arith.constant 0 : index
    %c0_51 = arith.constant 0 : index
    %55 = vector.load %arg2[%c9, %c0_50, %c0_51] : memref<16x128x128xbf16, #tpu.memory_space<vmem>>, vector<1x128x128xbf16>
    %56 = vector.shape_cast %55 : vector<1x128x128xbf16> to vector<128x128xbf16>
    %cst_52 = arith.constant dense<0.000000e+00> : vector<52x128xf32>
    %57 = tpu.matmul %54, %56, %cst_52 {dimension_numbers = #tpu.dot_dimension_numbers<[1], [0], [0], [1], [0, 0, 1, 1], [], []>} : vector<52x128xbf16>, vector<128x128xbf16>, vector<52x128xf32> -> vector<52x128xf32>
    %58 = arith.addf %52, %57 : vector<52x128xf32>
    %c0_53 = arith.constant 0 : index
    %c24 = arith.constant 24 : index
    %c0_54 = arith.constant 0 : index
    %59 = vector.load %arg1[%c0_53, %c24, %c0_54] : memref<1x88x128xbf16, #tpu.memory_space<vmem>>, vector<1x52x128xbf16>
    %60 = vector.shape_cast %59 : vector<1x52x128xbf16> to vector<52x128xbf16>
    %c10 = arith.constant 10 : index
    %c0_55 = arith.constant 0 : index
    %c0_56 = arith.constant 0 : index
    %61 = vector.load %arg2[%c10, %c0_55, %c0_56] : memref<16x128x128xbf16, #tpu.memory_space<vmem>>, vector<1x128x128xbf16>
    %62 = vector.shape_cast %61 : vector<1x128x128xbf16> to vector<128x128xbf16>
    %cst_57 = arith.constant dense<0.000000e+00> : vector<52x128xf32>
    %63 = tpu.matmul %60, %62, %cst_57 {dimension_numbers = #tpu.dot_dimension_numbers<[1], [0], [0], [1], [0, 0, 1, 1], [], []>} : vector<52x128xbf16>, vector<128x128xbf16>, vector<52x128xf32> -> vector<52x128xf32>
    %64 = arith.addf %58, %63 : vector<52x128xf32>
    %c0_58 = arith.constant 0 : index
    %c25 = arith.constant 25 : index
    %c0_59 = arith.constant 0 : index
    %65 = vector.load %arg1[%c0_58, %c25, %c0_59] : memref<1x88x128xbf16, #tpu.memory_space<vmem>>, vector<1x52x128xbf16>
    %66 = vector.shape_cast %65 : vector<1x52x128xbf16> to vector<52x128xbf16>
    %c11_60 = arith.constant 11 : index
    %c0_61 = arith.constant 0 : index
    %c0_62 = arith.constant 0 : index
    %67 = vector.load %arg2[%c11_60, %c0_61, %c0_62] : memref<16x128x128xbf16, #tpu.memory_space<vmem>>, vector<1x128x128xbf16>
    %68 = vector.shape_cast %67 : vector<1x128x128xbf16> to vector<128x128xbf16>
    %cst_63 = arith.constant dense<0.000000e+00> : vector<52x128xf32>
    %69 = tpu.matmul %66, %68, %cst_63 {dimension_numbers = #tpu.dot_dimension_numbers<[1], [0], [0], [1], [0, 0, 1, 1], [], []>} : vector<52x128xbf16>, vector<128x128xbf16>, vector<52x128xf32> -> vector<52x128xf32>
    %70 = arith.addf %64, %69 : vector<52x128xf32>
    %c0_64 = arith.constant 0 : index
    %c33 = arith.constant 33 : index
    %c0_65 = arith.constant 0 : index
    %71 = vector.load %arg1[%c0_64, %c33, %c0_65] : memref<1x88x128xbf16, #tpu.memory_space<vmem>>, vector<1x52x128xbf16>
    %72 = vector.shape_cast %71 : vector<1x52x128xbf16> to vector<52x128xbf16>
    %c12_66 = arith.constant 12 : index
    %c0_67 = arith.constant 0 : index
    %c0_68 = arith.constant 0 : index
    %73 = vector.load %arg2[%c12_66, %c0_67, %c0_68] : memref<16x128x128xbf16, #tpu.memory_space<vmem>>, vector<1x128x128xbf16>
    %74 = vector.shape_cast %73 : vector<1x128x128xbf16> to vector<128x128xbf16>
    %cst_69 = arith.constant dense<0.000000e+00> : vector<52x128xf32>
    %75 = tpu.matmul %72, %74, %cst_69 {dimension_numbers = #tpu.dot_dimension_numbers<[1], [0], [0], [1], [0, 0, 1, 1], [], []>} : vector<52x128xbf16>, vector<128x128xbf16>, vector<52x128xf32> -> vector<52x128xf32>
    %76 = arith.addf %70, %75 : vector<52x128xf32>
    %c0_70 = arith.constant 0 : index
    %c34 = arith.constant 34 : index
    %c0_71 = arith.constant 0 : index
    %77 = vector.load %arg1[%c0_70, %c34, %c0_71] : memref<1x88x128xbf16, #tpu.memory_space<vmem>>, vector<1x52x128xbf16>
    %78 = vector.shape_cast %77 : vector<1x52x128xbf16> to vector<52x128xbf16>
    %c13_72 = arith.constant 13 : index
    %c0_73 = arith.constant 0 : index
    %c0_74 = arith.constant 0 : index
    %79 = vector.load %arg2[%c13_72, %c0_73, %c0_74] : memref<16x128x128xbf16, #tpu.memory_space<vmem>>, vector<1x128x128xbf16>
    %80 = vector.shape_cast %79 : vector<1x128x128xbf16> to vector<128x128xbf16>
    %cst_75 = arith.constant dense<0.000000e+00> : vector<52x128xf32>
    %81 = tpu.matmul %78, %80, %cst_75 {dimension_numbers = #tpu.dot_dimension_numbers<[1], [0], [0], [1], [0, 0, 1, 1], [], []>} : vector<52x128xbf16>, vector<128x128xbf16>, vector<52x128xf32> -> vector<52x128xf32>
    %82 = arith.addf %76, %81 : vector<52x128xf32>
    %c0_76 = arith.constant 0 : index
    %c35 = arith.constant 35 : index
    %c0_77 = arith.constant 0 : index
    %83 = vector.load %arg1[%c0_76, %c35, %c0_77] : memref<1x88x128xbf16, #tpu.memory_space<vmem>>, vector<1x52x128xbf16>
    %84 = vector.shape_cast %83 : vector<1x52x128xbf16> to vector<52x128xbf16>
    %c14_78 = arith.constant 14 : index
    %c0_79 = arith.constant 0 : index
    %c0_80 = arith.constant 0 : index
    %85 = vector.load %arg2[%c14_78, %c0_79, %c0_80] : memref<16x128x128xbf16, #tpu.memory_space<vmem>>, vector<1x128x128xbf16>
    %86 = vector.shape_cast %85 : vector<1x128x128xbf16> to vector<128x128xbf16>
    %cst_81 = arith.constant dense<0.000000e+00> : vector<52x128xf32>
    %87 = tpu.matmul %84, %86, %cst_81 {dimension_numbers = #tpu.dot_dimension_numbers<[1], [0], [0], [1], [0, 0, 1, 1], [], []>} : vector<52x128xbf16>, vector<128x128xbf16>, vector<52x128xf32> -> vector<52x128xf32>
    %88 = arith.addf %82, %87 : vector<52x128xf32>
    %c0_82 = arith.constant 0 : index
    %c36 = arith.constant 36 : index
    %c0_83 = arith.constant 0 : index
    %89 = vector.load %arg1[%c0_82, %c36, %c0_83] : memref<1x88x128xbf16, #tpu.memory_space<vmem>>, vector<1x52x128xbf16>
    %90 = vector.shape_cast %89 : vector<1x52x128xbf16> to vector<52x128xbf16>
    %c15 = arith.constant 15 : index
    %c0_84 = arith.constant 0 : index
    %c0_85 = arith.constant 0 : index
    %91 = vector.load %arg2[%c15, %c0_84, %c0_85] : memref<16x128x128xbf16, #tpu.memory_space<vmem>>, vector<1x128x128xbf16>
    %92 = vector.shape_cast %91 : vector<1x128x128xbf16> to vector<128x128xbf16>
    %cst_86 = arith.constant dense<0.000000e+00> : vector<52x128xf32>
    %93 = tpu.matmul %90, %92, %cst_86 {dimension_numbers = #tpu.dot_dimension_numbers<[1], [0], [0], [1], [0, 0, 1, 1], [], []>} : vector<52x128xbf16>, vector<128x128xbf16>, vector<52x128xf32> -> vector<52x128xf32>
    %94 = arith.addf %88, %93 : vector<52x128xf32>
    %c0_87 = arith.constant 0 : index
    %c0_88 = arith.constant 0 : index
    %95 = vector.load %arg3[%c0_87, %c0_88] : memref<1x128xf32, #tpu.memory_space<vmem>>, vector<1x128xf32>
    %96 = vector.broadcast %95 : vector<1x128xf32> to vector<52x128xf32>
    %97 = arith.mulf %94, %96 : vector<52x128xf32>
    %c0_89 = arith.constant 0 : index
    %c0_90 = arith.constant 0 : index
    %98 = vector.load %arg4[%c0_89, %c0_90] : memref<1x128xf32, #tpu.memory_space<vmem>>, vector<1x128xf32>
    %99 = vector.broadcast %98 : vector<1x128xf32> to vector<52x128xf32>
    %100 = arith.addf %97, %99 : vector<52x128xf32>
    %c0_91 = arith.constant 0 : index
    %c0_92 = arith.constant 0 : index
    %c0_93 = arith.constant 0 : index
    %101 = vector.load %arg5[%c0_91, %c0_92, %c0_93] : memref<1x52x128xf32, #tpu.memory_space<vmem>>, vector<1x52x128xf32>
    %102 = vector.shape_cast %101 : vector<1x52x128xf32> to vector<52x128xf32>
    %103 = vector.shape_cast %100 : vector<52x128xf32> to vector<1x52x128xf32>
    tpu.vector_store %arg5[%c0_91, %c0_92, %c0_93], %103 {strides = array<i32>} : memref<1x52x128xf32, #tpu.memory_space<vmem>>, vector<1x52x128xf32>,
    return
  }
  func.func @transform_0(%arg0: i32) -> (i32, i32, i32) {
    %c0_i32 = arith.constant 0 : i32
    %c0_i32_0 = arith.constant 0 : i32
    %c0_i32_1 = arith.constant 0 : i32
    return %arg0, %c0_i32, %c0_i32_0 : i32, i32, i32
  }
  func.func @transform_1(%arg0: i32) -> (i32, i32, i32) {
    %c0_i32 = arith.constant 0 : i32
    %c0_i32_0 = arith.constant 0 : i32
    %c0_i32_1 = arith.constant 0 : i32
    %c0_i32_2 = arith.constant 0 : i32
    return %c0_i32, %c0_i32_0, %c0_i32_1 : i32, i32, i32
  }
  func.func @transform_2(%arg0: i32) -> (i32, i32) {
    %c0_i32 = arith.constant 0 : i32
    %c0_i32_0 = arith.constant 0 : i32
    %c0_i32_1 = arith.constant 0 : i32
    return %c0_i32, %c0_i32_0 : i32, i32
  }
  func.func @transform_3(%arg0: i32) -> (i32, i32) {
    %c0_i32 = arith.constant 0 : i32
    %c0_i32_0 = arith.constant 0 : i32
    %c0_i32_1 = arith.constant 0 : i32
    return %c0_i32, %c0_i32_0 : i32, i32
  }
  func.func @transform_4(%arg0: i32) -> (i32, i32, i32) {
    %c0_i32 = arith.constant 0 : i32
    %c0_i32_0 = arith.constant 0 : i32
    %c0_i32_1 = arith.constant 0 : i32
    return %arg0, %c0_i32, %c0_i32_0 : i32, i32, i32
  }
}

</mosaic_0001>

<llo_original>
// kernel: nlayer_discriminator_forward.5
$region0: #{nlayer_discriminator_forward.5}
  #allocation0 [shape = 'u32[]', space=smem, size = 0x4, offset = 0x4, fixed_abs, tag = 'smem constant byte address 0x4 - core index']
  #allocation1 [shape = 'u32[144,128]{1,0:T(1,128)}', space=vmem, size = 0x12000, scoped, tag = 'internal scratch']
  %s0 = inlined_call_operand.vmem [shape: bf16[2,170,16], index: 0, kind: input, shape index: {}]
  %s1 = inlined_call_operand.vmem [shape: bf16[4,16,128], index: 1, kind: input, shape index: {}]
  %s2 = inlined_call_operand.vmem [shape: f32[1,128], index: 2, kind: input, shape index: {}]
  %s3 = inlined_call_operand.vmem [shape: f32[1,128], index: 3, kind: input, shape index: {}]
  %s4 = inlined_call_operand.vmem [shape: bf16[2,152,128], index: 4, kind: output, shape index: {}]
  %s5 = sld [smem:[#allocation0]]
  $region49: #{nlayer_discriminator_forward.5} parent=0
    _
  %s7 = ssub.s32 1, %s5
  %s8 = scalar_select 0, %s7, %s5
  loop: start=0, step=1, limit=4
  $region2: #{nlayer_discriminator_forward.5} parent=0 // loop_pre_header
    _
  $region3: #{nlayer_discriminator_forward.5} parent=0 // loop_header
    %s10 = sphi 0, %s14
    %p11 = scmp.ge.s32.totalorder %s10, 4
    %s20 = sphi 0, %s22
    %s23 = sphi 0, %s20
    %s24 = sphi 0, %s23
    %s40 = sphi 0, %s24
    %s44 = sphi 0, %s44
    %s46 = sphi 0, %s44
    %s47 = sphi 0, %s46
    %s61 = sphi 0, %s47
    %s65 = sphi 0, %s65
    %s67 = sphi 0, %s65
    %s68 = sphi 0, %s67
    %s82 = sphi 0, %s68
    %s86 = sphi 0, %s86
    %s88 = sphi 0, %s86
    %s89 = sphi 0, %s88
    %s103 = sphi 0, %s89
    %s109 = sphi 0, %s111
    %s112 = sphi 0, %s109
    %s113 = sphi 0, %s112
    %s129 = sphi 0, %s113
  $region4: #{nlayer_discriminator_forward.5} parent=0 // loop_header_branch
    %13 = sbr.rel (%p11) target = $region8
  $region5: #{nlayer_discriminator_forward.5} parent=0 // loop_body
    %s15 = ssub.s32 %s10, 1
    %s16 = ssub.s32 %s10, 2
    %s17 = sadd.s32 %s10, 1
    %s18 = ssub.s32 %s10, %s17
    %p19 = scmp.eq.s32.totalorder %s18, 0
    %s21 = sadd.s32 %s20, 1
    %s22 = scalar_select %p19, %s20, %s21
    %p25 = pneg %p19
    %p26 = scmp.eq.s32.totalorder %s10, 1
    %p27 = por %p25, %p26
    %p28 = scmp.ne.s32.totalorder %s20, %s23
    %p29 = scmp.eq.s32.totalorder %s10, 0
    %p30 = por %p28, %p29
    %p31 = scmp.ne.s32.totalorder %s20, %s23
    %p32 = scmp.eq.s32.totalorder %s15, 1
    %p33 = por %p31, %p32
    %p34 = scmp.ne.s32.totalorder %s23, %s24
    %p35 = scmp.eq.s32.totalorder %s15, 0
    %p36 = por %p34, %p35
    %p37 = scmp.ne.s32.totalorder %s23, %s24
    %p38 = scmp.eq.s32.totalorder %s16, 1
    %p39 = por %p37, %p38
    %p41 = scmp.ne.s32.totalorder %s24, %s40
    %p42 = scmp.eq.s32.totalorder %s16, 0
    %p43 = por %p41, %p42
    %s45 = sadd.s32 %s44, 1
    %p48 = scmp.eq.s32.totalorder %s10, 1
    %p49 = scmp.ne.s32.totalorder %s44, %s46
    %p50 = scmp.eq.s32.totalorder %s10, 0
    %p51 = por %p49, %p50
    %p52 = scmp.ne.s32.totalorder %s44, %s46
    %p53 = scmp.eq.s32.totalorder %s15, 1
    %p54 = por %p52, %p53
    %p55 = scmp.ne.s32.totalorder %s46, %s47
    %p56 = scmp.eq.s32.totalorder %s15, 0
    %p57 = por %p55, %p56
    %p58 = scmp.ne.s32.totalorder %s46, %s47
    %p59 = scmp.eq.s32.totalorder %s16, 1
    %p60 = por %p58, %p59
    %p62 = scmp.ne.s32.totalorder %s47, %s61
    %p63 = scmp.eq.s32.totalorder %s16, 0
    %p64 = por %p62, %p63
    %s66 = sadd.s32 %s65, 1
    %p69 = scmp.eq.s32.totalorder %s10, 1
    %p70 = scmp.ne.s32.totalorder %s65, %s67
    %p71 = scmp.eq.s32.totalorder %s10, 0
    %p72 = por %p70, %p71
    %p73 = scmp.ne.s32.totalorder %s65, %s67
    %p74 = scmp.eq.s32.totalorder %s15, 1
    %p75 = por %p73, %p74
    %p76 = scmp.ne.s32.totalorder %s67, %s68
    %p77 = scmp.eq.s32.totalorder %s15, 0
    %p78 = por %p76, %p77
    %p79 = scmp.ne.s32.totalorder %s67, %s68
    %p80 = scmp.eq.s32.totalorder %s16, 1
    %p81 = por %p79, %p80
    %p83 = scmp.ne.s32.totalorder %s68, %s82
    %p84 = scmp.eq.s32.totalorder %s16, 0
    %p85 = por %p83, %p84
    %s87 = sadd.s32 %s86, 1
    %p90 = scmp.eq.s32.totalorder %s10, 1
    %p91 = scmp.ne.s32.totalorder %s86, %s88
    %p92 = scmp.eq.s32.totalorder %s10, 0
    %p93 = por %p91, %p92
    %p94 = scmp.ne.s32.totalorder %s86, %s88
    %p95 = scmp.eq.s32.totalorder %s15, 1
    %p96 = por %p94, %p95
    %p97 = scmp.ne.s32.totalorder %s88, %s89
    %p98 = scmp.eq.s32.totalorder %s15, 0
    %p99 = por %p97, %p98
    %p100 = scmp.ne.s32.totalorder %s88, %s89
    %p101 = scmp.eq.s32.totalorder %s16, 1
    %p102 = por %p100, %p101
    %p104 = scmp.ne.s32.totalorder %s89, %s103
    %p105 = scmp.eq.s32.totalorder %s16, 0
    %p106 = por %p104, %p105
    %s107 = ssub.s32 %s10, %s17
    %p108 = scmp.eq.s32.totalorder %s107, 0
    %s110 = sadd.s32 %s109, 1
    %s111 = scalar_select %p108, %s109, %s110
    %p114 = pneg %p108
    %p115 = scmp.eq.s32.totalorder %s10, 1
    %p116 = por %p114, %p115
    %p117 = scmp.ne.s32.totalorder %s109, %s112
    %p118 = scmp.eq.s32.totalorder %s10, 0
    %p119 = por %p117, %p118
    %p120 = scmp.ne.s32.totalorder %s109, %s112
    %p121 = scmp.eq.s32.totalorder %s15, 1
    %p122 = por %p120, %p121
    %p123 = scmp.ne.s32.totalorder %s112, %s113
    %p124 = scmp.eq.s32.totalorder %s15, 0
    %p125 = por %p123, %p124
    %p126 = scmp.ne.s32.totalorder %s112, %s113
    %p127 = scmp.eq.s32.totalorder %s16, 1
    %p128 = por %p126, %p127
    %p130 = scmp.ne.s32.totalorder %s113, %s129
    %p131 = scmp.eq.s32.totalorder %s16, 0
    %p132 = por %p130, %p131
    %p133 = scmp.le.s32.totalorder 1, %s10
    %p134 = scmp.lt.s32.totalorder %s10, 3
    %p135 = pnand %p133, %p134
    %p136 = pneg %p135
    // Predicated region
    $region9: #{nlayer_discriminator_forward.5} parent=5 // pred_check
      _
    $region10: #{nlayer_discriminator_forward.5} parent=5 // pred_check_branch
      %138 = sbr.rel (%p135) target = $region12
    $region11: #{nlayer_discriminator_forward.5} parent=5 // pred_region
      %s139 = ssub.s32 %s10, 1
      // Predicated region
      $region13: #{nlayer_discriminator_forward.5} parent=11 // pred_check
        %p140 = pneg %p57
      $region14: #{nlayer_discriminator_forward.5} parent=11 // pred_check_branch
        %142 = sbr.rel (%p140) target = $region16
      $region15: #{nlayer_discriminator_forward.5} parent=11 // pred_region
        _
      $region16: #{nlayer_discriminator_forward.5} parent=11 // pred_fallthru
        _
      // Predicated region
      $region17: #{nlayer_discriminator_forward.5} parent=11 // pred_check
        %p143 = pneg %p78
      $region18: #{nlayer_discriminator_forward.5} parent=11 // pred_check_branch
        %145 = sbr.rel (%p143) target = $region20
      $region19: #{nlayer_discriminator_forward.5} parent=11 // pred_region
        _
      $region20: #{nlayer_discriminator_forward.5} parent=11 // pred_fallthru
        _
      // Predicated region
      $region21: #{nlayer_discriminator_forward.5} parent=11 // pred_check
        %p146 = pneg %p99
      $region22: #{nlayer_discriminator_forward.5} parent=11 // pred_check_branch
        %148 = sbr.rel (%p146) target = $region24
      $region23: #{nlayer_discriminator_forward.5} parent=11 // pred_region
        _
      $region24: #{nlayer_discriminator_forward.5} parent=11 // pred_fallthru
        _
    $region12: #{nlayer_discriminator_forward.5} parent=5 // pred_fallthru
      _
    %p149 = scmp.lt.s32.totalorder %s10, 2
    // Predicated region
    $region25: #{nlayer_discriminator_forward.5} parent=5 // pred_check
      %p150 = pneg %p149
    $region26: #{nlayer_discriminator_forward.5} parent=5 // pred_check_branch
      %152 = sbr.rel (%p150) target = $region28
    $region27: #{nlayer_discriminator_forward.5} parent=5 // pred_region
      // Predicated region
      $region29: #{nlayer_discriminator_forward.5} parent=27 // pred_check
        %p153 = pneg %p30
      $region30: #{nlayer_discriminator_forward.5} parent=27 // pred_check_branch
        %155 = sbr.rel (%p153) target = $region32
      $region31: #{nlayer_discriminator_forward.5} parent=27 // pred_region
        %p156 = scmp.lt.s32.totalorder %s10, 1
        %s157 = scalar_select %p156, %s10, 1
        %s158 = smul.addr %s157, 22
        %s159 = smul.addr %s158, 4
        %s160 = scalar_lea.vmem %s0, %s159
      $region32: #{nlayer_discriminator_forward.5} parent=27 // pred_fallthru
        _
    $region28: #{nlayer_discriminator_forward.5} parent=5 // pred_fallthru
      _
    %p161 = scmp.le.s32.totalorder 1, %s10
    %p162 = scmp.lt.s32.totalorder %s10, 3
    %p163 = pnand %p161, %p162
    %p164 = pneg %p163
    // Predicated region
    $region33: #{nlayer_discriminator_forward.5} parent=5 // pred_check
      _
    $region34: #{nlayer_discriminator_forward.5} parent=5 // pred_check_branch
      %166 = sbr.rel (%p163) target = $region36
    $region35: #{nlayer_discriminator_forward.5} parent=5 // pred_region
      %s167 = ssub.s32 %s10, 1
      %p168 = scmp.lt.s32.totalorder %s15, 1
      %s169 = scalar_select %p168, %s15, 1
      %s170 = smul.addr %s169, 22
      %s171 = smul.addr %s170, 4
      %s172 = scalar_lea.vmem %s0, %s171
      %p173 = pneg %p36
      %p174 = pneg %p33
      %p175 = pneg %p57
      %p176 = pneg %p54
      %p177 = pneg %p78
      %p178 = pneg %p75
      %p179 = pneg %p99
      %p180 = pneg %p96
      %p181 = pneg %p125
      %p182 = pneg %p122
      %p183 = scmp.lt.s32.totalorder %s15, 1
      %s184 = scalar_select %p183, %s15, 1
      %s185 = smul.addr %s184, 19
      %s186 = smul.addr %s185, 4
      %s187 = scalar_lea.vmem %s4, %s186
      %p188 = scmp.lt.s32.totalorder %s15, 1
      %s189 = scalar_select %p188, %s15, 1
      %s190 = smul.addr %s189, 22
      %s191 = smul.addr %s190, 4
      %s192 = scalar_lea.vmem %s0, %s191
      %p193 = scmp.lt.s32.totalorder %s15, 1
      %s194 = scalar_select %p193, %s15, 1
      %s195 = smul.addr %s194, 19
      %s196 = smul.addr %s195, 4
      %s197 = scalar_lea.vmem %s4, %s196
      %v199 = vld [vmem:[%s192] sm:$0xf]
      %v200 = vld [vmem:[%s192 + $0x4] sm:$0xf]
      %v201 = vld [vmem:[%s192 + $0x8] sm:$0xf]
      %v202 = vld [vmem:[%s192 + $0xc] sm:$0xf]
      %v203 = vld [vmem:[%s192 + $0x10] sm:$0xf]
      %v204 = vld [vmem:[%s192 + $0x14] sm:$0xf]
      %v205 = vld [vmem:[%s192 + $0x18] sm:$0xf]
      %v206 = vld [vmem:[%s192 + $0x1c] sm:$0xf]
      %v207 = vld [vmem:[%s192 + $0x20] sm:$0xf]
      %v208 = vld [vmem:[%s192 + $0x24] sm:$0xf]
      %v209 = vld [vmem:[%s192 + $0x28] sm:$0xf]
      %v210 = vld [vmem:[%s192 + $0x2c] sm:$0xf]
      %v211 = vld [vmem:[%s192 + $0x30] sm:$0xf]
      %v212 = vld [vmem:[%s192 + $0x34] sm:$0xf]
      %v213 = vld [vmem:[%s192 + $0x38] sm:$0xf]
      %v214 = vld [vmem:[%s192 + $0x3c] sm:$0xf]
      %v215 = vld [vmem:[%s192 + $0x40] sm:$0xf]
      %v216 = vld [vmem:[%s192 + $0x44] sm:$0xf]
      %v217 = vld [vmem:[%s192 + $0x48] sm:$0xf]
      %v218 = vld [vmem:[%s1] sm:$0xf]
      %v219 = vld [vmem:[%s1 + $0x4] sm:$0xf]
      %v220 = vld [vmem:[%s192 + $0x4c] sm:$0x1]
      %s221 = scalar_lea.vmem %s1, 8
      %v222 = vld [vmem:[%s221] sm:$0xf]
      %v223 = vld [vmem:[%s221 + $0x4] sm:$0xf]
      %v244 = vunpack.c.l.b16 %v199
      %v245 = vunpack.c.l.b16 %v200
      %v246 = vunpack.c.l.b16 %v201
      %v247 = vunpack.c.l.b16 %v202
      %v248 = vunpack.c.l.b16 %v203
      %v249 = vunpack.c.l.b16 %v204
      %v250 = vunpack.c.l.b16 %v205
      %v251 = vunpack.c.l.b16 %v206
      %v252 = vunpack.c.l.b16 %v207
      %v253 = vunpack.c.l.b16 %v208
      %v254 = vunpack.c.l.b16 %v209
      %v255 = vunpack.c.l.b16 %v210
      %v256 = vunpack.c.l.b16 %v211
      %v257 = vunpack.c.l.b16 %v212
      %v258 = vunpack.c.l.b16 %v213
      %v259 = vunpack.c.l.b16 %v214
      %v260 = vunpack.c.l.b16 %v215
      %v261 = vunpack.c.l.b16 %v216
      %v262 = vunpack.c.l.b16 %v217
      %v263 = vunpack.c.l.b16 %v220
      %v264 = vpack.c.b16 %v245, %v244
      %v265 = vpack.c.b16 %v247, %v246
      %v266 = vpack.c.b16 %v249, %v248
      %v267 = vpack.c.b16 %v251, %v250
      %v268 = vpack.c.b16 %v253, %v252
      %v269 = vpack.c.b16 %v255, %v254
      %v270 = vpack.c.b16 %v257, %v256
      %v271 = vpack.c.b16 %v259, %v258
      %v272 = vpack.c.b16 %v261, %v260
      %v273 = vpack.c.b16 %v263, %v262
      %vm274 = vsmask.f32 7424
      %v276 = vshrl.u32 %v264, 16
      %v278 = vshll.u32 %v264, 16
      %v280 = vrot.slane %v278, 1
      %v281 = vor.u32 %v276, %v280
      %v283 = vshll.u32 %v265, 16
      %v285 = vrot.slane %v283, 1
      %v286 = vsel %vm274, %v281, %v285
      %v287 = vshrl.u32 %v265, 16
      %v289 = vor.u32 %v287, %v285
      %v291 = vshll.u32 %v266, 16
      %v293 = vrot.slane %v291, 1
      %v294 = vsel %vm274, %v289, %v293
      %v295 = vshrl.u32 %v266, 16
      %v297 = vor.u32 %v295, %v293
      %v299 = vshll.u32 %v267, 16
      %v301 = vrot.slane %v299, 1
      %v302 = vsel %vm274, %v297, %v301
      %v303 = vshrl.u32 %v267, 16
      %v305 = vor.u32 %v303, %v301
      %v307 = vshll.u32 %v268, 16
      %v309 = vrot.slane %v307, 1
      %v310 = vsel %vm274, %v305, %v309
      %v311 = vshrl.u32 %v268, 16
      %v313 = vor.u32 %v311, %v309
      %v315 = vshll.u32 %v269, 16
      %v317 = vrot.slane %v315, 1
      %v318 = vsel %vm274, %v313, %v317
      %v319 = vshrl.u32 %v269, 16
      %v321 = vor.u32 %v319, %v317
      %v323 = vshll.u32 %v270, 16
      %v325 = vrot.slane %v323, 1
      %v326 = vsel %vm274, %v321, %v325
      %v327 = vshrl.u32 %v270, 16
      %v329 = vor.u32 %v327, %v325
      %v331 = vshll.u32 %v271, 16
      %v333 = vrot.slane %v331, 1
      %v334 = vsel %vm274, %v329, %v333
      %v335 = vshrl.u32 %v271, 16
      %v337 = vor.u32 %v335, %v333
      %v339 = vshll.u32 %v272, 16
      %v341 = vrot.slane %v339, 1
      %v342 = vsel %vm274, %v337, %v341
      %v343 = vshrl.u32 %v272, 16
      %v345 = vor.u32 %v343, %v341
      %v347 = vshll.u32 %v273, 16
      %v349 = vrot.slane %v347, 1
      %v350 = vsel %vm274, %v345, %v349
      %v351 = vshrl.u32 %v273, 16
      %v353 = vor.u32 %v351, %v349
      %v356 = vunpack.c.l.b16 %v222
      %v357 = vunpack.c.l.b16 %v223
      %v358 = vpack.c.b16 %v357, %v356
      %vm360 = vcmask 130048
      %v362 = vsel %vm360, %v286, 0
      %v365 = vsel %vm360, %v294, 0
      %v368 = vsel %vm360, %v302, 0
      %v371 = vsel %vm360, %v310, 0
      %v374 = vsel %vm360, %v318, 0
      %v377 = vsel %vm360, %v326, 0
      %v380 = vsel %vm360, %v334, 0
      %v383 = vsel %vm360, %v342, 0
      %v386 = vsel %vm360, %v350, 0
      %v389 = vsel %vm360, %v353, 0
      %391 = vmatprep.subr.bf16.mxu0 0
      %392 = vmatpush1.bf16.msra.mxu0 %v358
      %393 = vmatprep.subr.bf16.mxu0 0
      %394 = vmatpush1.bf16.msra.mxu0 0
      %395 = vmatprep.subr.bf16.mxu0 0
      %396 = vmatpush1.bf16.msra.mxu0 0
      %397 = vmatprep.subr.bf16.mxu0 0
      %398 = vmatpush1.bf16.msra.mxu0 0
      %399 = vmatprep.subr.bf16.mxu0 0
      %400 = vmatpush1.bf16.msra.mxu0 0
      %401 = vmatprep.subr.bf16.mxu0 0
      %402 = vmatpush1.bf16.msra.mxu0 0
      %403 = vmatprep.subr.bf16.mxu0 0
      %404 = vmatpush1.bf16.msra.mxu0 0
      %405 = vmatprep.subr.bf16.mxu0 0
      %406 = vmatpush1.bf16.msra.mxu0 0
      %407 = vmatprep.subr.bf16.mxu0 0
      %408 = vmatpush1.bf16.msra.mxu0 0
      %409 = vmatprep.subr.bf16.mxu0 0
      %410 = vmatpush1.bf16.msra.mxu0 0
      %411 = vmatprep.subr.bf16.mxu0 0
      %412 = vmatpush1.bf16.msra.mxu0 0
      %413 = vmatprep.subr.bf16.mxu0 0
      %414 = vmatpush1.bf16.msra.mxu0 0
      %415 = vmatprep.subr.bf16.mxu0 0
      %416 = vmatpush1.bf16.msra.mxu0 0
      %417 = vmatprep.subr.bf16.mxu0 0
      %418 = vmatpush1.bf16.msra.mxu0 0
      %419 = vmatprep.subr.bf16.mxu0 0
      %420 = vmatpush1.bf16.msra.mxu0 0
      %421 = vmatprep.subr.bf16.mxu0 0
      %422 = vmatpush1.bf16.msra.mxu0 0
      %423 = vmatprep.mubr.bf16.mxu0 0
      %424 = vmatmul.mubr.bf16.gmra.mrb[0].mxu0 %v362
      %v425 = vpop.f32.mrb[0].mxu0
      %v426 = vadd.f32 0.0, %v425
      %v427 = vpop.f32.mrb[0].mxu0
      %v428 = vpop.f32.mrb[0].mxu0
      %v429 = vadd.f32 0.0, %v428
      %v430 = vpop.f32.mrb[0].mxu0
      %431 = vmatprep.mubr.bf16.mxu0 0
      %432 = vmatmul.mubr.bf16.gmra.mrb[0].mxu0 %v365
      %v433 = vpop.f32.mrb[0].mxu0
      %v434 = vadd.f32 0.0, %v433
      %v435 = vpop.f32.mrb[0].mxu0
      %v436 = vpop.f32.mrb[0].mxu0
      %v437 = vadd.f32 0.0, %v436
      %v438 = vpop.f32.mrb[0].mxu0
      %439 = vmatprep.mubr.bf16.mxu0 0
      %440 = vmatmul.mubr.bf16.gmra.mrb[0].mxu0 %v368
      %v441 = vpop.f32.mrb[0].mxu0
      %v442 = vadd.f32 0.0, %v441
      %v443 = vpop.f32.mrb[0].mxu0
      %v444 = vpop.f32.mrb[0].mxu0
      %v445 = vadd.f32 0.0, %v444
      %v446 = vpop.f32.mrb[0].mxu0
      %447 = vmatprep.mubr.bf16.mxu0 0
      %448 = vmatmul.mubr.bf16.gmra.mrb[0].mxu0 %v371
      %v449 = vpop.f32.mrb[0].mxu0
      %v450 = vadd.f32 0.0, %v449
      %v451 = vpop.f32.mrb[0].mxu0
      %v452 = vpop.f32.mrb[0].mxu0
      %v453 = vadd.f32 0.0, %v452
      %v454 = vpop.f32.mrb[0].mxu0
      %455 = vmatprep.mubr.bf16.mxu0 0
      %456 = vmatmul.mubr.bf16.gmra.mrb[0].mxu0 %v374
      %v457 = vpop.f32.mrb[0].mxu0
      %v458 = vadd.f32 0.0, %v457
      %v459 = vpop.f32.mrb[0].mxu0
      %v460 = vpop.f32.mrb[0].mxu0
      %v461 = vadd.f32 0.0, %v460
      %v462 = vpop.f32.mrb[0].mxu0
      %463 = vmatprep.mubr.bf16.mxu0 0
      %464 = vmatmul.mubr.bf16.gmra.mrb[0].mxu0 %v377
      %v465 = vpop.f32.mrb[0].mxu0
      %v466 = vadd.f32 0.0, %v465
      %v467 = vpop.f32.mrb[0].mxu0
      %v468 = vpop.f32.mrb[0].mxu0
      %v469 = vadd.f32 0.0, %v468
      %v470 = vpop.f32.mrb[0].mxu0
      %471 = vmatprep.mubr.bf16.mxu0 0
      %472 = vmatmul.mubr.bf16.gmra.mrb[0].mxu0 %v380
      %v473 = vpop.f32.mrb[0].mxu0
      %v474 = vadd.f32 0.0, %v473
      %v475 = vpop.f32.mrb[0].mxu0
      %v476 = vpop.f32.mrb[0].mxu0
      %v477 = vadd.f32 0.0, %v476
      %v478 = vpop.f32.mrb[0].mxu0
      %479 = vmatprep.mubr.bf16.mxu0 0
      %480 = vmatmul.mubr.bf16.gmra.mrb[0].mxu0 %v383
      %v481 = vpop.f32.mrb[0].mxu0
      %v482 = vadd.f32 0.0, %v481
      %v483 = vpop.f32.mrb[0].mxu0
      %v484 = vpop.f32.mrb[0].mxu0
      %v485 = vadd.f32 0.0, %v484
      %v486 = vpop.f32.mrb[0].mxu0
      %487 = vmatprep.mubr.bf16.mxu0 0
      %488 = vmatmul.mubr.bf16.gmra.mrb[0].mxu0 %v386
      %v489 = vpop.f32.mrb[0].mxu0
      %v490 = vadd.f32 0.0, %v489
      %v491 = vpop.f32.mrb[0].mxu0
      %v492 = vpop.f32.mrb[0].mxu0
      %v493 = vadd.f32 0.0, %v492
      %v494 = vpop.f32.mrb[0].mxu0
      %495 = vmatprep.mubr.bf16.mxu0 0
      %496 = vmatmul.mubr.bf16.gmra.mrb[0].mxu0 %v389
      %v497 = vpop.f32.mrb[0].mxu0
      %v498 = vadd.f32 0.0, %v497
      %v499 = vpop.f32.mrb[0].mxu0
      %v500 = vpop.f32.mrb[0].mxu0
      %v501 = vpop.f32.mrb[0].mxu0
      %502 = vdwg.mxu0
      %v503 = vpack.c.b16 %v262, %v262
      %v506 = vunpack.c.l.b16 %v218
      %v507 = vunpack.c.l.b16 %v219
      %v508 = vpack.c.b16 %v507, %v506
      %v510 = vsel %vm360, %v264, 0
      %v512 = vsel %vm360, %v265, 0
      %v514 = vsel %vm360, %v266, 0
      %v516 = vsel %vm360, %v267, 0
      %v518 = vsel %vm360, %v268, 0
      %v520 = vsel %vm360, %v269, 0
      %v522 = vsel %vm360, %v270, 0
      %v524 = vsel %vm360, %v271, 0
      %v526 = vsel %vm360, %v272, 0
      %v529 = vsel %vm360, %v503, 0
      %531 = vmatprep.subr.bf16.mxu0 0
      %532 = vmatpush1.bf16.msra.mxu0 %v508
      %533 = vmatprep.subr.bf16.mxu0 0
      %534 = vmatpush1.bf16.msra.mxu0 0
      %535 = vmatprep.subr.bf16.mxu0 0
      %536 = vmatpush1.bf16.msra.mxu0 0
      %537 = vmatprep.subr.bf16.mxu0 0
      %538 = vmatpush1.bf16.msra.mxu0 0
      %539 = vmatprep.subr.bf16.mxu0 0
      %540 = vmatpush1.bf16.msra.mxu0 0
      %541 = vmatprep.subr.bf16.mxu0 0
      %542 = vmatpush1.bf16.msra.mxu0 0
      %543 = vmatprep.subr.bf16.mxu0 0
      %544 = vmatpush1.bf16.msra.mxu0 0
      %545 = vmatprep.subr.bf16.mxu0 0
      %546 = vmatpush1.bf16.msra.mxu0 0
      %547 = vmatprep.subr.bf16.mxu0 0
      %548 = vmatpush1.bf16.msra.mxu0 0
      %549 = vmatprep.subr.bf16.mxu0 0
      %550 = vmatpush1.bf16.msra.mxu0 0
      %551 = vmatprep.subr.bf16.mxu0 0
      %552 = vmatpush1.bf16.msra.mxu0 0
      %553 = vmatprep.subr.bf16.mxu0 0
      %554 = vmatpush1.bf16.msra.mxu0 0
      %555 = vmatprep.subr.bf16.mxu0 0
      %556 = vmatpush1.bf16.msra.mxu0 0
      %557 = vmatprep.subr.bf16.mxu0 0
      %558 = vmatpush1.bf16.msra.mxu0 0
      %559 = vmatprep.subr.bf16.mxu0 0
      %560 = vmatpush1.bf16.msra.mxu0 0
      %561 = vmatprep.subr.bf16.mxu0 0
      %562 = vmatpush1.bf16.msra.mxu0 0
      %563 = vmatprep.mubr.bf16.mxu0 0
      %564 = vmatmul.mubr.bf16.gmra.mrb[0].mxu0 %v510
      %v565 = vpop.f32.mrb[0].mxu0
      %v566 = vadd.f32 %v426, %v565
      %v567 = vpop.f32.mrb[0].mxu0
      %v568 = vpop.f32.mrb[0].mxu0
      %v569 = vadd.f32 %v429, %v568
      %v570 = vpop.f32.mrb[0].mxu0
      %571 = vmatprep.mubr.bf16.mxu0 0
      %572 = vmatmul.mubr.bf16.gmra.mrb[0].mxu0 %v512
      %v573 = vpop.f32.mrb[0].mxu0
      %v574 = vadd.f32 %v434, %v573
      %v575 = vpop.f32.mrb[0].mxu0
      %v576 = vpop.f32.mrb[0].mxu0
      %v577 = vadd.f32 %v437, %v576
      %v578 = vpop.f32.mrb[0].mxu0
      %579 = vmatprep.mubr.bf16.mxu0 0
      %580 = vmatmul.mubr.bf16.gmra.mrb[0].mxu0 %v514
      %v581 = vpop.f32.mrb[0].mxu0
      %v582 = vadd.f32 %v442, %v581
      %v583 = vpop.f32.mrb[0].mxu0
      %v584 = vpop.f32.mrb[0].mxu0
      %v585 = vadd.f32 %v445, %v584
      %v586 = vpop.f32.mrb[0].mxu0
      %587 = vmatprep.mubr.bf16.mxu0 0
      %588 = vmatmul.mubr.bf16.gmra.mrb[0].mxu0 %v516
      %v589 = vpop.f32.mrb[0].mxu0
      %v590 = vadd.f32 %v450, %v589
      %v591 = vpop.f32.mrb[0].mxu0
      %v592 = vpop.f32.mrb[0].mxu0
      %v593 = vadd.f32 %v453, %v592
      %v594 = vpop.f32.mrb[0].mxu0
      %595 = vmatprep.mubr.bf16.mxu0 0
      %596 = vmatmul.mubr.bf16.gmra.mrb[0].mxu0 %v518
      %v597 = vpop.f32.mrb[0].mxu0
      %v598 = vadd.f32 %v458, %v597
      %v599 = vpop.f32.mrb[0].mxu0
      %v600 = vpop.f32.mrb[0].mxu0
      %v601 = vadd.f32 %v461, %v600
      %v602 = vpop.f32.mrb[0].mxu0
      %603 = vmatprep.mubr.bf16.mxu0 0
      %604 = vmatmul.mubr.bf16.gmra.mrb[0].mxu0 %v520
      %v605 = vpop.f32.mrb[0].mxu0
      %v606 = vadd.f32 %v466, %v605
      %v607 = vpop.f32.mrb[0].mxu0
      %v608 = vpop.f32.mrb[0].mxu0
      %v609 = vadd.f32 %v469, %v608
      %v610 = vpop.f32.mrb[0].mxu0
      %611 = vmatprep.mubr.bf16.mxu0 0
      %612 = vmatmul.mubr.bf16.gmra.mrb[0].mxu0 %v522
      %v613 = vpop.f32.mrb[0].mxu0
      %v614 = vadd.f32 %v474, %v613
      %v615 = vpop.f32.mrb[0].mxu0
      %v616 = vpop.f32.mrb[0].mxu0
      %v617 = vadd.f32 %v477, %v616
      %v618 = vpop.f32.mrb[0].mxu0
      %619 = vmatprep.mubr.bf16.mxu0 0
      %620 = vmatmul.mubr.bf16.gmra.mrb[0].mxu0 %v524
      %v621 = vpop.f32.mrb[0].mxu0
      %v622 = vadd.f32 %v482, %v621
      %v623 = vpop.f32.mrb[0].mxu0
      %v624 = vpop.f32.mrb[0].mxu0
      %v625 = vadd.f32 %v485, %v624
      %v626 = vpop.f32.mrb[0].mxu0
      %627 = vmatprep.mubr.bf16.mxu0 0
      %628 = vmatmul.mubr.bf16.gmra.mrb[0].mxu0 %v526
      %v629 = vpop.f32.mrb[0].mxu0
      %v630 = vadd.f32 %v490, %v629
      %v631 = vpop.f32.mrb[0].mxu0
      %v632 = vpop.f32.mrb[0].mxu0
      %v633 = vadd.f32 %v493, %v632
      %v634 = vpop.f32.mrb[0].mxu0
      %635 = vmatprep.mubr.bf16.mxu0 0
      %636 = vmatmul.mubr.bf16.gmra.mrb[0].mxu0 %v529
      %v637 = vpop.f32.mrb[0].mxu0
      %v638 = vadd.f32 %v498, %v637
      %v639 = vpop.f32.mrb[0].mxu0
      %v640 = vpop.f32.mrb[0].mxu0
      %v641 = vpop.f32.mrb[0].mxu0
      %642 = vdwg.mxu0
      %v643 = vld [vmem:[%s192 + $0x8] sm:$0xf]
      %v644 = vld [vmem:[%s192 + $0xc] sm:$0xf]
      %v645 = vld [vmem:[%s192 + $0x10] sm:$0xf]
      %v646 = vld [vmem:[%s192 + $0x14] sm:$0xf]
      %v647 = vld [vmem:[%s192 + $0x18] sm:$0xf]
      %v648 = vld [vmem:[%s192 + $0x1c] sm:$0xf]
      %v649 = vld [vmem:[%s192 + $0x20] sm:$0xf]
      %v650 = vld [vmem:[%s192 + $0x24] sm:$0xf]
      %v651 = vld [vmem:[%s192 + $0x28] sm:$0xf]
      %v652 = vld [vmem:[%s192 + $0x2c] sm:$0xf]
      %v653 = vld [vmem:[%s192 + $0x30] sm:$0xf]
      %v654 = vld [vmem:[%s192 + $0x34] sm:$0xf]
      %v655 = vld [vmem:[%s192 + $0x38] sm:$0xf]
      %v656 = vld [vmem:[%s192 + $0x3c] sm:$0xf]
      %v657 = vld [vmem:[%s192 + $0x40] sm:$0xf]
      %v658 = vld [vmem:[%s192 + $0x44] sm:$0xf]
      %v659 = vld [vmem:[%s192 + $0x48] sm:$0xf]
      %v660 = vld [vmem:[%s192 + $0x4c] sm:$0xf]
      %v661 = vld [vmem:[%s192 + $0x50] sm:$0xf]
      %v662 = vld [vmem:[%s192 + $0x54] sm:$0x1]
      %s663 = scalar_lea.vmem %s1, 16
      %v664 = vld [vmem:[%s663] sm:$0xf]
      %v665 = vld [vmem:[%s663 + $0x4] sm:$0xf]
      %v686 = vunpack.c.l.b16 %v643
      %v687 = vunpack.c.l.b16 %v644
      %v688 = vunpack.c.l.b16 %v645
      %v689 = vunpack.c.l.b16 %v646
      %v690 = vunpack.c.l.b16 %v647
      %v691 = vunpack.c.l.b16 %v648
      %v692 = vunpack.c.l.b16 %v649
      %v693 = vunpack.c.l.b16 %v650
      %v694 = vunpack.c.l.b16 %v651
      %v695 = vunpack.c.l.b16 %v652
      %v696 = vunpack.c.l.b16 %v653
      %v697 = vunpack.c.l.b16 %v654
      %v698 = vunpack.c.l.b16 %v655
      %v699 = vunpack.c.l.b16 %v656
      %v700 = vunpack.c.l.b16 %v657
      %v701 = vunpack.c.l.b16 %v658
      %v702 = vunpack.c.l.b16 %v659
      %v703 = vunpack.c.l.b16 %v660
      %v704 = vunpack.c.l.b16 %v661
      %v705 = vunpack.c.l.b16 %v662
      %v706 = vpack.c.b16 %v687, %v686
      %v707 = vpack.c.b16 %v689, %v688
      %v708 = vpack.c.b16 %v691, %v690
      %v709 = vpack.c.b16 %v693, %v692
      %v710 = vpack.c.b16 %v695, %v694
      %v711 = vpack.c.b16 %v697, %v696
      %v712 = vpack.c.b16 %v699, %v698
      %v713 = vpack.c.b16 %v701, %v700
      %v714 = vpack.c.b16 %v703, %v702
      %v715 = vpack.c.b16 %v705, %v704
      %v717 = vshrl.u32 %v706, 16
      %v719 = vshll.u32 %v706, 16
      %v721 = vrot.slane %v719, 1
      %v722 = vor.u32 %v717, %v721
      %v724 = vshll.u32 %v707, 16
      %v726 = vrot.slane %v724, 1
      %v727 = vsel %vm274, %v722, %v726
      %v728 = vshrl.u32 %v707, 16
      %v730 = vor.u32 %v728, %v726
      %v732 = vshll.u32 %v708, 16
      %v734 = vrot.slane %v732, 1
      %v735 = vsel %vm274, %v730, %v734
      %v736 = vshrl.u32 %v708, 16
      %v738 = vor.u32 %v736, %v734
      %v740 = vshll.u32 %v709, 16
      %v742 = vrot.slane %v740, 1
      %v743 = vsel %vm274, %v738, %v742
      %v744 = vshrl.u32 %v709, 16
      %v746 = vor.u32 %v744, %v742
      %v748 = vshll.u32 %v710, 16
      %v750 = vrot.slane %v748, 1
      %v751 = vsel %vm274, %v746, %v750
      %v752 = vshrl.u32 %v710, 16
      %v754 = vor.u32 %v752, %v750
      %v756 = vshll.u32 %v711, 16
      %v758 = vrot.slane %v756, 1
      %v759 = vsel %vm274, %v754, %v758
      %v760 = vshrl.u32 %v711, 16
      %v762 = vor.u32 %v760, %v758
      %v764 = vshll.u32 %v712, 16
      %v766 = vrot.slane %v764, 1
      %v767 = vsel %vm274, %v762, %v766
      %v768 = vshrl.u32 %v712, 16
      %v770 = vor.u32 %v768, %v766
      %v772 = vshll.u32 %v713, 16
      %v774 = vrot.slane %v772, 1
      %v775 = vsel %vm274, %v770, %v774
      %v776 = vshrl.u32 %v713, 16
      %v778 = vor.u32 %v776, %v774
      %v780 = vshll.u32 %v714, 16
      %v782 = vrot.slane %v780, 1
      %v783 = vsel %vm274, %v778, %v782
      %v784 = vshrl.u32 %v714, 16
      %v786 = vor.u32 %v784, %v782
      %v788 = vshll.u32 %v715, 16
      %v790 = vrot.slane %v788, 1
      %v791 = vsel %vm274, %v786, %v790
      %v792 = vshrl.u32 %v715, 16
      %v794 = vor.u32 %v792, %v790
      %v797 = vunpack.c.l.b16 %v664
      %v798 = vunpack.c.l.b16 %v665
      %v799 = vpack.c.b16 %v798, %v797
      %v802 = vsel %vm360, %v727, 0
      %v805 = vsel %vm360, %v735, 0
      %v808 = vsel %vm360, %v743, 0
      %v811 = vsel %vm360, %v751, 0
      %v814 = vsel %vm360, %v759, 0
      %v817 = vsel %vm360, %v767, 0
      %v820 = vsel %vm360, %v775, 0
      %v823 = vsel %vm360, %v783, 0
      %v826 = vsel %vm360, %v791, 0
      %v829 = vsel %vm360, %v794, 0
      %831 = vmatprep.subr.bf16.mxu0 0
      %832 = vmatpush1.bf16.msra.mxu0 %v799
      %833 = vmatprep.subr.bf16.mxu0 0
      %834 = vmatpush1.bf16.msra.mxu0 0
      %835 = vmatprep.subr.bf16.mxu0 0
      %836 = vmatpush1.bf16.msra.mxu0 0
      %837 = vmatprep.subr.bf16.mxu0 0
      %838 = vmatpush1.bf16.msra.mxu0 0
      %839 = vmatprep.subr.bf16.mxu0 0
      %840 = vmatpush1.bf16.msra.mxu0 0
      %841 = vmatprep.subr.bf16.mxu0 0
      %842 = vmatpush1.bf16.msra.mxu0 0
      %843 = vmatprep.subr.bf16.mxu0 0
      %844 = vmatpush1.bf16.msra.mxu0 0
      %845 = vmatprep.subr.bf16.mxu0 0
      %846 = vmatpush1.bf16.msra.mxu0 0
      %847 = vmatprep.subr.bf16.mxu0 0
      %848 = vmatpush1.bf16.msra.mxu0 0
      %849 = vmatprep.subr.bf16.mxu0 0
      %850 = vmatpush1.bf16.msra.mxu0 0
      %851 = vmatprep.subr.bf16.mxu0 0
      %852 = vmatpush1.bf16.msra.mxu0 0
      %853 = vmatprep.subr.bf16.mxu0 0
      %854 = vmatpush1.bf16.msra.mxu0 0
      %855 = vmatprep.subr.bf16.mxu0 0
      %856 = vmatpush1.bf16.msra.mxu0 0
      %857 = vmatprep.subr.bf16.mxu0 0
      %858 = vmatpush1.bf16.msra.mxu0 0
      %859 = vmatprep.subr.bf16.mxu0 0
      %860 = vmatpush1.bf16.msra.mxu0 0
      %861 = vmatprep.subr.bf16.mxu0 0
      %862 = vmatpush1.bf16.msra.mxu0 0
      %863 = vmatprep.mubr.bf16.mxu0 0
      %864 = vmatmul.mubr.bf16.gmra.mrb[0].mxu0 %v802
      %v865 = vpop.f32.mrb[0].mxu0
      %v866 = vadd.f32 0.0, %v865
      %v867 = vpop.f32.mrb[0].mxu0
      %v868 = vpop.f32.mrb[0].mxu0
      %v869 = vadd.f32 0.0, %v868
      %v870 = vpop.f32.mrb[0].mxu0
      %871 = vmatprep.mubr.bf16.mxu0 0
      %872 = vmatmul.mubr.bf16.gmra.mrb[0].mxu0 %v805
      %v873 = vpop.f32.mrb[0].mxu0
      %v874 = vadd.f32 0.0, %v873
      %v875 = vpop.f32.mrb[0].mxu0
      %v876 = vpop.f32.mrb[0].mxu0
      %v877 = vadd.f32 0.0, %v876
      %v878 = vpop.f32.mrb[0].mxu0
      %879 = vmatprep.mubr.bf16.mxu0 0
      %880 = vmatmul.mubr.bf16.gmra.mrb[0].mxu0 %v808
      %v881 = vpop.f32.mrb[0].mxu0
      %v882 = vadd.f32 0.0, %v881
      %v883 = vpop.f32.mrb[0].mxu0
      %v884 = vpop.f32.mrb[0].mxu0
      %v885 = vadd.f32 0.0, %v884
      %v886 = vpop.f32.mrb[0].mxu0
      %887 = vmatprep.mubr.bf16.mxu0 0
      %888 = vmatmul.mubr.bf16.gmra.mrb[0].mxu0 %v811
      %v889 = vpop.f32.mrb[0].mxu0
      %v890 = vadd.f32 0.0, %v889
      %v891 = vpop.f32.mrb[0].mxu0
      %v892 = vpop.f32.mrb[0].mxu0
      %v893 = vadd.f32 0.0, %v892
      %v894 = vpop.f32.mrb[0].mxu0
      %895 = vmatprep.mubr.bf16.mxu0 0
      %896 = vmatmul.mubr.bf16.gmra.mrb[0].mxu0 %v814
      %v897 = vpop.f32.mrb[0].mxu0
      %v898 = vadd.f32 0.0, %v897
      %v899 = vpop.f32.mrb[0].mxu0
      %v900 = vpop.f32.mrb[0].mxu0
      %v901 = vadd.f32 0.0, %v900
      %v902 = vpop.f32.mrb[0].mxu0
      %903 = vmatprep.mubr.bf16.mxu0 0
      %904 = vmatmul.mubr.bf16.gmra.mrb[0].mxu0 %v817
      %v905 = vpop.f32.mrb[0].mxu0
      %v906 = vadd.f32 0.0, %v905
      %v907 = vpop.f32.mrb[0].mxu0
      %v908 = vpop.f32.mrb[0].mxu0
      %v909 = vadd.f32 0.0, %v908
      %v910 = vpop.f32.mrb[0].mxu0
      %911 = vmatprep.mubr.bf16.mxu0 0
      %912 = vmatmul.mubr.bf16.gmra.mrb[0].mxu0 %v820
      %v913 = vpop.f32.mrb[0].mxu0
      %v914 = vadd.f32 0.0, %v913
      %v915 = vpop.f32.mrb[0].mxu0
      %v916 = vpop.f32.mrb[0].mxu0
      %v917 = vadd.f32 0.0, %v916
      %v918 = vpop.f32.mrb[0].mxu0
      %919 = vmatprep.mubr.bf16.mxu0 0
      %920 = vmatmul.mubr.bf16.gmra.mrb[0].mxu0 %v823
      %v921 = vpop.f32.mrb[0].mxu0
      %v922 = vadd.f32 0.0, %v921
      %v923 = vpop.f32.mrb[0].mxu0
      %v924 = vpop.f32.mrb[0].mxu0
      %v925 = vadd.f32 0.0, %v924
      %v926 = vpop.f32.mrb[0].mxu0
      %927 = vmatprep.mubr.bf16.mxu0 0
      %928 = vmatmul.mubr.bf16.gmra.mrb[0].mxu0 %v826
      %v929 = vpop.f32.mrb[0].mxu0
      %v930 = vadd.f32 0.0, %v929
      %v931 = vpop.f32.mrb[0].mxu0
      %v932 = vpop.f32.mrb[0].mxu0
      %v933 = vadd.f32 0.0, %v932
      %v934 = vpop.f32.mrb[0].mxu0
      %935 = vmatprep.mubr.bf16.mxu0 0
      %936 = vmatmul.mubr.bf16.gmra.mrb[0].mxu0 %v829
      %v937 = vpop.f32.mrb[0].mxu0
      %v938 = vadd.f32 0.0, %v937
      %v939 = vpop.f32.mrb[0].mxu0
      %v940 = vpop.f32.mrb[0].mxu0
      %v941 = vpop.f32.mrb[0].mxu0
      %942 = vdwg.mxu0
      %v943 = vadd.f32 %v566, %v866
      %v944 = vadd.f32 %v569, %v869
      %v945 = vadd.f32 %v574, %v874
      %v946 = vadd.f32 %v577, %v877
      %v947 = vadd.f32 %v582, %v882
      %v948 = vadd.f32 %v585, %v885
      %v949 = vadd.f32 %v590, %v890
      %v950 = vadd.f32 %v593, %v893
      %v951 = vadd.f32 %v598, %v898
      %v952 = vadd.f32 %v601, %v901
      %v953 = vadd.f32 %v606, %v906
      %v954 = vadd.f32 %v609, %v909
      %v955 = vadd.f32 %v614, %v914
      %v956 = vadd.f32 %v617, %v917
      %v957 = vadd.f32 %v622, %v922
      %v958 = vadd.f32 %v625, %v925
      %v959 = vadd.f32 %v630, %v930
      %v960 = vadd.f32 %v633, %v933
      %v961 = vadd.f32 %v638, %v938
      %v962 = vld [vmem:[%s192 + $0x8] sm:$0xe]
      %s963 = scalar_lea.vmem %s1, 24
      %v964 = vld [vmem:[%s963] sm:$0xf]
      %v965 = vld [vmem:[%s963 + $0x4] sm:$0xf]
      %v967 = vunpack.c.l.b16 %v962
      %v968 = vpack.c.b16 %v687, %v967
      %vm969 = vcmask 1046528
      %v970 = vrot.slane %v968, 1
      %v971 = vrot.slane %v707, 1
      %v972 = vsel %vm969, %v970, %v971
      %v973 = vrot.slane %v708, 1
      %v974 = vsel %vm969, %v971, %v973
      %v975 = vrot.slane %v709, 1
      %v976 = vsel %vm969, %v973, %v975
      %v977 = vrot.slane %v710, 1
      %v978 = vsel %vm969, %v975, %v977
      %v979 = vrot.slane %v711, 1
      %v980 = vsel %vm969, %v977, %v979
      %v981 = vrot.slane %v712, 1
      %v982 = vsel %vm969, %v979, %v981
      %v983 = vrot.slane %v713, 1
      %v984 = vsel %vm969, %v981, %v983
      %v985 = vrot.slane %v714, 1
      %v986 = vsel %vm969, %v983, %v985
      %v987 = vrot.slane %v715, 1
      %v988 = vsel %vm969, %v985, %v987
      %v991 = vunpack.c.l.b16 %v964
      %v992 = vunpack.c.l.b16 %v965
      %v993 = vpack.c.b16 %v992, %v991
      %v996 = vsel %vm360, %v972, 0
      %v999 = vsel %vm360, %v974, 0
      %v1002 = vsel %vm360, %v976, 0
      %v1005 = vsel %vm360, %v978, 0
      %v1008 = vsel %vm360, %v980, 0
      %v1011 = vsel %vm360, %v982, 0
      %v1014 = vsel %vm360, %v984, 0
      %v1017 = vsel %vm360, %v986, 0
      %v1020 = vsel %vm360, %v988, 0
      %v1023 = vsel %vm360, %v987, 0
      %1025 = vmatprep.subr.bf16.mxu0 0
      %1026 = vmatpush1.bf16.msra.mxu0 %v993
      %1027 = vmatprep.subr.bf16.mxu0 0
      %1028 = vmatpush1.bf16.msra.mxu0 0
      %1029 = vmatprep.subr.bf16.mxu0 0
      %1030 = vmatpush1.bf16.msra.mxu0 0
      %1031 = vmatprep.subr.bf16.mxu0 0
      %1032 = vmatpush1.bf16.msra.mxu0 0
      %1033 = vmatprep.subr.bf16.mxu0 0
      %1034 = vmatpush1.bf16.msra.mxu0 0
      %1035 = vmatprep.subr.bf16.mxu0 0
      %1036 = vmatpush1.bf16.msra.mxu0 0
      %1037 = vmatprep.subr.bf16.mxu0 0
      %1038 = vmatpush1.bf16.msra.mxu0 0
      %1039 = vmatprep.subr.bf16.mxu0 0
      %1040 = vmatpush1.bf16.msra.mxu0 0
      %1041 = vmatprep.subr.bf16.mxu0 0
      %1042 = vmatpush1.bf16.msra.mxu0 0
      %1043 = vmatprep.subr.bf16.mxu0 0
      %1044 = vmatpush1.bf16.msra.mxu0 0
      %1045 = vmatprep.subr.bf16.mxu0 0
      %1046 = vmatpush1.bf16.msra.mxu0 0
      %1047 = vmatprep.subr.bf16.mxu0 0
      %1048 = vmatpush1.bf16.msra.mxu0 0
      %1049 = vmatprep.subr.bf16.mxu0 0
      %1050 = vmatpush1.bf16.msra.mxu0 0
      %1051 = vmatprep.subr.bf16.mxu0 0
      %1052 = vmatpush1.bf16.msra.mxu0 0
      %1053 = vmatprep.subr.bf16.mxu0 0
      %1054 = vmatpush1.bf16.msra.mxu0 0
      %1055 = vmatprep.subr.bf16.mxu0 0
      %1056 = vmatpush1.bf16.msra.mxu0 0
      %1057 = vmatprep.mubr.bf16.mxu0 0
      %1058 = vmatmul.mubr.bf16.gmra.mrb[0].mxu0 %v996
      %v1059 = vpop.f32.mrb[0].mxu0
      %v1060 = vadd.f32 0.0, %v1059
      %v1061 = vpop.f32.mrb[0].mxu0
      %v1062 = vpop.f32.mrb[0].mxu0
      %v1063 = vadd.f32 0.0, %v1062
      %v1064 = vpop.f32.mrb[0].mxu0
      %1065 = vmatprep.mubr.bf16.mxu0 0
      %1066 = vmatmul.mubr.bf16.gmra.mrb[0].mxu0 %v999
      %v1067 = vpop.f32.mrb[0].mxu0
      %v1068 = vadd.f32 0.0, %v1067
      %v1069 = vpop.f32.mrb[0].mxu0
      %v1070 = vpop.f32.mrb[0].mxu0
      %v1071 = vadd.f32 0.0, %v1070
      %v1072 = vpop.f32.mrb[0].mxu0
      %1073 = vmatprep.mubr.bf16.mxu0 0
      %1074 = vmatmul.mubr.bf16.gmra.mrb[0].mxu0 %v1002
      %v1075 = vpop.f32.mrb[0].mxu0
      %v1076 = vadd.f32 0.0, %v1075
      %v1077 = vpop.f32.mrb[0].mxu0
      %v1078 = vpop.f32.mrb[0].mxu0
      %v1079 = vadd.f32 0.0, %v1078
      %v1080 = vpop.f32.mrb[0].mxu0
      %1081 = vmatprep.mubr.bf16.mxu0 0
      %1082 = vmatmul.mubr.bf16.gmra.mrb[0].mxu0 %v1005
      %v1083 = vpop.f32.mrb[0].mxu0
      %v1084 = vadd.f32 0.0, %v1083
      %v1085 = vpop.f32.mrb[0].mxu0
      %v1086 = vpop.f32.mrb[0].mxu0
      %v1087 = vadd.f32 0.0, %v1086
      %v1088 = vpop.f32.mrb[0].mxu0
      %1089 = vmatprep.mubr.bf16.mxu0 0
      %1090 = vmatmul.mubr.bf16.gmra.mrb[0].mxu0 %v1008
      %v1091 = vpop.f32.mrb[0].mxu0
      %v1092 = vadd.f32 0.0, %v1091
      %v1093 = vpop.f32.mrb[0].mxu0
      %v1094 = vpop.f32.mrb[0].mxu0
      %v1095 = vadd.f32 0.0, %v1094
      %v1096 = vpop.f32.mrb[0].mxu0
      %1097 = vmatprep.mubr.bf16.mxu0 0
      %1098 = vmatmul.mubr.bf16.gmra.mrb[0].mxu0 %v1011
      %v1099 = vpop.f32.mrb[0].mxu0
      %v1100 = vadd.f32 0.0, %v1099
      %v1101 = vpop.f32.mrb[0].mxu0
      %v1102 = vpop.f32.mrb[0].mxu0
      %v1103 = vadd.f32 0.0, %v1102
      %v1104 = vpop.f32.mrb[0].mxu0
      %1105 = vmatprep.mubr.bf16.mxu0 0
      %1106 = vmatmul.mubr.bf16.gmra.mrb[0].mxu0 %v1014
      %v1107 = vpop.f32.mrb[0].mxu0
      %v1108 = vadd.f32 0.0, %v1107
      %v1109 = vpop.f32.mrb[0].mxu0
      %v1110 = vpop.f32.mrb[0].mxu0
      %v1111 = vadd.f32 0.0, %v1110
      %v1112 = vpop.f32.mrb[0].mxu0
      %1113 = vmatprep.mubr.bf16.mxu0 0
      %1114 = vmatmul.mubr.bf16.gmra.mrb[0].mxu0 %v1017
      %v1115 = vpop.f32.mrb[0].mxu0
      %v1116 = vadd.f32 0.0, %v1115
      %v1117 = vpop.f32.mrb[0].mxu0
      %v1118 = vpop.f32.mrb[0].mxu0
      %v1119 = vadd.f32 0.0, %v1118
      %v1120 = vpop.f32.mrb[0].mxu0
      %1121 = vmatprep.mubr.bf16.mxu0 0
      %1122 = vmatmul.mubr.bf16.gmra.mrb[0].mxu0 %v1020
      %v1123 = vpop.f32.mrb[0].mxu0
      %v1124 = vadd.f32 0.0, %v1123
      %v1125 = vpop.f32.mrb[0].mxu0
      %v1126 = vpop.f32.mrb[0].mxu0
      %v1127 = vadd.f32 0.0, %v1126
      %v1128 = vpop.f32.mrb[0].mxu0
      %1129 = vmatprep.mubr.bf16.mxu0 0
      %1130 = vmatmul.mubr.bf16.gmra.mrb[0].mxu0 %v1023
      %v1131 = vpop.f32.mrb[0].mxu0
      %v1132 = vadd.f32 0.0, %v1131
      %v1133 = vpop.f32.mrb[0].mxu0
      %v1134 = vpop.f32.mrb[0].mxu0
      %v1135 = vpop.f32.mrb[0].mxu0
      %1136 = vdwg.mxu0
      %v1137 = vadd.f32 %v943, %v1060
      %v1138 = vadd.f32 %v944, %v1063
      %v1139 = vadd.f32 %v945, %v1068
      %v1140 = vadd.f32 %v946, %v1071
      %v1141 = vadd.f32 %v947, %v1076
      %v1142 = vadd.f32 %v948, %v1079
      %v1143 = vadd.f32 %v949, %v1084
      %v1144 = vadd.f32 %v950, %v1087
      %v1145 = vadd.f32 %v951, %v1092
      %v1146 = vadd.f32 %v952, %v1095
      %v1147 = vadd.f32 %v953, %v1100
      %v1148 = vadd.f32 %v954, %v1103
      %v1149 = vadd.f32 %v955, %v1108
      %v1150 = vadd.f32 %v956, %v1111
      %v1151 = vadd.f32 %v957, %v1116
      %v1152 = vadd.f32 %v958, %v1119
      %v1153 = vadd.f32 %v959, %v1124
      %v1154 = vadd.f32 %v960, %v1127
      %v1155 = vadd.f32 %v961, %v1132
      %v1156 = vld [vmem:[%s2] sm:$0x1]
      %v1158 = vlaneseq
      %v1159 = vshrl.u32 %v1158, 7
      %v1160 = vsub.s32 0, %v1159
      %v1161 = vrot.slane %v1156, %v1160
      %v1163 = vmul.f32 %v1137, %v1161
      %v1164 = vmul.f32 %v1138, %v1161
      %v1165 = vmul.f32 %v1139, %v1161
      %v1166 = vmul.f32 %v1140, %v1161
      %v1167 = vmul.f32 %v1141, %v1161
      %v1168 = vmul.f32 %v1142, %v1161
      %v1169 = vmul.f32 %v1143, %v1161
      %v1170 = vmul.f32 %v1144, %v1161
      %v1171 = vmul.f32 %v1145, %v1161
      %v1172 = vmul.f32 %v1146, %v1161
      %v1173 = vmul.f32 %v1147, %v1161
      %v1174 = vmul.f32 %v1148, %v1161
      %v1175 = vmul.f32 %v1149, %v1161
      %v1176 = vmul.f32 %v1150, %v1161
      %v1177 = vmul.f32 %v1151, %v1161
      %v1178 = vmul.f32 %v1152, %v1161
      %v1179 = vmul.f32 %v1153, %v1161
      %v1180 = vmul.f32 %v1154, %v1161
      %v1181 = vmul.f32 %v1155, %v1161
      %v1182 = vld [vmem:[%s3] sm:$0x1]
      %v1184 = vlaneseq
      %v1185 = vshrl.u32 %v1184, 7
      %v1186 = vsub.s32 0, %v1185
      %v1187 = vrot.slane %v1182, %v1186
      %v1189 = vadd.f32 %v1163, %v1187
      %v1190 = vadd.f32 %v1164, %v1187
      %v1191 = vadd.f32 %v1165, %v1187
      %v1192 = vadd.f32 %v1166, %v1187
      %v1193 = vadd.f32 %v1167, %v1187
      %v1194 = vadd.f32 %v1168, %v1187
      %v1195 = vadd.f32 %v1169, %v1187
      %v1196 = vadd.f32 %v1170, %v1187
      %v1197 = vadd.f32 %v1171, %v1187
      %v1198 = vadd.f32 %v1172, %v1187
      %v1199 = vadd.f32 %v1173, %v1187
      %v1200 = vadd.f32 %v1174, %v1187
      %v1201 = vadd.f32 %v1175, %v1187
      %v1202 = vadd.f32 %v1176, %v1187
      %v1203 = vadd.f32 %v1177, %v1187
      %v1204 = vadd.f32 %v1178, %v1187
      %v1205 = vadd.f32 %v1179, %v1187
      %v1206 = vadd.f32 %v1180, %v1187
      %v1207 = vadd.f32 %v1181, %v1187
      %vm1208 = vcmp.ge.f32.partialorder %v1189, 0.0
      %vm1209 = vcmp.ge.f32.partialorder %v1190, 0.0
      %vm1210 = vcmp.ge.f32.partialorder %v1191, 0.0
      %vm1211 = vcmp.ge.f32.partialorder %v1192, 0.0
      %vm1212 = vcmp.ge.f32.partialorder %v1193, 0.0
      %vm1213 = vcmp.ge.f32.partialorder %v1194, 0.0
      %vm1214 = vcmp.ge.f32.partialorder %v1195, 0.0
      %vm1215 = vcmp.ge.f32.partialorder %v1196, 0.0
      %vm1216 = vcmp.ge.f32.partialorder %v1197, 0.0
      %vm1217 = vcmp.ge.f32.partialorder %v1198, 0.0
      %vm1218 = vcmp.ge.f32.partialorder %v1199, 0.0
      %vm1219 = vcmp.ge.f32.partialorder %v1200, 0.0
      %vm1220 = vcmp.ge.f32.partialorder %v1201, 0.0
      %vm1221 = vcmp.ge.f32.partialorder %v1202, 0.0
      %vm1222 = vcmp.ge.f32.partialorder %v1203, 0.0
      %vm1223 = vcmp.ge.f32.partialorder %v1204, 0.0
      %vm1224 = vcmp.ge.f32.partialorder %v1205, 0.0
      %vm1225 = vcmp.ge.f32.partialorder %v1206, 0.0
      %vm1226 = vcmp.ge.f32.partialorder %v1207, 0.0
      %v1227 = vmul.f32 %v1189, 0.2
      %v1228 = vmul.f32 %v1190, 0.2
      %v1229 = vmul.f32 %v1191, 0.2
      %v1230 = vmul.f32 %v1192, 0.2
      %v1231 = vmul.f32 %v1193, 0.2
      %v1232 = vmul.f32 %v1194, 0.2
      %v1233 = vmul.f32 %v1195, 0.2
      %v1234 = vmul.f32 %v1196, 0.2
      %v1235 = vmul.f32 %v1197, 0.2
      %v1236 = vmul.f32 %v1198, 0.2
      %v1237 = vmul.f32 %v1199, 0.2
      %v1238 = vmul.f32 %v1200, 0.2
      %v1239 = vmul.f32 %v1201, 0.2
      %v1240 = vmul.f32 %v1202, 0.2
      %v1241 = vmul.f32 %v1203, 0.2
      %v1242 = vmul.f32 %v1204, 0.2
      %v1243 = vmul.f32 %v1205, 0.2
      %v1244 = vmul.f32 %v1206, 0.2
      %v1245 = vmul.f32 %v1207, 0.2
      %v1246 = vsel %vm1208, %v1189, %v1227
      %v1247 = vsel %vm1209, %v1190, %v1228
      %v1248 = vsel %vm1210, %v1191, %v1229
      %v1249 = vsel %vm1211, %v1192, %v1230
      %v1250 = vsel %vm1212, %v1193, %v1231
      %v1251 = vsel %vm1213, %v1194, %v1232
      %v1252 = vsel %vm1214, %v1195, %v1233
      %v1253 = vsel %vm1215, %v1196, %v1234
      %v1254 = vsel %vm1216, %v1197, %v1235
      %v1255 = vsel %vm1217, %v1198, %v1236
      %v1256 = vsel %vm1218, %v1199, %v1237
      %v1257 = vsel %vm1219, %v1200, %v1238
      %v1258 = vsel %vm1220, %v1201, %v1239
      %v1259 = vsel %vm1221, %v1202, %v1240
      %v1260 = vsel %vm1222, %v1203, %v1241
      %v1261 = vsel %vm1223, %v1204, %v1242
      %v1262 = vsel %vm1224, %v1205, %v1243
      %v1263 = vsel %vm1225, %v1206, %v1244
      %v1264 = vsel %vm1226, %v1207, %v1245
      %v1265 = vpack.c.bf16 %v1247, %v1246
      %v1266 = vpack.c.bf16 %v1249, %v1248
      %v1267 = vpack.c.bf16 %v1251, %v1250
      %v1268 = vpack.c.bf16 %v1253, %v1252
      %v1269 = vpack.c.bf16 %v1255, %v1254
      %v1270 = vpack.c.bf16 %v1257, %v1256
      %v1271 = vpack.c.bf16 %v1259, %v1258
      %v1272 = vpack.c.bf16 %v1261, %v1260
      %v1273 = vpack.c.bf16 %v1263, %v1262
      %v1274 = vpack.c.bf16 %v1264, %v1264
      %v1285 = vunpack.c.l.b16 %v1265
      %v1286 = vunpack.c.h.b16 %v1265
      %v1287 = vunpack.c.l.b16 %v1266
      %v1288 = vunpack.c.h.b16 %v1266
      %v1289 = vunpack.c.l.b16 %v1267
      %v1290 = vunpack.c.h.b16 %v1267
      %v1291 = vunpack.c.l.b16 %v1268
      %v1292 = vunpack.c.h.b16 %v1268
      %v1293 = vunpack.c.l.b16 %v1269
      %v1294 = vunpack.c.h.b16 %v1269
      %v1295 = vunpack.c.l.b16 %v1270
      %v1296 = vunpack.c.h.b16 %v1270
      %v1297 = vunpack.c.l.b16 %v1271
      %v1298 = vunpack.c.h.b16 %v1271
      %v1299 = vunpack.c.l.b16 %v1272
      %v1300 = vunpack.c.h.b16 %v1272
      %v1301 = vunpack.c.l.b16 %v1273
      %v1302 = vunpack.c.h.b16 %v1273
      %v1303 = vunpack.c.l.b16 %v1274
      %v1304 = vpack.c.b16 %v1285, %v1285
      %v1305 = vpack.c.b16 %v1286, %v1286
      %v1306 = vpack.c.b16 %v1287, %v1287
      %v1307 = vpack.c.b16 %v1288, %v1288
      %v1308 = vpack.c.b16 %v1289, %v1289
      %v1309 = vpack.c.b16 %v1290, %v1290
      %v1310 = vpack.c.b16 %v1291, %v1291
      %v1311 = vpack.c.b16 %v1292, %v1292
      %v1312 = vpack.c.b16 %v1293, %v1293
      %v1313 = vpack.c.b16 %v1294, %v1294
      %v1314 = vpack.c.b16 %v1295, %v1295
      %v1315 = vpack.c.b16 %v1296, %v1296
      %v1316 = vpack.c.b16 %v1297, %v1297
      %v1317 = vpack.c.b16 %v1298, %v1298
      %v1318 = vpack.c.b16 %v1299, %v1299
      %v1319 = vpack.c.b16 %v1300, %v1300
      %v1320 = vpack.c.b16 %v1301, %v1301
      %v1321 = vpack.c.b16 %v1302, %v1302
      %v1322 = vpack.c.b16 %v1303, %v1303
      %1342 = vst [vmem:[%s197] sm:$0xf] %v1304
      %1343 = vst [vmem:[%s197 + $0x4] sm:$0xf] %v1305
      %1344 = vst [vmem:[%s197 + $0x8] sm:$0xf] %v1306
      %1345 = vst [vmem:[%s197 + $0xc] sm:$0xf] %v1307
      %1346 = vst [vmem:[%s197 + $0x10] sm:$0xf] %v1308
      %1347 = vst [vmem:[%s197 + $0x14] sm:$0xf] %v1309
      %1348 = vst [vmem:[%s197 + $0x18] sm:$0xf] %v1310
      %1349 = vst [vmem:[%s197 + $0x1c] sm:$0xf] %v1311
      %1350 = vst [vmem:[%s197 + $0x20] sm:$0xf] %v1312
      %1351 = vst [vmem:[%s197 + $0x24] sm:$0xf] %v1313
      %1352 = vst [vmem:[%s197 + $0x28] sm:$0xf] %v1314
      %1353 = vst [vmem:[%s197 + $0x2c] sm:$0xf] %v1315
      %1354 = vst [vmem:[%s197 + $0x30] sm:$0xf] %v1316
      %1355 = vst [vmem:[%s197 + $0x34] sm:$0xf] %v1317
      %1356 = vst [vmem:[%s197 + $0x38] sm:$0xf] %v1318
      %1357 = vst [vmem:[%s197 + $0x3c] sm:$0xf] %v1319
      %1358 = vst [vmem:[%s197 + $0x40] sm:$0xf] %v1320
      %1359 = vst [vmem:[%s197 + $0x44] sm:$0xf] %v1321
      %1360 = vst [vmem:[%s197 + $0x48] sm:$0xf] %v1322
      %p1361 = scmp.lt.s32.totalorder %s15, 1
      %s1362 = scalar_select %p1361, %s15, 1
      %s1363 = smul.addr %s1362, 19
      %s1364 = smul.addr %s1363, 4
      %s1365 = scalar_lea.vmem %s4, %s1364
      // Predicated region
      $region37: #{nlayer_discriminator_forward.5} parent=35 // pred_check
        %p1366 = pneg %p122
      $region38: #{nlayer_discriminator_forward.5} parent=35 // pred_check_branch
        %1368 = sbr.rel (%p1366) target = $region40
      $region39: #{nlayer_discriminator_forward.5} parent=35 // pred_region
        _
      $region40: #{nlayer_discriminator_forward.5} parent=35 // pred_fallthru
        _
    $region36: #{nlayer_discriminator_forward.5} parent=5 // pred_fallthru
      _
    %p1369 = scmp.le.s32.totalorder 2, %s10
    // Predicated region
    $region41: #{nlayer_discriminator_forward.5} parent=5 // pred_check
      %p1370 = pneg %p1369
    $region42: #{nlayer_discriminator_forward.5} parent=5 // pred_check_branch
      %1372 = sbr.rel (%p1370) target = $region44
    $region43: #{nlayer_discriminator_forward.5} parent=5 // pred_region
      %s1373 = ssub.s32 %s10, 2
      // Predicated region
      $region45: #{nlayer_discriminator_forward.5} parent=43 // pred_check
        %p1374 = pneg %p128
      $region46: #{nlayer_discriminator_forward.5} parent=43 // pred_check_branch
        %1376 = sbr.rel (%p1374) target = $region48
      $region47: #{nlayer_discriminator_forward.5} parent=43 // pred_region
        %p1377 = scmp.lt.s32.totalorder %s16, 1
        %s1378 = scalar_select %p1377, %s16, 1
        %s1379 = smul.addr %s1378, 19
        %s1380 = smul.addr %s1379, 4
        %s1381 = scalar_lea.vmem %s4, %s1380
      $region48: #{nlayer_discriminator_forward.5} parent=43 // pred_fallthru
        _
    $region44: #{nlayer_discriminator_forward.5} parent=5 // pred_fallthru
      _
  $region6: #{nlayer_discriminator_forward.5} parent=0 // loop_footer
    %s14 = sadd.s32 1, %s10
  $region7: #{nlayer_discriminator_forward.5} parent=0 // loop_footer_branch
    %9 = sbr.rel target = $region3
  $region8: #{nlayer_discriminator_forward.5} parent=0 // loop_exit
    _

// kernel: nlayer_discriminator_forward.6
$region0: #{nlayer_discriminator_forward.6}
  #allocation0 [shape = 'u32[]', space=smem, size = 0x4, offset = 0x4, fixed_abs, tag = 'smem constant byte address 0x4 - core index']
  #allocation1 [shape = 'u32[144,128]{1,0:T(1,128)}', space=vmem, size = 0x12000, scoped, tag = 'internal scratch']
  %s0 = inlined_call_operand.vmem [shape: bf16[2,54,512], index: 0, kind: input, shape index: {}]
  %s1 = inlined_call_operand.vmem [shape: bf16[4,512,128], index: 1, kind: input, shape index: {}]
  %s2 = inlined_call_operand.vmem [shape: f32[1,128], index: 2, kind: input, shape index: {}]
  %s3 = inlined_call_operand.vmem [shape: f32[1,128], index: 3, kind: input, shape index: {}]
  %s4 = inlined_call_operand.vmem [shape: bf16[2,44,128], index: 4, kind: output, shape index: {}]
  %s5 = sld [smem:[#allocation0]]
  $region49: #{nlayer_discriminator_forward.6} parent=0
    _
  %s7 = ssub.s32 1, %s5
  %s8 = scalar_select 0, %s7, %s5
  loop: start=0, step=1, limit=4
  $region2: #{nlayer_discriminator_forward.6} parent=0 // loop_pre_header
    _
  $region3: #{nlayer_discriminator_forward.6} parent=0 // loop_header
    %s10 = sphi 0, %s14
    %p11 = scmp.ge.s32.totalorder %s10, 4
    %s20 = sphi 0, %s22
    %s23 = sphi 0, %s20
    %s24 = sphi 0, %s23
    %s40 = sphi 0, %s24
    %s44 = sphi 0, %s44
    %s46 = sphi 0, %s44
    %s47 = sphi 0, %s46
    %s61 = sphi 0, %s47
    %s65 = sphi 0, %s65
    %s67 = sphi 0, %s65
    %s68 = sphi 0, %s67
    %s82 = sphi 0, %s68
    %s86 = sphi 0, %s86
    %s88 = sphi 0, %s86
    %s89 = sphi 0, %s88
    %s103 = sphi 0, %s89
    %s109 = sphi 0, %s111
    %s112 = sphi 0, %s109
    %s113 = sphi 0, %s112
    %s129 = sphi 0, %s113
  $region4: #{nlayer_discriminator_forward.6} parent=0 // loop_header_branch
    %13 = sbr.rel (%p11) target = $region8
  $region5: #{nlayer_discriminator_forward.6} parent=0 // loop_body
    %s15 = ssub.s32 %s10, 1
    %s16 = ssub.s32 %s10, 2
    %s17 = sadd.s32 %s10, 1
    %s18 = ssub.s32 %s10, %s17
    %p19 = scmp.eq.s32.totalorder %s18, 0
    %s21 = sadd.s32 %s20, 1
    %s22 = scalar_select %p19, %s20, %s21
    %p25 = pneg %p19
    %p26 = scmp.eq.s32.totalorder %s10, 1
    %p27 = por %p25, %p26
    %p28 = scmp.ne.s32.totalorder %s20, %s23
    %p29 = scmp.eq.s32.totalorder %s10, 0
    %p30 = por %p28, %p29
    %p31 = scmp.ne.s32.totalorder %s20, %s23
    %p32 = scmp.eq.s32.totalorder %s15, 1
    %p33 = por %p31, %p32
    %p34 = scmp.ne.s32.totalorder %s23, %s24
    %p35 = scmp.eq.s32.totalorder %s15, 0
    %p36 = por %p34, %p35
    %p37 = scmp.ne.s32.totalorder %s23, %s24
    %p38 = scmp.eq.s32.totalorder %s16, 1
    %p39 = por %p37, %p38
    %p41 = scmp.ne.s32.totalorder %s24, %s40
    %p42 = scmp.eq.s32.totalorder %s16, 0
    %p43 = por %p41, %p42
    %s45 = sadd.s32 %s44, 1
    %p48 = scmp.eq.s32.totalorder %s10, 1
    %p49 = scmp.ne.s32.totalorder %s44, %s46
    %p50 = scmp.eq.s32.totalorder %s10, 0
    %p51 = por %p49, %p50
    %p52 = scmp.ne.s32.totalorder %s44, %s46
    %p53 = scmp.eq.s32.totalorder %s15, 1
    %p54 = por %p52, %p53
    %p55 = scmp.ne.s32.totalorder %s46, %s47
    %p56 = scmp.eq.s32.totalorder %s15, 0
    %p57 = por %p55, %p56
    %p58 = scmp.ne.s32.totalorder %s46, %s47
    %p59 = scmp.eq.s32.totalorder %s16, 1
    %p60 = por %p58, %p59
    %p62 = scmp.ne.s32.totalorder %s47, %s61
    %p63 = scmp.eq.s32.totalorder %s16, 0
    %p64 = por %p62, %p63
    %s66 = sadd.s32 %s65, 1
    %p69 = scmp.eq.s32.totalorder %s10, 1
    %p70 = scmp.ne.s32.totalorder %s65, %s67
    %p71 = scmp.eq.s32.totalorder %s10, 0
    %p72 = por %p70, %p71
    %p73 = scmp.ne.s32.totalorder %s65, %s67
    %p74 = scmp.eq.s32.totalorder %s15, 1
    %p75 = por %p73, %p74
    %p76 = scmp.ne.s32.totalorder %s67, %s68
    %p77 = scmp.eq.s32.totalorder %s15, 0
    %p78 = por %p76, %p77
    %p79 = scmp.ne.s32.totalorder %s67, %s68
    %p80 = scmp.eq.s32.totalorder %s16, 1
    %p81 = por %p79, %p80
    %p83 = scmp.ne.s32.totalorder %s68, %s82
    %p84 = scmp.eq.s32.totalorder %s16, 0
    %p85 = por %p83, %p84
    %s87 = sadd.s32 %s86, 1
    %p90 = scmp.eq.s32.totalorder %s10, 1
    %p91 = scmp.ne.s32.totalorder %s86, %s88
    %p92 = scmp.eq.s32.totalorder %s10, 0
    %p93 = por %p91, %p92
    %p94 = scmp.ne.s32.totalorder %s86, %s88
    %p95 = scmp.eq.s32.totalorder %s15, 1
    %p96 = por %p94, %p95
    %p97 = scmp.ne.s32.totalorder %s88, %s89
    %p98 = scmp.eq.s32.totalorder %s15, 0
    %p99 = por %p97, %p98
    %p100 = scmp.ne.s32.totalorder %s88, %s89
    %p101 = scmp.eq.s32.totalorder %s16, 1
    %p102 = por %p100, %p101
    %p104 = scmp.ne.s32.totalorder %s89, %s103
    %p105 = scmp.eq.s32.totalorder %s16, 0
    %p106 = por %p104, %p105
    %s107 = ssub.s32 %s10, %s17
    %p108 = scmp.eq.s32.totalorder %s107, 0
    %s110 = sadd.s32 %s109, 1
    %s111 = scalar_select %p108, %s109, %s110
    %p114 = pneg %p108
    %p115 = scmp.eq.s32.totalorder %s10, 1
    %p116 = por %p114, %p115
    %p117 = scmp.ne.s32.totalorder %s109, %s112
    %p118 = scmp.eq.s32.totalorder %s10, 0
    %p119 = por %p117, %p118
    %p120 = scmp.ne.s32.totalorder %s109, %s112
    %p121 = scmp.eq.s32.totalorder %s15, 1
    %p122 = por %p120, %p121
    %p123 = scmp.ne.s32.totalorder %s112, %s113
    %p124 = scmp.eq.s32.totalorder %s15, 0
    %p125 = por %p123, %p124
    %p126 = scmp.ne.s32.totalorder %s112, %s113
    %p127 = scmp.eq.s32.totalorder %s16, 1
    %p128 = por %p126, %p127
    %p130 = scmp.ne.s32.totalorder %s113, %s129
    %p131 = scmp.eq.s32.totalorder %s16, 0
    %p132 = por %p130, %p131
    %p133 = scmp.le.s32.totalorder 1, %s10
    %p134 = scmp.lt.s32.totalorder %s10, 3
    %p135 = pnand %p133, %p134
    %p136 = pneg %p135
    // Predicated region
    $region9: #{nlayer_discriminator_forward.6} parent=5 // pred_check
      _
    $region10: #{nlayer_discriminator_forward.6} parent=5 // pred_check_branch
      %138 = sbr.rel (%p135) target = $region12
    $region11: #{nlayer_discriminator_forward.6} parent=5 // pred_region
      %s139 = ssub.s32 %s10, 1
      // Predicated region
      $region13: #{nlayer_discriminator_forward.6} parent=11 // pred_check
        %p140 = pneg %p57
      $region14: #{nlayer_discriminator_forward.6} parent=11 // pred_check_branch
        %142 = sbr.rel (%p140) target = $region16
      $region15: #{nlayer_discriminator_forward.6} parent=11 // pred_region
        _
      $region16: #{nlayer_discriminator_forward.6} parent=11 // pred_fallthru
        _
      // Predicated region
      $region17: #{nlayer_discriminator_forward.6} parent=11 // pred_check
        %p143 = pneg %p78
      $region18: #{nlayer_discriminator_forward.6} parent=11 // pred_check_branch
        %145 = sbr.rel (%p143) target = $region20
      $region19: #{nlayer_discriminator_forward.6} parent=11 // pred_region
        _
      $region20: #{nlayer_discriminator_forward.6} parent=11 // pred_fallthru
        _
      // Predicated region
      $region21: #{nlayer_discriminator_forward.6} parent=11 // pred_check
        %p146 = pneg %p99
      $region22: #{nlayer_discriminator_forward.6} parent=11 // pred_check_branch
        %148 = sbr.rel (%p146) target = $region24
      $region23: #{nlayer_discriminator_forward.6} parent=11 // pred_region
        _
      $region24: #{nlayer_discriminator_forward.6} parent=11 // pred_fallthru
        _
    $region12: #{nlayer_discriminator_forward.6} parent=5 // pred_fallthru
      _
    %p149 = scmp.lt.s32.totalorder %s10, 2
    // Predicated region
    $region25: #{nlayer_discriminator_forward.6} parent=5 // pred_check
      %p150 = pneg %p149
    $region26: #{nlayer_discriminator_forward.6} parent=5 // pred_check_branch
      %152 = sbr.rel (%p150) target = $region28
    $region27: #{nlayer_discriminator_forward.6} parent=5 // pred_region
      // Predicated region
      $region29: #{nlayer_discriminator_forward.6} parent=27 // pred_check
        %p153 = pneg %p30
      $region30: #{nlayer_discriminator_forward.6} parent=27 // pred_check_branch
        %155 = sbr.rel (%p153) target = $region32
      $region31: #{nlayer_discriminator_forward.6} parent=27 // pred_region
        %p156 = scmp.lt.s32.totalorder %s10, 1
        %s157 = scalar_select %p156, %s10, 1
        %s158 = smul.addr %s157, 28
        %s159 = smul.addr %s158, 4
        %s160 = scalar_lea.vmem %s0, %s159
      $region32: #{nlayer_discriminator_forward.6} parent=27 // pred_fallthru
        _
    $region28: #{nlayer_discriminator_forward.6} parent=5 // pred_fallthru
      _
    %p161 = scmp.le.s32.totalorder 1, %s10
    %p162 = scmp.lt.s32.totalorder %s10, 3
    %p163 = pnand %p161, %p162
    %p164 = pneg %p163
    // Predicated region
    $region33: #{nlayer_discriminator_forward.6} parent=5 // pred_check
      _
    $region34: #{nlayer_discriminator_forward.6} parent=5 // pred_check_branch
      %166 = sbr.rel (%p163) target = $region36
    $region35: #{nlayer_discriminator_forward.6} parent=5 // pred_region
      %s167 = ssub.s32 %s10, 1
      %p168 = scmp.lt.s32.totalorder %s15, 1
      %s169 = scalar_select %p168, %s15, 1
      %s170 = smul.addr %s169, 28
      %s171 = smul.addr %s170, 4
      %s172 = scalar_lea.vmem %s0, %s171
      %p173 = pneg %p36
      %p174 = pneg %p33
      %p175 = pneg %p57
      %p176 = pneg %p54
      %p177 = pneg %p78
      %p178 = pneg %p75
      %p179 = pneg %p99
      %p180 = pneg %p96
      %p181 = pneg %p125
      %p182 = pneg %p122
      %p183 = scmp.lt.s32.totalorder %s15, 1
      %s184 = scalar_select %p183, %s15, 1
      %s185 = smul.addr %s184, 6
      %s186 = smul.addr %s185, 4
      %s187 = scalar_lea.vmem %s4, %s186
      %p188 = scmp.lt.s32.totalorder %s15, 1
      %s189 = scalar_select %p188, %s15, 1
      %s190 = smul.addr %s189, 28
      %s191 = smul.addr %s190, 4
      %s192 = scalar_lea.vmem %s0, %s191
      %p193 = scmp.lt.s32.totalorder %s15, 1
      %s194 = scalar_select %p193, %s15, 1
      %s195 = smul.addr %s194, 6
      %s196 = smul.addr %s195, 4
      %s197 = scalar_lea.vmem %s4, %s196
      %v199 = vld [vmem:[%s192] sm:$0xff]
      %v200 = vld [vmem:[%s192 + $0x8] sm:$0xff]
      %v201 = vld [vmem:[%s192 + $0x10] sm:$0xff]
      %v202 = vld [vmem:[%s192 + $0x18] sm:$0xff]
      %v203 = vld [vmem:[%s192 + $0x20] sm:$0xff]
      %v204 = vld [vmem:[%s192 + $0x28] sm:$0xff]
      %v205 = vld [vmem:[%s192 + $0x30] sm:$0xff]
      %v206 = vld [vmem:[%s192 + $0x38] sm:$0xff]
      %v207 = vld [vmem:[%s192 + $0x40] sm:$0xff]
      %v208 = vld [vmem:[%s192 + $0x48] sm:$0xff]
      %v209 = vld [vmem:[%s192 + $0x50] sm:$0x33]
      %v210 = vld [vmem:[%s192 + $0x58] sm:$0x33]
      %v211 = vld [vmem:[%s1] sm:$0xf]
      %v212 = vld [vmem:[%s1 + $0x4] sm:$0xf]
      %v213 = vld [vmem:[%s1 + $0x8] sm:$0xf]
      %v214 = vld [vmem:[%s1 + $0xc] sm:$0xf]
      %v215 = vld [vmem:[%s1 + $0x10] sm:$0xf]
      %v216 = vld [vmem:[%s1 + $0x14] sm:$0xf]
      %v217 = vld [vmem:[%s1 + $0x18] sm:$0xf]
      %v218 = vld [vmem:[%s1 + $0x1c] sm:$0xf]
      %v219 = vld [vmem:[%s1 + $0x20] sm:$0xf]
      %v220 = vld [vmem:[%s1 + $0x24] sm:$0xf]
      %v221 = vld [vmem:[%s1 + $0x28] sm:$0xf]
      %v222 = vld [vmem:[%s1 + $0x2c] sm:$0xf]
      %v223 = vld [vmem:[%s1 + $0x30] sm:$0xf]
      %v224 = vld [vmem:[%s1 + $0x34] sm:$0xf]
      %v225 = vld [vmem:[%s1 + $0x38] sm:$0xf]
      %v226 = vld [vmem:[%s1 + $0x3c] sm:$0xf]
      %v227 = vld [vmem:[%s1 + $0x40] sm:$0xf]
      %v228 = vld [vmem:[%s1 + $0x44] sm:$0xf]
      %v229 = vld [vmem:[%s1 + $0x48] sm:$0xf]
      %v230 = vld [vmem:[%s1 + $0x4c] sm:$0xf]
      %v231 = vld [vmem:[%s1 + $0x50] sm:$0xf]
      %v232 = vld [vmem:[%s1 + $0x54] sm:$0xf]
      %v233 = vld [vmem:[%s1 + $0x58] sm:$0xf]
      %v234 = vld [vmem:[%s1 + $0x5c] sm:$0xf]
      %v235 = vld [vmem:[%s1 + $0x60] sm:$0xf]
      %v236 = vld [vmem:[%s1 + $0x64] sm:$0xf]
      %v237 = vld [vmem:[%s1 + $0x68] sm:$0xf]
      %v238 = vld [vmem:[%s1 + $0x6c] sm:$0xf]
      %v239 = vld [vmem:[%s1 + $0x70] sm:$0xf]
      %v240 = vld [vmem:[%s1 + $0x74] sm:$0xf]
      %v241 = vld [vmem:[%s1 + $0x78] sm:$0xf]
      %v242 = vld [vmem:[%s1 + $0x7c] sm:$0xf]
      %v243 = vld [vmem:[%s1 + $0x80] sm:$0xf]
      %v244 = vld [vmem:[%s1 + $0x84] sm:$0xf]
      %v245 = vld [vmem:[%s1 + $0x88] sm:$0xf]
      %v246 = vld [vmem:[%s1 + $0x8c] sm:$0xf]
      %v247 = vld [vmem:[%s1 + $0x90] sm:$0xf]
      %v248 = vld [vmem:[%s1 + $0x94] sm:$0xf]
      %v249 = vld [vmem:[%s1 + $0x98] sm:$0xf]
      %v250 = vld [vmem:[%s1 + $0x9c] sm:$0xf]
      %v251 = vld [vmem:[%s1 + $0xa0] sm:$0xf]
      %v252 = vld [vmem:[%s1 + $0xa4] sm:$0xf]
      %v253 = vld [vmem:[%s1 + $0xa8] sm:$0xf]
      %v254 = vld [vmem:[%s1 + $0xac] sm:$0xf]
      %v255 = vld [vmem:[%s1 + $0xb0] sm:$0xf]
      %v256 = vld [vmem:[%s1 + $0xb4] sm:$0xf]
      %v257 = vld [vmem:[%s1 + $0xb8] sm:$0xf]
      %v258 = vld [vmem:[%s1 + $0xbc] sm:$0xf]
      %v259 = vld [vmem:[%s1 + $0xc0] sm:$0xf]
      %v260 = vld [vmem:[%s1 + $0xc4] sm:$0xf]
      %v261 = vld [vmem:[%s1 + $0xc8] sm:$0xf]
      %v262 = vld [vmem:[%s1 + $0xcc] sm:$0xf]
      %v263 = vld [vmem:[%s1 + $0xd0] sm:$0xf]
      %v264 = vld [vmem:[%s1 + $0xd4] sm:$0xf]
      %v265 = vld [vmem:[%s1 + $0xd8] sm:$0xf]
      %v266 = vld [vmem:[%s1 + $0xdc] sm:$0xf]
      %v267 = vld [vmem:[%s1 + $0xe0] sm:$0xf]
      %v268 = vld [vmem:[%s1 + $0xe4] sm:$0xf]
      %v269 = vld [vmem:[%s1 + $0xe8] sm:$0xf]
      %v270 = vld [vmem:[%s1 + $0xec] sm:$0xf]
      %v271 = vld [vmem:[%s1 + $0xf0] sm:$0xf]
      %v272 = vld [vmem:[%s1 + $0xf4] sm:$0xf]
      %v273 = vld [vmem:[%s1 + $0xf8] sm:$0xf]
      %v274 = vld [vmem:[%s1 + $0xfc] sm:$0xf]
      %v275 = vld [vmem:[%s192 + $0x50] sm:$0x77]
      %v276 = vld [vmem:[%s192 + $0x58] sm:$0x77]
      %s277 = scalar_lea.vmem %s1, 256
      %v278 = vld [vmem:[%s277] sm:$0xf]
      %v279 = vld [vmem:[%s277 + $0x4] sm:$0xf]
      %v280 = vld [vmem:[%s277 + $0x8] sm:$0xf]
      %v281 = vld [vmem:[%s277 + $0xc] sm:$0xf]
      %v282 = vld [vmem:[%s277 + $0x10] sm:$0xf]
      %v283 = vld [vmem:[%s277 + $0x14] sm:$0xf]
      %v284 = vld [vmem:[%s277 + $0x18] sm:$0xf]
      %v285 = vld [vmem:[%s277 + $0x1c] sm:$0xf]
      %v286 = vld [vmem:[%s277 + $0x20] sm:$0xf]
      %v287 = vld [vmem:[%s277 + $0x24] sm:$0xf]
      %v288 = vld [vmem:[%s277 + $0x28] sm:$0xf]
      %v289 = vld [vmem:[%s277 + $0x2c] sm:$0xf]
      %v290 = vld [vmem:[%s277 + $0x30] sm:$0xf]
      %v291 = vld [vmem:[%s277 + $0x34] sm:$0xf]
      %v292 = vld [vmem:[%s277 + $0x38] sm:$0xf]
      %v293 = vld [vmem:[%s277 + $0x3c] sm:$0xf]
      %v294 = vld [vmem:[%s277 + $0x40] sm:$0xf]
      %v295 = vld [vmem:[%s277 + $0x44] sm:$0xf]
      %v296 = vld [vmem:[%s277 + $0x48] sm:$0xf]
      %v297 = vld [vmem:[%s277 + $0x4c] sm:$0xf]
      %v298 = vld [vmem:[%s277 + $0x50] sm:$0xf]
      %v299 = vld [vmem:[%s277 + $0x54] sm:$0xf]
      %v300 = vld [vmem:[%s277 + $0x58] sm:$0xf]
      %v301 = vld [vmem:[%s277 + $0x5c] sm:$0xf]
      %v302 = vld [vmem:[%s277 + $0x60] sm:$0xf]
      %v303 = vld [vmem:[%s277 + $0x64] sm:$0xf]
      %v304 = vld [vmem:[%s277 + $0x68] sm:$0xf]
      %v305 = vld [vmem:[%s277 + $0x6c] sm:$0xf]
      %v306 = vld [vmem:[%s277 + $0x70] sm:$0xf]
      %v307 = vld [vmem:[%s277 + $0x74] sm:$0xf]
      %v308 = vld [vmem:[%s277 + $0x78] sm:$0xf]
      %v309 = vld [vmem:[%s277 + $0x7c] sm:$0xf]
      %v310 = vld [vmem:[%s277 + $0x80] sm:$0xf]
      %v311 = vld [vmem:[%s277 + $0x84] sm:$0xf]
      %v312 = vld [vmem:[%s277 + $0x88] sm:$0xf]
      %v313 = vld [vmem:[%s277 + $0x8c] sm:$0xf]
      %v314 = vld [vmem:[%s277 + $0x90] sm:$0xf]
      %v315 = vld [vmem:[%s277 + $0x94] sm:$0xf]
      %v316 = vld [vmem:[%s277 + $0x98] sm:$0xf]
      %v317 = vld [vmem:[%s277 + $0x9c] sm:$0xf]
      %v318 = vld [vmem:[%s277 + $0xa0] sm:$0xf]
      %v319 = vld [vmem:[%s277 + $0xa4] sm:$0xf]
      %v320 = vld [vmem:[%s277 + $0xa8] sm:$0xf]
      %v321 = vld [vmem:[%s277 + $0xac] sm:$0xf]
      %v322 = vld [vmem:[%s277 + $0xb0] sm:$0xf]
      %v323 = vld [vmem:[%s277 + $0xb4] sm:$0xf]
      %v324 = vld [vmem:[%s277 + $0xb8] sm:$0xf]
      %v325 = vld [vmem:[%s277 + $0xbc] sm:$0xf]
      %v326 = vld [vmem:[%s277 + $0xc0] sm:$0xf]
      %v327 = vld [vmem:[%s277 + $0xc4] sm:$0xf]
      %v328 = vld [vmem:[%s277 + $0xc8] sm:$0xf]
      %v329 = vld [vmem:[%s277 + $0xcc] sm:$0xf]
      %v330 = vld [vmem:[%s277 + $0xd0] sm:$0xf]
      %v331 = vld [vmem:[%s277 + $0xd4] sm:$0xf]
      %v332 = vld [vmem:[%s277 + $0xd8] sm:$0xf]
      %v333 = vld [vmem:[%s277 + $0xdc] sm:$0xf]
      %v334 = vld [vmem:[%s277 + $0xe0] sm:$0xf]
      %v335 = vld [vmem:[%s277 + $0xe4] sm:$0xf]
      %v336 = vld [vmem:[%s277 + $0xe8] sm:$0xf]
      %v337 = vld [vmem:[%s277 + $0xec] sm:$0xf]
      %v338 = vld [vmem:[%s277 + $0xf0] sm:$0xf]
      %v339 = vld [vmem:[%s277 + $0xf4] sm:$0xf]
      %v340 = vld [vmem:[%s277 + $0xf8] sm:$0xf]
      %v341 = vld [vmem:[%s277 + $0xfc] sm:$0xf]
      %v354 = vunpack.c.l.b16 %v199
      %v355 = vunpack.c.h.b16 %v199
      %v356 = vunpack.c.l.b16 %v200
      %v357 = vunpack.c.h.b16 %v200
      %v358 = vunpack.c.l.b16 %v201
      %v359 = vunpack.c.h.b16 %v201
      %v360 = vunpack.c.l.b16 %v202
      %v361 = vunpack.c.h.b16 %v202
      %v362 = vunpack.c.l.b16 %v203
      %v363 = vunpack.c.h.b16 %v203
      %v364 = vunpack.c.l.b16 %v204
      %v365 = vunpack.c.h.b16 %v204
      %v366 = vunpack.c.l.b16 %v205
      %v367 = vunpack.c.h.b16 %v205
      %v368 = vunpack.c.l.b16 %v206
      %v369 = vunpack.c.h.b16 %v206
      %v370 = vunpack.c.l.b16 %v207
      %v371 = vunpack.c.h.b16 %v207
      %v372 = vunpack.c.l.b16 %v208
      %v373 = vunpack.c.h.b16 %v208
      %v374 = vunpack.c.l.b16 %v275
      %v375 = vunpack.c.h.b16 %v275
      %v376 = vunpack.c.l.b16 %v276
      %v377 = vunpack.c.h.b16 %v276
      %v378 = vpack.c.b16 %v358, %v354
      %v379 = vpack.c.b16 %v359, %v355
      %v380 = vpack.c.b16 %v360, %v356
      %v381 = vpack.c.b16 %v361, %v357
      %v382 = vpack.c.b16 %v366, %v362
      %v383 = vpack.c.b16 %v367, %v363
      %v384 = vpack.c.b16 %v368, %v364
      %v385 = vpack.c.b16 %v369, %v365
      %v386 = vpack.c.b16 %v374, %v370
      %v387 = vpack.c.b16 %v375, %v371
      %v388 = vpack.c.b16 %v376, %v372
      %v389 = vpack.c.b16 %v377, %v373
      %vm390 = vsmask.f32 7424
      %v392 = vshrl.u32 %v378, 16
      %v394 = vshll.u32 %v378, 16
      %v396 = vrot.slane %v394, 1
      %v397 = vor.u32 %v392, %v396
      %v399 = vshll.u32 %v382, 16
      %v401 = vrot.slane %v399, 1
      %v402 = vsel %vm390, %v397, %v401
      %v404 = vshrl.u32 %v379, 16
      %v406 = vshll.u32 %v379, 16
      %v408 = vrot.slane %v406, 1
      %v409 = vor.u32 %v404, %v408
      %v411 = vshll.u32 %v383, 16
      %v413 = vrot.slane %v411, 1
      %v414 = vsel %vm390, %v409, %v413
      %v416 = vshrl.u32 %v380, 16
      %v418 = vshll.u32 %v380, 16
      %v420 = vrot.slane %v418, 1
      %v421 = vor.u32 %v416, %v420
      %v423 = vshll.u32 %v384, 16
      %v425 = vrot.slane %v423, 1
      %v426 = vsel %vm390, %v421, %v425
      %v428 = vshrl.u32 %v381, 16
      %v430 = vshll.u32 %v381, 16
      %v432 = vrot.slane %v430, 1
      %v433 = vor.u32 %v428, %v432
      %v435 = vshll.u32 %v385, 16
      %v437 = vrot.slane %v435, 1
      %v438 = vsel %vm390, %v433, %v437
      %v439 = vshrl.u32 %v382, 16
      %v441 = vor.u32 %v439, %v401
      %v443 = vshll.u32 %v386, 16
      %v445 = vrot.slane %v443, 1
      %v446 = vsel %vm390, %v441, %v445
      %v447 = vshrl.u32 %v383, 16
      %v449 = vor.u32 %v447, %v413
      %v451 = vshll.u32 %v387, 16
      %v453 = vrot.slane %v451, 1
      %v454 = vsel %vm390, %v449, %v453
      %v455 = vshrl.u32 %v384, 16
      %v457 = vor.u32 %v455, %v425
      %v459 = vshll.u32 %v388, 16
      %v461 = vrot.slane %v459, 1
      %v462 = vsel %vm390, %v457, %v461
      %v463 = vshrl.u32 %v385, 16
      %v465 = vor.u32 %v463, %v437
      %v467 = vshll.u32 %v389, 16
      %v469 = vrot.slane %v467, 1
      %v470 = vsel %vm390, %v465, %v469
      %v471 = vshrl.u32 %v386, 16
      %v473 = vor.u32 %v471, %v445
      %v474 = vshrl.u32 %v387, 16
      %v476 = vor.u32 %v474, %v453
      %v477 = vshrl.u32 %v388, 16
      %v479 = vor.u32 %v477, %v461
      %v480 = vshrl.u32 %v389, 16
      %v482 = vor.u32 %v480, %v469
      %v559 = vunpack.c.l.b16 %v278
      %v560 = vunpack.c.l.b16 %v279
      %v561 = vunpack.c.l.b16 %v280
      %v562 = vunpack.c.l.b16 %v281
      %v563 = vunpack.c.l.b16 %v282
      %v564 = vunpack.c.l.b16 %v283
      %v565 = vunpack.c.l.b16 %v284
      %v566 = vunpack.c.l.b16 %v285
      %v567 = vunpack.c.l.b16 %v286
      %v568 = vunpack.c.l.b16 %v287
      %v569 = vunpack.c.l.b16 %v288
      %v570 = vunpack.c.l.b16 %v289
      %v571 = vunpack.c.l.b16 %v290
      %v572 = vunpack.c.l.b16 %v291
      %v573 = vunpack.c.l.b16 %v292
      %v574 = vunpack.c.l.b16 %v293
      %v575 = vunpack.c.l.b16 %v294
      %v576 = vunpack.c.l.b16 %v295
      %v577 = vunpack.c.l.b16 %v296
      %v578 = vunpack.c.l.b16 %v297
      %v579 = vunpack.c.l.b16 %v298
      %v580 = vunpack.c.l.b16 %v299
      %v581 = vunpack.c.l.b16 %v300
      %v582 = vunpack.c.l.b16 %v301
      %v583 = vunpack.c.l.b16 %v302
      %v584 = vunpack.c.l.b16 %v303
      %v585 = vunpack.c.l.b16 %v304
      %v586 = vunpack.c.l.b16 %v305
      %v587 = vunpack.c.l.b16 %v306
      %v588 = vunpack.c.l.b16 %v307
      %v589 = vunpack.c.l.b16 %v308
      %v590 = vunpack.c.l.b16 %v309
      %v591 = vunpack.c.l.b16 %v310
      %v592 = vunpack.c.l.b16 %v311
      %v593 = vunpack.c.l.b16 %v312
      %v594 = vunpack.c.l.b16 %v313
      %v595 = vunpack.c.l.b16 %v314
      %v596 = vunpack.c.l.b16 %v315
      %v597 = vunpack.c.l.b16 %v316
      %v598 = vunpack.c.l.b16 %v317
      %v599 = vunpack.c.l.b16 %v318
      %v600 = vunpack.c.l.b16 %v319
      %v601 = vunpack.c.l.b16 %v320
      %v602 = vunpack.c.l.b16 %v321
      %v603 = vunpack.c.l.b16 %v322
      %v604 = vunpack.c.l.b16 %v323
      %v605 = vunpack.c.l.b16 %v324
      %v606 = vunpack.c.l.b16 %v325
      %v607 = vunpack.c.l.b16 %v326
      %v608 = vunpack.c.l.b16 %v327
      %v609 = vunpack.c.l.b16 %v328
      %v610 = vunpack.c.l.b16 %v329
      %v611 = vunpack.c.l.b16 %v330
      %v612 = vunpack.c.l.b16 %v331
      %v613 = vunpack.c.l.b16 %v332
      %v614 = vunpack.c.l.b16 %v333
      %v615 = vunpack.c.l.b16 %v334
      %v616 = vunpack.c.l.b16 %v335
      %v617 = vunpack.c.l.b16 %v336
      %v618 = vunpack.c.l.b16 %v337
      %v619 = vunpack.c.l.b16 %v338
      %v620 = vunpack.c.l.b16 %v339
      %v621 = vunpack.c.l.b16 %v340
      %v622 = vunpack.c.l.b16 %v341
      %v623 = vpack.c.b16 %v560, %v559
      %v624 = vpack.c.b16 %v562, %v561
      %v625 = vpack.c.b16 %v564, %v563
      %v626 = vpack.c.b16 %v566, %v565
      %v627 = vpack.c.b16 %v568, %v567
      %v628 = vpack.c.b16 %v570, %v569
      %v629 = vpack.c.b16 %v572, %v571
      %v630 = vpack.c.b16 %v574, %v573
      %v631 = vpack.c.b16 %v576, %v575
      %v632 = vpack.c.b16 %v578, %v577
      %v633 = vpack.c.b16 %v580, %v579
      %v634 = vpack.c.b16 %v582, %v581
      %v635 = vpack.c.b16 %v584, %v583
      %v636 = vpack.c.b16 %v586, %v585
      %v637 = vpack.c.b16 %v588, %v587
      %v638 = vpack.c.b16 %v590, %v589
      %v639 = vpack.c.b16 %v592, %v591
      %v640 = vpack.c.b16 %v594, %v593
      %v641 = vpack.c.b16 %v596, %v595
      %v642 = vpack.c.b16 %v598, %v597
      %v643 = vpack.c.b16 %v600, %v599
      %v644 = vpack.c.b16 %v602, %v601
      %v645 = vpack.c.b16 %v604, %v603
      %v646 = vpack.c.b16 %v606, %v605
      %v647 = vpack.c.b16 %v608, %v607
      %v648 = vpack.c.b16 %v610, %v609
      %v649 = vpack.c.b16 %v612, %v611
      %v650 = vpack.c.b16 %v614, %v613
      %v651 = vpack.c.b16 %v616, %v615
      %v652 = vpack.c.b16 %v618, %v617
      %v653 = vpack.c.b16 %v620, %v619
      %v654 = vpack.c.b16 %v622, %v621
      %687 = vmatprep.subr.bf16.mxu0 0
      %688 = vmatpush1.bf16.msra.mxu0 %v623
      %689 = vmatprep.subr.bf16.mxu0 0
      %690 = vmatpush1.bf16.msra.mxu0 %v624
      %691 = vmatprep.subr.bf16.mxu0 0
      %692 = vmatpush1.bf16.msra.mxu0 %v625
      %693 = vmatprep.subr.bf16.mxu0 0
      %694 = vmatpush1.bf16.msra.mxu0 %v626
      %695 = vmatprep.subr.bf16.mxu0 0
      %696 = vmatpush1.bf16.msra.mxu0 %v627
      %697 = vmatprep.subr.bf16.mxu0 0
      %698 = vmatpush1.bf16.msra.mxu0 %v628
      %699 = vmatprep.subr.bf16.mxu0 0
      %700 = vmatpush1.bf16.msra.mxu0 %v629
      %701 = vmatprep.subr.bf16.mxu0 0
      %702 = vmatpush1.bf16.msra.mxu0 %v630
      %703 = vmatprep.subr.bf16.mxu0 0
      %704 = vmatpush1.bf16.msra.mxu0 %v631
      %705 = vmatprep.subr.bf16.mxu0 0
      %706 = vmatpush1.bf16.msra.mxu0 %v632
      %707 = vmatprep.subr.bf16.mxu0 0
      %708 = vmatpush1.bf16.msra.mxu0 %v633
      %709 = vmatprep.subr.bf16.mxu0 0
      %710 = vmatpush1.bf16.msra.mxu0 %v634
      %711 = vmatprep.subr.bf16.mxu0 0
      %712 = vmatpush1.bf16.msra.mxu0 %v635
      %713 = vmatprep.subr.bf16.mxu0 0
      %714 = vmatpush1.bf16.msra.mxu0 %v636
      %715 = vmatprep.subr.bf16.mxu0 0
      %716 = vmatpush1.bf16.msra.mxu0 %v637
      %717 = vmatprep.subr.bf16.mxu0 0
      %718 = vmatpush1.bf16.msra.mxu0 %v638
      %719 = vmatprep.mubr.bf16.mxu0 %v414
      %720 = vmatmul.mubr.bf16.gmra.mrb[0].mxu0 %v402
      %v721 = vpop.f32.mrb[0].mxu0
      %v722 = vadd.f32 0.0, %v721
      %v723 = vpop.f32.mrb[0].mxu0
      %v724 = vpop.f32.mrb[0].mxu0
      %v725 = vadd.f32 0.0, %v724
      %v726 = vpop.f32.mrb[0].mxu0
      %727 = vmatprep.mubr.bf16.mxu0 %v454
      %728 = vmatmul.mubr.bf16.gmra.mrb[0].mxu0 %v446
      %v729 = vpop.f32.mrb[0].mxu0
      %v730 = vadd.f32 0.0, %v729
      %v731 = vpop.f32.mrb[0].mxu0
      %v732 = vpop.f32.mrb[0].mxu0
      %v733 = vadd.f32 0.0, %v732
      %v734 = vpop.f32.mrb[0].mxu0
      %735 = vmatprep.mubr.bf16.mxu0 %v476
      %736 = vmatmul.mubr.bf16.gmra.mrb[0].mxu0 %v473
      %v737 = vpop.f32.mrb[0].mxu0
      %v738 = vadd.f32 0.0, %v737
      %v739 = vpop.f32.mrb[0].mxu0
      %v740 = vpop.f32.mrb[0].mxu0
      %v741 = vadd.f32 0.0, %v740
      %v742 = vpop.f32.mrb[0].mxu0
      %743 = vdwg.mxu0
      %744 = vmatprep.subr.bf16.mxu0 0
      %745 = vmatpush1.bf16.msra.mxu0 %v639
      %746 = vmatprep.subr.bf16.mxu0 0
      %747 = vmatpush1.bf16.msra.mxu0 %v640
      %748 = vmatprep.subr.bf16.mxu0 0
      %749 = vmatpush1.bf16.msra.mxu0 %v641
      %750 = vmatprep.subr.bf16.mxu0 0
      %751 = vmatpush1.bf16.msra.mxu0 %v642
      %752 = vmatprep.subr.bf16.mxu0 0
      %753 = vmatpush1.bf16.msra.mxu0 %v643
      %754 = vmatprep.subr.bf16.mxu0 0
      %755 = vmatpush1.bf16.msra.mxu0 %v644
      %756 = vmatprep.subr.bf16.mxu0 0
      %757 = vmatpush1.bf16.msra.mxu0 %v645
      %758 = vmatprep.subr.bf16.mxu0 0
      %759 = vmatpush1.bf16.msra.mxu0 %v646
      %760 = vmatprep.subr.bf16.mxu0 0
      %761 = vmatpush1.bf16.msra.mxu0 %v647
      %762 = vmatprep.subr.bf16.mxu0 0
      %763 = vmatpush1.bf16.msra.mxu0 %v648
      %764 = vmatprep.subr.bf16.mxu0 0
      %765 = vmatpush1.bf16.msra.mxu0 %v649
      %766 = vmatprep.subr.bf16.mxu0 0
      %767 = vmatpush1.bf16.msra.mxu0 %v650
      %768 = vmatprep.subr.bf16.mxu0 0
      %769 = vmatpush1.bf16.msra.mxu0 %v651
      %770 = vmatprep.subr.bf16.mxu0 0
      %771 = vmatpush1.bf16.msra.mxu0 %v652
      %772 = vmatprep.subr.bf16.mxu0 0
      %773 = vmatpush1.bf16.msra.mxu0 %v653
      %774 = vmatprep.subr.bf16.mxu0 0
      %775 = vmatpush1.bf16.msra.mxu0 %v654
      %776 = vmatprep.mubr.bf16.mxu0 %v438
      %777 = vmatmul.mubr.bf16.gmra.mrb[0].mxu0 %v426
      %v778 = vpop.f32.mrb[0].mxu0
      %v779 = vadd.f32 %v722, %v778
      %v780 = vpop.f32.mrb[0].mxu0
      %v781 = vpop.f32.mrb[0].mxu0
      %v782 = vadd.f32 %v725, %v781
      %v783 = vpop.f32.mrb[0].mxu0
      %784 = vmatprep.mubr.bf16.mxu0 %v470
      %785 = vmatmul.mubr.bf16.gmra.mrb[0].mxu0 %v462
      %v786 = vpop.f32.mrb[0].mxu0
      %v787 = vadd.f32 %v730, %v786
      %v788 = vpop.f32.mrb[0].mxu0
      %v789 = vpop.f32.mrb[0].mxu0
      %v790 = vadd.f32 %v733, %v789
      %v791 = vpop.f32.mrb[0].mxu0
      %792 = vmatprep.mubr.bf16.mxu0 %v482
      %793 = vmatmul.mubr.bf16.gmra.mrb[0].mxu0 %v479
      %v794 = vpop.f32.mrb[0].mxu0
      %v795 = vadd.f32 %v738, %v794
      %v796 = vpop.f32.mrb[0].mxu0
      %v797 = vpop.f32.mrb[0].mxu0
      %v798 = vadd.f32 %v741, %v797
      %v799 = vpop.f32.mrb[0].mxu0
      %800 = vdwg.mxu0
      %v803 = vunpack.c.l.b16 %v209
      %v804 = vunpack.c.h.b16 %v209
      %v805 = vunpack.c.l.b16 %v210
      %v806 = vunpack.c.h.b16 %v210
      %v807 = vpack.c.b16 %v803, %v370
      %v808 = vpack.c.b16 %v804, %v371
      %v809 = vpack.c.b16 %v805, %v372
      %v810 = vpack.c.b16 %v806, %v373
      %v887 = vunpack.c.l.b16 %v211
      %v888 = vunpack.c.l.b16 %v212
      %v889 = vunpack.c.l.b16 %v213
      %v890 = vunpack.c.l.b16 %v214
      %v891 = vunpack.c.l.b16 %v215
      %v892 = vunpack.c.l.b16 %v216
      %v893 = vunpack.c.l.b16 %v217
      %v894 = vunpack.c.l.b16 %v218
      %v895 = vunpack.c.l.b16 %v219
      %v896 = vunpack.c.l.b16 %v220
      %v897 = vunpack.c.l.b16 %v221
      %v898 = vunpack.c.l.b16 %v222
      %v899 = vunpack.c.l.b16 %v223
      %v900 = vunpack.c.l.b16 %v224
      %v901 = vunpack.c.l.b16 %v225
      %v902 = vunpack.c.l.b16 %v226
      %v903 = vunpack.c.l.b16 %v227
      %v904 = vunpack.c.l.b16 %v228
      %v905 = vunpack.c.l.b16 %v229
      %v906 = vunpack.c.l.b16 %v230
      %v907 = vunpack.c.l.b16 %v231
      %v908 = vunpack.c.l.b16 %v232
      %v909 = vunpack.c.l.b16 %v233
      %v910 = vunpack.c.l.b16 %v234
      %v911 = vunpack.c.l.b16 %v235
      %v912 = vunpack.c.l.b16 %v236
      %v913 = vunpack.c.l.b16 %v237
      %v914 = vunpack.c.l.b16 %v238
      %v915 = vunpack.c.l.b16 %v239
      %v916 = vunpack.c.l.b16 %v240
      %v917 = vunpack.c.l.b16 %v241
      %v918 = vunpack.c.l.b16 %v242
      %v919 = vunpack.c.l.b16 %v243
      %v920 = vunpack.c.l.b16 %v244
      %v921 = vunpack.c.l.b16 %v245
      %v922 = vunpack.c.l.b16 %v246
      %v923 = vunpack.c.l.b16 %v247
      %v924 = vunpack.c.l.b16 %v248
      %v925 = vunpack.c.l.b16 %v249
      %v926 = vunpack.c.l.b16 %v250
      %v927 = vunpack.c.l.b16 %v251
      %v928 = vunpack.c.l.b16 %v252
      %v929 = vunpack.c.l.b16 %v253
      %v930 = vunpack.c.l.b16 %v254
      %v931 = vunpack.c.l.b16 %v255
      %v932 = vunpack.c.l.b16 %v256
      %v933 = vunpack.c.l.b16 %v257
      %v934 = vunpack.c.l.b16 %v258
      %v935 = vunpack.c.l.b16 %v259
      %v936 = vunpack.c.l.b16 %v260
      %v937 = vunpack.c.l.b16 %v261
      %v938 = vunpack.c.l.b16 %v262
      %v939 = vunpack.c.l.b16 %v263
      %v940 = vunpack.c.l.b16 %v264
      %v941 = vunpack.c.l.b16 %v265
      %v942 = vunpack.c.l.b16 %v266
      %v943 = vunpack.c.l.b16 %v267
      %v944 = vunpack.c.l.b16 %v268
      %v945 = vunpack.c.l.b16 %v269
      %v946 = vunpack.c.l.b16 %v270
      %v947 = vunpack.c.l.b16 %v271
      %v948 = vunpack.c.l.b16 %v272
      %v949 = vunpack.c.l.b16 %v273
      %v950 = vunpack.c.l.b16 %v274
      %v951 = vpack.c.b16 %v888, %v887
      %v952 = vpack.c.b16 %v890, %v889
      %v953 = vpack.c.b16 %v892, %v891
      %v954 = vpack.c.b16 %v894, %v893
      %v955 = vpack.c.b16 %v896, %v895
      %v956 = vpack.c.b16 %v898, %v897
      %v957 = vpack.c.b16 %v900, %v899
      %v958 = vpack.c.b16 %v902, %v901
      %v959 = vpack.c.b16 %v904, %v903
      %v960 = vpack.c.b16 %v906, %v905
      %v961 = vpack.c.b16 %v908, %v907
      %v962 = vpack.c.b16 %v910, %v909
      %v963 = vpack.c.b16 %v912, %v911
      %v964 = vpack.c.b16 %v914, %v913
      %v965 = vpack.c.b16 %v916, %v915
      %v966 = vpack.c.b16 %v918, %v917
      %v967 = vpack.c.b16 %v920, %v919
      %v968 = vpack.c.b16 %v922, %v921
      %v969 = vpack.c.b16 %v924, %v923
      %v970 = vpack.c.b16 %v926, %v925
      %v971 = vpack.c.b16 %v928, %v927
      %v972 = vpack.c.b16 %v930, %v929
      %v973 = vpack.c.b16 %v932, %v931
      %v974 = vpack.c.b16 %v934, %v933
      %v975 = vpack.c.b16 %v936, %v935
      %v976 = vpack.c.b16 %v938, %v937
      %v977 = vpack.c.b16 %v940, %v939
      %v978 = vpack.c.b16 %v942, %v941
      %v979 = vpack.c.b16 %v944, %v943
      %v980 = vpack.c.b16 %v946, %v945
      %v981 = vpack.c.b16 %v948, %v947
      %v982 = vpack.c.b16 %v950, %v949
      %1015 = vmatprep.subr.bf16.mxu0 0
      %1016 = vmatpush1.bf16.msra.mxu0 %v951
      %1017 = vmatprep.subr.bf16.mxu0 0
      %1018 = vmatpush1.bf16.msra.mxu0 %v952
      %1019 = vmatprep.subr.bf16.mxu0 0
      %1020 = vmatpush1.bf16.msra.mxu0 %v953
      %1021 = vmatprep.subr.bf16.mxu0 0
      %1022 = vmatpush1.bf16.msra.mxu0 %v954
      %1023 = vmatprep.subr.bf16.mxu0 0
      %1024 = vmatpush1.bf16.msra.mxu0 %v955
      %1025 = vmatprep.subr.bf16.mxu0 0
      %1026 = vmatpush1.bf16.msra.mxu0 %v956
      %1027 = vmatprep.subr.bf16.mxu0 0
      %1028 = vmatpush1.bf16.msra.mxu0 %v957
      %1029 = vmatprep.subr.bf16.mxu0 0
      %1030 = vmatpush1.bf16.msra.mxu0 %v958
      %1031 = vmatprep.subr.bf16.mxu0 0
      %1032 = vmatpush1.bf16.msra.mxu0 %v959
      %1033 = vmatprep.subr.bf16.mxu0 0
      %1034 = vmatpush1.bf16.msra.mxu0 %v960
      %1035 = vmatprep.subr.bf16.mxu0 0
      %1036 = vmatpush1.bf16.msra.mxu0 %v961
      %1037 = vmatprep.subr.bf16.mxu0 0
      %1038 = vmatpush1.bf16.msra.mxu0 %v962
      %1039 = vmatprep.subr.bf16.mxu0 0
      %1040 = vmatpush1.bf16.msra.mxu0 %v963
      %1041 = vmatprep.subr.bf16.mxu0 0
      %1042 = vmatpush1.bf16.msra.mxu0 %v964
      %1043 = vmatprep.subr.bf16.mxu0 0
      %1044 = vmatpush1.bf16.msra.mxu0 %v965
      %1045 = vmatprep.subr.bf16.mxu0 0
      %1046 = vmatpush1.bf16.msra.mxu0 %v966
      %1047 = vmatprep.mubr.bf16.mxu0 %v379
      %1048 = vmatmul.mubr.bf16.gmra.mrb[0].mxu0 %v378
      %v1049 = vpop.f32.mrb[0].mxu0
      %v1050 = vadd.f32 %v779, %v1049
      %v1051 = vpop.f32.mrb[0].mxu0
      %v1052 = vpop.f32.mrb[0].mxu0
      %v1053 = vadd.f32 %v782, %v1052
      %v1054 = vpop.f32.mrb[0].mxu0
      %1055 = vmatprep.mubr.bf16.mxu0 %v383
      %1056 = vmatmul.mubr.bf16.gmra.mrb[0].mxu0 %v382
      %v1057 = vpop.f32.mrb[0].mxu0
      %v1058 = vadd.f32 %v787, %v1057
      %v1059 = vpop.f32.mrb[0].mxu0
      %v1060 = vpop.f32.mrb[0].mxu0
      %v1061 = vadd.f32 %v790, %v1060
      %v1062 = vpop.f32.mrb[0].mxu0
      %1063 = vmatprep.mubr.bf16.mxu0 %v808
      %1064 = vmatmul.mubr.bf16.gmra.mrb[0].mxu0 %v807
      %v1065 = vpop.f32.mrb[0].mxu0
      %v1066 = vadd.f32 %v795, %v1065
      %v1067 = vpop.f32.mrb[0].mxu0
      %v1068 = vpop.f32.mrb[0].mxu0
      %v1069 = vadd.f32 %v798, %v1068
      %v1070 = vpop.f32.mrb[0].mxu0
      %1071 = vdwg.mxu0
      %1072 = vmatprep.subr.bf16.mxu0 0
      %1073 = vmatpush1.bf16.msra.mxu0 %v967
      %1074 = vmatprep.subr.bf16.mxu0 0
      %1075 = vmatpush1.bf16.msra.mxu0 %v968
      %1076 = vmatprep.subr.bf16.mxu0 0
      %1077 = vmatpush1.bf16.msra.mxu0 %v969
      %1078 = vmatprep.subr.bf16.mxu0 0
      %1079 = vmatpush1.bf16.msra.mxu0 %v970
      %1080 = vmatprep.subr.bf16.mxu0 0
      %1081 = vmatpush1.bf16.msra.mxu0 %v971
      %1082 = vmatprep.subr.bf16.mxu0 0
      %1083 = vmatpush1.bf16.msra.mxu0 %v972
      %1084 = vmatprep.subr.bf16.mxu0 0
      %1085 = vmatpush1.bf16.msra.mxu0 %v973
      %1086 = vmatprep.subr.bf16.mxu0 0
      %1087 = vmatpush1.bf16.msra.mxu0 %v974
      %1088 = vmatprep.subr.bf16.mxu0 0
      %1089 = vmatpush1.bf16.msra.mxu0 %v975
      %1090 = vmatprep.subr.bf16.mxu0 0
      %1091 = vmatpush1.bf16.msra.mxu0 %v976
      %1092 = vmatprep.subr.bf16.mxu0 0
      %1093 = vmatpush1.bf16.msra.mxu0 %v977
      %1094 = vmatprep.subr.bf16.mxu0 0
      %1095 = vmatpush1.bf16.msra.mxu0 %v978
      %1096 = vmatprep.subr.bf16.mxu0 0
      %1097 = vmatpush1.bf16.msra.mxu0 %v979
      %1098 = vmatprep.subr.bf16.mxu0 0
      %1099 = vmatpush1.bf16.msra.mxu0 %v980
      %1100 = vmatprep.subr.bf16.mxu0 0
      %1101 = vmatpush1.bf16.msra.mxu0 %v981
      %1102 = vmatprep.subr.bf16.mxu0 0
      %1103 = vmatpush1.bf16.msra.mxu0 %v982
      %1104 = vmatprep.mubr.bf16.mxu0 %v381
      %1105 = vmatmul.mubr.bf16.gmra.mrb[0].mxu0 %v380
      %v1106 = vpop.f32.mrb[0].mxu0
      %v1107 = vadd.f32 %v1050, %v1106
      %v1108 = vpop.f32.mrb[0].mxu0
      %v1109 = vpop.f32.mrb[0].mxu0
      %v1110 = vadd.f32 %v1053, %v1109
      %v1111 = vpop.f32.mrb[0].mxu0
      %1112 = vmatprep.mubr.bf16.mxu0 %v385
      %1113 = vmatmul.mubr.bf16.gmra.mrb[0].mxu0 %v384
      %v1114 = vpop.f32.mrb[0].mxu0
      %v1115 = vadd.f32 %v1058, %v1114
      %v1116 = vpop.f32.mrb[0].mxu0
      %v1117 = vpop.f32.mrb[0].mxu0
      %v1118 = vadd.f32 %v1061, %v1117
      %v1119 = vpop.f32.mrb[0].mxu0
      %1120 = vmatprep.mubr.bf16.mxu0 %v810
      %1121 = vmatmul.mubr.bf16.gmra.mrb[0].mxu0 %v809
      %v1122 = vpop.f32.mrb[0].mxu0
      %v1123 = vadd.f32 %v1066, %v1122
      %v1124 = vpop.f32.mrb[0].mxu0
      %v1125 = vpop.f32.mrb[0].mxu0
      %v1126 = vadd.f32 %v1069, %v1125
      %v1127 = vpop.f32.mrb[0].mxu0
      %1128 = vdwg.mxu0
      %v1129 = vld [vmem:[%s192 + $0x10] sm:$0xff]
      %v1130 = vld [vmem:[%s192 + $0x18] sm:$0xff]
      %v1131 = vld [vmem:[%s192 + $0x20] sm:$0xff]
      %v1132 = vld [vmem:[%s192 + $0x28] sm:$0xff]
      %v1133 = vld [vmem:[%s192 + $0x30] sm:$0xff]
      %v1134 = vld [vmem:[%s192 + $0x38] sm:$0xff]
      %v1135 = vld [vmem:[%s192 + $0x40] sm:$0xff]
      %v1136 = vld [vmem:[%s192 + $0x48] sm:$0xff]
      %v1137 = vld [vmem:[%s192 + $0x50] sm:$0xff]
      %v1138 = vld [vmem:[%s192 + $0x58] sm:$0xff]
      %v1139 = vld [vmem:[%s192 + $0x60] sm:$0x77]
      %v1140 = vld [vmem:[%s192 + $0x68] sm:$0x77]
      %s1141 = scalar_lea.vmem %s1, 512
      %v1142 = vld [vmem:[%s1141] sm:$0xf]
      %v1143 = vld [vmem:[%s1141 + $0x4] sm:$0xf]
      %v1144 = vld [vmem:[%s1141 + $0x8] sm:$0xf]
      %v1145 = vld [vmem:[%s1141 + $0xc] sm:$0xf]
      %v1146 = vld [vmem:[%s1141 + $0x10] sm:$0xf]
      %v1147 = vld [vmem:[%s1141 + $0x14] sm:$0xf]
      %v1148 = vld [vmem:[%s1141 + $0x18] sm:$0xf]
      %v1149 = vld [vmem:[%s1141 + $0x1c] sm:$0xf]
      %v1150 = vld [vmem:[%s1141 + $0x20] sm:$0xf]
      %v1151 = vld [vmem:[%s1141 + $0x24] sm:$0xf]
      %v1152 = vld [vmem:[%s1141 + $0x28] sm:$0xf]
      %v1153 = vld [vmem:[%s1141 + $0x2c] sm:$0xf]
      %v1154 = vld [vmem:[%s1141 + $0x30] sm:$0xf]
      %v1155 = vld [vmem:[%s1141 + $0x34] sm:$0xf]
      %v1156 = vld [vmem:[%s1141 + $0x38] sm:$0xf]
      %v1157 = vld [vmem:[%s1141 + $0x3c] sm:$0xf]
      %v1158 = vld [vmem:[%s1141 + $0x40] sm:$0xf]
      %v1159 = vld [vmem:[%s1141 + $0x44] sm:$0xf]
      %v1160 = vld [vmem:[%s1141 + $0x48] sm:$0xf]
      %v1161 = vld [vmem:[%s1141 + $0x4c] sm:$0xf]
      %v1162 = vld [vmem:[%s1141 + $0x50] sm:$0xf]
      %v1163 = vld [vmem:[%s1141 + $0x54] sm:$0xf]
      %v1164 = vld [vmem:[%s1141 + $0x58] sm:$0xf]
      %v1165 = vld [vmem:[%s1141 + $0x5c] sm:$0xf]
      %v1166 = vld [vmem:[%s1141 + $0x60] sm:$0xf]
      %v1167 = vld [vmem:[%s1141 + $0x64] sm:$0xf]
      %v1168 = vld [vmem:[%s1141 + $0x68] sm:$0xf]
      %v1169 = vld [vmem:[%s1141 + $0x6c] sm:$0xf]
      %v1170 = vld [vmem:[%s1141 + $0x70] sm:$0xf]
      %v1171 = vld [vmem:[%s1141 + $0x74] sm:$0xf]
      %v1172 = vld [vmem:[%s1141 + $0x78] sm:$0xf]
      %v1173 = vld [vmem:[%s1141 + $0x7c] sm:$0xf]
      %v1174 = vld [vmem:[%s1141 + $0x80] sm:$0xf]
      %v1175 = vld [vmem:[%s1141 + $0x84] sm:$0xf]
      %v1176 = vld [vmem:[%s1141 + $0x88] sm:$0xf]
      %v1177 = vld [vmem:[%s1141 + $0x8c] sm:$0xf]
      %v1178 = vld [vmem:[%s1141 + $0x90] sm:$0xf]
      %v1179 = vld [vmem:[%s1141 + $0x94] sm:$0xf]
      %v1180 = vld [vmem:[%s1141 + $0x98] sm:$0xf]
      %v1181 = vld [vmem:[%s1141 + $0x9c] sm:$0xf]
      %v1182 = vld [vmem:[%s1141 + $0xa0] sm:$0xf]
      %v1183 = vld [vmem:[%s1141 + $0xa4] sm:$0xf]
      %v1184 = vld [vmem:[%s1141 + $0xa8] sm:$0xf]
      %v1185 = vld [vmem:[%s1141 + $0xac] sm:$0xf]
      %v1186 = vld [vmem:[%s1141 + $0xb0] sm:$0xf]
      %v1187 = vld [vmem:[%s1141 + $0xb4] sm:$0xf]
      %v1188 = vld [vmem:[%s1141 + $0xb8] sm:$0xf]
      %v1189 = vld [vmem:[%s1141 + $0xbc] sm:$0xf]
      %v1190 = vld [vmem:[%s1141 + $0xc0] sm:$0xf]
      %v1191 = vld [vmem:[%s1141 + $0xc4] sm:$0xf]
      %v1192 = vld [vmem:[%s1141 + $0xc8] sm:$0xf]
      %v1193 = vld [vmem:[%s1141 + $0xcc] sm:$0xf]
      %v1194 = vld [vmem:[%s1141 + $0xd0] sm:$0xf]
      %v1195 = vld [vmem:[%s1141 + $0xd4] sm:$0xf]
      %v1196 = vld [vmem:[%s1141 + $0xd8] sm:$0xf]
      %v1197 = vld [vmem:[%s1141 + $0xdc] sm:$0xf]
      %v1198 = vld [vmem:[%s1141 + $0xe0] sm:$0xf]
      %v1199 = vld [vmem:[%s1141 + $0xe4] sm:$0xf]
      %v1200 = vld [vmem:[%s1141 + $0xe8] sm:$0xf]
      %v1201 = vld [vmem:[%s1141 + $0xec] sm:$0xf]
      %v1202 = vld [vmem:[%s1141 + $0xf0] sm:$0xf]
      %v1203 = vld [vmem:[%s1141 + $0xf4] sm:$0xf]
      %v1204 = vld [vmem:[%s1141 + $0xf8] sm:$0xf]
      %v1205 = vld [vmem:[%s1141 + $0xfc] sm:$0xf]
      %v1218 = vunpack.c.l.b16 %v1129
      %v1219 = vunpack.c.h.b16 %v1129
      %v1220 = vunpack.c.l.b16 %v1130
      %v1221 = vunpack.c.h.b16 %v1130
      %v1222 = vunpack.c.l.b16 %v1131
      %v1223 = vunpack.c.h.b16 %v1131
      %v1224 = vunpack.c.l.b16 %v1132
      %v1225 = vunpack.c.h.b16 %v1132
      %v1226 = vunpack.c.l.b16 %v1133
      %v1227 = vunpack.c.h.b16 %v1133
      %v1228 = vunpack.c.l.b16 %v1134
      %v1229 = vunpack.c.h.b16 %v1134
      %v1230 = vunpack.c.l.b16 %v1135
      %v1231 = vunpack.c.h.b16 %v1135
      %v1232 = vunpack.c.l.b16 %v1136
      %v1233 = vunpack.c.h.b16 %v1136
      %v1234 = vunpack.c.l.b16 %v1137
      %v1235 = vunpack.c.h.b16 %v1137
      %v1236 = vunpack.c.l.b16 %v1138
      %v1237 = vunpack.c.h.b16 %v1138
      %v1238 = vunpack.c.l.b16 %v1139
      %v1239 = vunpack.c.h.b16 %v1139
      %v1240 = vunpack.c.l.b16 %v1140
      %v1241 = vunpack.c.h.b16 %v1140
      %v1242 = vpack.c.b16 %v1222, %v1218
      %v1243 = vpack.c.b16 %v1223, %v1219
      %v1244 = vpack.c.b16 %v1224, %v1220
      %v1245 = vpack.c.b16 %v1225, %v1221
      %v1246 = vpack.c.b16 %v1230, %v1226
      %v1247 = vpack.c.b16 %v1231, %v1227
      %v1248 = vpack.c.b16 %v1232, %v1228
      %v1249 = vpack.c.b16 %v1233, %v1229
      %v1250 = vpack.c.b16 %v1238, %v1234
      %v1251 = vpack.c.b16 %v1239, %v1235
      %v1252 = vpack.c.b16 %v1240, %v1236
      %v1253 = vpack.c.b16 %v1241, %v1237
      %v1255 = vshrl.u32 %v1242, 16
      %v1257 = vshll.u32 %v1242, 16
      %v1259 = vrot.slane %v1257, 1
      %v1260 = vor.u32 %v1255, %v1259
      %v1262 = vshll.u32 %v1246, 16
      %v1264 = vrot.slane %v1262, 1
      %v1265 = vsel %vm390, %v1260, %v1264
      %v1267 = vshrl.u32 %v1243, 16
      %v1269 = vshll.u32 %v1243, 16
      %v1271 = vrot.slane %v1269, 1
      %v1272 = vor.u32 %v1267, %v1271
      %v1274 = vshll.u32 %v1247, 16
      %v1276 = vrot.slane %v1274, 1
      %v1277 = vsel %vm390, %v1272, %v1276
      %v1279 = vshrl.u32 %v1244, 16
      %v1281 = vshll.u32 %v1244, 16
      %v1283 = vrot.slane %v1281, 1
      %v1284 = vor.u32 %v1279, %v1283
      %v1286 = vshll.u32 %v1248, 16
      %v1288 = vrot.slane %v1286, 1
      %v1289 = vsel %vm390, %v1284, %v1288
      %v1291 = vshrl.u32 %v1245, 16
      %v1293 = vshll.u32 %v1245, 16
      %v1295 = vrot.slane %v1293, 1
      %v1296 = vor.u32 %v1291, %v1295
      %v1298 = vshll.u32 %v1249, 16
      %v1300 = vrot.slane %v1298, 1
      %v1301 = vsel %vm390, %v1296, %v1300
      %v1302 = vshrl.u32 %v1246, 16
      %v1304 = vor.u32 %v1302, %v1264
      %v1306 = vshll.u32 %v1250, 16
      %v1308 = vrot.slane %v1306, 1
      %v1309 = vsel %vm390, %v1304, %v1308
      %v1310 = vshrl.u32 %v1247, 16
      %v1312 = vor.u32 %v1310, %v1276
      %v1314 = vshll.u32 %v1251, 16
      %v1316 = vrot.slane %v1314, 1
      %v1317 = vsel %vm390, %v1312, %v1316
      %v1318 = vshrl.u32 %v1248, 16
      %v1320 = vor.u32 %v1318, %v1288
      %v1322 = vshll.u32 %v1252, 16
      %v1324 = vrot.slane %v1322, 1
      %v1325 = vsel %vm390, %v1320, %v1324
      %v1326 = vshrl.u32 %v1249, 16
      %v1328 = vor.u32 %v1326, %v1300
      %v1330 = vshll.u32 %v1253, 16
      %v1332 = vrot.slane %v1330, 1
      %v1333 = vsel %vm390, %v1328, %v1332
      %v1334 = vshrl.u32 %v1250, 16
      %v1336 = vor.u32 %v1334, %v1308
      %v1337 = vshrl.u32 %v1251, 16
      %v1339 = vor.u32 %v1337, %v1316
      %v1340 = vshrl.u32 %v1252, 16
      %v1342 = vor.u32 %v1340, %v1324
      %v1343 = vshrl.u32 %v1253, 16
      %v1345 = vor.u32 %v1343, %v1332
      %v1422 = vunpack.c.l.b16 %v1142
      %v1423 = vunpack.c.l.b16 %v1143
      %v1424 = vunpack.c.l.b16 %v1144
      %v1425 = vunpack.c.l.b16 %v1145
      %v1426 = vunpack.c.l.b16 %v1146
      %v1427 = vunpack.c.l.b16 %v1147
      %v1428 = vunpack.c.l.b16 %v1148
      %v1429 = vunpack.c.l.b16 %v1149
      %v1430 = vunpack.c.l.b16 %v1150
      %v1431 = vunpack.c.l.b16 %v1151
      %v1432 = vunpack.c.l.b16 %v1152
      %v1433 = vunpack.c.l.b16 %v1153
      %v1434 = vunpack.c.l.b16 %v1154
      %v1435 = vunpack.c.l.b16 %v1155
      %v1436 = vunpack.c.l.b16 %v1156
      %v1437 = vunpack.c.l.b16 %v1157
      %v1438 = vunpack.c.l.b16 %v1158
      %v1439 = vunpack.c.l.b16 %v1159
      %v1440 = vunpack.c.l.b16 %v1160
      %v1441 = vunpack.c.l.b16 %v1161
      %v1442 = vunpack.c.l.b16 %v1162
      %v1443 = vunpack.c.l.b16 %v1163
      %v1444 = vunpack.c.l.b16 %v1164
      %v1445 = vunpack.c.l.b16 %v1165
      %v1446 = vunpack.c.l.b16 %v1166
      %v1447 = vunpack.c.l.b16 %v1167
      %v1448 = vunpack.c.l.b16 %v1168
      %v1449 = vunpack.c.l.b16 %v1169
      %v1450 = vunpack.c.l.b16 %v1170
      %v1451 = vunpack.c.l.b16 %v1171
      %v1452 = vunpack.c.l.b16 %v1172
      %v1453 = vunpack.c.l.b16 %v1173
      %v1454 = vunpack.c.l.b16 %v1174
      %v1455 = vunpack.c.l.b16 %v1175
      %v1456 = vunpack.c.l.b16 %v1176
      %v1457 = vunpack.c.l.b16 %v1177
      %v1458 = vunpack.c.l.b16 %v1178
      %v1459 = vunpack.c.l.b16 %v1179
      %v1460 = vunpack.c.l.b16 %v1180
      %v1461 = vunpack.c.l.b16 %v1181
      %v1462 = vunpack.c.l.b16 %v1182
      %v1463 = vunpack.c.l.b16 %v1183
      %v1464 = vunpack.c.l.b16 %v1184
      %v1465 = vunpack.c.l.b16 %v1185
      %v1466 = vunpack.c.l.b16 %v1186
      %v1467 = vunpack.c.l.b16 %v1187
      %v1468 = vunpack.c.l.b16 %v1188
      %v1469 = vunpack.c.l.b16 %v1189
      %v1470 = vunpack.c.l.b16 %v1190
      %v1471 = vunpack.c.l.b16 %v1191
      %v1472 = vunpack.c.l.b16 %v1192
      %v1473 = vunpack.c.l.b16 %v1193
      %v1474 = vunpack.c.l.b16 %v1194
      %v1475 = vunpack.c.l.b16 %v1195
      %v1476 = vunpack.c.l.b16 %v1196
      %v1477 = vunpack.c.l.b16 %v1197
      %v1478 = vunpack.c.l.b16 %v1198
      %v1479 = vunpack.c.l.b16 %v1199
      %v1480 = vunpack.c.l.b16 %v1200
      %v1481 = vunpack.c.l.b16 %v1201
      %v1482 = vunpack.c.l.b16 %v1202
      %v1483 = vunpack.c.l.b16 %v1203
      %v1484 = vunpack.c.l.b16 %v1204
      %v1485 = vunpack.c.l.b16 %v1205
      %v1486 = vpack.c.b16 %v1423, %v1422
      %v1487 = vpack.c.b16 %v1425, %v1424
      %v1488 = vpack.c.b16 %v1427, %v1426
      %v1489 = vpack.c.b16 %v1429, %v1428
      %v1490 = vpack.c.b16 %v1431, %v1430
      %v1491 = vpack.c.b16 %v1433, %v1432
      %v1492 = vpack.c.b16 %v1435, %v1434
      %v1493 = vpack.c.b16 %v1437, %v1436
      %v1494 = vpack.c.b16 %v1439, %v1438
      %v1495 = vpack.c.b16 %v1441, %v1440
      %v1496 = vpack.c.b16 %v1443, %v1442
      %v1497 = vpack.c.b16 %v1445, %v1444
      %v1498 = vpack.c.b16 %v1447, %v1446
      %v1499 = vpack.c.b16 %v1449, %v1448
      %v1500 = vpack.c.b16 %v1451, %v1450
      %v1501 = vpack.c.b16 %v1453, %v1452
      %v1502 = vpack.c.b16 %v1455, %v1454
      %v1503 = vpack.c.b16 %v1457, %v1456
      %v1504 = vpack.c.b16 %v1459, %v1458
      %v1505 = vpack.c.b16 %v1461, %v1460
      %v1506 = vpack.c.b16 %v1463, %v1462
      %v1507 = vpack.c.b16 %v1465, %v1464
      %v1508 = vpack.c.b16 %v1467, %v1466
      %v1509 = vpack.c.b16 %v1469, %v1468
      %v1510 = vpack.c.b16 %v1471, %v1470
      %v1511 = vpack.c.b16 %v1473, %v1472
      %v1512 = vpack.c.b16 %v1475, %v1474
      %v1513 = vpack.c.b16 %v1477, %v1476
      %v1514 = vpack.c.b16 %v1479, %v1478
      %v1515 = vpack.c.b16 %v1481, %v1480
      %v1516 = vpack.c.b16 %v1483, %v1482
      %v1517 = vpack.c.b16 %v1485, %v1484
      %1550 = vmatprep.subr.bf16.mxu0 0
      %1551 = vmatpush1.bf16.msra.mxu0 %v1486
      %1552 = vmatprep.subr.bf16.mxu0 0
      %1553 = vmatpush1.bf16.msra.mxu0 %v1487
      %1554 = vmatprep.subr.bf16.mxu0 0
      %1555 = vmatpush1.bf16.msra.mxu0 %v1488
      %1556 = vmatprep.subr.bf16.mxu0 0
      %1557 = vmatpush1.bf16.msra.mxu0 %v1489
      %1558 = vmatprep.subr.bf16.mxu0 0
      %1559 = vmatpush1.bf16.msra.mxu0 %v1490
      %1560 = vmatprep.subr.bf16.mxu0 0
      %1561 = vmatpush1.bf16.msra.mxu0 %v1491
      %1562 = vmatprep.subr.bf16.mxu0 0
      %1563 = vmatpush1.bf16.msra.mxu0 %v1492
      %1564 = vmatprep.subr.bf16.mxu0 0
      %1565 = vmatpush1.bf16.msra.mxu0 %v1493
      %1566 = vmatprep.subr.bf16.mxu0 0
      %1567 = vmatpush1.bf16.msra.mxu0 %v1494
      %1568 = vmatprep.subr.bf16.mxu0 0
      %1569 = vmatpush1.bf16.msra.mxu0 %v1495
      %1570 = vmatprep.subr.bf16.mxu0 0
      %1571 = vmatpush1.bf16.msra.mxu0 %v1496
      %1572 = vmatprep.subr.bf16.mxu0 0
      %1573 = vmatpush1.bf16.msra.mxu0 %v1497
      %1574 = vmatprep.subr.bf16.mxu0 0
      %1575 = vmatpush1.bf16.msra.mxu0 %v1498
      %1576 = vmatprep.subr.bf16.mxu0 0
      %1577 = vmatpush1.bf16.msra.mxu0 %v1499
      %1578 = vmatprep.subr.bf16.mxu0 0
      %1579 = vmatpush1.bf16.msra.mxu0 %v1500
      %1580 = vmatprep.subr.bf16.mxu0 0
      %1581 = vmatpush1.bf16.msra.mxu0 %v1501
      %1582 = vmatprep.mubr.bf16.mxu0 %v1277
      %1583 = vmatmul.mubr.bf16.gmra.mrb[0].mxu0 %v1265
      %v1584 = vpop.f32.mrb[0].mxu0
      %v1585 = vadd.f32 0.0, %v1584
      %v1586 = vpop.f32.mrb[0].mxu0
      %v1587 = vpop.f32.mrb[0].mxu0
      %v1588 = vadd.f32 0.0, %v1587
      %v1589 = vpop.f32.mrb[0].mxu0
      %1590 = vmatprep.mubr.bf16.mxu0 %v1317
      %1591 = vmatmul.mubr.bf16.gmra.mrb[0].mxu0 %v1309
      %v1592 = vpop.f32.mrb[0].mxu0
      %v1593 = vadd.f32 0.0, %v1592
      %v1594 = vpop.f32.mrb[0].mxu0
      %v1595 = vpop.f32.mrb[0].mxu0
      %v1596 = vadd.f32 0.0, %v1595
      %v1597 = vpop.f32.mrb[0].mxu0
      %1598 = vmatprep.mubr.bf16.mxu0 %v1339
      %1599 = vmatmul.mubr.bf16.gmra.mrb[0].mxu0 %v1336
      %v1600 = vpop.f32.mrb[0].mxu0
      %v1601 = vadd.f32 0.0, %v1600
      %v1602 = vpop.f32.mrb[0].mxu0
      %v1603 = vpop.f32.mrb[0].mxu0
      %v1604 = vadd.f32 0.0, %v1603
      %v1605 = vpop.f32.mrb[0].mxu0
      %1606 = vdwg.mxu0
      %1607 = vmatprep.subr.bf16.mxu0 0
      %1608 = vmatpush1.bf16.msra.mxu0 %v1502
      %1609 = vmatprep.subr.bf16.mxu0 0
      %1610 = vmatpush1.bf16.msra.mxu0 %v1503
      %1611 = vmatprep.subr.bf16.mxu0 0
      %1612 = vmatpush1.bf16.msra.mxu0 %v1504
      %1613 = vmatprep.subr.bf16.mxu0 0
      %1614 = vmatpush1.bf16.msra.mxu0 %v1505
      %1615 = vmatprep.subr.bf16.mxu0 0
      %1616 = vmatpush1.bf16.msra.mxu0 %v1506
      %1617 = vmatprep.subr.bf16.mxu0 0
      %1618 = vmatpush1.bf16.msra.mxu0 %v1507
      %1619 = vmatprep.subr.bf16.mxu0 0
      %1620 = vmatpush1.bf16.msra.mxu0 %v1508
      %1621 = vmatprep.subr.bf16.mxu0 0
      %1622 = vmatpush1.bf16.msra.mxu0 %v1509
      %1623 = vmatprep.subr.bf16.mxu0 0
      %1624 = vmatpush1.bf16.msra.mxu0 %v1510
      %1625 = vmatprep.subr.bf16.mxu0 0
      %1626 = vmatpush1.bf16.msra.mxu0 %v1511
      %1627 = vmatprep.subr.bf16.mxu0 0
      %1628 = vmatpush1.bf16.msra.mxu0 %v1512
      %1629 = vmatprep.subr.bf16.mxu0 0
      %1630 = vmatpush1.bf16.msra.mxu0 %v1513
      %1631 = vmatprep.subr.bf16.mxu0 0
      %1632 = vmatpush1.bf16.msra.mxu0 %v1514
      %1633 = vmatprep.subr.bf16.mxu0 0
      %1634 = vmatpush1.bf16.msra.mxu0 %v1515
      %1635 = vmatprep.subr.bf16.mxu0 0
      %1636 = vmatpush1.bf16.msra.mxu0 %v1516
      %1637 = vmatprep.subr.bf16.mxu0 0
      %1638 = vmatpush1.bf16.msra.mxu0 %v1517
      %1639 = vmatprep.mubr.bf16.mxu0 %v1301
      %1640 = vmatmul.mubr.bf16.gmra.mrb[0].mxu0 %v1289
      %v1641 = vpop.f32.mrb[0].mxu0
      %v1642 = vadd.f32 %v1585, %v1641
      %v1643 = vpop.f32.mrb[0].mxu0
      %v1644 = vpop.f32.mrb[0].mxu0
      %v1645 = vadd.f32 %v1588, %v1644
      %v1646 = vpop.f32.mrb[0].mxu0
      %1647 = vmatprep.mubr.bf16.mxu0 %v1333
      %1648 = vmatmul.mubr.bf16.gmra.mrb[0].mxu0 %v1325
      %v1649 = vpop.f32.mrb[0].mxu0
      %v1650 = vadd.f32 %v1593, %v1649
      %v1651 = vpop.f32.mrb[0].mxu0
      %v1652 = vpop.f32.mrb[0].mxu0
      %v1653 = vadd.f32 %v1596, %v1652
      %v1654 = vpop.f32.mrb[0].mxu0
      %1655 = vmatprep.mubr.bf16.mxu0 %v1345
      %1656 = vmatmul.mubr.bf16.gmra.mrb[0].mxu0 %v1342
      %v1657 = vpop.f32.mrb[0].mxu0
      %v1658 = vadd.f32 %v1601, %v1657
      %v1659 = vpop.f32.mrb[0].mxu0
      %v1660 = vpop.f32.mrb[0].mxu0
      %v1661 = vadd.f32 %v1604, %v1660
      %v1662 = vpop.f32.mrb[0].mxu0
      %1663 = vdwg.mxu0
      %v1664 = vadd.f32 %v1107, %v1642
      %v1665 = vadd.f32 %v1110, %v1645
      %v1666 = vadd.f32 %v1115, %v1650
      %v1667 = vadd.f32 %v1118, %v1653
      %v1668 = vadd.f32 %v1123, %v1658
      %v1669 = vadd.f32 %v1126, %v1661
      %v1670 = vld [vmem:[%s192 + $0x10] sm:$0xee]
      %v1671 = vld [vmem:[%s192 + $0x18] sm:$0xee]
      %s1672 = scalar_lea.vmem %s1, 768
      %v1673 = vld [vmem:[%s1672] sm:$0xf]
      %v1674 = vld [vmem:[%s1672 + $0x4] sm:$0xf]
      %v1675 = vld [vmem:[%s1672 + $0x8] sm:$0xf]
      %v1676 = vld [vmem:[%s1672 + $0xc] sm:$0xf]
      %v1677 = vld [vmem:[%s1672 + $0x10] sm:$0xf]
      %v1678 = vld [vmem:[%s1672 + $0x14] sm:$0xf]
      %v1679 = vld [vmem:[%s1672 + $0x18] sm:$0xf]
      %v1680 = vld [vmem:[%s1672 + $0x1c] sm:$0xf]
      %v1681 = vld [vmem:[%s1672 + $0x20] sm:$0xf]
      %v1682 = vld [vmem:[%s1672 + $0x24] sm:$0xf]
      %v1683 = vld [vmem:[%s1672 + $0x28] sm:$0xf]
      %v1684 = vld [vmem:[%s1672 + $0x2c] sm:$0xf]
      %v1685 = vld [vmem:[%s1672 + $0x30] sm:$0xf]
      %v1686 = vld [vmem:[%s1672 + $0x34] sm:$0xf]
      %v1687 = vld [vmem:[%s1672 + $0x38] sm:$0xf]
      %v1688 = vld [vmem:[%s1672 + $0x3c] sm:$0xf]
      %v1689 = vld [vmem:[%s1672 + $0x40] sm:$0xf]
      %v1690 = vld [vmem:[%s1672 + $0x44] sm:$0xf]
      %v1691 = vld [vmem:[%s1672 + $0x48] sm:$0xf]
      %v1692 = vld [vmem:[%s1672 + $0x4c] sm:$0xf]
      %v1693 = vld [vmem:[%s1672 + $0x50] sm:$0xf]
      %v1694 = vld [vmem:[%s1672 + $0x54] sm:$0xf]
      %v1695 = vld [vmem:[%s1672 + $0x58] sm:$0xf]
      %v1696 = vld [vmem:[%s1672 + $0x5c] sm:$0xf]
      %v1697 = vld [vmem:[%s1672 + $0x60] sm:$0xf]
      %v1698 = vld [vmem:[%s1672 + $0x64] sm:$0xf]
      %v1699 = vld [vmem:[%s1672 + $0x68] sm:$0xf]
      %v1700 = vld [vmem:[%s1672 + $0x6c] sm:$0xf]
      %v1701 = vld [vmem:[%s1672 + $0x70] sm:$0xf]
      %v1702 = vld [vmem:[%s1672 + $0x74] sm:$0xf]
      %v1703 = vld [vmem:[%s1672 + $0x78] sm:$0xf]
      %v1704 = vld [vmem:[%s1672 + $0x7c] sm:$0xf]
      %v1705 = vld [vmem:[%s1672 + $0x80] sm:$0xf]
      %v1706 = vld [vmem:[%s1672 + $0x84] sm:$0xf]
      %v1707 = vld [vmem:[%s1672 + $0x88] sm:$0xf]
      %v1708 = vld [vmem:[%s1672 + $0x8c] sm:$0xf]
      %v1709 = vld [vmem:[%s1672 + $0x90] sm:$0xf]
      %v1710 = vld [vmem:[%s1672 + $0x94] sm:$0xf]
      %v1711 = vld [vmem:[%s1672 + $0x98] sm:$0xf]
      %v1712 = vld [vmem:[%s1672 + $0x9c] sm:$0xf]
      %v1713 = vld [vmem:[%s1672 + $0xa0] sm:$0xf]
      %v1714 = vld [vmem:[%s1672 + $0xa4] sm:$0xf]
      %v1715 = vld [vmem:[%s1672 + $0xa8] sm:$0xf]
      %v1716 = vld [vmem:[%s1672 + $0xac] sm:$0xf]
      %v1717 = vld [vmem:[%s1672 + $0xb0] sm:$0xf]
      %v1718 = vld [vmem:[%s1672 + $0xb4] sm:$0xf]
      %v1719 = vld [vmem:[%s1672 + $0xb8] sm:$0xf]
      %v1720 = vld [vmem:[%s1672 + $0xbc] sm:$0xf]
      %v1721 = vld [vmem:[%s1672 + $0xc0] sm:$0xf]
      %v1722 = vld [vmem:[%s1672 + $0xc4] sm:$0xf]
      %v1723 = vld [vmem:[%s1672 + $0xc8] sm:$0xf]
      %v1724 = vld [vmem:[%s1672 + $0xcc] sm:$0xf]
      %v1725 = vld [vmem:[%s1672 + $0xd0] sm:$0xf]
      %v1726 = vld [vmem:[%s1672 + $0xd4] sm:$0xf]
      %v1727 = vld [vmem:[%s1672 + $0xd8] sm:$0xf]
      %v1728 = vld [vmem:[%s1672 + $0xdc] sm:$0xf]
      %v1729 = vld [vmem:[%s1672 + $0xe0] sm:$0xf]
      %v1730 = vld [vmem:[%s1672 + $0xe4] sm:$0xf]
      %v1731 = vld [vmem:[%s1672 + $0xe8] sm:$0xf]
      %v1732 = vld [vmem:[%s1672 + $0xec] sm:$0xf]
      %v1733 = vld [vmem:[%s1672 + $0xf0] sm:$0xf]
      %v1734 = vld [vmem:[%s1672 + $0xf4] sm:$0xf]
      %v1735 = vld [vmem:[%s1672 + $0xf8] sm:$0xf]
      %v1736 = vld [vmem:[%s1672 + $0xfc] sm:$0xf]
      %v1739 = vunpack.c.l.b16 %v1670
      %v1740 = vunpack.c.h.b16 %v1670
      %v1741 = vunpack.c.l.b16 %v1671
      %v1742 = vunpack.c.h.b16 %v1671
      %v1743 = vpack.c.b16 %v1222, %v1739
      %v1744 = vpack.c.b16 %v1223, %v1740
      %v1745 = vpack.c.b16 %v1224, %v1741
      %v1746 = vpack.c.b16 %v1225, %v1742
      %vm1747 = vcmask 1046528
      %v1748 = vrot.slane %v1743, 1
      %v1749 = vrot.slane %v1246, 1
      %v1750 = vsel %vm1747, %v1748, %v1749
      %v1751 = vrot.slane %v1744, 1
      %v1752 = vrot.slane %v1247, 1
      %v1753 = vsel %vm1747, %v1751, %v1752
      %v1754 = vrot.slane %v1745, 1
      %v1755 = vrot.slane %v1248, 1
      %v1756 = vsel %vm1747, %v1754, %v1755
      %v1757 = vrot.slane %v1746, 1
      %v1758 = vrot.slane %v1249, 1
      %v1759 = vsel %vm1747, %v1757, %v1758
      %v1760 = vrot.slane %v1250, 1
      %v1761 = vsel %vm1747, %v1749, %v1760
      %v1762 = vrot.slane %v1251, 1
      %v1763 = vsel %vm1747, %v1752, %v1762
      %v1764 = vrot.slane %v1252, 1
      %v1765 = vsel %vm1747, %v1755, %v1764
      %v1766 = vrot.slane %v1253, 1
      %v1767 = vsel %vm1747, %v1758, %v1766
      %v1844 = vunpack.c.l.b16 %v1673
      %v1845 = vunpack.c.l.b16 %v1674
      %v1846 = vunpack.c.l.b16 %v1675
      %v1847 = vunpack.c.l.b16 %v1676
      %v1848 = vunpack.c.l.b16 %v1677
      %v1849 = vunpack.c.l.b16 %v1678
      %v1850 = vunpack.c.l.b16 %v1679
      %v1851 = vunpack.c.l.b16 %v1680
      %v1852 = vunpack.c.l.b16 %v1681
      %v1853 = vunpack.c.l.b16 %v1682
      %v1854 = vunpack.c.l.b16 %v1683
      %v1855 = vunpack.c.l.b16 %v1684
      %v1856 = vunpack.c.l.b16 %v1685
      %v1857 = vunpack.c.l.b16 %v1686
      %v1858 = vunpack.c.l.b16 %v1687
      %v1859 = vunpack.c.l.b16 %v1688
      %v1860 = vunpack.c.l.b16 %v1689
      %v1861 = vunpack.c.l.b16 %v1690
      %v1862 = vunpack.c.l.b16 %v1691
      %v1863 = vunpack.c.l.b16 %v1692
      %v1864 = vunpack.c.l.b16 %v1693
      %v1865 = vunpack.c.l.b16 %v1694
      %v1866 = vunpack.c.l.b16 %v1695
      %v1867 = vunpack.c.l.b16 %v1696
      %v1868 = vunpack.c.l.b16 %v1697
      %v1869 = vunpack.c.l.b16 %v1698
      %v1870 = vunpack.c.l.b16 %v1699
      %v1871 = vunpack.c.l.b16 %v1700
      %v1872 = vunpack.c.l.b16 %v1701
      %v1873 = vunpack.c.l.b16 %v1702
      %v1874 = vunpack.c.l.b16 %v1703
      %v1875 = vunpack.c.l.b16 %v1704
      %v1876 = vunpack.c.l.b16 %v1705
      %v1877 = vunpack.c.l.b16 %v1706
      %v1878 = vunpack.c.l.b16 %v1707
      %v1879 = vunpack.c.l.b16 %v1708
      %v1880 = vunpack.c.l.b16 %v1709
      %v1881 = vunpack.c.l.b16 %v1710
      %v1882 = vunpack.c.l.b16 %v1711
      %v1883 = vunpack.c.l.b16 %v1712
      %v1884 = vunpack.c.l.b16 %v1713
      %v1885 = vunpack.c.l.b16 %v1714
      %v1886 = vunpack.c.l.b16 %v1715
      %v1887 = vunpack.c.l.b16 %v1716
      %v1888 = vunpack.c.l.b16 %v1717
      %v1889 = vunpack.c.l.b16 %v1718
      %v1890 = vunpack.c.l.b16 %v1719
      %v1891 = vunpack.c.l.b16 %v1720
      %v1892 = vunpack.c.l.b16 %v1721
      %v1893 = vunpack.c.l.b16 %v1722
      %v1894 = vunpack.c.l.b16 %v1723
      %v1895 = vunpack.c.l.b16 %v1724
      %v1896 = vunpack.c.l.b16 %v1725
      %v1897 = vunpack.c.l.b16 %v1726
      %v1898 = vunpack.c.l.b16 %v1727
      %v1899 = vunpack.c.l.b16 %v1728
      %v1900 = vunpack.c.l.b16 %v1729
      %v1901 = vunpack.c.l.b16 %v1730
      %v1902 = vunpack.c.l.b16 %v1731
      %v1903 = vunpack.c.l.b16 %v1732
      %v1904 = vunpack.c.l.b16 %v1733
      %v1905 = vunpack.c.l.b16 %v1734
      %v1906 = vunpack.c.l.b16 %v1735
      %v1907 = vunpack.c.l.b16 %v1736
      %v1908 = vpack.c.b16 %v1845, %v1844
      %v1909 = vpack.c.b16 %v1847, %v1846
      %v1910 = vpack.c.b16 %v1849, %v1848
      %v1911 = vpack.c.b16 %v1851, %v1850
      %v1912 = vpack.c.b16 %v1853, %v1852
      %v1913 = vpack.c.b16 %v1855, %v1854
      %v1914 = vpack.c.b16 %v1857, %v1856
      %v1915 = vpack.c.b16 %v1859, %v1858
      %v1916 = vpack.c.b16 %v1861, %v1860
      %v1917 = vpack.c.b16 %v1863, %v1862
      %v1918 = vpack.c.b16 %v1865, %v1864
      %v1919 = vpack.c.b16 %v1867, %v1866
      %v1920 = vpack.c.b16 %v1869, %v1868
      %v1921 = vpack.c.b16 %v1871, %v1870
      %v1922 = vpack.c.b16 %v1873, %v1872
      %v1923 = vpack.c.b16 %v1875, %v1874
      %v1924 = vpack.c.b16 %v1877, %v1876
      %v1925 = vpack.c.b16 %v1879, %v1878
      %v1926 = vpack.c.b16 %v1881, %v1880
      %v1927 = vpack.c.b16 %v1883, %v1882
      %v1928 = vpack.c.b16 %v1885, %v1884
      %v1929 = vpack.c.b16 %v1887, %v1886
      %v1930 = vpack.c.b16 %v1889, %v1888
      %v1931 = vpack.c.b16 %v1891, %v1890
      %v1932 = vpack.c.b16 %v1893, %v1892
      %v1933 = vpack.c.b16 %v1895, %v1894
      %v1934 = vpack.c.b16 %v1897, %v1896
      %v1935 = vpack.c.b16 %v1899, %v1898
      %v1936 = vpack.c.b16 %v1901, %v1900
      %v1937 = vpack.c.b16 %v1903, %v1902
      %v1938 = vpack.c.b16 %v1905, %v1904
      %v1939 = vpack.c.b16 %v1907, %v1906
      %1972 = vmatprep.subr.bf16.mxu0 0
      %1973 = vmatpush1.bf16.msra.mxu0 %v1908
      %1974 = vmatprep.subr.bf16.mxu0 0
      %1975 = vmatpush1.bf16.msra.mxu0 %v1909
      %1976 = vmatprep.subr.bf16.mxu0 0
      %1977 = vmatpush1.bf16.msra.mxu0 %v1910
      %1978 = vmatprep.subr.bf16.mxu0 0
      %1979 = vmatpush1.bf16.msra.mxu0 %v1911
      %1980 = vmatprep.subr.bf16.mxu0 0
      %1981 = vmatpush1.bf16.msra.mxu0 %v1912
      %1982 = vmatprep.subr.bf16.mxu0 0
      %1983 = vmatpush1.bf16.msra.mxu0 %v1913
      %1984 = vmatprep.subr.bf16.mxu0 0
      %1985 = vmatpush1.bf16.msra.mxu0 %v1914
      %1986 = vmatprep.subr.bf16.mxu0 0
      %1987 = vmatpush1.bf16.msra.mxu0 %v1915
      %1988 = vmatprep.subr.bf16.mxu0 0
      %1989 = vmatpush1.bf16.msra.mxu0 %v1916
      %1990 = vmatprep.subr.bf16.mxu0 0
      %1991 = vmatpush1.bf16.msra.mxu0 %v1917
      %1992 = vmatprep.subr.bf16.mxu0 0
      %1993 = vmatpush1.bf16.msra.mxu0 %v1918
      %1994 = vmatprep.subr.bf16.mxu0 0
      %1995 = vmatpush1.bf16.msra.mxu0 %v1919
      %1996 = vmatprep.subr.bf16.mxu0 0
      %1997 = vmatpush1.bf16.msra.mxu0 %v1920
      %1998 = vmatprep.subr.bf16.mxu0 0
      %1999 = vmatpush1.bf16.msra.mxu0 %v1921
      %2000 = vmatprep.subr.bf16.mxu0 0
      %2001 = vmatpush1.bf16.msra.mxu0 %v1922
      %2002 = vmatprep.subr.bf16.mxu0 0
      %2003 = vmatpush1.bf16.msra.mxu0 %v1923
      %2004 = vmatprep.mubr.bf16.mxu0 %v1753
      %2005 = vmatmul.mubr.bf16.gmra.mrb[0].mxu0 %v1750
      %v2006 = vpop.f32.mrb[0].mxu0
      %v2007 = vadd.f32 0.0, %v2006
      %v2008 = vpop.f32.mrb[0].mxu0
      %v2009 = vpop.f32.mrb[0].mxu0
      %v2010 = vadd.f32 0.0, %v2009
      %v2011 = vpop.f32.mrb[0].mxu0
      %2012 = vmatprep.mubr.bf16.mxu0 %v1763
      %2013 = vmatmul.mubr.bf16.gmra.mrb[0].mxu0 %v1761
      %v2014 = vpop.f32.mrb[0].mxu0
      %v2015 = vadd.f32 0.0, %v2014
      %v2016 = vpop.f32.mrb[0].mxu0
      %v2017 = vpop.f32.mrb[0].mxu0
      %v2018 = vadd.f32 0.0, %v2017
      %v2019 = vpop.f32.mrb[0].mxu0
      %2020 = vmatprep.mubr.bf16.mxu0 %v1762
      %2021 = vmatmul.mubr.bf16.gmra.mrb[0].mxu0 %v1760
      %v2022 = vpop.f32.mrb[0].mxu0
      %v2023 = vadd.f32 0.0, %v2022
      %v2024 = vpop.f32.mrb[0].mxu0
      %v2025 = vpop.f32.mrb[0].mxu0
      %v2026 = vadd.f32 0.0, %v2025
      %v2027 = vpop.f32.mrb[0].mxu0
      %2028 = vdwg.mxu0
      %2029 = vmatprep.subr.bf16.mxu0 0
      %2030 = vmatpush1.bf16.msra.mxu0 %v1924
      %2031 = vmatprep.subr.bf16.mxu0 0
      %2032 = vmatpush1.bf16.msra.mxu0 %v1925
      %2033 = vmatprep.subr.bf16.mxu0 0
      %2034 = vmatpush1.bf16.msra.mxu0 %v1926
      %2035 = vmatprep.subr.bf16.mxu0 0
      %2036 = vmatpush1.bf16.msra.mxu0 %v1927
      %2037 = vmatprep.subr.bf16.mxu0 0
      %2038 = vmatpush1.bf16.msra.mxu0 %v1928
      %2039 = vmatprep.subr.bf16.mxu0 0
      %2040 = vmatpush1.bf16.msra.mxu0 %v1929
      %2041 = vmatprep.subr.bf16.mxu0 0
      %2042 = vmatpush1.bf16.msra.mxu0 %v1930
      %2043 = vmatprep.subr.bf16.mxu0 0
      %2044 = vmatpush1.bf16.msra.mxu0 %v1931
      %2045 = vmatprep.subr.bf16.mxu0 0
      %2046 = vmatpush1.bf16.msra.mxu0 %v1932
      %2047 = vmatprep.subr.bf16.mxu0 0
      %2048 = vmatpush1.bf16.msra.mxu0 %v1933
      %2049 = vmatprep.subr.bf16.mxu0 0
      %2050 = vmatpush1.bf16.msra.mxu0 %v1934
      %2051 = vmatprep.subr.bf16.mxu0 0
      %2052 = vmatpush1.bf16.msra.mxu0 %v1935
      %2053 = vmatprep.subr.bf16.mxu0 0
      %2054 = vmatpush1.bf16.msra.mxu0 %v1936
      %2055 = vmatprep.subr.bf16.mxu0 0
      %2056 = vmatpush1.bf16.msra.mxu0 %v1937
      %2057 = vmatprep.subr.bf16.mxu0 0
      %2058 = vmatpush1.bf16.msra.mxu0 %v1938
      %2059 = vmatprep.subr.bf16.mxu0 0
      %2060 = vmatpush1.bf16.msra.mxu0 %v1939
      %2061 = vmatprep.mubr.bf16.mxu0 %v1759
      %2062 = vmatmul.mubr.bf16.gmra.mrb[0].mxu0 %v1756
      %v2063 = vpop.f32.mrb[0].mxu0
      %v2064 = vadd.f32 %v2007, %v2063
      %v2065 = vpop.f32.mrb[0].mxu0
      %v2066 = vpop.f32.mrb[0].mxu0
      %v2067 = vadd.f32 %v2010, %v2066
      %v2068 = vpop.f32.mrb[0].mxu0
      %2069 = vmatprep.mubr.bf16.mxu0 %v1767
      %2070 = vmatmul.mubr.bf16.gmra.mrb[0].mxu0 %v1765
      %v2071 = vpop.f32.mrb[0].mxu0
      %v2072 = vadd.f32 %v2015, %v2071
      %v2073 = vpop.f32.mrb[0].mxu0
      %v2074 = vpop.f32.mrb[0].mxu0
      %v2075 = vadd.f32 %v2018, %v2074
      %v2076 = vpop.f32.mrb[0].mxu0
      %2077 = vmatprep.mubr.bf16.mxu0 %v1766
      %2078 = vmatmul.mubr.bf16.gmra.mrb[0].mxu0 %v1764
      %v2079 = vpop.f32.mrb[0].mxu0
      %v2080 = vadd.f32 %v2023, %v2079
      %v2081 = vpop.f32.mrb[0].mxu0
      %v2082 = vpop.f32.mrb[0].mxu0
      %v2083 = vadd.f32 %v2026, %v2082
      %v2084 = vpop.f32.mrb[0].mxu0
      %2085 = vdwg.mxu0
      %v2086 = vadd.f32 %v1664, %v2064
      %v2087 = vadd.f32 %v1665, %v2067
      %v2088 = vadd.f32 %v1666, %v2072
      %v2089 = vadd.f32 %v1667, %v2075
      %v2090 = vadd.f32 %v1668, %v2080
      %v2091 = vadd.f32 %v1669, %v2083
      %v2092 = vld [vmem:[%s2] sm:$0x1]
      %v2094 = vlaneseq
      %v2095 = vshrl.u32 %v2094, 7
      %v2096 = vsub.s32 0, %v2095
      %v2097 = vrot.slane %v2092, %v2096
      %v2099 = vmul.f32 %v2086, %v2097
      %v2100 = vmul.f32 %v2087, %v2097
      %v2101 = vmul.f32 %v2088, %v2097
      %v2102 = vmul.f32 %v2089, %v2097
      %v2103 = vmul.f32 %v2090, %v2097
      %v2104 = vmul.f32 %v2091, %v2097
      %v2105 = vld [vmem:[%s3] sm:$0x1]
      %v2107 = vlaneseq
      %v2108 = vshrl.u32 %v2107, 7
      %v2109 = vsub.s32 0, %v2108
      %v2110 = vrot.slane %v2105, %v2109
      %v2112 = vadd.f32 %v2099, %v2110
      %v2113 = vadd.f32 %v2100, %v2110
      %v2114 = vadd.f32 %v2101, %v2110
      %v2115 = vadd.f32 %v2102, %v2110
      %v2116 = vadd.f32 %v2103, %v2110
      %v2117 = vadd.f32 %v2104, %v2110
      %vm2118 = vcmp.ge.f32.partialorder %v2112, 0.0
      %vm2119 = vcmp.ge.f32.partialorder %v2113, 0.0
      %vm2120 = vcmp.ge.f32.partialorder %v2114, 0.0
      %vm2121 = vcmp.ge.f32.partialorder %v2115, 0.0
      %vm2122 = vcmp.ge.f32.partialorder %v2116, 0.0
      %vm2123 = vcmp.ge.f32.partialorder %v2117, 0.0
      %v2124 = vmul.f32 %v2112, 0.2
      %v2125 = vmul.f32 %v2113, 0.2
      %v2126 = vmul.f32 %v2114, 0.2
      %v2127 = vmul.f32 %v2115, 0.2
      %v2128 = vmul.f32 %v2116, 0.2
      %v2129 = vmul.f32 %v2117, 0.2
      %v2130 = vsel %vm2118, %v2112, %v2124
      %v2131 = vsel %vm2119, %v2113, %v2125
      %v2132 = vsel %vm2120, %v2114, %v2126
      %v2133 = vsel %vm2121, %v2115, %v2127
      %v2134 = vsel %vm2122, %v2116, %v2128
      %v2135 = vsel %vm2123, %v2117, %v2129
      %v2136 = vpack.c.bf16 %v2131, %v2130
      %v2137 = vpack.c.bf16 %v2133, %v2132
      %v2138 = vpack.c.bf16 %v2135, %v2134
      %v2142 = vunpack.c.l.b16 %v2136
      %v2143 = vunpack.c.h.b16 %v2136
      %v2144 = vunpack.c.l.b16 %v2137
      %v2145 = vunpack.c.h.b16 %v2137
      %v2146 = vunpack.c.l.b16 %v2138
      %v2147 = vunpack.c.h.b16 %v2138
      %v2148 = vpack.c.b16 %v2142, %v2142
      %v2149 = vpack.c.b16 %v2143, %v2143
      %v2150 = vpack.c.b16 %v2144, %v2144
      %v2151 = vpack.c.b16 %v2145, %v2145
      %v2152 = vpack.c.b16 %v2146, %v2146
      %v2153 = vpack.c.b16 %v2147, %v2147
      %2160 = vst [vmem:[%s197] sm:$0xf] %v2148
      %2161 = vst [vmem:[%s197 + $0x4] sm:$0xf] %v2149
      %2162 = vst [vmem:[%s197 + $0x8] sm:$0xf] %v2150
      %2163 = vst [vmem:[%s197 + $0xc] sm:$0xf] %v2151
      %2164 = vst [vmem:[%s197 + $0x10] sm:$0xf] %v2152
      %2165 = vst [vmem:[%s197 + $0x14] sm:$0x3] %v2153
      %p2166 = scmp.lt.s32.totalorder %s15, 1
      %s2167 = scalar_select %p2166, %s15, 1
      %s2168 = smul.addr %s2167, 6
      %s2169 = smul.addr %s2168, 4
      %s2170 = scalar_lea.vmem %s4, %s2169
      // Predicated region
      $region37: #{nlayer_discriminator_forward.6} parent=35 // pred_check
        %p2171 = pneg %p122
      $region38: #{nlayer_discriminator_forward.6} parent=35 // pred_check_branch
        %2173 = sbr.rel (%p2171) target = $region40
      $region39: #{nlayer_discriminator_forward.6} parent=35 // pred_region
        _
      $region40: #{nlayer_discriminator_forward.6} parent=35 // pred_fallthru
        _
    $region36: #{nlayer_discriminator_forward.6} parent=5 // pred_fallthru
      _
    %p2174 = scmp.le.s32.totalorder 2, %s10
    // Predicated region
    $region41: #{nlayer_discriminator_forward.6} parent=5 // pred_check
      %p2175 = pneg %p2174
    $region42: #{nlayer_discriminator_forward.6} parent=5 // pred_check_branch
      %2177 = sbr.rel (%p2175) target = $region44
    $region43: #{nlayer_discriminator_forward.6} parent=5 // pred_region
      %s2178 = ssub.s32 %s10, 2
      // Predicated region
      $region45: #{nlayer_discriminator_forward.6} parent=43 // pred_check
        %p2179 = pneg %p128
      $region46: #{nlayer_discriminator_forward.6} parent=43 // pred_check_branch
        %2181 = sbr.rel (%p2179) target = $region48
      $region47: #{nlayer_discriminator_forward.6} parent=43 // pred_region
        %p2182 = scmp.lt.s32.totalorder %s16, 1
        %s2183 = scalar_select %p2182, %s16, 1
        %s2184 = smul.addr %s2183, 6
        %s2185 = smul.addr %s2184, 4
        %s2186 = scalar_lea.vmem %s4, %s2185
      $region48: #{nlayer_discriminator_forward.6} parent=43 // pred_fallthru
        _
    $region44: #{nlayer_discriminator_forward.6} parent=5 // pred_fallthru
      _
  $region6: #{nlayer_discriminator_forward.6} parent=0 // loop_footer
    %s14 = sadd.s32 1, %s10
  $region7: #{nlayer_discriminator_forward.6} parent=0 // loop_footer_branch
    %9 = sbr.rel target = $region3
  $region8: #{nlayer_discriminator_forward.6} parent=0 // loop_exit
    _

// kernel: nlayer_discriminator_forward.7
$region0: #{nlayer_discriminator_forward.7}
  #allocation0 [shape = 'u32[]', space=smem, size = 0x4, offset = 0x4, fixed_abs, tag = 'smem constant byte address 0x4 - core index']
  #allocation1 [shape = 'u32[144,128]{1,0:T(1,128)}', space=vmem, size = 0x12000, scoped, tag = 'internal scratch']
  %s0 = inlined_call_operand.vmem [shape: bf16[2,36,512], index: 0, kind: input, shape index: {}]
  %s1 = inlined_call_operand.vmem [shape: bf16[4,512,128], index: 1, kind: input, shape index: {}]
  %s2 = inlined_call_operand.vmem [shape: f32[1,128], index: 2, kind: input, shape index: {}]
  %s3 = inlined_call_operand.vmem [shape: f32[1,128], index: 3, kind: input, shape index: {}]
  %s4 = inlined_call_operand.vmem [shape: bf16[2,26,128], index: 4, kind: output, shape index: {}]
  %s5 = sld [smem:[#allocation0]]
  $region49: #{nlayer_discriminator_forward.7} parent=0
    _
  %s7 = ssub.s32 1, %s5
  %s8 = scalar_select 0, %s7, %s5
  loop: start=0, step=1, limit=4
  $region2: #{nlayer_discriminator_forward.7} parent=0 // loop_pre_header
    _
  $region3: #{nlayer_discriminator_forward.7} parent=0 // loop_header
    %s10 = sphi 0, %s14
    %p11 = scmp.ge.s32.totalorder %s10, 4
    %s20 = sphi 0, %s22
    %s23 = sphi 0, %s20
    %s24 = sphi 0, %s23
    %s40 = sphi 0, %s24
    %s44 = sphi 0, %s44
    %s46 = sphi 0, %s44
    %s47 = sphi 0, %s46
    %s61 = sphi 0, %s47
    %s65 = sphi 0, %s65
    %s67 = sphi 0, %s65
    %s68 = sphi 0, %s67
    %s82 = sphi 0, %s68
    %s86 = sphi 0, %s86
    %s88 = sphi 0, %s86
    %s89 = sphi 0, %s88
    %s103 = sphi 0, %s89
    %s109 = sphi 0, %s111
    %s112 = sphi 0, %s109
    %s113 = sphi 0, %s112
    %s129 = sphi 0, %s113
  $region4: #{nlayer_discriminator_forward.7} parent=0 // loop_header_branch
    %13 = sbr.rel (%p11) target = $region8
  $region5: #{nlayer_discriminator_forward.7} parent=0 // loop_body
    %s15 = ssub.s32 %s10, 1
    %s16 = ssub.s32 %s10, 2
    %s17 = sadd.s32 %s10, 1
    %s18 = ssub.s32 %s10, %s17
    %p19 = scmp.eq.s32.totalorder %s18, 0
    %s21 = sadd.s32 %s20, 1
    %s22 = scalar_select %p19, %s20, %s21
    %p25 = pneg %p19
    %p26 = scmp.eq.s32.totalorder %s10, 1
    %p27 = por %p25, %p26
    %p28 = scmp.ne.s32.totalorder %s20, %s23
    %p29 = scmp.eq.s32.totalorder %s10, 0
    %p30 = por %p28, %p29
    %p31 = scmp.ne.s32.totalorder %s20, %s23
    %p32 = scmp.eq.s32.totalorder %s15, 1
    %p33 = por %p31, %p32
    %p34 = scmp.ne.s32.totalorder %s23, %s24
    %p35 = scmp.eq.s32.totalorder %s15, 0
    %p36 = por %p34, %p35
    %p37 = scmp.ne.s32.totalorder %s23, %s24
    %p38 = scmp.eq.s32.totalorder %s16, 1
    %p39 = por %p37, %p38
    %p41 = scmp.ne.s32.totalorder %s24, %s40
    %p42 = scmp.eq.s32.totalorder %s16, 0
    %p43 = por %p41, %p42
    %s45 = sadd.s32 %s44, 1
    %p48 = scmp.eq.s32.totalorder %s10, 1
    %p49 = scmp.ne.s32.totalorder %s44, %s46
    %p50 = scmp.eq.s32.totalorder %s10, 0
    %p51 = por %p49, %p50
    %p52 = scmp.ne.s32.totalorder %s44, %s46
    %p53 = scmp.eq.s32.totalorder %s15, 1
    %p54 = por %p52, %p53
    %p55 = scmp.ne.s32.totalorder %s46, %s47
    %p56 = scmp.eq.s32.totalorder %s15, 0
    %p57 = por %p55, %p56
    %p58 = scmp.ne.s32.totalorder %s46, %s47
    %p59 = scmp.eq.s32.totalorder %s16, 1
    %p60 = por %p58, %p59
    %p62 = scmp.ne.s32.totalorder %s47, %s61
    %p63 = scmp.eq.s32.totalorder %s16, 0
    %p64 = por %p62, %p63
    %s66 = sadd.s32 %s65, 1
    %p69 = scmp.eq.s32.totalorder %s10, 1
    %p70 = scmp.ne.s32.totalorder %s65, %s67
    %p71 = scmp.eq.s32.totalorder %s10, 0
    %p72 = por %p70, %p71
    %p73 = scmp.ne.s32.totalorder %s65, %s67
    %p74 = scmp.eq.s32.totalorder %s15, 1
    %p75 = por %p73, %p74
    %p76 = scmp.ne.s32.totalorder %s67, %s68
    %p77 = scmp.eq.s32.totalorder %s15, 0
    %p78 = por %p76, %p77
    %p79 = scmp.ne.s32.totalorder %s67, %s68
    %p80 = scmp.eq.s32.totalorder %s16, 1
    %p81 = por %p79, %p80
    %p83 = scmp.ne.s32.totalorder %s68, %s82
    %p84 = scmp.eq.s32.totalorder %s16, 0
    %p85 = por %p83, %p84
    %s87 = sadd.s32 %s86, 1
    %p90 = scmp.eq.s32.totalorder %s10, 1
    %p91 = scmp.ne.s32.totalorder %s86, %s88
    %p92 = scmp.eq.s32.totalorder %s10, 0
    %p93 = por %p91, %p92
    %p94 = scmp.ne.s32.totalorder %s86, %s88
    %p95 = scmp.eq.s32.totalorder %s15, 1
    %p96 = por %p94, %p95
    %p97 = scmp.ne.s32.totalorder %s88, %s89
    %p98 = scmp.eq.s32.totalorder %s15, 0
    %p99 = por %p97, %p98
    %p100 = scmp.ne.s32.totalorder %s88, %s89
    %p101 = scmp.eq.s32.totalorder %s16, 1
    %p102 = por %p100, %p101
    %p104 = scmp.ne.s32.totalorder %s89, %s103
    %p105 = scmp.eq.s32.totalorder %s16, 0
    %p106 = por %p104, %p105
    %s107 = ssub.s32 %s10, %s17
    %p108 = scmp.eq.s32.totalorder %s107, 0
    %s110 = sadd.s32 %s109, 1
    %s111 = scalar_select %p108, %s109, %s110
    %p114 = pneg %p108
    %p115 = scmp.eq.s32.totalorder %s10, 1
    %p116 = por %p114, %p115
    %p117 = scmp.ne.s32.totalorder %s109, %s112
    %p118 = scmp.eq.s32.totalorder %s10, 0
    %p119 = por %p117, %p118
    %p120 = scmp.ne.s32.totalorder %s109, %s112
    %p121 = scmp.eq.s32.totalorder %s15, 1
    %p122 = por %p120, %p121
    %p123 = scmp.ne.s32.totalorder %s112, %s113
    %p124 = scmp.eq.s32.totalorder %s15, 0
    %p125 = por %p123, %p124
    %p126 = scmp.ne.s32.totalorder %s112, %s113
    %p127 = scmp.eq.s32.totalorder %s16, 1
    %p128 = por %p126, %p127
    %p130 = scmp.ne.s32.totalorder %s113, %s129
    %p131 = scmp.eq.s32.totalorder %s16, 0
    %p132 = por %p130, %p131
    %p133 = scmp.le.s32.totalorder 1, %s10
    %p134 = scmp.lt.s32.totalorder %s10, 3
    %p135 = pnand %p133, %p134
    %p136 = pneg %p135
    // Predicated region
    $region9: #{nlayer_discriminator_forward.7} parent=5 // pred_check
      _
    $region10: #{nlayer_discriminator_forward.7} parent=5 // pred_check_branch
      %138 = sbr.rel (%p135) target = $region12
    $region11: #{nlayer_discriminator_forward.7} parent=5 // pred_region
      %s139 = ssub.s32 %s10, 1
      // Predicated region
      $region13: #{nlayer_discriminator_forward.7} parent=11 // pred_check
        %p140 = pneg %p57
      $region14: #{nlayer_discriminator_forward.7} parent=11 // pred_check_branch
        %142 = sbr.rel (%p140) target = $region16
      $region15: #{nlayer_discriminator_forward.7} parent=11 // pred_region
        _
      $region16: #{nlayer_discriminator_forward.7} parent=11 // pred_fallthru
        _
      // Predicated region
      $region17: #{nlayer_discriminator_forward.7} parent=11 // pred_check
        %p143 = pneg %p78
      $region18: #{nlayer_discriminator_forward.7} parent=11 // pred_check_branch
        %145 = sbr.rel (%p143) target = $region20
      $region19: #{nlayer_discriminator_forward.7} parent=11 // pred_region
        _
      $region20: #{nlayer_discriminator_forward.7} parent=11 // pred_fallthru
        _
      // Predicated region
      $region21: #{nlayer_discriminator_forward.7} parent=11 // pred_check
        %p146 = pneg %p99
      $region22: #{nlayer_discriminator_forward.7} parent=11 // pred_check_branch
        %148 = sbr.rel (%p146) target = $region24
      $region23: #{nlayer_discriminator_forward.7} parent=11 // pred_region
        _
      $region24: #{nlayer_discriminator_forward.7} parent=11 // pred_fallthru
        _
    $region12: #{nlayer_discriminator_forward.7} parent=5 // pred_fallthru
      _
    %p149 = scmp.lt.s32.totalorder %s10, 2
    // Predicated region
    $region25: #{nlayer_discriminator_forward.7} parent=5 // pred_check
      %p150 = pneg %p149
    $region26: #{nlayer_discriminator_forward.7} parent=5 // pred_check_branch
      %152 = sbr.rel (%p150) target = $region28
    $region27: #{nlayer_discriminator_forward.7} parent=5 // pred_region
      // Predicated region
      $region29: #{nlayer_discriminator_forward.7} parent=27 // pred_check
        %p153 = pneg %p30
      $region30: #{nlayer_discriminator_forward.7} parent=27 // pred_check_branch
        %155 = sbr.rel (%p153) target = $region32
      $region31: #{nlayer_discriminator_forward.7} parent=27 // pred_region
        %p156 = scmp.lt.s32.totalorder %s10, 1
        %s157 = scalar_select %p156, %s10, 1
        %s158 = smul.addr %s157, 20
        %s159 = smul.addr %s158, 4
        %s160 = scalar_lea.vmem %s0, %s159
      $region32: #{nlayer_discriminator_forward.7} parent=27 // pred_fallthru
        _
    $region28: #{nlayer_discriminator_forward.7} parent=5 // pred_fallthru
      _
    %p161 = scmp.le.s32.totalorder 1, %s10
    %p162 = scmp.lt.s32.totalorder %s10, 3
    %p163 = pnand %p161, %p162
    %p164 = pneg %p163
    // Predicated region
    $region33: #{nlayer_discriminator_forward.7} parent=5 // pred_check
      _
    $region34: #{nlayer_discriminator_forward.7} parent=5 // pred_check_branch
      %166 = sbr.rel (%p163) target = $region36
    $region35: #{nlayer_discriminator_forward.7} parent=5 // pred_region
      %s167 = ssub.s32 %s10, 1
      %p168 = scmp.lt.s32.totalorder %s15, 1
      %s169 = scalar_select %p168, %s15, 1
      %s170 = smul.addr %s169, 20
      %s171 = smul.addr %s170, 4
      %s172 = scalar_lea.vmem %s0, %s171
      %p173 = pneg %p36
      %p174 = pneg %p33
      %p175 = pneg %p57
      %p176 = pneg %p54
      %p177 = pneg %p78
      %p178 = pneg %p75
      %p179 = pneg %p99
      %p180 = pneg %p96
      %p181 = pneg %p125
      %p182 = pneg %p122
      %p183 = scmp.lt.s32.totalorder %s15, 1
      %s184 = scalar_select %p183, %s15, 1
      %s185 = smul.addr %s184, 4
      %s186 = smul.addr %s185, 4
      %s187 = scalar_lea.vmem %s4, %s186
      %p188 = scmp.lt.s32.totalorder %s15, 1
      %s189 = scalar_select %p188, %s15, 1
      %s190 = smul.addr %s189, 20
      %s191 = smul.addr %s190, 4
      %s192 = scalar_lea.vmem %s0, %s191
      %p193 = scmp.lt.s32.totalorder %s15, 1
      %s194 = scalar_select %p193, %s15, 1
      %s195 = smul.addr %s194, 4
      %s196 = smul.addr %s195, 4
      %s197 = scalar_lea.vmem %s4, %s196
      %v199 = vld [vmem:[%s192] sm:$0xff]
      %v200 = vld [vmem:[%s192 + $0x8] sm:$0xff]
      %v201 = vld [vmem:[%s192 + $0x10] sm:$0xff]
      %v202 = vld [vmem:[%s192 + $0x18] sm:$0xff]
      %v203 = vld [vmem:[%s192 + $0x20] sm:$0xff]
      %v204 = vld [vmem:[%s192 + $0x28] sm:$0xff]
      %v205 = vld [vmem:[%s192 + $0x30] sm:$0x11]
      %v206 = vld [vmem:[%s192 + $0x38] sm:$0x11]
      %v207 = vld [vmem:[%s1] sm:$0xf]
      %v208 = vld [vmem:[%s1 + $0x4] sm:$0xf]
      %v209 = vld [vmem:[%s1 + $0x8] sm:$0xf]
      %v210 = vld [vmem:[%s1 + $0xc] sm:$0xf]
      %v211 = vld [vmem:[%s1 + $0x10] sm:$0xf]
      %v212 = vld [vmem:[%s1 + $0x14] sm:$0xf]
      %v213 = vld [vmem:[%s1 + $0x18] sm:$0xf]
      %v214 = vld [vmem:[%s1 + $0x1c] sm:$0xf]
      %v215 = vld [vmem:[%s1 + $0x20] sm:$0xf]
      %v216 = vld [vmem:[%s1 + $0x24] sm:$0xf]
      %v217 = vld [vmem:[%s1 + $0x28] sm:$0xf]
      %v218 = vld [vmem:[%s1 + $0x2c] sm:$0xf]
      %v219 = vld [vmem:[%s1 + $0x30] sm:$0xf]
      %v220 = vld [vmem:[%s1 + $0x34] sm:$0xf]
      %v221 = vld [vmem:[%s1 + $0x38] sm:$0xf]
      %v222 = vld [vmem:[%s1 + $0x3c] sm:$0xf]
      %v223 = vld [vmem:[%s1 + $0x40] sm:$0xf]
      %v224 = vld [vmem:[%s1 + $0x44] sm:$0xf]
      %v225 = vld [vmem:[%s1 + $0x48] sm:$0xf]
      %v226 = vld [vmem:[%s1 + $0x4c] sm:$0xf]
      %v227 = vld [vmem:[%s1 + $0x50] sm:$0xf]
      %v228 = vld [vmem:[%s1 + $0x54] sm:$0xf]
      %v229 = vld [vmem:[%s1 + $0x58] sm:$0xf]
      %v230 = vld [vmem:[%s1 + $0x5c] sm:$0xf]
      %v231 = vld [vmem:[%s1 + $0x60] sm:$0xf]
      %v232 = vld [vmem:[%s1 + $0x64] sm:$0xf]
      %v233 = vld [vmem:[%s1 + $0x68] sm:$0xf]
      %v234 = vld [vmem:[%s1 + $0x6c] sm:$0xf]
      %v235 = vld [vmem:[%s1 + $0x70] sm:$0xf]
      %v236 = vld [vmem:[%s1 + $0x74] sm:$0xf]
      %v237 = vld [vmem:[%s1 + $0x78] sm:$0xf]
      %v238 = vld [vmem:[%s1 + $0x7c] sm:$0xf]
      %v239 = vld [vmem:[%s1 + $0x80] sm:$0xf]
      %v240 = vld [vmem:[%s1 + $0x84] sm:$0xf]
      %v241 = vld [vmem:[%s1 + $0x88] sm:$0xf]
      %v242 = vld [vmem:[%s1 + $0x8c] sm:$0xf]
      %v243 = vld [vmem:[%s1 + $0x90] sm:$0xf]
      %v244 = vld [vmem:[%s1 + $0x94] sm:$0xf]
      %v245 = vld [vmem:[%s1 + $0x98] sm:$0xf]
      %v246 = vld [vmem:[%s1 + $0x9c] sm:$0xf]
      %v247 = vld [vmem:[%s1 + $0xa0] sm:$0xf]
      %v248 = vld [vmem:[%s1 + $0xa4] sm:$0xf]
      %v249 = vld [vmem:[%s1 + $0xa8] sm:$0xf]
      %v250 = vld [vmem:[%s1 + $0xac] sm:$0xf]
      %v251 = vld [vmem:[%s1 + $0xb0] sm:$0xf]
      %v252 = vld [vmem:[%s1 + $0xb4] sm:$0xf]
      %v253 = vld [vmem:[%s1 + $0xb8] sm:$0xf]
      %v254 = vld [vmem:[%s1 + $0xbc] sm:$0xf]
      %v255 = vld [vmem:[%s1 + $0xc0] sm:$0xf]
      %v256 = vld [vmem:[%s1 + $0xc4] sm:$0xf]
      %v257 = vld [vmem:[%s1 + $0xc8] sm:$0xf]
      %v258 = vld [vmem:[%s1 + $0xcc] sm:$0xf]
      %v259 = vld [vmem:[%s1 + $0xd0] sm:$0xf]
      %v260 = vld [vmem:[%s1 + $0xd4] sm:$0xf]
      %v261 = vld [vmem:[%s1 + $0xd8] sm:$0xf]
      %v262 = vld [vmem:[%s1 + $0xdc] sm:$0xf]
      %v263 = vld [vmem:[%s1 + $0xe0] sm:$0xf]
      %v264 = vld [vmem:[%s1 + $0xe4] sm:$0xf]
      %v265 = vld [vmem:[%s1 + $0xe8] sm:$0xf]
      %v266 = vld [vmem:[%s1 + $0xec] sm:$0xf]
      %v267 = vld [vmem:[%s1 + $0xf0] sm:$0xf]
      %v268 = vld [vmem:[%s1 + $0xf4] sm:$0xf]
      %v269 = vld [vmem:[%s1 + $0xf8] sm:$0xf]
      %v270 = vld [vmem:[%s1 + $0xfc] sm:$0xf]
      %v271 = vld [vmem:[%s192 + $0x30] sm:$0x33]
      %v272 = vld [vmem:[%s192 + $0x38] sm:$0x33]
      %s273 = scalar_lea.vmem %s1, 256
      %v274 = vld [vmem:[%s273] sm:$0xf]
      %v275 = vld [vmem:[%s273 + $0x4] sm:$0xf]
      %v276 = vld [vmem:[%s273 + $0x8] sm:$0xf]
      %v277 = vld [vmem:[%s273 + $0xc] sm:$0xf]
      %v278 = vld [vmem:[%s273 + $0x10] sm:$0xf]
      %v279 = vld [vmem:[%s273 + $0x14] sm:$0xf]
      %v280 = vld [vmem:[%s273 + $0x18] sm:$0xf]
      %v281 = vld [vmem:[%s273 + $0x1c] sm:$0xf]
      %v282 = vld [vmem:[%s273 + $0x20] sm:$0xf]
      %v283 = vld [vmem:[%s273 + $0x24] sm:$0xf]
      %v284 = vld [vmem:[%s273 + $0x28] sm:$0xf]
      %v285 = vld [vmem:[%s273 + $0x2c] sm:$0xf]
      %v286 = vld [vmem:[%s273 + $0x30] sm:$0xf]
      %v287 = vld [vmem:[%s273 + $0x34] sm:$0xf]
      %v288 = vld [vmem:[%s273 + $0x38] sm:$0xf]
      %v289 = vld [vmem:[%s273 + $0x3c] sm:$0xf]
      %v290 = vld [vmem:[%s273 + $0x40] sm:$0xf]
      %v291 = vld [vmem:[%s273 + $0x44] sm:$0xf]
      %v292 = vld [vmem:[%s273 + $0x48] sm:$0xf]
      %v293 = vld [vmem:[%s273 + $0x4c] sm:$0xf]
      %v294 = vld [vmem:[%s273 + $0x50] sm:$0xf]
      %v295 = vld [vmem:[%s273 + $0x54] sm:$0xf]
      %v296 = vld [vmem:[%s273 + $0x58] sm:$0xf]
      %v297 = vld [vmem:[%s273 + $0x5c] sm:$0xf]
      %v298 = vld [vmem:[%s273 + $0x60] sm:$0xf]
      %v299 = vld [vmem:[%s273 + $0x64] sm:$0xf]
      %v300 = vld [vmem:[%s273 + $0x68] sm:$0xf]
      %v301 = vld [vmem:[%s273 + $0x6c] sm:$0xf]
      %v302 = vld [vmem:[%s273 + $0x70] sm:$0xf]
      %v303 = vld [vmem:[%s273 + $0x74] sm:$0xf]
      %v304 = vld [vmem:[%s273 + $0x78] sm:$0xf]
      %v305 = vld [vmem:[%s273 + $0x7c] sm:$0xf]
      %v306 = vld [vmem:[%s273 + $0x80] sm:$0xf]
      %v307 = vld [vmem:[%s273 + $0x84] sm:$0xf]
      %v308 = vld [vmem:[%s273 + $0x88] sm:$0xf]
      %v309 = vld [vmem:[%s273 + $0x8c] sm:$0xf]
      %v310 = vld [vmem:[%s273 + $0x90] sm:$0xf]
      %v311 = vld [vmem:[%s273 + $0x94] sm:$0xf]
      %v312 = vld [vmem:[%s273 + $0x98] sm:$0xf]
      %v313 = vld [vmem:[%s273 + $0x9c] sm:$0xf]
      %v314 = vld [vmem:[%s273 + $0xa0] sm:$0xf]
      %v315 = vld [vmem:[%s273 + $0xa4] sm:$0xf]
      %v316 = vld [vmem:[%s273 + $0xa8] sm:$0xf]
      %v317 = vld [vmem:[%s273 + $0xac] sm:$0xf]
      %v318 = vld [vmem:[%s273 + $0xb0] sm:$0xf]
      %v319 = vld [vmem:[%s273 + $0xb4] sm:$0xf]
      %v320 = vld [vmem:[%s273 + $0xb8] sm:$0xf]
      %v321 = vld [vmem:[%s273 + $0xbc] sm:$0xf]
      %v322 = vld [vmem:[%s273 + $0xc0] sm:$0xf]
      %v323 = vld [vmem:[%s273 + $0xc4] sm:$0xf]
      %v324 = vld [vmem:[%s273 + $0xc8] sm:$0xf]
      %v325 = vld [vmem:[%s273 + $0xcc] sm:$0xf]
      %v326 = vld [vmem:[%s273 + $0xd0] sm:$0xf]
      %v327 = vld [vmem:[%s273 + $0xd4] sm:$0xf]
      %v328 = vld [vmem:[%s273 + $0xd8] sm:$0xf]
      %v329 = vld [vmem:[%s273 + $0xdc] sm:$0xf]
      %v330 = vld [vmem:[%s273 + $0xe0] sm:$0xf]
      %v331 = vld [vmem:[%s273 + $0xe4] sm:$0xf]
      %v332 = vld [vmem:[%s273 + $0xe8] sm:$0xf]
      %v333 = vld [vmem:[%s273 + $0xec] sm:$0xf]
      %v334 = vld [vmem:[%s273 + $0xf0] sm:$0xf]
      %v335 = vld [vmem:[%s273 + $0xf4] sm:$0xf]
      %v336 = vld [vmem:[%s273 + $0xf8] sm:$0xf]
      %v337 = vld [vmem:[%s273 + $0xfc] sm:$0xf]
      %v346 = vunpack.c.l.b16 %v199
      %v347 = vunpack.c.h.b16 %v199
      %v348 = vunpack.c.l.b16 %v200
      %v349 = vunpack.c.h.b16 %v200
      %v350 = vunpack.c.l.b16 %v201
      %v351 = vunpack.c.h.b16 %v201
      %v352 = vunpack.c.l.b16 %v202
      %v353 = vunpack.c.h.b16 %v202
      %v354 = vunpack.c.l.b16 %v203
      %v355 = vunpack.c.h.b16 %v203
      %v356 = vunpack.c.l.b16 %v204
      %v357 = vunpack.c.h.b16 %v204
      %v358 = vunpack.c.l.b16 %v271
      %v359 = vunpack.c.h.b16 %v271
      %v360 = vunpack.c.l.b16 %v272
      %v361 = vunpack.c.h.b16 %v272
      %v362 = vpack.c.b16 %v350, %v346
      %v363 = vpack.c.b16 %v351, %v347
      %v364 = vpack.c.b16 %v352, %v348
      %v365 = vpack.c.b16 %v353, %v349
      %v366 = vpack.c.b16 %v358, %v354
      %v367 = vpack.c.b16 %v359, %v355
      %v368 = vpack.c.b16 %v360, %v356
      %v369 = vpack.c.b16 %v361, %v357
      %vm370 = vsmask.f32 7424
      %v372 = vshrl.u32 %v362, 16
      %v374 = vshll.u32 %v362, 16
      %v376 = vrot.slane %v374, 1
      %v377 = vor.u32 %v372, %v376
      %v379 = vshll.u32 %v366, 16
      %v381 = vrot.slane %v379, 1
      %v382 = vsel %vm370, %v377, %v381
      %v384 = vshrl.u32 %v363, 16
      %v386 = vshll.u32 %v363, 16
      %v388 = vrot.slane %v386, 1
      %v389 = vor.u32 %v384, %v388
      %v391 = vshll.u32 %v367, 16
      %v393 = vrot.slane %v391, 1
      %v394 = vsel %vm370, %v389, %v393
      %v396 = vshrl.u32 %v364, 16
      %v398 = vshll.u32 %v364, 16
      %v400 = vrot.slane %v398, 1
      %v401 = vor.u32 %v396, %v400
      %v403 = vshll.u32 %v368, 16
      %v405 = vrot.slane %v403, 1
      %v406 = vsel %vm370, %v401, %v405
      %v408 = vshrl.u32 %v365, 16
      %v410 = vshll.u32 %v365, 16
      %v412 = vrot.slane %v410, 1
      %v413 = vor.u32 %v408, %v412
      %v415 = vshll.u32 %v369, 16
      %v417 = vrot.slane %v415, 1
      %v418 = vsel %vm370, %v413, %v417
      %v419 = vshrl.u32 %v366, 16
      %v421 = vor.u32 %v419, %v381
      %v422 = vshrl.u32 %v367, 16
      %v424 = vor.u32 %v422, %v393
      %v425 = vshrl.u32 %v368, 16
      %v427 = vor.u32 %v425, %v405
      %v428 = vshrl.u32 %v369, 16
      %v430 = vor.u32 %v428, %v417
      %v503 = vunpack.c.l.b16 %v274
      %v504 = vunpack.c.l.b16 %v275
      %v505 = vunpack.c.l.b16 %v276
      %v506 = vunpack.c.l.b16 %v277
      %v507 = vunpack.c.l.b16 %v278
      %v508 = vunpack.c.l.b16 %v279
      %v509 = vunpack.c.l.b16 %v280
      %v510 = vunpack.c.l.b16 %v281
      %v511 = vunpack.c.l.b16 %v282
      %v512 = vunpack.c.l.b16 %v283
      %v513 = vunpack.c.l.b16 %v284
      %v514 = vunpack.c.l.b16 %v285
      %v515 = vunpack.c.l.b16 %v286
      %v516 = vunpack.c.l.b16 %v287
      %v517 = vunpack.c.l.b16 %v288
      %v518 = vunpack.c.l.b16 %v289
      %v519 = vunpack.c.l.b16 %v290
      %v520 = vunpack.c.l.b16 %v291
      %v521 = vunpack.c.l.b16 %v292
      %v522 = vunpack.c.l.b16 %v293
      %v523 = vunpack.c.l.b16 %v294
      %v524 = vunpack.c.l.b16 %v295
      %v525 = vunpack.c.l.b16 %v296
      %v526 = vunpack.c.l.b16 %v297
      %v527 = vunpack.c.l.b16 %v298
      %v528 = vunpack.c.l.b16 %v299
      %v529 = vunpack.c.l.b16 %v300
      %v530 = vunpack.c.l.b16 %v301
      %v531 = vunpack.c.l.b16 %v302
      %v532 = vunpack.c.l.b16 %v303
      %v533 = vunpack.c.l.b16 %v304
      %v534 = vunpack.c.l.b16 %v305
      %v535 = vunpack.c.l.b16 %v306
      %v536 = vunpack.c.l.b16 %v307
      %v537 = vunpack.c.l.b16 %v308
      %v538 = vunpack.c.l.b16 %v309
      %v539 = vunpack.c.l.b16 %v310
      %v540 = vunpack.c.l.b16 %v311
      %v541 = vunpack.c.l.b16 %v312
      %v542 = vunpack.c.l.b16 %v313
      %v543 = vunpack.c.l.b16 %v314
      %v544 = vunpack.c.l.b16 %v315
      %v545 = vunpack.c.l.b16 %v316
      %v546 = vunpack.c.l.b16 %v317
      %v547 = vunpack.c.l.b16 %v318
      %v548 = vunpack.c.l.b16 %v319
      %v549 = vunpack.c.l.b16 %v320
      %v550 = vunpack.c.l.b16 %v321
      %v551 = vunpack.c.l.b16 %v322
      %v552 = vunpack.c.l.b16 %v323
      %v553 = vunpack.c.l.b16 %v324
      %v554 = vunpack.c.l.b16 %v325
      %v555 = vunpack.c.l.b16 %v326
      %v556 = vunpack.c.l.b16 %v327
      %v557 = vunpack.c.l.b16 %v328
      %v558 = vunpack.c.l.b16 %v329
      %v559 = vunpack.c.l.b16 %v330
      %v560 = vunpack.c.l.b16 %v331
      %v561 = vunpack.c.l.b16 %v332
      %v562 = vunpack.c.l.b16 %v333
      %v563 = vunpack.c.l.b16 %v334
      %v564 = vunpack.c.l.b16 %v335
      %v565 = vunpack.c.l.b16 %v336
      %v566 = vunpack.c.l.b16 %v337
      %v567 = vpack.c.b16 %v504, %v503
      %v568 = vpack.c.b16 %v506, %v505
      %v569 = vpack.c.b16 %v508, %v507
      %v570 = vpack.c.b16 %v510, %v509
      %v571 = vpack.c.b16 %v512, %v511
      %v572 = vpack.c.b16 %v514, %v513
      %v573 = vpack.c.b16 %v516, %v515
      %v574 = vpack.c.b16 %v518, %v517
      %v575 = vpack.c.b16 %v520, %v519
      %v576 = vpack.c.b16 %v522, %v521
      %v577 = vpack.c.b16 %v524, %v523
      %v578 = vpack.c.b16 %v526, %v525
      %v579 = vpack.c.b16 %v528, %v527
      %v580 = vpack.c.b16 %v530, %v529
      %v581 = vpack.c.b16 %v532, %v531
      %v582 = vpack.c.b16 %v534, %v533
      %v583 = vpack.c.b16 %v536, %v535
      %v584 = vpack.c.b16 %v538, %v537
      %v585 = vpack.c.b16 %v540, %v539
      %v586 = vpack.c.b16 %v542, %v541
      %v587 = vpack.c.b16 %v544, %v543
      %v588 = vpack.c.b16 %v546, %v545
      %v589 = vpack.c.b16 %v548, %v547
      %v590 = vpack.c.b16 %v550, %v549
      %v591 = vpack.c.b16 %v552, %v551
      %v592 = vpack.c.b16 %v554, %v553
      %v593 = vpack.c.b16 %v556, %v555
      %v594 = vpack.c.b16 %v558, %v557
      %v595 = vpack.c.b16 %v560, %v559
      %v596 = vpack.c.b16 %v562, %v561
      %v597 = vpack.c.b16 %v564, %v563
      %v598 = vpack.c.b16 %v566, %v565
      %631 = vmatprep.subr.bf16.mxu0 0
      %632 = vmatpush1.bf16.msra.mxu0 %v567
      %633 = vmatprep.subr.bf16.mxu0 0
      %634 = vmatpush1.bf16.msra.mxu0 %v568
      %635 = vmatprep.subr.bf16.mxu0 0
      %636 = vmatpush1.bf16.msra.mxu0 %v569
      %637 = vmatprep.subr.bf16.mxu0 0
      %638 = vmatpush1.bf16.msra.mxu0 %v570
      %639 = vmatprep.subr.bf16.mxu0 0
      %640 = vmatpush1.bf16.msra.mxu0 %v571
      %641 = vmatprep.subr.bf16.mxu0 0
      %642 = vmatpush1.bf16.msra.mxu0 %v572
      %643 = vmatprep.subr.bf16.mxu0 0
      %644 = vmatpush1.bf16.msra.mxu0 %v573
      %645 = vmatprep.subr.bf16.mxu0 0
      %646 = vmatpush1.bf16.msra.mxu0 %v574
      %647 = vmatprep.subr.bf16.mxu0 0
      %648 = vmatpush1.bf16.msra.mxu0 %v575
      %649 = vmatprep.subr.bf16.mxu0 0
      %650 = vmatpush1.bf16.msra.mxu0 %v576
      %651 = vmatprep.subr.bf16.mxu0 0
      %652 = vmatpush1.bf16.msra.mxu0 %v577
      %653 = vmatprep.subr.bf16.mxu0 0
      %654 = vmatpush1.bf16.msra.mxu0 %v578
      %655 = vmatprep.subr.bf16.mxu0 0
      %656 = vmatpush1.bf16.msra.mxu0 %v579
      %657 = vmatprep.subr.bf16.mxu0 0
      %658 = vmatpush1.bf16.msra.mxu0 %v580
      %659 = vmatprep.subr.bf16.mxu0 0
      %660 = vmatpush1.bf16.msra.mxu0 %v581
      %661 = vmatprep.subr.bf16.mxu0 0
      %662 = vmatpush1.bf16.msra.mxu0 %v582
      %663 = vmatprep.mubr.bf16.mxu0 %v394
      %664 = vmatmul.mubr.bf16.gmra.mrb[0].mxu0 %v382
      %v665 = vpop.f32.mrb[0].mxu0
      %v666 = vadd.f32 0.0, %v665
      %v667 = vpop.f32.mrb[0].mxu0
      %v668 = vpop.f32.mrb[0].mxu0
      %v669 = vadd.f32 0.0, %v668
      %v670 = vpop.f32.mrb[0].mxu0
      %671 = vmatprep.mubr.bf16.mxu0 %v424
      %672 = vmatmul.mubr.bf16.gmra.mrb[0].mxu0 %v421
      %v673 = vpop.f32.mrb[0].mxu0
      %v674 = vadd.f32 0.0, %v673
      %v675 = vpop.f32.mrb[0].mxu0
      %v676 = vpop.f32.mrb[0].mxu0
      %v677 = vadd.f32 0.0, %v676
      %v678 = vpop.f32.mrb[0].mxu0
      %679 = vdwg.mxu0
      %680 = vmatprep.subr.bf16.mxu0 0
      %681 = vmatpush1.bf16.msra.mxu0 %v583
      %682 = vmatprep.subr.bf16.mxu0 0
      %683 = vmatpush1.bf16.msra.mxu0 %v584
      %684 = vmatprep.subr.bf16.mxu0 0
      %685 = vmatpush1.bf16.msra.mxu0 %v585
      %686 = vmatprep.subr.bf16.mxu0 0
      %687 = vmatpush1.bf16.msra.mxu0 %v586
      %688 = vmatprep.subr.bf16.mxu0 0
      %689 = vmatpush1.bf16.msra.mxu0 %v587
      %690 = vmatprep.subr.bf16.mxu0 0
      %691 = vmatpush1.bf16.msra.mxu0 %v588
      %692 = vmatprep.subr.bf16.mxu0 0
      %693 = vmatpush1.bf16.msra.mxu0 %v589
      %694 = vmatprep.subr.bf16.mxu0 0
      %695 = vmatpush1.bf16.msra.mxu0 %v590
      %696 = vmatprep.subr.bf16.mxu0 0
      %697 = vmatpush1.bf16.msra.mxu0 %v591
      %698 = vmatprep.subr.bf16.mxu0 0
      %699 = vmatpush1.bf16.msra.mxu0 %v592
      %700 = vmatprep.subr.bf16.mxu0 0
      %701 = vmatpush1.bf16.msra.mxu0 %v593
      %702 = vmatprep.subr.bf16.mxu0 0
      %703 = vmatpush1.bf16.msra.mxu0 %v594
      %704 = vmatprep.subr.bf16.mxu0 0
      %705 = vmatpush1.bf16.msra.mxu0 %v595
      %706 = vmatprep.subr.bf16.mxu0 0
      %707 = vmatpush1.bf16.msra.mxu0 %v596
      %708 = vmatprep.subr.bf16.mxu0 0
      %709 = vmatpush1.bf16.msra.mxu0 %v597
      %710 = vmatprep.subr.bf16.mxu0 0
      %711 = vmatpush1.bf16.msra.mxu0 %v598
      %712 = vmatprep.mubr.bf16.mxu0 %v418
      %713 = vmatmul.mubr.bf16.gmra.mrb[0].mxu0 %v406
      %v714 = vpop.f32.mrb[0].mxu0
      %v715 = vadd.f32 %v666, %v714
      %v716 = vpop.f32.mrb[0].mxu0
      %v717 = vpop.f32.mrb[0].mxu0
      %v718 = vadd.f32 %v669, %v717
      %v719 = vpop.f32.mrb[0].mxu0
      %720 = vmatprep.mubr.bf16.mxu0 %v430
      %721 = vmatmul.mubr.bf16.gmra.mrb[0].mxu0 %v427
      %v722 = vpop.f32.mrb[0].mxu0
      %v723 = vadd.f32 %v674, %v722
      %v724 = vpop.f32.mrb[0].mxu0
      %v725 = vpop.f32.mrb[0].mxu0
      %v726 = vadd.f32 %v677, %v725
      %v727 = vpop.f32.mrb[0].mxu0
      %728 = vdwg.mxu0
      %v731 = vunpack.c.l.b16 %v205
      %v732 = vunpack.c.h.b16 %v205
      %v733 = vunpack.c.l.b16 %v206
      %v734 = vunpack.c.h.b16 %v206
      %v735 = vpack.c.b16 %v731, %v354
      %v736 = vpack.c.b16 %v732, %v355
      %v737 = vpack.c.b16 %v733, %v356
      %v738 = vpack.c.b16 %v734, %v357
      %v811 = vunpack.c.l.b16 %v207
      %v812 = vunpack.c.l.b16 %v208
      %v813 = vunpack.c.l.b16 %v209
      %v814 = vunpack.c.l.b16 %v210
      %v815 = vunpack.c.l.b16 %v211
      %v816 = vunpack.c.l.b16 %v212
      %v817 = vunpack.c.l.b16 %v213
      %v818 = vunpack.c.l.b16 %v214
      %v819 = vunpack.c.l.b16 %v215
      %v820 = vunpack.c.l.b16 %v216
      %v821 = vunpack.c.l.b16 %v217
      %v822 = vunpack.c.l.b16 %v218
      %v823 = vunpack.c.l.b16 %v219
      %v824 = vunpack.c.l.b16 %v220
      %v825 = vunpack.c.l.b16 %v221
      %v826 = vunpack.c.l.b16 %v222
      %v827 = vunpack.c.l.b16 %v223
      %v828 = vunpack.c.l.b16 %v224
      %v829 = vunpack.c.l.b16 %v225
      %v830 = vunpack.c.l.b16 %v226
      %v831 = vunpack.c.l.b16 %v227
      %v832 = vunpack.c.l.b16 %v228
      %v833 = vunpack.c.l.b16 %v229
      %v834 = vunpack.c.l.b16 %v230
      %v835 = vunpack.c.l.b16 %v231
      %v836 = vunpack.c.l.b16 %v232
      %v837 = vunpack.c.l.b16 %v233
      %v838 = vunpack.c.l.b16 %v234
      %v839 = vunpack.c.l.b16 %v235
      %v840 = vunpack.c.l.b16 %v236
      %v841 = vunpack.c.l.b16 %v237
      %v842 = vunpack.c.l.b16 %v238
      %v843 = vunpack.c.l.b16 %v239
      %v844 = vunpack.c.l.b16 %v240
      %v845 = vunpack.c.l.b16 %v241
      %v846 = vunpack.c.l.b16 %v242
      %v847 = vunpack.c.l.b16 %v243
      %v848 = vunpack.c.l.b16 %v244
      %v849 = vunpack.c.l.b16 %v245
      %v850 = vunpack.c.l.b16 %v246
      %v851 = vunpack.c.l.b16 %v247
      %v852 = vunpack.c.l.b16 %v248
      %v853 = vunpack.c.l.b16 %v249
      %v854 = vunpack.c.l.b16 %v250
      %v855 = vunpack.c.l.b16 %v251
      %v856 = vunpack.c.l.b16 %v252
      %v857 = vunpack.c.l.b16 %v253
      %v858 = vunpack.c.l.b16 %v254
      %v859 = vunpack.c.l.b16 %v255
      %v860 = vunpack.c.l.b16 %v256
      %v861 = vunpack.c.l.b16 %v257
      %v862 = vunpack.c.l.b16 %v258
      %v863 = vunpack.c.l.b16 %v259
      %v864 = vunpack.c.l.b16 %v260
      %v865 = vunpack.c.l.b16 %v261
      %v866 = vunpack.c.l.b16 %v262
      %v867 = vunpack.c.l.b16 %v263
      %v868 = vunpack.c.l.b16 %v264
      %v869 = vunpack.c.l.b16 %v265
      %v870 = vunpack.c.l.b16 %v266
      %v871 = vunpack.c.l.b16 %v267
      %v872 = vunpack.c.l.b16 %v268
      %v873 = vunpack.c.l.b16 %v269
      %v874 = vunpack.c.l.b16 %v270
      %v875 = vpack.c.b16 %v812, %v811
      %v876 = vpack.c.b16 %v814, %v813
      %v877 = vpack.c.b16 %v816, %v815
      %v878 = vpack.c.b16 %v818, %v817
      %v879 = vpack.c.b16 %v820, %v819
      %v880 = vpack.c.b16 %v822, %v821
      %v881 = vpack.c.b16 %v824, %v823
      %v882 = vpack.c.b16 %v826, %v825
      %v883 = vpack.c.b16 %v828, %v827
      %v884 = vpack.c.b16 %v830, %v829
      %v885 = vpack.c.b16 %v832, %v831
      %v886 = vpack.c.b16 %v834, %v833
      %v887 = vpack.c.b16 %v836, %v835
      %v888 = vpack.c.b16 %v838, %v837
      %v889 = vpack.c.b16 %v840, %v839
      %v890 = vpack.c.b16 %v842, %v841
      %v891 = vpack.c.b16 %v844, %v843
      %v892 = vpack.c.b16 %v846, %v845
      %v893 = vpack.c.b16 %v848, %v847
      %v894 = vpack.c.b16 %v850, %v849
      %v895 = vpack.c.b16 %v852, %v851
      %v896 = vpack.c.b16 %v854, %v853
      %v897 = vpack.c.b16 %v856, %v855
      %v898 = vpack.c.b16 %v858, %v857
      %v899 = vpack.c.b16 %v860, %v859
      %v900 = vpack.c.b16 %v862, %v861
      %v901 = vpack.c.b16 %v864, %v863
      %v902 = vpack.c.b16 %v866, %v865
      %v903 = vpack.c.b16 %v868, %v867
      %v904 = vpack.c.b16 %v870, %v869
      %v905 = vpack.c.b16 %v872, %v871
      %v906 = vpack.c.b16 %v874, %v873
      %939 = vmatprep.subr.bf16.mxu0 0
      %940 = vmatpush1.bf16.msra.mxu0 %v875
      %941 = vmatprep.subr.bf16.mxu0 0
      %942 = vmatpush1.bf16.msra.mxu0 %v876
      %943 = vmatprep.subr.bf16.mxu0 0
      %944 = vmatpush1.bf16.msra.mxu0 %v877
      %945 = vmatprep.subr.bf16.mxu0 0
      %946 = vmatpush1.bf16.msra.mxu0 %v878
      %947 = vmatprep.subr.bf16.mxu0 0
      %948 = vmatpush1.bf16.msra.mxu0 %v879
      %949 = vmatprep.subr.bf16.mxu0 0
      %950 = vmatpush1.bf16.msra.mxu0 %v880
      %951 = vmatprep.subr.bf16.mxu0 0
      %952 = vmatpush1.bf16.msra.mxu0 %v881
      %953 = vmatprep.subr.bf16.mxu0 0
      %954 = vmatpush1.bf16.msra.mxu0 %v882
      %955 = vmatprep.subr.bf16.mxu0 0
      %956 = vmatpush1.bf16.msra.mxu0 %v883
      %957 = vmatprep.subr.bf16.mxu0 0
      %958 = vmatpush1.bf16.msra.mxu0 %v884
      %959 = vmatprep.subr.bf16.mxu0 0
      %960 = vmatpush1.bf16.msra.mxu0 %v885
      %961 = vmatprep.subr.bf16.mxu0 0
      %962 = vmatpush1.bf16.msra.mxu0 %v886
      %963 = vmatprep.subr.bf16.mxu0 0
      %964 = vmatpush1.bf16.msra.mxu0 %v887
      %965 = vmatprep.subr.bf16.mxu0 0
      %966 = vmatpush1.bf16.msra.mxu0 %v888
      %967 = vmatprep.subr.bf16.mxu0 0
      %968 = vmatpush1.bf16.msra.mxu0 %v889
      %969 = vmatprep.subr.bf16.mxu0 0
      %970 = vmatpush1.bf16.msra.mxu0 %v890
      %971 = vmatprep.mubr.bf16.mxu0 %v363
      %972 = vmatmul.mubr.bf16.gmra.mrb[0].mxu0 %v362
      %v973 = vpop.f32.mrb[0].mxu0
      %v974 = vadd.f32 %v715, %v973
      %v975 = vpop.f32.mrb[0].mxu0
      %v976 = vpop.f32.mrb[0].mxu0
      %v977 = vadd.f32 %v718, %v976
      %v978 = vpop.f32.mrb[0].mxu0
      %979 = vmatprep.mubr.bf16.mxu0 %v736
      %980 = vmatmul.mubr.bf16.gmra.mrb[0].mxu0 %v735
      %v981 = vpop.f32.mrb[0].mxu0
      %v982 = vadd.f32 %v723, %v981
      %v983 = vpop.f32.mrb[0].mxu0
      %v984 = vpop.f32.mrb[0].mxu0
      %v985 = vadd.f32 %v726, %v984
      %v986 = vpop.f32.mrb[0].mxu0
      %987 = vdwg.mxu0
      %988 = vmatprep.subr.bf16.mxu0 0
      %989 = vmatpush1.bf16.msra.mxu0 %v891
      %990 = vmatprep.subr.bf16.mxu0 0
      %991 = vmatpush1.bf16.msra.mxu0 %v892
      %992 = vmatprep.subr.bf16.mxu0 0
      %993 = vmatpush1.bf16.msra.mxu0 %v893
      %994 = vmatprep.subr.bf16.mxu0 0
      %995 = vmatpush1.bf16.msra.mxu0 %v894
      %996 = vmatprep.subr.bf16.mxu0 0
      %997 = vmatpush1.bf16.msra.mxu0 %v895
      %998 = vmatprep.subr.bf16.mxu0 0
      %999 = vmatpush1.bf16.msra.mxu0 %v896
      %1000 = vmatprep.subr.bf16.mxu0 0
      %1001 = vmatpush1.bf16.msra.mxu0 %v897
      %1002 = vmatprep.subr.bf16.mxu0 0
      %1003 = vmatpush1.bf16.msra.mxu0 %v898
      %1004 = vmatprep.subr.bf16.mxu0 0
      %1005 = vmatpush1.bf16.msra.mxu0 %v899
      %1006 = vmatprep.subr.bf16.mxu0 0
      %1007 = vmatpush1.bf16.msra.mxu0 %v900
      %1008 = vmatprep.subr.bf16.mxu0 0
      %1009 = vmatpush1.bf16.msra.mxu0 %v901
      %1010 = vmatprep.subr.bf16.mxu0 0
      %1011 = vmatpush1.bf16.msra.mxu0 %v902
      %1012 = vmatprep.subr.bf16.mxu0 0
      %1013 = vmatpush1.bf16.msra.mxu0 %v903
      %1014 = vmatprep.subr.bf16.mxu0 0
      %1015 = vmatpush1.bf16.msra.mxu0 %v904
      %1016 = vmatprep.subr.bf16.mxu0 0
      %1017 = vmatpush1.bf16.msra.mxu0 %v905
      %1018 = vmatprep.subr.bf16.mxu0 0
      %1019 = vmatpush1.bf16.msra.mxu0 %v906
      %1020 = vmatprep.mubr.bf16.mxu0 %v365
      %1021 = vmatmul.mubr.bf16.gmra.mrb[0].mxu0 %v364
      %v1022 = vpop.f32.mrb[0].mxu0
      %v1023 = vadd.f32 %v974, %v1022
      %v1024 = vpop.f32.mrb[0].mxu0
      %v1025 = vpop.f32.mrb[0].mxu0
      %v1026 = vadd.f32 %v977, %v1025
      %v1027 = vpop.f32.mrb[0].mxu0
      %1028 = vmatprep.mubr.bf16.mxu0 %v738
      %1029 = vmatmul.mubr.bf16.gmra.mrb[0].mxu0 %v737
      %v1030 = vpop.f32.mrb[0].mxu0
      %v1031 = vadd.f32 %v982, %v1030
      %v1032 = vpop.f32.mrb[0].mxu0
      %v1033 = vpop.f32.mrb[0].mxu0
      %v1034 = vadd.f32 %v985, %v1033
      %v1035 = vpop.f32.mrb[0].mxu0
      %1036 = vdwg.mxu0
      %v1037 = vld [vmem:[%s192 + $0x10] sm:$0xff]
      %v1038 = vld [vmem:[%s192 + $0x18] sm:$0xff]
      %v1039 = vld [vmem:[%s192 + $0x20] sm:$0xff]
      %v1040 = vld [vmem:[%s192 + $0x28] sm:$0xff]
      %v1041 = vld [vmem:[%s192 + $0x30] sm:$0xff]
      %v1042 = vld [vmem:[%s192 + $0x38] sm:$0xff]
      %v1043 = vld [vmem:[%s192 + $0x40] sm:$0x33]
      %v1044 = vld [vmem:[%s192 + $0x48] sm:$0x33]
      %s1045 = scalar_lea.vmem %s1, 512
      %v1046 = vld [vmem:[%s1045] sm:$0xf]
      %v1047 = vld [vmem:[%s1045 + $0x4] sm:$0xf]
      %v1048 = vld [vmem:[%s1045 + $0x8] sm:$0xf]
      %v1049 = vld [vmem:[%s1045 + $0xc] sm:$0xf]
      %v1050 = vld [vmem:[%s1045 + $0x10] sm:$0xf]
      %v1051 = vld [vmem:[%s1045 + $0x14] sm:$0xf]
      %v1052 = vld [vmem:[%s1045 + $0x18] sm:$0xf]
      %v1053 = vld [vmem:[%s1045 + $0x1c] sm:$0xf]
      %v1054 = vld [vmem:[%s1045 + $0x20] sm:$0xf]
      %v1055 = vld [vmem:[%s1045 + $0x24] sm:$0xf]
      %v1056 = vld [vmem:[%s1045 + $0x28] sm:$0xf]
      %v1057 = vld [vmem:[%s1045 + $0x2c] sm:$0xf]
      %v1058 = vld [vmem:[%s1045 + $0x30] sm:$0xf]
      %v1059 = vld [vmem:[%s1045 + $0x34] sm:$0xf]
      %v1060 = vld [vmem:[%s1045 + $0x38] sm:$0xf]
      %v1061 = vld [vmem:[%s1045 + $0x3c] sm:$0xf]
      %v1062 = vld [vmem:[%s1045 + $0x40] sm:$0xf]
      %v1063 = vld [vmem:[%s1045 + $0x44] sm:$0xf]
      %v1064 = vld [vmem:[%s1045 + $0x48] sm:$0xf]
      %v1065 = vld [vmem:[%s1045 + $0x4c] sm:$0xf]
      %v1066 = vld [vmem:[%s1045 + $0x50] sm:$0xf]
      %v1067 = vld [vmem:[%s1045 + $0x54] sm:$0xf]
      %v1068 = vld [vmem:[%s1045 + $0x58] sm:$0xf]
      %v1069 = vld [vmem:[%s1045 + $0x5c] sm:$0xf]
      %v1070 = vld [vmem:[%s1045 + $0x60] sm:$0xf]
      %v1071 = vld [vmem:[%s1045 + $0x64] sm:$0xf]
      %v1072 = vld [vmem:[%s1045 + $0x68] sm:$0xf]
      %v1073 = vld [vmem:[%s1045 + $0x6c] sm:$0xf]
      %v1074 = vld [vmem:[%s1045 + $0x70] sm:$0xf]
      %v1075 = vld [vmem:[%s1045 + $0x74] sm:$0xf]
      %v1076 = vld [vmem:[%s1045 + $0x78] sm:$0xf]
      %v1077 = vld [vmem:[%s1045 + $0x7c] sm:$0xf]
      %v1078 = vld [vmem:[%s1045 + $0x80] sm:$0xf]
      %v1079 = vld [vmem:[%s1045 + $0x84] sm:$0xf]
      %v1080 = vld [vmem:[%s1045 + $0x88] sm:$0xf]
      %v1081 = vld [vmem:[%s1045 + $0x8c] sm:$0xf]
      %v1082 = vld [vmem:[%s1045 + $0x90] sm:$0xf]
      %v1083 = vld [vmem:[%s1045 + $0x94] sm:$0xf]
      %v1084 = vld [vmem:[%s1045 + $0x98] sm:$0xf]
      %v1085 = vld [vmem:[%s1045 + $0x9c] sm:$0xf]
      %v1086 = vld [vmem:[%s1045 + $0xa0] sm:$0xf]
      %v1087 = vld [vmem:[%s1045 + $0xa4] sm:$0xf]
      %v1088 = vld [vmem:[%s1045 + $0xa8] sm:$0xf]
      %v1089 = vld [vmem:[%s1045 + $0xac] sm:$0xf]
      %v1090 = vld [vmem:[%s1045 + $0xb0] sm:$0xf]
      %v1091 = vld [vmem:[%s1045 + $0xb4] sm:$0xf]
      %v1092 = vld [vmem:[%s1045 + $0xb8] sm:$0xf]
      %v1093 = vld [vmem:[%s1045 + $0xbc] sm:$0xf]
      %v1094 = vld [vmem:[%s1045 + $0xc0] sm:$0xf]
      %v1095 = vld [vmem:[%s1045 + $0xc4] sm:$0xf]
      %v1096 = vld [vmem:[%s1045 + $0xc8] sm:$0xf]
      %v1097 = vld [vmem:[%s1045 + $0xcc] sm:$0xf]
      %v1098 = vld [vmem:[%s1045 + $0xd0] sm:$0xf]
      %v1099 = vld [vmem:[%s1045 + $0xd4] sm:$0xf]
      %v1100 = vld [vmem:[%s1045 + $0xd8] sm:$0xf]
      %v1101 = vld [vmem:[%s1045 + $0xdc] sm:$0xf]
      %v1102 = vld [vmem:[%s1045 + $0xe0] sm:$0xf]
      %v1103 = vld [vmem:[%s1045 + $0xe4] sm:$0xf]
      %v1104 = vld [vmem:[%s1045 + $0xe8] sm:$0xf]
      %v1105 = vld [vmem:[%s1045 + $0xec] sm:$0xf]
      %v1106 = vld [vmem:[%s1045 + $0xf0] sm:$0xf]
      %v1107 = vld [vmem:[%s1045 + $0xf4] sm:$0xf]
      %v1108 = vld [vmem:[%s1045 + $0xf8] sm:$0xf]
      %v1109 = vld [vmem:[%s1045 + $0xfc] sm:$0xf]
      %v1118 = vunpack.c.l.b16 %v1037
      %v1119 = vunpack.c.h.b16 %v1037
      %v1120 = vunpack.c.l.b16 %v1038
      %v1121 = vunpack.c.h.b16 %v1038
      %v1122 = vunpack.c.l.b16 %v1039
      %v1123 = vunpack.c.h.b16 %v1039
      %v1124 = vunpack.c.l.b16 %v1040
      %v1125 = vunpack.c.h.b16 %v1040
      %v1126 = vunpack.c.l.b16 %v1041
      %v1127 = vunpack.c.h.b16 %v1041
      %v1128 = vunpack.c.l.b16 %v1042
      %v1129 = vunpack.c.h.b16 %v1042
      %v1130 = vunpack.c.l.b16 %v1043
      %v1131 = vunpack.c.h.b16 %v1043
      %v1132 = vunpack.c.l.b16 %v1044
      %v1133 = vunpack.c.h.b16 %v1044
      %v1134 = vpack.c.b16 %v1122, %v1118
      %v1135 = vpack.c.b16 %v1123, %v1119
      %v1136 = vpack.c.b16 %v1124, %v1120
      %v1137 = vpack.c.b16 %v1125, %v1121
      %v1138 = vpack.c.b16 %v1130, %v1126
      %v1139 = vpack.c.b16 %v1131, %v1127
      %v1140 = vpack.c.b16 %v1132, %v1128
      %v1141 = vpack.c.b16 %v1133, %v1129
      %v1143 = vshrl.u32 %v1134, 16
      %v1145 = vshll.u32 %v1134, 16
      %v1147 = vrot.slane %v1145, 1
      %v1148 = vor.u32 %v1143, %v1147
      %v1150 = vshll.u32 %v1138, 16
      %v1152 = vrot.slane %v1150, 1
      %v1153 = vsel %vm370, %v1148, %v1152
      %v1155 = vshrl.u32 %v1135, 16
      %v1157 = vshll.u32 %v1135, 16
      %v1159 = vrot.slane %v1157, 1
      %v1160 = vor.u32 %v1155, %v1159
      %v1162 = vshll.u32 %v1139, 16
      %v1164 = vrot.slane %v1162, 1
      %v1165 = vsel %vm370, %v1160, %v1164
      %v1167 = vshrl.u32 %v1136, 16
      %v1169 = vshll.u32 %v1136, 16
      %v1171 = vrot.slane %v1169, 1
      %v1172 = vor.u32 %v1167, %v1171
      %v1174 = vshll.u32 %v1140, 16
      %v1176 = vrot.slane %v1174, 1
      %v1177 = vsel %vm370, %v1172, %v1176
      %v1179 = vshrl.u32 %v1137, 16
      %v1181 = vshll.u32 %v1137, 16
      %v1183 = vrot.slane %v1181, 1
      %v1184 = vor.u32 %v1179, %v1183
      %v1186 = vshll.u32 %v1141, 16
      %v1188 = vrot.slane %v1186, 1
      %v1189 = vsel %vm370, %v1184, %v1188
      %v1190 = vshrl.u32 %v1138, 16
      %v1192 = vor.u32 %v1190, %v1152
      %v1193 = vshrl.u32 %v1139, 16
      %v1195 = vor.u32 %v1193, %v1164
      %v1196 = vshrl.u32 %v1140, 16
      %v1198 = vor.u32 %v1196, %v1176
      %v1199 = vshrl.u32 %v1141, 16
      %v1201 = vor.u32 %v1199, %v1188
      %v1274 = vunpack.c.l.b16 %v1046
      %v1275 = vunpack.c.l.b16 %v1047
      %v1276 = vunpack.c.l.b16 %v1048
      %v1277 = vunpack.c.l.b16 %v1049
      %v1278 = vunpack.c.l.b16 %v1050
      %v1279 = vunpack.c.l.b16 %v1051
      %v1280 = vunpack.c.l.b16 %v1052
      %v1281 = vunpack.c.l.b16 %v1053
      %v1282 = vunpack.c.l.b16 %v1054
      %v1283 = vunpack.c.l.b16 %v1055
      %v1284 = vunpack.c.l.b16 %v1056
      %v1285 = vunpack.c.l.b16 %v1057
      %v1286 = vunpack.c.l.b16 %v1058
      %v1287 = vunpack.c.l.b16 %v1059
      %v1288 = vunpack.c.l.b16 %v1060
      %v1289 = vunpack.c.l.b16 %v1061
      %v1290 = vunpack.c.l.b16 %v1062
      %v1291 = vunpack.c.l.b16 %v1063
      %v1292 = vunpack.c.l.b16 %v1064
      %v1293 = vunpack.c.l.b16 %v1065
      %v1294 = vunpack.c.l.b16 %v1066
      %v1295 = vunpack.c.l.b16 %v1067
      %v1296 = vunpack.c.l.b16 %v1068
      %v1297 = vunpack.c.l.b16 %v1069
      %v1298 = vunpack.c.l.b16 %v1070
      %v1299 = vunpack.c.l.b16 %v1071
      %v1300 = vunpack.c.l.b16 %v1072
      %v1301 = vunpack.c.l.b16 %v1073
      %v1302 = vunpack.c.l.b16 %v1074
      %v1303 = vunpack.c.l.b16 %v1075
      %v1304 = vunpack.c.l.b16 %v1076
      %v1305 = vunpack.c.l.b16 %v1077
      %v1306 = vunpack.c.l.b16 %v1078
      %v1307 = vunpack.c.l.b16 %v1079
      %v1308 = vunpack.c.l.b16 %v1080
      %v1309 = vunpack.c.l.b16 %v1081
      %v1310 = vunpack.c.l.b16 %v1082
      %v1311 = vunpack.c.l.b16 %v1083
      %v1312 = vunpack.c.l.b16 %v1084
      %v1313 = vunpack.c.l.b16 %v1085
      %v1314 = vunpack.c.l.b16 %v1086
      %v1315 = vunpack.c.l.b16 %v1087
      %v1316 = vunpack.c.l.b16 %v1088
      %v1317 = vunpack.c.l.b16 %v1089
      %v1318 = vunpack.c.l.b16 %v1090
      %v1319 = vunpack.c.l.b16 %v1091
      %v1320 = vunpack.c.l.b16 %v1092
      %v1321 = vunpack.c.l.b16 %v1093
      %v1322 = vunpack.c.l.b16 %v1094
      %v1323 = vunpack.c.l.b16 %v1095
      %v1324 = vunpack.c.l.b16 %v1096
      %v1325 = vunpack.c.l.b16 %v1097
      %v1326 = vunpack.c.l.b16 %v1098
      %v1327 = vunpack.c.l.b16 %v1099
      %v1328 = vunpack.c.l.b16 %v1100
      %v1329 = vunpack.c.l.b16 %v1101
      %v1330 = vunpack.c.l.b16 %v1102
      %v1331 = vunpack.c.l.b16 %v1103
      %v1332 = vunpack.c.l.b16 %v1104
      %v1333 = vunpack.c.l.b16 %v1105
      %v1334 = vunpack.c.l.b16 %v1106
      %v1335 = vunpack.c.l.b16 %v1107
      %v1336 = vunpack.c.l.b16 %v1108
      %v1337 = vunpack.c.l.b16 %v1109
      %v1338 = vpack.c.b16 %v1275, %v1274
      %v1339 = vpack.c.b16 %v1277, %v1276
      %v1340 = vpack.c.b16 %v1279, %v1278
      %v1341 = vpack.c.b16 %v1281, %v1280
      %v1342 = vpack.c.b16 %v1283, %v1282
      %v1343 = vpack.c.b16 %v1285, %v1284
      %v1344 = vpack.c.b16 %v1287, %v1286
      %v1345 = vpack.c.b16 %v1289, %v1288
      %v1346 = vpack.c.b16 %v1291, %v1290
      %v1347 = vpack.c.b16 %v1293, %v1292
      %v1348 = vpack.c.b16 %v1295, %v1294
      %v1349 = vpack.c.b16 %v1297, %v1296
      %v1350 = vpack.c.b16 %v1299, %v1298
      %v1351 = vpack.c.b16 %v1301, %v1300
      %v1352 = vpack.c.b16 %v1303, %v1302
      %v1353 = vpack.c.b16 %v1305, %v1304
      %v1354 = vpack.c.b16 %v1307, %v1306
      %v1355 = vpack.c.b16 %v1309, %v1308
      %v1356 = vpack.c.b16 %v1311, %v1310
      %v1357 = vpack.c.b16 %v1313, %v1312
      %v1358 = vpack.c.b16 %v1315, %v1314
      %v1359 = vpack.c.b16 %v1317, %v1316
      %v1360 = vpack.c.b16 %v1319, %v1318
      %v1361 = vpack.c.b16 %v1321, %v1320
      %v1362 = vpack.c.b16 %v1323, %v1322
      %v1363 = vpack.c.b16 %v1325, %v1324
      %v1364 = vpack.c.b16 %v1327, %v1326
      %v1365 = vpack.c.b16 %v1329, %v1328
      %v1366 = vpack.c.b16 %v1331, %v1330
      %v1367 = vpack.c.b16 %v1333, %v1332
      %v1368 = vpack.c.b16 %v1335, %v1334
      %v1369 = vpack.c.b16 %v1337, %v1336
      %1402 = vmatprep.subr.bf16.mxu0 0
      %1403 = vmatpush1.bf16.msra.mxu0 %v1338
      %1404 = vmatprep.subr.bf16.mxu0 0
      %1405 = vmatpush1.bf16.msra.mxu0 %v1339
      %1406 = vmatprep.subr.bf16.mxu0 0
      %1407 = vmatpush1.bf16.msra.mxu0 %v1340
      %1408 = vmatprep.subr.bf16.mxu0 0
      %1409 = vmatpush1.bf16.msra.mxu0 %v1341
      %1410 = vmatprep.subr.bf16.mxu0 0
      %1411 = vmatpush1.bf16.msra.mxu0 %v1342
      %1412 = vmatprep.subr.bf16.mxu0 0
      %1413 = vmatpush1.bf16.msra.mxu0 %v1343
      %1414 = vmatprep.subr.bf16.mxu0 0
      %1415 = vmatpush1.bf16.msra.mxu0 %v1344
      %1416 = vmatprep.subr.bf16.mxu0 0
      %1417 = vmatpush1.bf16.msra.mxu0 %v1345
      %1418 = vmatprep.subr.bf16.mxu0 0
      %1419 = vmatpush1.bf16.msra.mxu0 %v1346
      %1420 = vmatprep.subr.bf16.mxu0 0
      %1421 = vmatpush1.bf16.msra.mxu0 %v1347
      %1422 = vmatprep.subr.bf16.mxu0 0
      %1423 = vmatpush1.bf16.msra.mxu0 %v1348
      %1424 = vmatprep.subr.bf16.mxu0 0
      %1425 = vmatpush1.bf16.msra.mxu0 %v1349
      %1426 = vmatprep.subr.bf16.mxu0 0
      %1427 = vmatpush1.bf16.msra.mxu0 %v1350
      %1428 = vmatprep.subr.bf16.mxu0 0
      %1429 = vmatpush1.bf16.msra.mxu0 %v1351
      %1430 = vmatprep.subr.bf16.mxu0 0
      %1431 = vmatpush1.bf16.msra.mxu0 %v1352
      %1432 = vmatprep.subr.bf16.mxu0 0
      %1433 = vmatpush1.bf16.msra.mxu0 %v1353
      %1434 = vmatprep.mubr.bf16.mxu0 %v1165
      %1435 = vmatmul.mubr.bf16.gmra.mrb[0].mxu0 %v1153
      %v1436 = vpop.f32.mrb[0].mxu0
      %v1437 = vadd.f32 0.0, %v1436
      %v1438 = vpop.f32.mrb[0].mxu0
      %v1439 = vpop.f32.mrb[0].mxu0
      %v1440 = vadd.f32 0.0, %v1439
      %v1441 = vpop.f32.mrb[0].mxu0
      %1442 = vmatprep.mubr.bf16.mxu0 %v1195
      %1443 = vmatmul.mubr.bf16.gmra.mrb[0].mxu0 %v1192
      %v1444 = vpop.f32.mrb[0].mxu0
      %v1445 = vadd.f32 0.0, %v1444
      %v1446 = vpop.f32.mrb[0].mxu0
      %v1447 = vpop.f32.mrb[0].mxu0
      %v1448 = vadd.f32 0.0, %v1447
      %v1449 = vpop.f32.mrb[0].mxu0
      %1450 = vdwg.mxu0
      %1451 = vmatprep.subr.bf16.mxu0 0
      %1452 = vmatpush1.bf16.msra.mxu0 %v1354
      %1453 = vmatprep.subr.bf16.mxu0 0
      %1454 = vmatpush1.bf16.msra.mxu0 %v1355
      %1455 = vmatprep.subr.bf16.mxu0 0
      %1456 = vmatpush1.bf16.msra.mxu0 %v1356
      %1457 = vmatprep.subr.bf16.mxu0 0
      %1458 = vmatpush1.bf16.msra.mxu0 %v1357
      %1459 = vmatprep.subr.bf16.mxu0 0
      %1460 = vmatpush1.bf16.msra.mxu0 %v1358
      %1461 = vmatprep.subr.bf16.mxu0 0
      %1462 = vmatpush1.bf16.msra.mxu0 %v1359
      %1463 = vmatprep.subr.bf16.mxu0 0
      %1464 = vmatpush1.bf16.msra.mxu0 %v1360
      %1465 = vmatprep.subr.bf16.mxu0 0
      %1466 = vmatpush1.bf16.msra.mxu0 %v1361
      %1467 = vmatprep.subr.bf16.mxu0 0
      %1468 = vmatpush1.bf16.msra.mxu0 %v1362
      %1469 = vmatprep.subr.bf16.mxu0 0
      %1470 = vmatpush1.bf16.msra.mxu0 %v1363
      %1471 = vmatprep.subr.bf16.mxu0 0
      %1472 = vmatpush1.bf16.msra.mxu0 %v1364
      %1473 = vmatprep.subr.bf16.mxu0 0
      %1474 = vmatpush1.bf16.msra.mxu0 %v1365
      %1475 = vmatprep.subr.bf16.mxu0 0
      %1476 = vmatpush1.bf16.msra.mxu0 %v1366
      %1477 = vmatprep.subr.bf16.mxu0 0
      %1478 = vmatpush1.bf16.msra.mxu0 %v1367
      %1479 = vmatprep.subr.bf16.mxu0 0
      %1480 = vmatpush1.bf16.msra.mxu0 %v1368
      %1481 = vmatprep.subr.bf16.mxu0 0
      %1482 = vmatpush1.bf16.msra.mxu0 %v1369
      %1483 = vmatprep.mubr.bf16.mxu0 %v1189
      %1484 = vmatmul.mubr.bf16.gmra.mrb[0].mxu0 %v1177
      %v1485 = vpop.f32.mrb[0].mxu0
      %v1486 = vadd.f32 %v1437, %v1485
      %v1487 = vpop.f32.mrb[0].mxu0
      %v1488 = vpop.f32.mrb[0].mxu0
      %v1489 = vadd.f32 %v1440, %v1488
      %v1490 = vpop.f32.mrb[0].mxu0
      %1491 = vmatprep.mubr.bf16.mxu0 %v1201
      %1492 = vmatmul.mubr.bf16.gmra.mrb[0].mxu0 %v1198
      %v1493 = vpop.f32.mrb[0].mxu0
      %v1494 = vadd.f32 %v1445, %v1493
      %v1495 = vpop.f32.mrb[0].mxu0
      %v1496 = vpop.f32.mrb[0].mxu0
      %v1497 = vadd.f32 %v1448, %v1496
      %v1498 = vpop.f32.mrb[0].mxu0
      %1499 = vdwg.mxu0
      %v1500 = vadd.f32 %v1023, %v1486
      %v1501 = vadd.f32 %v1026, %v1489
      %v1502 = vadd.f32 %v1031, %v1494
      %v1503 = vadd.f32 %v1034, %v1497
      %v1504 = vld [vmem:[%s192 + $0x10] sm:$0xee]
      %v1505 = vld [vmem:[%s192 + $0x18] sm:$0xee]
      %s1506 = scalar_lea.vmem %s1, 768
      %v1507 = vld [vmem:[%s1506] sm:$0xf]
      %v1508 = vld [vmem:[%s1506 + $0x4] sm:$0xf]
      %v1509 = vld [vmem:[%s1506 + $0x8] sm:$0xf]
      %v1510 = vld [vmem:[%s1506 + $0xc] sm:$0xf]
      %v1511 = vld [vmem:[%s1506 + $0x10] sm:$0xf]
      %v1512 = vld [vmem:[%s1506 + $0x14] sm:$0xf]
      %v1513 = vld [vmem:[%s1506 + $0x18] sm:$0xf]
      %v1514 = vld [vmem:[%s1506 + $0x1c] sm:$0xf]
      %v1515 = vld [vmem:[%s1506 + $0x20] sm:$0xf]
      %v1516 = vld [vmem:[%s1506 + $0x24] sm:$0xf]
      %v1517 = vld [vmem:[%s1506 + $0x28] sm:$0xf]
      %v1518 = vld [vmem:[%s1506 + $0x2c] sm:$0xf]
      %v1519 = vld [vmem:[%s1506 + $0x30] sm:$0xf]
      %v1520 = vld [vmem:[%s1506 + $0x34] sm:$0xf]
      %v1521 = vld [vmem:[%s1506 + $0x38] sm:$0xf]
      %v1522 = vld [vmem:[%s1506 + $0x3c] sm:$0xf]
      %v1523 = vld [vmem:[%s1506 + $0x40] sm:$0xf]
      %v1524 = vld [vmem:[%s1506 + $0x44] sm:$0xf]
      %v1525 = vld [vmem:[%s1506 + $0x48] sm:$0xf]
      %v1526 = vld [vmem:[%s1506 + $0x4c] sm:$0xf]
      %v1527 = vld [vmem:[%s1506 + $0x50] sm:$0xf]
      %v1528 = vld [vmem:[%s1506 + $0x54] sm:$0xf]
      %v1529 = vld [vmem:[%s1506 + $0x58] sm:$0xf]
      %v1530 = vld [vmem:[%s1506 + $0x5c] sm:$0xf]
      %v1531 = vld [vmem:[%s1506 + $0x60] sm:$0xf]
      %v1532 = vld [vmem:[%s1506 + $0x64] sm:$0xf]
      %v1533 = vld [vmem:[%s1506 + $0x68] sm:$0xf]
      %v1534 = vld [vmem:[%s1506 + $0x6c] sm:$0xf]
      %v1535 = vld [vmem:[%s1506 + $0x70] sm:$0xf]
      %v1536 = vld [vmem:[%s1506 + $0x74] sm:$0xf]
      %v1537 = vld [vmem:[%s1506 + $0x78] sm:$0xf]
      %v1538 = vld [vmem:[%s1506 + $0x7c] sm:$0xf]
      %v1539 = vld [vmem:[%s1506 + $0x80] sm:$0xf]
      %v1540 = vld [vmem:[%s1506 + $0x84] sm:$0xf]
      %v1541 = vld [vmem:[%s1506 + $0x88] sm:$0xf]
      %v1542 = vld [vmem:[%s1506 + $0x8c] sm:$0xf]
      %v1543 = vld [vmem:[%s1506 + $0x90] sm:$0xf]
      %v1544 = vld [vmem:[%s1506 + $0x94] sm:$0xf]
      %v1545 = vld [vmem:[%s1506 + $0x98] sm:$0xf]
      %v1546 = vld [vmem:[%s1506 + $0x9c] sm:$0xf]
      %v1547 = vld [vmem:[%s1506 + $0xa0] sm:$0xf]
      %v1548 = vld [vmem:[%s1506 + $0xa4] sm:$0xf]
      %v1549 = vld [vmem:[%s1506 + $0xa8] sm:$0xf]
      %v1550 = vld [vmem:[%s1506 + $0xac] sm:$0xf]
      %v1551 = vld [vmem:[%s1506 + $0xb0] sm:$0xf]
      %v1552 = vld [vmem:[%s1506 + $0xb4] sm:$0xf]
      %v1553 = vld [vmem:[%s1506 + $0xb8] sm:$0xf]
      %v1554 = vld [vmem:[%s1506 + $0xbc] sm:$0xf]
      %v1555 = vld [vmem:[%s1506 + $0xc0] sm:$0xf]
      %v1556 = vld [vmem:[%s1506 + $0xc4] sm:$0xf]
      %v1557 = vld [vmem:[%s1506 + $0xc8] sm:$0xf]
      %v1558 = vld [vmem:[%s1506 + $0xcc] sm:$0xf]
      %v1559 = vld [vmem:[%s1506 + $0xd0] sm:$0xf]
      %v1560 = vld [vmem:[%s1506 + $0xd4] sm:$0xf]
      %v1561 = vld [vmem:[%s1506 + $0xd8] sm:$0xf]
      %v1562 = vld [vmem:[%s1506 + $0xdc] sm:$0xf]
      %v1563 = vld [vmem:[%s1506 + $0xe0] sm:$0xf]
      %v1564 = vld [vmem:[%s1506 + $0xe4] sm:$0xf]
      %v1565 = vld [vmem:[%s1506 + $0xe8] sm:$0xf]
      %v1566 = vld [vmem:[%s1506 + $0xec] sm:$0xf]
      %v1567 = vld [vmem:[%s1506 + $0xf0] sm:$0xf]
      %v1568 = vld [vmem:[%s1506 + $0xf4] sm:$0xf]
      %v1569 = vld [vmem:[%s1506 + $0xf8] sm:$0xf]
      %v1570 = vld [vmem:[%s1506 + $0xfc] sm:$0xf]
      %v1573 = vunpack.c.l.b16 %v1504
      %v1574 = vunpack.c.h.b16 %v1504
      %v1575 = vunpack.c.l.b16 %v1505
      %v1576 = vunpack.c.h.b16 %v1505
      %v1577 = vpack.c.b16 %v1122, %v1573
      %v1578 = vpack.c.b16 %v1123, %v1574
      %v1579 = vpack.c.b16 %v1124, %v1575
      %v1580 = vpack.c.b16 %v1125, %v1576
      %vm1581 = vcmask 1046528
      %v1582 = vrot.slane %v1577, 1
      %v1583 = vrot.slane %v1138, 1
      %v1584 = vsel %vm1581, %v1582, %v1583
      %v1585 = vrot.slane %v1578, 1
      %v1586 = vrot.slane %v1139, 1
      %v1587 = vsel %vm1581, %v1585, %v1586
      %v1588 = vrot.slane %v1579, 1
      %v1589 = vrot.slane %v1140, 1
      %v1590 = vsel %vm1581, %v1588, %v1589
      %v1591 = vrot.slane %v1580, 1
      %v1592 = vrot.slane %v1141, 1
      %v1593 = vsel %vm1581, %v1591, %v1592
      %v1666 = vunpack.c.l.b16 %v1507
      %v1667 = vunpack.c.l.b16 %v1508
      %v1668 = vunpack.c.l.b16 %v1509
      %v1669 = vunpack.c.l.b16 %v1510
      %v1670 = vunpack.c.l.b16 %v1511
      %v1671 = vunpack.c.l.b16 %v1512
      %v1672 = vunpack.c.l.b16 %v1513
      %v1673 = vunpack.c.l.b16 %v1514
      %v1674 = vunpack.c.l.b16 %v1515
      %v1675 = vunpack.c.l.b16 %v1516
      %v1676 = vunpack.c.l.b16 %v1517
      %v1677 = vunpack.c.l.b16 %v1518
      %v1678 = vunpack.c.l.b16 %v1519
      %v1679 = vunpack.c.l.b16 %v1520
      %v1680 = vunpack.c.l.b16 %v1521
      %v1681 = vunpack.c.l.b16 %v1522
      %v1682 = vunpack.c.l.b16 %v1523
      %v1683 = vunpack.c.l.b16 %v1524
      %v1684 = vunpack.c.l.b16 %v1525
      %v1685 = vunpack.c.l.b16 %v1526
      %v1686 = vunpack.c.l.b16 %v1527
      %v1687 = vunpack.c.l.b16 %v1528
      %v1688 = vunpack.c.l.b16 %v1529
      %v1689 = vunpack.c.l.b16 %v1530
      %v1690 = vunpack.c.l.b16 %v1531
      %v1691 = vunpack.c.l.b16 %v1532
      %v1692 = vunpack.c.l.b16 %v1533
      %v1693 = vunpack.c.l.b16 %v1534
      %v1694 = vunpack.c.l.b16 %v1535
      %v1695 = vunpack.c.l.b16 %v1536
      %v1696 = vunpack.c.l.b16 %v1537
      %v1697 = vunpack.c.l.b16 %v1538
      %v1698 = vunpack.c.l.b16 %v1539
      %v1699 = vunpack.c.l.b16 %v1540
      %v1700 = vunpack.c.l.b16 %v1541
      %v1701 = vunpack.c.l.b16 %v1542
      %v1702 = vunpack.c.l.b16 %v1543
      %v1703 = vunpack.c.l.b16 %v1544
      %v1704 = vunpack.c.l.b16 %v1545
      %v1705 = vunpack.c.l.b16 %v1546
      %v1706 = vunpack.c.l.b16 %v1547
      %v1707 = vunpack.c.l.b16 %v1548
      %v1708 = vunpack.c.l.b16 %v1549
      %v1709 = vunpack.c.l.b16 %v1550
      %v1710 = vunpack.c.l.b16 %v1551
      %v1711 = vunpack.c.l.b16 %v1552
      %v1712 = vunpack.c.l.b16 %v1553
      %v1713 = vunpack.c.l.b16 %v1554
      %v1714 = vunpack.c.l.b16 %v1555
      %v1715 = vunpack.c.l.b16 %v1556
      %v1716 = vunpack.c.l.b16 %v1557
      %v1717 = vunpack.c.l.b16 %v1558
      %v1718 = vunpack.c.l.b16 %v1559
      %v1719 = vunpack.c.l.b16 %v1560
      %v1720 = vunpack.c.l.b16 %v1561
      %v1721 = vunpack.c.l.b16 %v1562
      %v1722 = vunpack.c.l.b16 %v1563
      %v1723 = vunpack.c.l.b16 %v1564
      %v1724 = vunpack.c.l.b16 %v1565
      %v1725 = vunpack.c.l.b16 %v1566
      %v1726 = vunpack.c.l.b16 %v1567
      %v1727 = vunpack.c.l.b16 %v1568
      %v1728 = vunpack.c.l.b16 %v1569
      %v1729 = vunpack.c.l.b16 %v1570
      %v1730 = vpack.c.b16 %v1667, %v1666
      %v1731 = vpack.c.b16 %v1669, %v1668
      %v1732 = vpack.c.b16 %v1671, %v1670
      %v1733 = vpack.c.b16 %v1673, %v1672
      %v1734 = vpack.c.b16 %v1675, %v1674
      %v1735 = vpack.c.b16 %v1677, %v1676
      %v1736 = vpack.c.b16 %v1679, %v1678
      %v1737 = vpack.c.b16 %v1681, %v1680
      %v1738 = vpack.c.b16 %v1683, %v1682
      %v1739 = vpack.c.b16 %v1685, %v1684
      %v1740 = vpack.c.b16 %v1687, %v1686
      %v1741 = vpack.c.b16 %v1689, %v1688
      %v1742 = vpack.c.b16 %v1691, %v1690
      %v1743 = vpack.c.b16 %v1693, %v1692
      %v1744 = vpack.c.b16 %v1695, %v1694
      %v1745 = vpack.c.b16 %v1697, %v1696
      %v1746 = vpack.c.b16 %v1699, %v1698
      %v1747 = vpack.c.b16 %v1701, %v1700
      %v1748 = vpack.c.b16 %v1703, %v1702
      %v1749 = vpack.c.b16 %v1705, %v1704
      %v1750 = vpack.c.b16 %v1707, %v1706
      %v1751 = vpack.c.b16 %v1709, %v1708
      %v1752 = vpack.c.b16 %v1711, %v1710
      %v1753 = vpack.c.b16 %v1713, %v1712
      %v1754 = vpack.c.b16 %v1715, %v1714
      %v1755 = vpack.c.b16 %v1717, %v1716
      %v1756 = vpack.c.b16 %v1719, %v1718
      %v1757 = vpack.c.b16 %v1721, %v1720
      %v1758 = vpack.c.b16 %v1723, %v1722
      %v1759 = vpack.c.b16 %v1725, %v1724
      %v1760 = vpack.c.b16 %v1727, %v1726
      %v1761 = vpack.c.b16 %v1729, %v1728
      %1794 = vmatprep.subr.bf16.mxu0 0
      %1795 = vmatpush1.bf16.msra.mxu0 %v1730
      %1796 = vmatprep.subr.bf16.mxu0 0
      %1797 = vmatpush1.bf16.msra.mxu0 %v1731
      %1798 = vmatprep.subr.bf16.mxu0 0
      %1799 = vmatpush1.bf16.msra.mxu0 %v1732
      %1800 = vmatprep.subr.bf16.mxu0 0
      %1801 = vmatpush1.bf16.msra.mxu0 %v1733
      %1802 = vmatprep.subr.bf16.mxu0 0
      %1803 = vmatpush1.bf16.msra.mxu0 %v1734
      %1804 = vmatprep.subr.bf16.mxu0 0
      %1805 = vmatpush1.bf16.msra.mxu0 %v1735
      %1806 = vmatprep.subr.bf16.mxu0 0
      %1807 = vmatpush1.bf16.msra.mxu0 %v1736
      %1808 = vmatprep.subr.bf16.mxu0 0
      %1809 = vmatpush1.bf16.msra.mxu0 %v1737
      %1810 = vmatprep.subr.bf16.mxu0 0
      %1811 = vmatpush1.bf16.msra.mxu0 %v1738
      %1812 = vmatprep.subr.bf16.mxu0 0
      %1813 = vmatpush1.bf16.msra.mxu0 %v1739
      %1814 = vmatprep.subr.bf16.mxu0 0
      %1815 = vmatpush1.bf16.msra.mxu0 %v1740
      %1816 = vmatprep.subr.bf16.mxu0 0
      %1817 = vmatpush1.bf16.msra.mxu0 %v1741
      %1818 = vmatprep.subr.bf16.mxu0 0
      %1819 = vmatpush1.bf16.msra.mxu0 %v1742
      %1820 = vmatprep.subr.bf16.mxu0 0
      %1821 = vmatpush1.bf16.msra.mxu0 %v1743
      %1822 = vmatprep.subr.bf16.mxu0 0
      %1823 = vmatpush1.bf16.msra.mxu0 %v1744
      %1824 = vmatprep.subr.bf16.mxu0 0
      %1825 = vmatpush1.bf16.msra.mxu0 %v1745
      %1826 = vmatprep.mubr.bf16.mxu0 %v1587
      %1827 = vmatmul.mubr.bf16.gmra.mrb[0].mxu0 %v1584
      %v1828 = vpop.f32.mrb[0].mxu0
      %v1829 = vadd.f32 0.0, %v1828
      %v1830 = vpop.f32.mrb[0].mxu0
      %v1831 = vpop.f32.mrb[0].mxu0
      %v1832 = vadd.f32 0.0, %v1831
      %v1833 = vpop.f32.mrb[0].mxu0
      %1834 = vmatprep.mubr.bf16.mxu0 %v1586
      %1835 = vmatmul.mubr.bf16.gmra.mrb[0].mxu0 %v1583
      %v1836 = vpop.f32.mrb[0].mxu0
      %v1837 = vadd.f32 0.0, %v1836
      %v1838 = vpop.f32.mrb[0].mxu0
      %v1839 = vpop.f32.mrb[0].mxu0
      %v1840 = vadd.f32 0.0, %v1839
      %v1841 = vpop.f32.mrb[0].mxu0
      %1842 = vdwg.mxu0
      %1843 = vmatprep.subr.bf16.mxu0 0
      %1844 = vmatpush1.bf16.msra.mxu0 %v1746
      %1845 = vmatprep.subr.bf16.mxu0 0
      %1846 = vmatpush1.bf16.msra.mxu0 %v1747
      %1847 = vmatprep.subr.bf16.mxu0 0
      %1848 = vmatpush1.bf16.msra.mxu0 %v1748
      %1849 = vmatprep.subr.bf16.mxu0 0
      %1850 = vmatpush1.bf16.msra.mxu0 %v1749
      %1851 = vmatprep.subr.bf16.mxu0 0
      %1852 = vmatpush1.bf16.msra.mxu0 %v1750
      %1853 = vmatprep.subr.bf16.mxu0 0
      %1854 = vmatpush1.bf16.msra.mxu0 %v1751
      %1855 = vmatprep.subr.bf16.mxu0 0
      %1856 = vmatpush1.bf16.msra.mxu0 %v1752
      %1857 = vmatprep.subr.bf16.mxu0 0
      %1858 = vmatpush1.bf16.msra.mxu0 %v1753
      %1859 = vmatprep.subr.bf16.mxu0 0
      %1860 = vmatpush1.bf16.msra.mxu0 %v1754
      %1861 = vmatprep.subr.bf16.mxu0 0
      %1862 = vmatpush1.bf16.msra.mxu0 %v1755
      %1863 = vmatprep.subr.bf16.mxu0 0
      %1864 = vmatpush1.bf16.msra.mxu0 %v1756
      %1865 = vmatprep.subr.bf16.mxu0 0
      %1866 = vmatpush1.bf16.msra.mxu0 %v1757
      %1867 = vmatprep.subr.bf16.mxu0 0
      %1868 = vmatpush1.bf16.msra.mxu0 %v1758
      %1869 = vmatprep.subr.bf16.mxu0 0
      %1870 = vmatpush1.bf16.msra.mxu0 %v1759
      %1871 = vmatprep.subr.bf16.mxu0 0
      %1872 = vmatpush1.bf16.msra.mxu0 %v1760
      %1873 = vmatprep.subr.bf16.mxu0 0
      %1874 = vmatpush1.bf16.msra.mxu0 %v1761
      %1875 = vmatprep.mubr.bf16.mxu0 %v1593
      %1876 = vmatmul.mubr.bf16.gmra.mrb[0].mxu0 %v1590
      %v1877 = vpop.f32.mrb[0].mxu0
      %v1878 = vadd.f32 %v1829, %v1877
      %v1879 = vpop.f32.mrb[0].mxu0
      %v1880 = vpop.f32.mrb[0].mxu0
      %v1881 = vadd.f32 %v1832, %v1880
      %v1882 = vpop.f32.mrb[0].mxu0
      %1883 = vmatprep.mubr.bf16.mxu0 %v1592
      %1884 = vmatmul.mubr.bf16.gmra.mrb[0].mxu0 %v1589
      %v1885 = vpop.f32.mrb[0].mxu0
      %v1886 = vadd.f32 %v1837, %v1885
      %v1887 = vpop.f32.mrb[0].mxu0
      %v1888 = vpop.f32.mrb[0].mxu0
      %v1889 = vadd.f32 %v1840, %v1888
      %v1890 = vpop.f32.mrb[0].mxu0
      %1891 = vdwg.mxu0
      %v1892 = vadd.f32 %v1500, %v1878
      %v1893 = vadd.f32 %v1501, %v1881
      %v1894 = vadd.f32 %v1502, %v1886
      %v1895 = vadd.f32 %v1503, %v1889
      %v1896 = vld [vmem:[%s2] sm:$0x1]
      %v1898 = vlaneseq
      %v1899 = vshrl.u32 %v1898, 7
      %v1900 = vsub.s32 0, %v1899
      %v1901 = vrot.slane %v1896, %v1900
      %v1903 = vmul.f32 %v1892, %v1901
      %v1904 = vmul.f32 %v1893, %v1901
      %v1905 = vmul.f32 %v1894, %v1901
      %v1906 = vmul.f32 %v1895, %v1901
      %v1907 = vld [vmem:[%s3] sm:$0x1]
      %v1909 = vlaneseq
      %v1910 = vshrl.u32 %v1909, 7
      %v1911 = vsub.s32 0, %v1910
      %v1912 = vrot.slane %v1907, %v1911
      %v1914 = vadd.f32 %v1903, %v1912
      %v1915 = vadd.f32 %v1904, %v1912
      %v1916 = vadd.f32 %v1905, %v1912
      %v1917 = vadd.f32 %v1906, %v1912
      %vm1918 = vcmp.ge.f32.partialorder %v1914, 0.0
      %vm1919 = vcmp.ge.f32.partialorder %v1915, 0.0
      %vm1920 = vcmp.ge.f32.partialorder %v1916, 0.0
      %vm1921 = vcmp.ge.f32.partialorder %v1917, 0.0
      %v1922 = vmul.f32 %v1914, 0.2
      %v1923 = vmul.f32 %v1915, 0.2
      %v1924 = vmul.f32 %v1916, 0.2
      %v1925 = vmul.f32 %v1917, 0.2
      %v1926 = vsel %vm1918, %v1914, %v1922
      %v1927 = vsel %vm1919, %v1915, %v1923
      %v1928 = vsel %vm1920, %v1916, %v1924
      %v1929 = vsel %vm1921, %v1917, %v1925
      %v1930 = vpack.c.bf16 %v1927, %v1926
      %v1931 = vpack.c.bf16 %v1929, %v1928
      %v1934 = vunpack.c.l.b16 %v1930
      %v1935 = vunpack.c.h.b16 %v1930
      %v1936 = vunpack.c.l.b16 %v1931
      %v1937 = vunpack.c.h.b16 %v1931
      %v1938 = vpack.c.b16 %v1934, %v1934
      %v1939 = vpack.c.b16 %v1935, %v1935
      %v1940 = vpack.c.b16 %v1936, %v1936
      %v1941 = vpack.c.b16 %v1937, %v1937
      %1946 = vst [vmem:[%s197] sm:$0xf] %v1938
      %1947 = vst [vmem:[%s197 + $0x4] sm:$0xf] %v1939
      %1948 = vst [vmem:[%s197 + $0x8] sm:$0xf] %v1940
      %1949 = vst [vmem:[%s197 + $0xc] sm:$0x1] %v1941
      %p1950 = scmp.lt.s32.totalorder %s15, 1
      %s1951 = scalar_select %p1950, %s15, 1
      %s1952 = smul.addr %s1951, 4
      %s1953 = smul.addr %s1952, 4
      %s1954 = scalar_lea.vmem %s4, %s1953
      // Predicated region
      $region37: #{nlayer_discriminator_forward.7} parent=35 // pred_check
        %p1955 = pneg %p122
      $region38: #{nlayer_discriminator_forward.7} parent=35 // pred_check_branch
        %1957 = sbr.rel (%p1955) target = $region40
      $region39: #{nlayer_discriminator_forward.7} parent=35 // pred_region
        _
      $region40: #{nlayer_discriminator_forward.7} parent=35 // pred_fallthru
        _
    $region36: #{nlayer_discriminator_forward.7} parent=5 // pred_fallthru
      _
    %p1958 = scmp.le.s32.totalorder 2, %s10
    // Predicated region
    $region41: #{nlayer_discriminator_forward.7} parent=5 // pred_check
      %p1959 = pneg %p1958
    $region42: #{nlayer_discriminator_forward.7} parent=5 // pred_check_branch
      %1961 = sbr.rel (%p1959) target = $region44
    $region43: #{nlayer_discriminator_forward.7} parent=5 // pred_region
      %s1962 = ssub.s32 %s10, 2
      // Predicated region
      $region45: #{nlayer_discriminator_forward.7} parent=43 // pred_check
        %p1963 = pneg %p128
      $region46: #{nlayer_discriminator_forward.7} parent=43 // pred_check_branch
        %1965 = sbr.rel (%p1963) target = $region48
      $region47: #{nlayer_discriminator_forward.7} parent=43 // pred_region
        %p1966 = scmp.lt.s32.totalorder %s16, 1
        %s1967 = scalar_select %p1966, %s16, 1
        %s1968 = smul.addr %s1967, 4
        %s1969 = smul.addr %s1968, 4
        %s1970 = scalar_lea.vmem %s4, %s1969
      $region48: #{nlayer_discriminator_forward.7} parent=43 // pred_fallthru
        _
    $region44: #{nlayer_discriminator_forward.7} parent=5 // pred_fallthru
      _
  $region6: #{nlayer_discriminator_forward.7} parent=0 // loop_footer
    %s14 = sadd.s32 1, %s10
  $region7: #{nlayer_discriminator_forward.7} parent=0 // loop_footer_branch
    %9 = sbr.rel target = $region3
  $region8: #{nlayer_discriminator_forward.7} parent=0 // loop_exit
    _

// kernel: nlayer_discriminator_forward.8
$region0: #{nlayer_discriminator_forward.8}
  #allocation0 [shape = 'u32[]', space=smem, size = 0x4, offset = 0x4, fixed_abs, tag = 'smem constant byte address 0x4 - core index']
  #allocation1 [shape = 'u32[144,128]{1,0:T(1,128)}', space=vmem, size = 0x12000, scoped, tag = 'internal scratch']
  %s0 = inlined_call_operand.vmem [shape: bf16[2,77,128], index: 0, kind: input, shape index: {}]
  %s1 = inlined_call_operand.vmem [shape: bf16[16,128,128], index: 1, kind: input, shape index: {}]
  %s2 = inlined_call_operand.vmem [shape: f32[1,128], index: 2, kind: input, shape index: {}]
  %s3 = inlined_call_operand.vmem [shape: f32[1,128], index: 3, kind: input, shape index: {}]
  %s4 = inlined_call_operand.vmem [shape: bf16[2,41,128], index: 4, kind: output, shape index: {}]
  %s5 = sld [smem:[#allocation0]]
  $region49: #{nlayer_discriminator_forward.8} parent=0
    _
  %s7 = ssub.s32 1, %s5
  %s8 = scalar_select 0, %s7, %s5
  loop: start=0, step=1, limit=4
  $region2: #{nlayer_discriminator_forward.8} parent=0 // loop_pre_header
    _
  $region3: #{nlayer_discriminator_forward.8} parent=0 // loop_header
    %s10 = sphi 0, %s14
    %p11 = scmp.ge.s32.totalorder %s10, 4
    %s20 = sphi 0, %s22
    %s23 = sphi 0, %s20
    %s24 = sphi 0, %s23
    %s40 = sphi 0, %s24
    %s44 = sphi 0, %s44
    %s46 = sphi 0, %s44
    %s47 = sphi 0, %s46
    %s61 = sphi 0, %s47
    %s65 = sphi 0, %s65
    %s67 = sphi 0, %s65
    %s68 = sphi 0, %s67
    %s82 = sphi 0, %s68
    %s86 = sphi 0, %s86
    %s88 = sphi 0, %s86
    %s89 = sphi 0, %s88
    %s103 = sphi 0, %s89
    %s109 = sphi 0, %s111
    %s112 = sphi 0, %s109
    %s113 = sphi 0, %s112
    %s129 = sphi 0, %s113
  $region4: #{nlayer_discriminator_forward.8} parent=0 // loop_header_branch
    %13 = sbr.rel (%p11) target = $region8
  $region5: #{nlayer_discriminator_forward.8} parent=0 // loop_body
    %s15 = ssub.s32 %s10, 1
    %s16 = ssub.s32 %s10, 2
    %s17 = sadd.s32 %s10, 1
    %s18 = ssub.s32 %s10, %s17
    %p19 = scmp.eq.s32.totalorder %s18, 0
    %s21 = sadd.s32 %s20, 1
    %s22 = scalar_select %p19, %s20, %s21
    %p25 = pneg %p19
    %p26 = scmp.eq.s32.totalorder %s10, 1
    %p27 = por %p25, %p26
    %p28 = scmp.ne.s32.totalorder %s20, %s23
    %p29 = scmp.eq.s32.totalorder %s10, 0
    %p30 = por %p28, %p29
    %p31 = scmp.ne.s32.totalorder %s20, %s23
    %p32 = scmp.eq.s32.totalorder %s15, 1
    %p33 = por %p31, %p32
    %p34 = scmp.ne.s32.totalorder %s23, %s24
    %p35 = scmp.eq.s32.totalorder %s15, 0
    %p36 = por %p34, %p35
    %p37 = scmp.ne.s32.totalorder %s23, %s24
    %p38 = scmp.eq.s32.totalorder %s16, 1
    %p39 = por %p37, %p38
    %p41 = scmp.ne.s32.totalorder %s24, %s40
    %p42 = scmp.eq.s32.totalorder %s16, 0
    %p43 = por %p41, %p42
    %s45 = sadd.s32 %s44, 1
    %p48 = scmp.eq.s32.totalorder %s10, 1
    %p49 = scmp.ne.s32.totalorder %s44, %s46
    %p50 = scmp.eq.s32.totalorder %s10, 0
    %p51 = por %p49, %p50
    %p52 = scmp.ne.s32.totalorder %s44, %s46
    %p53 = scmp.eq.s32.totalorder %s15, 1
    %p54 = por %p52, %p53
    %p55 = scmp.ne.s32.totalorder %s46, %s47
    %p56 = scmp.eq.s32.totalorder %s15, 0
    %p57 = por %p55, %p56
    %p58 = scmp.ne.s32.totalorder %s46, %s47
    %p59 = scmp.eq.s32.totalorder %s16, 1
    %p60 = por %p58, %p59
    %p62 = scmp.ne.s32.totalorder %s47, %s61
    %p63 = scmp.eq.s32.totalorder %s16, 0
    %p64 = por %p62, %p63
    %s66 = sadd.s32 %s65, 1
    %p69 = scmp.eq.s32.totalorder %s10, 1
    %p70 = scmp.ne.s32.totalorder %s65, %s67
    %p71 = scmp.eq.s32.totalorder %s10, 0
    %p72 = por %p70, %p71
    %p73 = scmp.ne.s32.totalorder %s65, %s67
    %p74 = scmp.eq.s32.totalorder %s15, 1
    %p75 = por %p73, %p74
    %p76 = scmp.ne.s32.totalorder %s67, %s68
    %p77 = scmp.eq.s32.totalorder %s15, 0
    %p78 = por %p76, %p77
    %p79 = scmp.ne.s32.totalorder %s67, %s68
    %p80 = scmp.eq.s32.totalorder %s16, 1
    %p81 = por %p79, %p80
    %p83 = scmp.ne.s32.totalorder %s68, %s82
    %p84 = scmp.eq.s32.totalorder %s16, 0
    %p85 = por %p83, %p84
    %s87 = sadd.s32 %s86, 1
    %p90 = scmp.eq.s32.totalorder %s10, 1
    %p91 = scmp.ne.s32.totalorder %s86, %s88
    %p92 = scmp.eq.s32.totalorder %s10, 0
    %p93 = por %p91, %p92
    %p94 = scmp.ne.s32.totalorder %s86, %s88
    %p95 = scmp.eq.s32.totalorder %s15, 1
    %p96 = por %p94, %p95
    %p97 = scmp.ne.s32.totalorder %s88, %s89
    %p98 = scmp.eq.s32.totalorder %s15, 0
    %p99 = por %p97, %p98
    %p100 = scmp.ne.s32.totalorder %s88, %s89
    %p101 = scmp.eq.s32.totalorder %s16, 1
    %p102 = por %p100, %p101
    %p104 = scmp.ne.s32.totalorder %s89, %s103
    %p105 = scmp.eq.s32.totalorder %s16, 0
    %p106 = por %p104, %p105
    %s107 = ssub.s32 %s10, %s17
    %p108 = scmp.eq.s32.totalorder %s107, 0
    %s110 = sadd.s32 %s109, 1
    %s111 = scalar_select %p108, %s109, %s110
    %p114 = pneg %p108
    %p115 = scmp.eq.s32.totalorder %s10, 1
    %p116 = por %p114, %p115
    %p117 = scmp.ne.s32.totalorder %s109, %s112
    %p118 = scmp.eq.s32.totalorder %s10, 0
    %p119 = por %p117, %p118
    %p120 = scmp.ne.s32.totalorder %s109, %s112
    %p121 = scmp.eq.s32.totalorder %s15, 1
    %p122 = por %p120, %p121
    %p123 = scmp.ne.s32.totalorder %s112, %s113
    %p124 = scmp.eq.s32.totalorder %s15, 0
    %p125 = por %p123, %p124
    %p126 = scmp.ne.s32.totalorder %s112, %s113
    %p127 = scmp.eq.s32.totalorder %s16, 1
    %p128 = por %p126, %p127
    %p130 = scmp.ne.s32.totalorder %s113, %s129
    %p131 = scmp.eq.s32.totalorder %s16, 0
    %p132 = por %p130, %p131
    %p133 = scmp.le.s32.totalorder 1, %s10
    %p134 = scmp.lt.s32.totalorder %s10, 3
    %p135 = pnand %p133, %p134
    %p136 = pneg %p135
    // Predicated region
    $region9: #{nlayer_discriminator_forward.8} parent=5 // pred_check
      _
    $region10: #{nlayer_discriminator_forward.8} parent=5 // pred_check_branch
      %138 = sbr.rel (%p135) target = $region12
    $region11: #{nlayer_discriminator_forward.8} parent=5 // pred_region
      %s139 = ssub.s32 %s10, 1
      // Predicated region
      $region13: #{nlayer_discriminator_forward.8} parent=11 // pred_check
        %p140 = pneg %p57
      $region14: #{nlayer_discriminator_forward.8} parent=11 // pred_check_branch
        %142 = sbr.rel (%p140) target = $region16
      $region15: #{nlayer_discriminator_forward.8} parent=11 // pred_region
        _
      $region16: #{nlayer_discriminator_forward.8} parent=11 // pred_fallthru
        _
      // Predicated region
      $region17: #{nlayer_discriminator_forward.8} parent=11 // pred_check
        %p143 = pneg %p78
      $region18: #{nlayer_discriminator_forward.8} parent=11 // pred_check_branch
        %145 = sbr.rel (%p143) target = $region20
      $region19: #{nlayer_discriminator_forward.8} parent=11 // pred_region
        _
      $region20: #{nlayer_discriminator_forward.8} parent=11 // pred_fallthru
        _
      // Predicated region
      $region21: #{nlayer_discriminator_forward.8} parent=11 // pred_check
        %p146 = pneg %p99
      $region22: #{nlayer_discriminator_forward.8} parent=11 // pred_check_branch
        %148 = sbr.rel (%p146) target = $region24
      $region23: #{nlayer_discriminator_forward.8} parent=11 // pred_region
        _
      $region24: #{nlayer_discriminator_forward.8} parent=11 // pred_fallthru
        _
    $region12: #{nlayer_discriminator_forward.8} parent=5 // pred_fallthru
      _
    %p149 = scmp.lt.s32.totalorder %s10, 2
    // Predicated region
    $region25: #{nlayer_discriminator_forward.8} parent=5 // pred_check
      %p150 = pneg %p149
    $region26: #{nlayer_discriminator_forward.8} parent=5 // pred_check_branch
      %152 = sbr.rel (%p150) target = $region28
    $region27: #{nlayer_discriminator_forward.8} parent=5 // pred_region
      // Predicated region
      $region29: #{nlayer_discriminator_forward.8} parent=27 // pred_check
        %p153 = pneg %p30
      $region30: #{nlayer_discriminator_forward.8} parent=27 // pred_check_branch
        %155 = sbr.rel (%p153) target = $region32
      $region31: #{nlayer_discriminator_forward.8} parent=27 // pred_region
        %p156 = scmp.lt.s32.totalorder %s10, 1
        %s157 = scalar_select %p156, %s10, 1
        %s158 = smul.addr %s157, 10
        %s159 = smul.addr %s158, 4
        %s160 = scalar_lea.vmem %s0, %s159
      $region32: #{nlayer_discriminator_forward.8} parent=27 // pred_fallthru
        _
    $region28: #{nlayer_discriminator_forward.8} parent=5 // pred_fallthru
      _
    %p161 = scmp.le.s32.totalorder 1, %s10
    %p162 = scmp.lt.s32.totalorder %s10, 3
    %p163 = pnand %p161, %p162
    %p164 = pneg %p163
    // Predicated region
    $region33: #{nlayer_discriminator_forward.8} parent=5 // pred_check
      _
    $region34: #{nlayer_discriminator_forward.8} parent=5 // pred_check_branch
      %166 = sbr.rel (%p163) target = $region36
    $region35: #{nlayer_discriminator_forward.8} parent=5 // pred_region
      %s167 = ssub.s32 %s10, 1
      %p168 = scmp.lt.s32.totalorder %s15, 1
      %s169 = scalar_select %p168, %s15, 1
      %s170 = smul.addr %s169, 10
      %s171 = smul.addr %s170, 4
      %s172 = scalar_lea.vmem %s0, %s171
      %p173 = pneg %p36
      %p174 = pneg %p33
      %p175 = pneg %p57
      %p176 = pneg %p54
      %p177 = pneg %p78
      %p178 = pneg %p75
      %p179 = pneg %p99
      %p180 = pneg %p96
      %p181 = pneg %p125
      %p182 = pneg %p122
      %p183 = scmp.lt.s32.totalorder %s15, 1
      %s184 = scalar_select %p183, %s15, 1
      %s185 = smul.addr %s184, 6
      %s186 = smul.addr %s185, 4
      %s187 = scalar_lea.vmem %s4, %s186
      %p188 = scmp.lt.s32.totalorder %s15, 1
      %s189 = scalar_select %p188, %s15, 1
      %s190 = smul.addr %s189, 10
      %s191 = smul.addr %s190, 4
      %s192 = scalar_lea.vmem %s0, %s191
      %p193 = scmp.lt.s32.totalorder %s15, 1
      %s194 = scalar_select %p193, %s15, 1
      %s195 = smul.addr %s194, 6
      %s196 = smul.addr %s195, 4
      %s197 = scalar_lea.vmem %s4, %s196
      %v199 = vld [vmem:[%s192] sm:$0xf]
      %v200 = vld [vmem:[%s192 + $0x4] sm:$0xf]
      %v201 = vld [vmem:[%s192 + $0x8] sm:$0xf]
      %v202 = vld [vmem:[%s192 + $0xc] sm:$0xf]
      %v203 = vld [vmem:[%s192 + $0x10] sm:$0xf]
      %v204 = vld [vmem:[%s192 + $0x14] sm:$0x1]
      %v205 = vld [vmem:[%s1] sm:$0xf]
      %v206 = vld [vmem:[%s1 + $0x4] sm:$0xf]
      %v207 = vld [vmem:[%s1 + $0x8] sm:$0xf]
      %v208 = vld [vmem:[%s1 + $0xc] sm:$0xf]
      %v209 = vld [vmem:[%s1 + $0x10] sm:$0xf]
      %v210 = vld [vmem:[%s1 + $0x14] sm:$0xf]
      %v211 = vld [vmem:[%s1 + $0x18] sm:$0xf]
      %v212 = vld [vmem:[%s1 + $0x1c] sm:$0xf]
      %v213 = vld [vmem:[%s1 + $0x20] sm:$0xf]
      %v214 = vld [vmem:[%s1 + $0x24] sm:$0xf]
      %v215 = vld [vmem:[%s1 + $0x28] sm:$0xf]
      %v216 = vld [vmem:[%s1 + $0x2c] sm:$0xf]
      %v217 = vld [vmem:[%s1 + $0x30] sm:$0xf]
      %v218 = vld [vmem:[%s1 + $0x34] sm:$0xf]
      %v219 = vld [vmem:[%s1 + $0x38] sm:$0xf]
      %v220 = vld [vmem:[%s1 + $0x3c] sm:$0xf]
      %s221 = scalar_lea.vmem %s1, 64
      %v222 = vld [vmem:[%s221] sm:$0xf]
      %v223 = vld [vmem:[%s221 + $0x4] sm:$0xf]
      %v224 = vld [vmem:[%s221 + $0x8] sm:$0xf]
      %v225 = vld [vmem:[%s221 + $0xc] sm:$0xf]
      %v226 = vld [vmem:[%s221 + $0x10] sm:$0xf]
      %v227 = vld [vmem:[%s221 + $0x14] sm:$0xf]
      %v228 = vld [vmem:[%s221 + $0x18] sm:$0xf]
      %v229 = vld [vmem:[%s221 + $0x1c] sm:$0xf]
      %v230 = vld [vmem:[%s221 + $0x20] sm:$0xf]
      %v231 = vld [vmem:[%s221 + $0x24] sm:$0xf]
      %v232 = vld [vmem:[%s221 + $0x28] sm:$0xf]
      %v233 = vld [vmem:[%s221 + $0x2c] sm:$0xf]
      %v234 = vld [vmem:[%s221 + $0x30] sm:$0xf]
      %v235 = vld [vmem:[%s221 + $0x34] sm:$0xf]
      %v236 = vld [vmem:[%s221 + $0x38] sm:$0xf]
      %v237 = vld [vmem:[%s221 + $0x3c] sm:$0xf]
      %v244 = vunpack.c.l.b16 %v199
      %v245 = vunpack.c.l.b16 %v200
      %v246 = vunpack.c.l.b16 %v201
      %v247 = vunpack.c.l.b16 %v202
      %v248 = vunpack.c.l.b16 %v203
      %v249 = vunpack.c.l.b16 %v204
      %v250 = vpack.c.b16 %v245, %v244
      %v251 = vpack.c.b16 %v247, %v246
      %v252 = vpack.c.b16 %v249, %v248
      %vm253 = vsmask.f32 7424
      %v255 = vshrl.u32 %v250, 16
      %v257 = vshll.u32 %v250, 16
      %v259 = vrot.slane %v257, 1
      %v260 = vor.u32 %v255, %v259
      %v262 = vshll.u32 %v251, 16
      %v264 = vrot.slane %v262, 1
      %v265 = vsel %vm253, %v260, %v264
      %v266 = vshrl.u32 %v251, 16
      %v268 = vor.u32 %v266, %v264
      %v270 = vshll.u32 %v252, 16
      %v272 = vrot.slane %v270, 1
      %v273 = vsel %vm253, %v268, %v272
      %v274 = vshrl.u32 %v252, 16
      %v276 = vor.u32 %v274, %v272
      %v296 = vunpack.c.l.b16 %v222
      %v297 = vunpack.c.l.b16 %v223
      %v298 = vunpack.c.l.b16 %v224
      %v299 = vunpack.c.l.b16 %v225
      %v300 = vunpack.c.l.b16 %v226
      %v301 = vunpack.c.l.b16 %v227
      %v302 = vunpack.c.l.b16 %v228
      %v303 = vunpack.c.l.b16 %v229
      %v304 = vunpack.c.l.b16 %v230
      %v305 = vunpack.c.l.b16 %v231
      %v306 = vunpack.c.l.b16 %v232
      %v307 = vunpack.c.l.b16 %v233
      %v308 = vunpack.c.l.b16 %v234
      %v309 = vunpack.c.l.b16 %v235
      %v310 = vunpack.c.l.b16 %v236
      %v311 = vunpack.c.l.b16 %v237
      %v312 = vpack.c.b16 %v297, %v296
      %v313 = vpack.c.b16 %v299, %v298
      %v314 = vpack.c.b16 %v301, %v300
      %v315 = vpack.c.b16 %v303, %v302
      %v316 = vpack.c.b16 %v305, %v304
      %v317 = vpack.c.b16 %v307, %v306
      %v318 = vpack.c.b16 %v309, %v308
      %v319 = vpack.c.b16 %v311, %v310
      %328 = vmatprep.subr.bf16.mxu0 0
      %329 = vmatpush1.bf16.msra.mxu0 %v312
      %330 = vmatprep.subr.bf16.mxu0 0
      %331 = vmatpush1.bf16.msra.mxu0 %v313
      %332 = vmatprep.subr.bf16.mxu0 0
      %333 = vmatpush1.bf16.msra.mxu0 %v314
      %334 = vmatprep.subr.bf16.mxu0 0
      %335 = vmatpush1.bf16.msra.mxu0 %v315
      %336 = vmatprep.subr.bf16.mxu0 0
      %337 = vmatpush1.bf16.msra.mxu0 %v316
      %338 = vmatprep.subr.bf16.mxu0 0
      %339 = vmatpush1.bf16.msra.mxu0 %v317
      %340 = vmatprep.subr.bf16.mxu0 0
      %341 = vmatpush1.bf16.msra.mxu0 %v318
      %342 = vmatprep.subr.bf16.mxu0 0
      %343 = vmatpush1.bf16.msra.mxu0 %v319
      %344 = vmatprep.subr.bf16.mxu0 0
      %345 = vmatpush1.bf16.msra.mxu0 0
      %346 = vmatprep.subr.bf16.mxu0 0
      %347 = vmatpush1.bf16.msra.mxu0 0
      %348 = vmatprep.subr.bf16.mxu0 0
      %349 = vmatpush1.bf16.msra.mxu0 0
      %350 = vmatprep.subr.bf16.mxu0 0
      %351 = vmatpush1.bf16.msra.mxu0 0
      %352 = vmatprep.subr.bf16.mxu0 0
      %353 = vmatpush1.bf16.msra.mxu0 0
      %354 = vmatprep.subr.bf16.mxu0 0
      %355 = vmatpush1.bf16.msra.mxu0 0
      %356 = vmatprep.subr.bf16.mxu0 0
      %357 = vmatpush1.bf16.msra.mxu0 0
      %358 = vmatprep.subr.bf16.mxu0 0
      %359 = vmatpush1.bf16.msra.mxu0 0
      %360 = vmatprep.mubr.bf16.mxu0 0
      %361 = vmatmul.mubr.bf16.gmra.mrb[0].mxu0 %v265
      %v362 = vpop.f32.mrb[0].mxu0
      %v363 = vadd.f32 0.0, %v362
      %v364 = vpop.f32.mrb[0].mxu0
      %v365 = vpop.f32.mrb[0].mxu0
      %v366 = vadd.f32 0.0, %v365
      %v367 = vpop.f32.mrb[0].mxu0
      %368 = vmatprep.mubr.bf16.mxu0 0
      %369 = vmatmul.mubr.bf16.gmra.mrb[0].mxu0 %v273
      %v370 = vpop.f32.mrb[0].mxu0
      %v371 = vadd.f32 0.0, %v370
      %v372 = vpop.f32.mrb[0].mxu0
      %v373 = vpop.f32.mrb[0].mxu0
      %v374 = vadd.f32 0.0, %v373
      %v375 = vpop.f32.mrb[0].mxu0
      %376 = vmatprep.mubr.bf16.mxu0 0
      %377 = vmatmul.mubr.bf16.gmra.mrb[0].mxu0 %v276
      %v378 = vpop.f32.mrb[0].mxu0
      %v379 = vadd.f32 0.0, %v378
      %v380 = vpop.f32.mrb[0].mxu0
      %v381 = vpop.f32.mrb[0].mxu0
      %v382 = vadd.f32 0.0, %v381
      %v383 = vpop.f32.mrb[0].mxu0
      %384 = vdwg.mxu0
      %v404 = vunpack.c.l.b16 %v205
      %v405 = vunpack.c.l.b16 %v206
      %v406 = vunpack.c.l.b16 %v207
      %v407 = vunpack.c.l.b16 %v208
      %v408 = vunpack.c.l.b16 %v209
      %v409 = vunpack.c.l.b16 %v210
      %v410 = vunpack.c.l.b16 %v211
      %v411 = vunpack.c.l.b16 %v212
      %v412 = vunpack.c.l.b16 %v213
      %v413 = vunpack.c.l.b16 %v214
      %v414 = vunpack.c.l.b16 %v215
      %v415 = vunpack.c.l.b16 %v216
      %v416 = vunpack.c.l.b16 %v217
      %v417 = vunpack.c.l.b16 %v218
      %v418 = vunpack.c.l.b16 %v219
      %v419 = vunpack.c.l.b16 %v220
      %v420 = vpack.c.b16 %v405, %v404
      %v421 = vpack.c.b16 %v407, %v406
      %v422 = vpack.c.b16 %v409, %v408
      %v423 = vpack.c.b16 %v411, %v410
      %v424 = vpack.c.b16 %v413, %v412
      %v425 = vpack.c.b16 %v415, %v414
      %v426 = vpack.c.b16 %v417, %v416
      %v427 = vpack.c.b16 %v419, %v418
      %436 = vmatprep.subr.bf16.mxu0 0
      %437 = vmatpush1.bf16.msra.mxu0 %v420
      %438 = vmatprep.subr.bf16.mxu0 0
      %439 = vmatpush1.bf16.msra.mxu0 %v421
      %440 = vmatprep.subr.bf16.mxu0 0
      %441 = vmatpush1.bf16.msra.mxu0 %v422
      %442 = vmatprep.subr.bf16.mxu0 0
      %443 = vmatpush1.bf16.msra.mxu0 %v423
      %444 = vmatprep.subr.bf16.mxu0 0
      %445 = vmatpush1.bf16.msra.mxu0 %v424
      %446 = vmatprep.subr.bf16.mxu0 0
      %447 = vmatpush1.bf16.msra.mxu0 %v425
      %448 = vmatprep.subr.bf16.mxu0 0
      %449 = vmatpush1.bf16.msra.mxu0 %v426
      %450 = vmatprep.subr.bf16.mxu0 0
      %451 = vmatpush1.bf16.msra.mxu0 %v427
      %452 = vmatprep.subr.bf16.mxu0 0
      %453 = vmatpush1.bf16.msra.mxu0 0
      %454 = vmatprep.subr.bf16.mxu0 0
      %455 = vmatpush1.bf16.msra.mxu0 0
      %456 = vmatprep.subr.bf16.mxu0 0
      %457 = vmatpush1.bf16.msra.mxu0 0
      %458 = vmatprep.subr.bf16.mxu0 0
      %459 = vmatpush1.bf16.msra.mxu0 0
      %460 = vmatprep.subr.bf16.mxu0 0
      %461 = vmatpush1.bf16.msra.mxu0 0
      %462 = vmatprep.subr.bf16.mxu0 0
      %463 = vmatpush1.bf16.msra.mxu0 0
      %464 = vmatprep.subr.bf16.mxu0 0
      %465 = vmatpush1.bf16.msra.mxu0 0
      %466 = vmatprep.subr.bf16.mxu0 0
      %467 = vmatpush1.bf16.msra.mxu0 0
      %468 = vmatprep.mubr.bf16.mxu0 0
      %469 = vmatmul.mubr.bf16.gmra.mrb[0].mxu0 %v250
      %v470 = vpop.f32.mrb[0].mxu0
      %v471 = vadd.f32 %v363, %v470
      %v472 = vpop.f32.mrb[0].mxu0
      %v473 = vpop.f32.mrb[0].mxu0
      %v474 = vadd.f32 %v366, %v473
      %v475 = vpop.f32.mrb[0].mxu0
      %476 = vmatprep.mubr.bf16.mxu0 0
      %477 = vmatmul.mubr.bf16.gmra.mrb[0].mxu0 %v251
      %v478 = vpop.f32.mrb[0].mxu0
      %v479 = vadd.f32 %v371, %v478
      %v480 = vpop.f32.mrb[0].mxu0
      %v481 = vpop.f32.mrb[0].mxu0
      %v482 = vadd.f32 %v374, %v481
      %v483 = vpop.f32.mrb[0].mxu0
      %484 = vmatprep.mubr.bf16.mxu0 0
      %485 = vmatmul.mubr.bf16.gmra.mrb[0].mxu0 %v252
      %v486 = vpop.f32.mrb[0].mxu0
      %v487 = vadd.f32 %v379, %v486
      %v488 = vpop.f32.mrb[0].mxu0
      %v489 = vpop.f32.mrb[0].mxu0
      %v490 = vadd.f32 %v382, %v489
      %v491 = vpop.f32.mrb[0].mxu0
      %492 = vdwg.mxu0
      %v493 = vld [vmem:[%s192] sm:$0xe]
      %v494 = vld [vmem:[%s192 + $0x14] sm:$0x3]
      %s495 = scalar_lea.vmem %s1, 128
      %v496 = vld [vmem:[%s495] sm:$0xf]
      %v497 = vld [vmem:[%s495 + $0x4] sm:$0xf]
      %v498 = vld [vmem:[%s495 + $0x8] sm:$0xf]
      %v499 = vld [vmem:[%s495 + $0xc] sm:$0xf]
      %v500 = vld [vmem:[%s495 + $0x10] sm:$0xf]
      %v501 = vld [vmem:[%s495 + $0x14] sm:$0xf]
      %v502 = vld [vmem:[%s495 + $0x18] sm:$0xf]
      %v503 = vld [vmem:[%s495 + $0x1c] sm:$0xf]
      %v504 = vld [vmem:[%s495 + $0x20] sm:$0xf]
      %v505 = vld [vmem:[%s495 + $0x24] sm:$0xf]
      %v506 = vld [vmem:[%s495 + $0x28] sm:$0xf]
      %v507 = vld [vmem:[%s495 + $0x2c] sm:$0xf]
      %v508 = vld [vmem:[%s495 + $0x30] sm:$0xf]
      %v509 = vld [vmem:[%s495 + $0x34] sm:$0xf]
      %v510 = vld [vmem:[%s495 + $0x38] sm:$0xf]
      %v511 = vld [vmem:[%s495 + $0x3c] sm:$0xf]
      %v514 = vunpack.c.l.b16 %v493
      %v515 = vunpack.c.l.b16 %v494
      %v516 = vpack.c.b16 %v245, %v514
      %v517 = vpack.c.b16 %v515, %v248
      %vm518 = vcmask 1046528
      %v519 = vrot.slane %v516, 1
      %v520 = vrot.slane %v251, 1
      %v521 = vsel %vm518, %v519, %v520
      %v522 = vrot.slane %v517, 1
      %v523 = vsel %vm518, %v520, %v522
      %v543 = vunpack.c.l.b16 %v496
      %v544 = vunpack.c.l.b16 %v497
      %v545 = vunpack.c.l.b16 %v498
      %v546 = vunpack.c.l.b16 %v499
      %v547 = vunpack.c.l.b16 %v500
      %v548 = vunpack.c.l.b16 %v501
      %v549 = vunpack.c.l.b16 %v502
      %v550 = vunpack.c.l.b16 %v503
      %v551 = vunpack.c.l.b16 %v504
      %v552 = vunpack.c.l.b16 %v505
      %v553 = vunpack.c.l.b16 %v506
      %v554 = vunpack.c.l.b16 %v507
      %v555 = vunpack.c.l.b16 %v508
      %v556 = vunpack.c.l.b16 %v509
      %v557 = vunpack.c.l.b16 %v510
      %v558 = vunpack.c.l.b16 %v511
      %v559 = vpack.c.b16 %v544, %v543
      %v560 = vpack.c.b16 %v546, %v545
      %v561 = vpack.c.b16 %v548, %v547
      %v562 = vpack.c.b16 %v550, %v549
      %v563 = vpack.c.b16 %v552, %v551
      %v564 = vpack.c.b16 %v554, %v553
      %v565 = vpack.c.b16 %v556, %v555
      %v566 = vpack.c.b16 %v558, %v557
      %575 = vmatprep.subr.bf16.mxu0 0
      %576 = vmatpush1.bf16.msra.mxu0 %v559
      %577 = vmatprep.subr.bf16.mxu0 0
      %578 = vmatpush1.bf16.msra.mxu0 %v560
      %579 = vmatprep.subr.bf16.mxu0 0
      %580 = vmatpush1.bf16.msra.mxu0 %v561
      %581 = vmatprep.subr.bf16.mxu0 0
      %582 = vmatpush1.bf16.msra.mxu0 %v562
      %583 = vmatprep.subr.bf16.mxu0 0
      %584 = vmatpush1.bf16.msra.mxu0 %v563
      %585 = vmatprep.subr.bf16.mxu0 0
      %586 = vmatpush1.bf16.msra.mxu0 %v564
      %587 = vmatprep.subr.bf16.mxu0 0
      %588 = vmatpush1.bf16.msra.mxu0 %v565
      %589 = vmatprep.subr.bf16.mxu0 0
      %590 = vmatpush1.bf16.msra.mxu0 %v566
      %591 = vmatprep.subr.bf16.mxu0 0
      %592 = vmatpush1.bf16.msra.mxu0 0
      %593 = vmatprep.subr.bf16.mxu0 0
      %594 = vmatpush1.bf16.msra.mxu0 0
      %595 = vmatprep.subr.bf16.mxu0 0
      %596 = vmatpush1.bf16.msra.mxu0 0
      %597 = vmatprep.subr.bf16.mxu0 0
      %598 = vmatpush1.bf16.msra.mxu0 0
      %599 = vmatprep.subr.bf16.mxu0 0
      %600 = vmatpush1.bf16.msra.mxu0 0
      %601 = vmatprep.subr.bf16.mxu0 0
      %602 = vmatpush1.bf16.msra.mxu0 0
      %603 = vmatprep.subr.bf16.mxu0 0
      %604 = vmatpush1.bf16.msra.mxu0 0
      %605 = vmatprep.subr.bf16.mxu0 0
      %606 = vmatpush1.bf16.msra.mxu0 0
      %607 = vmatprep.mubr.bf16.mxu0 0
      %608 = vmatmul.mubr.bf16.gmra.mrb[0].mxu0 %v521
      %v609 = vpop.f32.mrb[0].mxu0
      %v610 = vadd.f32 0.0, %v609
      %v611 = vpop.f32.mrb[0].mxu0
      %v612 = vpop.f32.mrb[0].mxu0
      %v613 = vadd.f32 0.0, %v612
      %v614 = vpop.f32.mrb[0].mxu0
      %615 = vmatprep.mubr.bf16.mxu0 0
      %616 = vmatmul.mubr.bf16.gmra.mrb[0].mxu0 %v523
      %v617 = vpop.f32.mrb[0].mxu0
      %v618 = vadd.f32 0.0, %v617
      %v619 = vpop.f32.mrb[0].mxu0
      %v620 = vpop.f32.mrb[0].mxu0
      %v621 = vadd.f32 0.0, %v620
      %v622 = vpop.f32.mrb[0].mxu0
      %623 = vmatprep.mubr.bf16.mxu0 0
      %624 = vmatmul.mubr.bf16.gmra.mrb[0].mxu0 %v522
      %v625 = vpop.f32.mrb[0].mxu0
      %v626 = vadd.f32 0.0, %v625
      %v627 = vpop.f32.mrb[0].mxu0
      %v628 = vpop.f32.mrb[0].mxu0
      %v629 = vadd.f32 0.0, %v628
      %v630 = vpop.f32.mrb[0].mxu0
      %631 = vdwg.mxu0
      %v632 = vadd.f32 %v471, %v610
      %v633 = vadd.f32 %v474, %v613
      %v634 = vadd.f32 %v479, %v618
      %v635 = vadd.f32 %v482, %v621
      %v636 = vadd.f32 %v487, %v626
      %v637 = vadd.f32 %v490, %v629
      %s638 = scalar_lea.vmem %s1, 192
      %v639 = vld [vmem:[%s638] sm:$0xf]
      %v640 = vld [vmem:[%s638 + $0x4] sm:$0xf]
      %v641 = vld [vmem:[%s638 + $0x8] sm:$0xf]
      %v642 = vld [vmem:[%s638 + $0xc] sm:$0xf]
      %v643 = vld [vmem:[%s638 + $0x10] sm:$0xf]
      %v644 = vld [vmem:[%s638 + $0x14] sm:$0xf]
      %v645 = vld [vmem:[%s638 + $0x18] sm:$0xf]
      %v646 = vld [vmem:[%s638 + $0x1c] sm:$0xf]
      %v647 = vld [vmem:[%s638 + $0x20] sm:$0xf]
      %v648 = vld [vmem:[%s638 + $0x24] sm:$0xf]
      %v649 = vld [vmem:[%s638 + $0x28] sm:$0xf]
      %v650 = vld [vmem:[%s638 + $0x2c] sm:$0xf]
      %v651 = vld [vmem:[%s638 + $0x30] sm:$0xf]
      %v652 = vld [vmem:[%s638 + $0x34] sm:$0xf]
      %v653 = vld [vmem:[%s638 + $0x38] sm:$0xf]
      %v654 = vld [vmem:[%s638 + $0x3c] sm:$0xf]
      %vm655 = vsmask.f32 6400
      %v657 = vshrl.u32 %v516, 16
      %v659 = vrot.slane %v657, 1
      %v660 = vshll.u32 %v516, 16
      %v662 = vrot.slane %v660, 2
      %v663 = vor.u32 %v659, %v662
      %v664 = vrot.slane %v266, 1
      %v665 = vrot.slane %v262, 2
      %v666 = vor.u32 %v664, %v665
      %v667 = vsel %vm655, %v663, %v666
      %v669 = vshrl.u32 %v517, 16
      %v671 = vrot.slane %v669, 1
      %v672 = vshll.u32 %v517, 16
      %v674 = vrot.slane %v672, 2
      %v675 = vor.u32 %v671, %v674
      %v676 = vsel %vm655, %v666, %v675
      %v696 = vunpack.c.l.b16 %v639
      %v697 = vunpack.c.l.b16 %v640
      %v698 = vunpack.c.l.b16 %v641
      %v699 = vunpack.c.l.b16 %v642
      %v700 = vunpack.c.l.b16 %v643
      %v701 = vunpack.c.l.b16 %v644
      %v702 = vunpack.c.l.b16 %v645
      %v703 = vunpack.c.l.b16 %v646
      %v704 = vunpack.c.l.b16 %v647
      %v705 = vunpack.c.l.b16 %v648
      %v706 = vunpack.c.l.b16 %v649
      %v707 = vunpack.c.l.b16 %v650
      %v708 = vunpack.c.l.b16 %v651
      %v709 = vunpack.c.l.b16 %v652
      %v710 = vunpack.c.l.b16 %v653
      %v711 = vunpack.c.l.b16 %v654
      %v712 = vpack.c.b16 %v697, %v696
      %v713 = vpack.c.b16 %v699, %v698
      %v714 = vpack.c.b16 %v701, %v700
      %v715 = vpack.c.b16 %v703, %v702
      %v716 = vpack.c.b16 %v705, %v704
      %v717 = vpack.c.b16 %v707, %v706
      %v718 = vpack.c.b16 %v709, %v708
      %v719 = vpack.c.b16 %v711, %v710
      %728 = vmatprep.subr.bf16.mxu0 0
      %729 = vmatpush1.bf16.msra.mxu0 %v712
      %730 = vmatprep.subr.bf16.mxu0 0
      %731 = vmatpush1.bf16.msra.mxu0 %v713
      %732 = vmatprep.subr.bf16.mxu0 0
      %733 = vmatpush1.bf16.msra.mxu0 %v714
      %734 = vmatprep.subr.bf16.mxu0 0
      %735 = vmatpush1.bf16.msra.mxu0 %v715
      %736 = vmatprep.subr.bf16.mxu0 0
      %737 = vmatpush1.bf16.msra.mxu0 %v716
      %738 = vmatprep.subr.bf16.mxu0 0
      %739 = vmatpush1.bf16.msra.mxu0 %v717
      %740 = vmatprep.subr.bf16.mxu0 0
      %741 = vmatpush1.bf16.msra.mxu0 %v718
      %742 = vmatprep.subr.bf16.mxu0 0
      %743 = vmatpush1.bf16.msra.mxu0 %v719
      %744 = vmatprep.subr.bf16.mxu0 0
      %745 = vmatpush1.bf16.msra.mxu0 0
      %746 = vmatprep.subr.bf16.mxu0 0
      %747 = vmatpush1.bf16.msra.mxu0 0
      %748 = vmatprep.subr.bf16.mxu0 0
      %749 = vmatpush1.bf16.msra.mxu0 0
      %750 = vmatprep.subr.bf16.mxu0 0
      %751 = vmatpush1.bf16.msra.mxu0 0
      %752 = vmatprep.subr.bf16.mxu0 0
      %753 = vmatpush1.bf16.msra.mxu0 0
      %754 = vmatprep.subr.bf16.mxu0 0
      %755 = vmatpush1.bf16.msra.mxu0 0
      %756 = vmatprep.subr.bf16.mxu0 0
      %757 = vmatpush1.bf16.msra.mxu0 0
      %758 = vmatprep.subr.bf16.mxu0 0
      %759 = vmatpush1.bf16.msra.mxu0 0
      %760 = vmatprep.mubr.bf16.mxu0 0
      %761 = vmatmul.mubr.bf16.gmra.mrb[0].mxu0 %v667
      %v762 = vpop.f32.mrb[0].mxu0
      %v763 = vadd.f32 0.0, %v762
      %v764 = vpop.f32.mrb[0].mxu0
      %v765 = vpop.f32.mrb[0].mxu0
      %v766 = vadd.f32 0.0, %v765
      %v767 = vpop.f32.mrb[0].mxu0
      %768 = vmatprep.mubr.bf16.mxu0 0
      %769 = vmatmul.mubr.bf16.gmra.mrb[0].mxu0 %v676
      %v770 = vpop.f32.mrb[0].mxu0
      %v771 = vadd.f32 0.0, %v770
      %v772 = vpop.f32.mrb[0].mxu0
      %v773 = vpop.f32.mrb[0].mxu0
      %v774 = vadd.f32 0.0, %v773
      %v775 = vpop.f32.mrb[0].mxu0
      %776 = vmatprep.mubr.bf16.mxu0 0
      %777 = vmatmul.mubr.bf16.gmra.mrb[0].mxu0 %v675
      %v778 = vpop.f32.mrb[0].mxu0
      %v779 = vadd.f32 0.0, %v778
      %v780 = vpop.f32.mrb[0].mxu0
      %v781 = vpop.f32.mrb[0].mxu0
      %v782 = vadd.f32 0.0, %v781
      %v783 = vpop.f32.mrb[0].mxu0
      %784 = vdwg.mxu0
      %v785 = vadd.f32 %v632, %v763
      %v786 = vadd.f32 %v633, %v766
      %v787 = vadd.f32 %v634, %v771
      %v788 = vadd.f32 %v635, %v774
      %v789 = vadd.f32 %v636, %v779
      %v790 = vadd.f32 %v637, %v782
      %v791 = vld [vmem:[%s192 + $0x4] sm:$0xe]
      %v792 = vld [vmem:[%s192 + $0x8] sm:$0xf]
      %v793 = vld [vmem:[%s192 + $0xc] sm:$0xf]
      %v794 = vld [vmem:[%s192 + $0x10] sm:$0xf]
      %v795 = vld [vmem:[%s192 + $0x14] sm:$0xf]
      %v796 = vld [vmem:[%s192 + $0x18] sm:$0x3]
      %s797 = scalar_lea.vmem %s1, 256
      %v798 = vld [vmem:[%s797] sm:$0xf]
      %v799 = vld [vmem:[%s797 + $0x4] sm:$0xf]
      %v800 = vld [vmem:[%s797 + $0x8] sm:$0xf]
      %v801 = vld [vmem:[%s797 + $0xc] sm:$0xf]
      %v802 = vld [vmem:[%s797 + $0x10] sm:$0xf]
      %v803 = vld [vmem:[%s797 + $0x14] sm:$0xf]
      %v804 = vld [vmem:[%s797 + $0x18] sm:$0xf]
      %v805 = vld [vmem:[%s797 + $0x1c] sm:$0xf]
      %v806 = vld [vmem:[%s797 + $0x20] sm:$0xf]
      %v807 = vld [vmem:[%s797 + $0x24] sm:$0xf]
      %v808 = vld [vmem:[%s797 + $0x28] sm:$0xf]
      %v809 = vld [vmem:[%s797 + $0x2c] sm:$0xf]
      %v810 = vld [vmem:[%s797 + $0x30] sm:$0xf]
      %v811 = vld [vmem:[%s797 + $0x34] sm:$0xf]
      %v812 = vld [vmem:[%s797 + $0x38] sm:$0xf]
      %v813 = vld [vmem:[%s797 + $0x3c] sm:$0xf]
      %v820 = vunpack.c.l.b16 %v791
      %v821 = vunpack.c.l.b16 %v792
      %v822 = vunpack.c.l.b16 %v793
      %v823 = vunpack.c.l.b16 %v794
      %v824 = vunpack.c.l.b16 %v795
      %v825 = vunpack.c.l.b16 %v796
      %v826 = vpack.c.b16 %v821, %v820
      %v827 = vpack.c.b16 %v823, %v822
      %v828 = vpack.c.b16 %v825, %v824
      %v830 = vshrl.u32 %v826, 16
      %v832 = vrot.slane %v830, 1
      %v833 = vshll.u32 %v826, 16
      %v835 = vrot.slane %v833, 2
      %v836 = vor.u32 %v832, %v835
      %v838 = vshrl.u32 %v827, 16
      %v840 = vrot.slane %v838, 1
      %v841 = vshll.u32 %v827, 16
      %v843 = vrot.slane %v841, 2
      %v844 = vor.u32 %v840, %v843
      %v845 = vsel %vm655, %v836, %v844
      %v847 = vshrl.u32 %v828, 16
      %v849 = vrot.slane %v847, 1
      %v850 = vshll.u32 %v828, 16
      %v852 = vrot.slane %v850, 2
      %v853 = vor.u32 %v849, %v852
      %v854 = vsel %vm655, %v844, %v853
      %v874 = vunpack.c.l.b16 %v798
      %v875 = vunpack.c.l.b16 %v799
      %v876 = vunpack.c.l.b16 %v800
      %v877 = vunpack.c.l.b16 %v801
      %v878 = vunpack.c.l.b16 %v802
      %v879 = vunpack.c.l.b16 %v803
      %v880 = vunpack.c.l.b16 %v804
      %v881 = vunpack.c.l.b16 %v805
      %v882 = vunpack.c.l.b16 %v806
      %v883 = vunpack.c.l.b16 %v807
      %v884 = vunpack.c.l.b16 %v808
      %v885 = vunpack.c.l.b16 %v809
      %v886 = vunpack.c.l.b16 %v810
      %v887 = vunpack.c.l.b16 %v811
      %v888 = vunpack.c.l.b16 %v812
      %v889 = vunpack.c.l.b16 %v813
      %v890 = vpack.c.b16 %v875, %v874
      %v891 = vpack.c.b16 %v877, %v876
      %v892 = vpack.c.b16 %v879, %v878
      %v893 = vpack.c.b16 %v881, %v880
      %v894 = vpack.c.b16 %v883, %v882
      %v895 = vpack.c.b16 %v885, %v884
      %v896 = vpack.c.b16 %v887, %v886
      %v897 = vpack.c.b16 %v889, %v888
      %906 = vmatprep.subr.bf16.mxu0 0
      %907 = vmatpush1.bf16.msra.mxu0 %v890
      %908 = vmatprep.subr.bf16.mxu0 0
      %909 = vmatpush1.bf16.msra.mxu0 %v891
      %910 = vmatprep.subr.bf16.mxu0 0
      %911 = vmatpush1.bf16.msra.mxu0 %v892
      %912 = vmatprep.subr.bf16.mxu0 0
      %913 = vmatpush1.bf16.msra.mxu0 %v893
      %914 = vmatprep.subr.bf16.mxu0 0
      %915 = vmatpush1.bf16.msra.mxu0 %v894
      %916 = vmatprep.subr.bf16.mxu0 0
      %917 = vmatpush1.bf16.msra.mxu0 %v895
      %918 = vmatprep.subr.bf16.mxu0 0
      %919 = vmatpush1.bf16.msra.mxu0 %v896
      %920 = vmatprep.subr.bf16.mxu0 0
      %921 = vmatpush1.bf16.msra.mxu0 %v897
      %922 = vmatprep.subr.bf16.mxu0 0
      %923 = vmatpush1.bf16.msra.mxu0 0
      %924 = vmatprep.subr.bf16.mxu0 0
      %925 = vmatpush1.bf16.msra.mxu0 0
      %926 = vmatprep.subr.bf16.mxu0 0
      %927 = vmatpush1.bf16.msra.mxu0 0
      %928 = vmatprep.subr.bf16.mxu0 0
      %929 = vmatpush1.bf16.msra.mxu0 0
      %930 = vmatprep.subr.bf16.mxu0 0
      %931 = vmatpush1.bf16.msra.mxu0 0
      %932 = vmatprep.subr.bf16.mxu0 0
      %933 = vmatpush1.bf16.msra.mxu0 0
      %934 = vmatprep.subr.bf16.mxu0 0
      %935 = vmatpush1.bf16.msra.mxu0 0
      %936 = vmatprep.subr.bf16.mxu0 0
      %937 = vmatpush1.bf16.msra.mxu0 0
      %938 = vmatprep.mubr.bf16.mxu0 0
      %939 = vmatmul.mubr.bf16.gmra.mrb[0].mxu0 %v845
      %v940 = vpop.f32.mrb[0].mxu0
      %v941 = vadd.f32 0.0, %v940
      %v942 = vpop.f32.mrb[0].mxu0
      %v943 = vpop.f32.mrb[0].mxu0
      %v944 = vadd.f32 0.0, %v943
      %v945 = vpop.f32.mrb[0].mxu0
      %946 = vmatprep.mubr.bf16.mxu0 0
      %947 = vmatmul.mubr.bf16.gmra.mrb[0].mxu0 %v854
      %v948 = vpop.f32.mrb[0].mxu0
      %v949 = vadd.f32 0.0, %v948
      %v950 = vpop.f32.mrb[0].mxu0
      %v951 = vpop.f32.mrb[0].mxu0
      %v952 = vadd.f32 0.0, %v951
      %v953 = vpop.f32.mrb[0].mxu0
      %954 = vmatprep.mubr.bf16.mxu0 0
      %955 = vmatmul.mubr.bf16.gmra.mrb[0].mxu0 %v853
      %v956 = vpop.f32.mrb[0].mxu0
      %v957 = vadd.f32 0.0, %v956
      %v958 = vpop.f32.mrb[0].mxu0
      %v959 = vpop.f32.mrb[0].mxu0
      %v960 = vadd.f32 0.0, %v959
      %v961 = vpop.f32.mrb[0].mxu0
      %962 = vdwg.mxu0
      %v963 = vadd.f32 %v785, %v941
      %v964 = vadd.f32 %v786, %v944
      %v965 = vadd.f32 %v787, %v949
      %v966 = vadd.f32 %v788, %v952
      %v967 = vadd.f32 %v789, %v957
      %v968 = vadd.f32 %v790, %v960
      %v969 = vld [vmem:[%s192 + $0x4] sm:$0xc]
      %v970 = vld [vmem:[%s192 + $0x18] sm:$0x7]
      %s971 = scalar_lea.vmem %s1, 320
      %v972 = vld [vmem:[%s971] sm:$0xf]
      %v973 = vld [vmem:[%s971 + $0x4] sm:$0xf]
      %v974 = vld [vmem:[%s971 + $0x8] sm:$0xf]
      %v975 = vld [vmem:[%s971 + $0xc] sm:$0xf]
      %v976 = vld [vmem:[%s971 + $0x10] sm:$0xf]
      %v977 = vld [vmem:[%s971 + $0x14] sm:$0xf]
      %v978 = vld [vmem:[%s971 + $0x18] sm:$0xf]
      %v979 = vld [vmem:[%s971 + $0x1c] sm:$0xf]
      %v980 = vld [vmem:[%s971 + $0x20] sm:$0xf]
      %v981 = vld [vmem:[%s971 + $0x24] sm:$0xf]
      %v982 = vld [vmem:[%s971 + $0x28] sm:$0xf]
      %v983 = vld [vmem:[%s971 + $0x2c] sm:$0xf]
      %v984 = vld [vmem:[%s971 + $0x30] sm:$0xf]
      %v985 = vld [vmem:[%s971 + $0x34] sm:$0xf]
      %v986 = vld [vmem:[%s971 + $0x38] sm:$0xf]
      %v987 = vld [vmem:[%s971 + $0x3c] sm:$0xf]
      %v990 = vunpack.c.l.b16 %v969
      %v991 = vunpack.c.l.b16 %v970
      %v992 = vpack.c.b16 %v821, %v990
      %v993 = vpack.c.b16 %v991, %v824
      %vm994 = vcmask 1045504
      %v995 = vrot.slane %v992, 2
      %v996 = vrot.slane %v827, 2
      %v997 = vsel %vm994, %v995, %v996
      %v998 = vrot.slane %v993, 2
      %v999 = vsel %vm994, %v996, %v998
      %v1019 = vunpack.c.l.b16 %v972
      %v1020 = vunpack.c.l.b16 %v973
      %v1021 = vunpack.c.l.b16 %v974
      %v1022 = vunpack.c.l.b16 %v975
      %v1023 = vunpack.c.l.b16 %v976
      %v1024 = vunpack.c.l.b16 %v977
      %v1025 = vunpack.c.l.b16 %v978
      %v1026 = vunpack.c.l.b16 %v979
      %v1027 = vunpack.c.l.b16 %v980
      %v1028 = vunpack.c.l.b16 %v981
      %v1029 = vunpack.c.l.b16 %v982
      %v1030 = vunpack.c.l.b16 %v983
      %v1031 = vunpack.c.l.b16 %v984
      %v1032 = vunpack.c.l.b16 %v985
      %v1033 = vunpack.c.l.b16 %v986
      %v1034 = vunpack.c.l.b16 %v987
      %v1035 = vpack.c.b16 %v1020, %v1019
      %v1036 = vpack.c.b16 %v1022, %v1021
      %v1037 = vpack.c.b16 %v1024, %v1023
      %v1038 = vpack.c.b16 %v1026, %v1025
      %v1039 = vpack.c.b16 %v1028, %v1027
      %v1040 = vpack.c.b16 %v1030, %v1029
      %v1041 = vpack.c.b16 %v1032, %v1031
      %v1042 = vpack.c.b16 %v1034, %v1033
      %1051 = vmatprep.subr.bf16.mxu0 0
      %1052 = vmatpush1.bf16.msra.mxu0 %v1035
      %1053 = vmatprep.subr.bf16.mxu0 0
      %1054 = vmatpush1.bf16.msra.mxu0 %v1036
      %1055 = vmatprep.subr.bf16.mxu0 0
      %1056 = vmatpush1.bf16.msra.mxu0 %v1037
      %1057 = vmatprep.subr.bf16.mxu0 0
      %1058 = vmatpush1.bf16.msra.mxu0 %v1038
      %1059 = vmatprep.subr.bf16.mxu0 0
      %1060 = vmatpush1.bf16.msra.mxu0 %v1039
      %1061 = vmatprep.subr.bf16.mxu0 0
      %1062 = vmatpush1.bf16.msra.mxu0 %v1040
      %1063 = vmatprep.subr.bf16.mxu0 0
      %1064 = vmatpush1.bf16.msra.mxu0 %v1041
      %1065 = vmatprep.subr.bf16.mxu0 0
      %1066 = vmatpush1.bf16.msra.mxu0 %v1042
      %1067 = vmatprep.subr.bf16.mxu0 0
      %1068 = vmatpush1.bf16.msra.mxu0 0
      %1069 = vmatprep.subr.bf16.mxu0 0
      %1070 = vmatpush1.bf16.msra.mxu0 0
      %1071 = vmatprep.subr.bf16.mxu0 0
      %1072 = vmatpush1.bf16.msra.mxu0 0
      %1073 = vmatprep.subr.bf16.mxu0 0
      %1074 = vmatpush1.bf16.msra.mxu0 0
      %1075 = vmatprep.subr.bf16.mxu0 0
      %1076 = vmatpush1.bf16.msra.mxu0 0
      %1077 = vmatprep.subr.bf16.mxu0 0
      %1078 = vmatpush1.bf16.msra.mxu0 0
      %1079 = vmatprep.subr.bf16.mxu0 0
      %1080 = vmatpush1.bf16.msra.mxu0 0
      %1081 = vmatprep.subr.bf16.mxu0 0
      %1082 = vmatpush1.bf16.msra.mxu0 0
      %1083 = vmatprep.mubr.bf16.mxu0 0
      %1084 = vmatmul.mubr.bf16.gmra.mrb[0].mxu0 %v997
      %v1085 = vpop.f32.mrb[0].mxu0
      %v1086 = vadd.f32 0.0, %v1085
      %v1087 = vpop.f32.mrb[0].mxu0
      %v1088 = vpop.f32.mrb[0].mxu0
      %v1089 = vadd.f32 0.0, %v1088
      %v1090 = vpop.f32.mrb[0].mxu0
      %1091 = vmatprep.mubr.bf16.mxu0 0
      %1092 = vmatmul.mubr.bf16.gmra.mrb[0].mxu0 %v999
      %v1093 = vpop.f32.mrb[0].mxu0
      %v1094 = vadd.f32 0.0, %v1093
      %v1095 = vpop.f32.mrb[0].mxu0
      %v1096 = vpop.f32.mrb[0].mxu0
      %v1097 = vadd.f32 0.0, %v1096
      %v1098 = vpop.f32.mrb[0].mxu0
      %1099 = vmatprep.mubr.bf16.mxu0 0
      %1100 = vmatmul.mubr.bf16.gmra.mrb[0].mxu0 %v998
      %v1101 = vpop.f32.mrb[0].mxu0
      %v1102 = vadd.f32 0.0, %v1101
      %v1103 = vpop.f32.mrb[0].mxu0
      %v1104 = vpop.f32.mrb[0].mxu0
      %v1105 = vadd.f32 0.0, %v1104
      %v1106 = vpop.f32.mrb[0].mxu0
      %1107 = vdwg.mxu0
      %v1108 = vadd.f32 %v963, %v1086
      %v1109 = vadd.f32 %v964, %v1089
      %v1110 = vadd.f32 %v965, %v1094
      %v1111 = vadd.f32 %v966, %v1097
      %v1112 = vadd.f32 %v967, %v1102
      %v1113 = vadd.f32 %v968, %v1105
      %s1114 = scalar_lea.vmem %s1, 384
      %v1115 = vld [vmem:[%s1114] sm:$0xf]
      %v1116 = vld [vmem:[%s1114 + $0x4] sm:$0xf]
      %v1117 = vld [vmem:[%s1114 + $0x8] sm:$0xf]
      %v1118 = vld [vmem:[%s1114 + $0xc] sm:$0xf]
      %v1119 = vld [vmem:[%s1114 + $0x10] sm:$0xf]
      %v1120 = vld [vmem:[%s1114 + $0x14] sm:$0xf]
      %v1121 = vld [vmem:[%s1114 + $0x18] sm:$0xf]
      %v1122 = vld [vmem:[%s1114 + $0x1c] sm:$0xf]
      %v1123 = vld [vmem:[%s1114 + $0x20] sm:$0xf]
      %v1124 = vld [vmem:[%s1114 + $0x24] sm:$0xf]
      %v1125 = vld [vmem:[%s1114 + $0x28] sm:$0xf]
      %v1126 = vld [vmem:[%s1114 + $0x2c] sm:$0xf]
      %v1127 = vld [vmem:[%s1114 + $0x30] sm:$0xf]
      %v1128 = vld [vmem:[%s1114 + $0x34] sm:$0xf]
      %v1129 = vld [vmem:[%s1114 + $0x38] sm:$0xf]
      %v1130 = vld [vmem:[%s1114 + $0x3c] sm:$0xf]
      %vm1131 = vsmask.f32 5376
      %v1133 = vshrl.u32 %v992, 16
      %v1135 = vrot.slane %v1133, 2
      %v1136 = vshll.u32 %v992, 16
      %v1138 = vrot.slane %v1136, 3
      %v1139 = vor.u32 %v1135, %v1138
      %v1140 = vrot.slane %v838, 2
      %v1141 = vrot.slane %v841, 3
      %v1142 = vor.u32 %v1140, %v1141
      %v1143 = vsel %vm1131, %v1139, %v1142
      %v1145 = vshrl.u32 %v993, 16
      %v1147 = vrot.slane %v1145, 2
      %v1148 = vshll.u32 %v993, 16
      %v1150 = vrot.slane %v1148, 3
      %v1151 = vor.u32 %v1147, %v1150
      %v1152 = vsel %vm1131, %v1142, %v1151
      %v1172 = vunpack.c.l.b16 %v1115
      %v1173 = vunpack.c.l.b16 %v1116
      %v1174 = vunpack.c.l.b16 %v1117
      %v1175 = vunpack.c.l.b16 %v1118
      %v1176 = vunpack.c.l.b16 %v1119
      %v1177 = vunpack.c.l.b16 %v1120
      %v1178 = vunpack.c.l.b16 %v1121
      %v1179 = vunpack.c.l.b16 %v1122
      %v1180 = vunpack.c.l.b16 %v1123
      %v1181 = vunpack.c.l.b16 %v1124
      %v1182 = vunpack.c.l.b16 %v1125
      %v1183 = vunpack.c.l.b16 %v1126
      %v1184 = vunpack.c.l.b16 %v1127
      %v1185 = vunpack.c.l.b16 %v1128
      %v1186 = vunpack.c.l.b16 %v1129
      %v1187 = vunpack.c.l.b16 %v1130
      %v1188 = vpack.c.b16 %v1173, %v1172
      %v1189 = vpack.c.b16 %v1175, %v1174
      %v1190 = vpack.c.b16 %v1177, %v1176
      %v1191 = vpack.c.b16 %v1179, %v1178
      %v1192 = vpack.c.b16 %v1181, %v1180
      %v1193 = vpack.c.b16 %v1183, %v1182
      %v1194 = vpack.c.b16 %v1185, %v1184
      %v1195 = vpack.c.b16 %v1187, %v1186
      %1204 = vmatprep.subr.bf16.mxu0 0
      %1205 = vmatpush1.bf16.msra.mxu0 %v1188
      %1206 = vmatprep.subr.bf16.mxu0 0
      %1207 = vmatpush1.bf16.msra.mxu0 %v1189
      %1208 = vmatprep.subr.bf16.mxu0 0
      %1209 = vmatpush1.bf16.msra.mxu0 %v1190
      %1210 = vmatprep.subr.bf16.mxu0 0
      %1211 = vmatpush1.bf16.msra.mxu0 %v1191
      %1212 = vmatprep.subr.bf16.mxu0 0
      %1213 = vmatpush1.bf16.msra.mxu0 %v1192
      %1214 = vmatprep.subr.bf16.mxu0 0
      %1215 = vmatpush1.bf16.msra.mxu0 %v1193
      %1216 = vmatprep.subr.bf16.mxu0 0
      %1217 = vmatpush1.bf16.msra.mxu0 %v1194
      %1218 = vmatprep.subr.bf16.mxu0 0
      %1219 = vmatpush1.bf16.msra.mxu0 %v1195
      %1220 = vmatprep.subr.bf16.mxu0 0
      %1221 = vmatpush1.bf16.msra.mxu0 0
      %1222 = vmatprep.subr.bf16.mxu0 0
      %1223 = vmatpush1.bf16.msra.mxu0 0
      %1224 = vmatprep.subr.bf16.mxu0 0
      %1225 = vmatpush1.bf16.msra.mxu0 0
      %1226 = vmatprep.subr.bf16.mxu0 0
      %1227 = vmatpush1.bf16.msra.mxu0 0
      %1228 = vmatprep.subr.bf16.mxu0 0
      %1229 = vmatpush1.bf16.msra.mxu0 0
      %1230 = vmatprep.subr.bf16.mxu0 0
      %1231 = vmatpush1.bf16.msra.mxu0 0
      %1232 = vmatprep.subr.bf16.mxu0 0
      %1233 = vmatpush1.bf16.msra.mxu0 0
      %1234 = vmatprep.subr.bf16.mxu0 0
      %1235 = vmatpush1.bf16.msra.mxu0 0
      %1236 = vmatprep.mubr.bf16.mxu0 0
      %1237 = vmatmul.mubr.bf16.gmra.mrb[0].mxu0 %v1143
      %v1238 = vpop.f32.mrb[0].mxu0
      %v1239 = vadd.f32 0.0, %v1238
      %v1240 = vpop.f32.mrb[0].mxu0
      %v1241 = vpop.f32.mrb[0].mxu0
      %v1242 = vadd.f32 0.0, %v1241
      %v1243 = vpop.f32.mrb[0].mxu0
      %1244 = vmatprep.mubr.bf16.mxu0 0
      %1245 = vmatmul.mubr.bf16.gmra.mrb[0].mxu0 %v1152
      %v1246 = vpop.f32.mrb[0].mxu0
      %v1247 = vadd.f32 0.0, %v1246
      %v1248 = vpop.f32.mrb[0].mxu0
      %v1249 = vpop.f32.mrb[0].mxu0
      %v1250 = vadd.f32 0.0, %v1249
      %v1251 = vpop.f32.mrb[0].mxu0
      %1252 = vmatprep.mubr.bf16.mxu0 0
      %1253 = vmatmul.mubr.bf16.gmra.mrb[0].mxu0 %v1151
      %v1254 = vpop.f32.mrb[0].mxu0
      %v1255 = vadd.f32 0.0, %v1254
      %v1256 = vpop.f32.mrb[0].mxu0
      %v1257 = vpop.f32.mrb[0].mxu0
      %v1258 = vadd.f32 0.0, %v1257
      %v1259 = vpop.f32.mrb[0].mxu0
      %1260 = vdwg.mxu0
      %v1261 = vadd.f32 %v1108, %v1239
      %v1262 = vadd.f32 %v1109, %v1242
      %v1263 = vadd.f32 %v1110, %v1247
      %v1264 = vadd.f32 %v1111, %v1250
      %v1265 = vadd.f32 %v1112, %v1255
      %v1266 = vadd.f32 %v1113, %v1258
      %v1267 = vld [vmem:[%s192 + $0x4] sm:$0x8]
      %v1268 = vld [vmem:[%s192 + $0x18] sm:$0xf]
      %s1269 = scalar_lea.vmem %s1, 448
      %v1270 = vld [vmem:[%s1269] sm:$0xf]
      %v1271 = vld [vmem:[%s1269 + $0x4] sm:$0xf]
      %v1272 = vld [vmem:[%s1269 + $0x8] sm:$0xf]
      %v1273 = vld [vmem:[%s1269 + $0xc] sm:$0xf]
      %v1274 = vld [vmem:[%s1269 + $0x10] sm:$0xf]
      %v1275 = vld [vmem:[%s1269 + $0x14] sm:$0xf]
      %v1276 = vld [vmem:[%s1269 + $0x18] sm:$0xf]
      %v1277 = vld [vmem:[%s1269 + $0x1c] sm:$0xf]
      %v1278 = vld [vmem:[%s1269 + $0x20] sm:$0xf]
      %v1279 = vld [vmem:[%s1269 + $0x24] sm:$0xf]
      %v1280 = vld [vmem:[%s1269 + $0x28] sm:$0xf]
      %v1281 = vld [vmem:[%s1269 + $0x2c] sm:$0xf]
      %v1282 = vld [vmem:[%s1269 + $0x30] sm:$0xf]
      %v1283 = vld [vmem:[%s1269 + $0x34] sm:$0xf]
      %v1284 = vld [vmem:[%s1269 + $0x38] sm:$0xf]
      %v1285 = vld [vmem:[%s1269 + $0x3c] sm:$0xf]
      %v1288 = vunpack.c.l.b16 %v1267
      %v1289 = vunpack.c.l.b16 %v1268
      %v1290 = vpack.c.b16 %v821, %v1288
      %v1291 = vpack.c.b16 %v1289, %v824
      %vm1292 = vcmask 1044480
      %v1293 = vrot.slane %v1290, 3
      %v1294 = vrot.slane %v827, 3
      %v1295 = vsel %vm1292, %v1293, %v1294
      %v1296 = vrot.slane %v1291, 3
      %v1297 = vsel %vm1292, %v1294, %v1296
      %v1317 = vunpack.c.l.b16 %v1270
      %v1318 = vunpack.c.l.b16 %v1271
      %v1319 = vunpack.c.l.b16 %v1272
      %v1320 = vunpack.c.l.b16 %v1273
      %v1321 = vunpack.c.l.b16 %v1274
      %v1322 = vunpack.c.l.b16 %v1275
      %v1323 = vunpack.c.l.b16 %v1276
      %v1324 = vunpack.c.l.b16 %v1277
      %v1325 = vunpack.c.l.b16 %v1278
      %v1326 = vunpack.c.l.b16 %v1279
      %v1327 = vunpack.c.l.b16 %v1280
      %v1328 = vunpack.c.l.b16 %v1281
      %v1329 = vunpack.c.l.b16 %v1282
      %v1330 = vunpack.c.l.b16 %v1283
      %v1331 = vunpack.c.l.b16 %v1284
      %v1332 = vunpack.c.l.b16 %v1285
      %v1333 = vpack.c.b16 %v1318, %v1317
      %v1334 = vpack.c.b16 %v1320, %v1319
      %v1335 = vpack.c.b16 %v1322, %v1321
      %v1336 = vpack.c.b16 %v1324, %v1323
      %v1337 = vpack.c.b16 %v1326, %v1325
      %v1338 = vpack.c.b16 %v1328, %v1327
      %v1339 = vpack.c.b16 %v1330, %v1329
      %v1340 = vpack.c.b16 %v1332, %v1331
      %1349 = vmatprep.subr.bf16.mxu0 0
      %1350 = vmatpush1.bf16.msra.mxu0 %v1333
      %1351 = vmatprep.subr.bf16.mxu0 0
      %1352 = vmatpush1.bf16.msra.mxu0 %v1334
      %1353 = vmatprep.subr.bf16.mxu0 0
      %1354 = vmatpush1.bf16.msra.mxu0 %v1335
      %1355 = vmatprep.subr.bf16.mxu0 0
      %1356 = vmatpush1.bf16.msra.mxu0 %v1336
      %1357 = vmatprep.subr.bf16.mxu0 0
      %1358 = vmatpush1.bf16.msra.mxu0 %v1337
      %1359 = vmatprep.subr.bf16.mxu0 0
      %1360 = vmatpush1.bf16.msra.mxu0 %v1338
      %1361 = vmatprep.subr.bf16.mxu0 0
      %1362 = vmatpush1.bf16.msra.mxu0 %v1339
      %1363 = vmatprep.subr.bf16.mxu0 0
      %1364 = vmatpush1.bf16.msra.mxu0 %v1340
      %1365 = vmatprep.subr.bf16.mxu0 0
      %1366 = vmatpush1.bf16.msra.mxu0 0
      %1367 = vmatprep.subr.bf16.mxu0 0
      %1368 = vmatpush1.bf16.msra.mxu0 0
      %1369 = vmatprep.subr.bf16.mxu0 0
      %1370 = vmatpush1.bf16.msra.mxu0 0
      %1371 = vmatprep.subr.bf16.mxu0 0
      %1372 = vmatpush1.bf16.msra.mxu0 0
      %1373 = vmatprep.subr.bf16.mxu0 0
      %1374 = vmatpush1.bf16.msra.mxu0 0
      %1375 = vmatprep.subr.bf16.mxu0 0
      %1376 = vmatpush1.bf16.msra.mxu0 0
      %1377 = vmatprep.subr.bf16.mxu0 0
      %1378 = vmatpush1.bf16.msra.mxu0 0
      %1379 = vmatprep.subr.bf16.mxu0 0
      %1380 = vmatpush1.bf16.msra.mxu0 0
      %1381 = vmatprep.mubr.bf16.mxu0 0
      %1382 = vmatmul.mubr.bf16.gmra.mrb[0].mxu0 %v1295
      %v1383 = vpop.f32.mrb[0].mxu0
      %v1384 = vadd.f32 0.0, %v1383
      %v1385 = vpop.f32.mrb[0].mxu0
      %v1386 = vpop.f32.mrb[0].mxu0
      %v1387 = vadd.f32 0.0, %v1386
      %v1388 = vpop.f32.mrb[0].mxu0
      %1389 = vmatprep.mubr.bf16.mxu0 0
      %1390 = vmatmul.mubr.bf16.gmra.mrb[0].mxu0 %v1297
      %v1391 = vpop.f32.mrb[0].mxu0
      %v1392 = vadd.f32 0.0, %v1391
      %v1393 = vpop.f32.mrb[0].mxu0
      %v1394 = vpop.f32.mrb[0].mxu0
      %v1395 = vadd.f32 0.0, %v1394
      %v1396 = vpop.f32.mrb[0].mxu0
      %1397 = vmatprep.mubr.bf16.mxu0 0
      %1398 = vmatmul.mubr.bf16.gmra.mrb[0].mxu0 %v1296
      %v1399 = vpop.f32.mrb[0].mxu0
      %v1400 = vadd.f32 0.0, %v1399
      %v1401 = vpop.f32.mrb[0].mxu0
      %v1402 = vpop.f32.mrb[0].mxu0
      %v1403 = vadd.f32 0.0, %v1402
      %v1404 = vpop.f32.mrb[0].mxu0
      %1405 = vdwg.mxu0
      %v1406 = vadd.f32 %v1261, %v1384
      %v1407 = vadd.f32 %v1262, %v1387
      %v1408 = vadd.f32 %v1263, %v1392
      %v1409 = vadd.f32 %v1264, %v1395
      %v1410 = vadd.f32 %v1265, %v1400
      %v1411 = vadd.f32 %v1266, %v1403
      %v1412 = vld [vmem:[%s192 + $0x8] sm:$0x8]
      %v1413 = vld [vmem:[%s192 + $0xc] sm:$0xf]
      %v1414 = vld [vmem:[%s192 + $0x10] sm:$0xf]
      %v1415 = vld [vmem:[%s192 + $0x14] sm:$0xf]
      %v1416 = vld [vmem:[%s192 + $0x18] sm:$0xf]
      %v1417 = vld [vmem:[%s192 + $0x1c] sm:$0xf]
      %s1418 = scalar_lea.vmem %s1, 512
      %v1419 = vld [vmem:[%s1418] sm:$0xf]
      %v1420 = vld [vmem:[%s1418 + $0x4] sm:$0xf]
      %v1421 = vld [vmem:[%s1418 + $0x8] sm:$0xf]
      %v1422 = vld [vmem:[%s1418 + $0xc] sm:$0xf]
      %v1423 = vld [vmem:[%s1418 + $0x10] sm:$0xf]
      %v1424 = vld [vmem:[%s1418 + $0x14] sm:$0xf]
      %v1425 = vld [vmem:[%s1418 + $0x18] sm:$0xf]
      %v1426 = vld [vmem:[%s1418 + $0x1c] sm:$0xf]
      %v1427 = vld [vmem:[%s1418 + $0x20] sm:$0xf]
      %v1428 = vld [vmem:[%s1418 + $0x24] sm:$0xf]
      %v1429 = vld [vmem:[%s1418 + $0x28] sm:$0xf]
      %v1430 = vld [vmem:[%s1418 + $0x2c] sm:$0xf]
      %v1431 = vld [vmem:[%s1418 + $0x30] sm:$0xf]
      %v1432 = vld [vmem:[%s1418 + $0x34] sm:$0xf]
      %v1433 = vld [vmem:[%s1418 + $0x38] sm:$0xf]
      %v1434 = vld [vmem:[%s1418 + $0x3c] sm:$0xf]
      %v1441 = vunpack.c.l.b16 %v1412
      %v1442 = vunpack.c.l.b16 %v1413
      %v1443 = vunpack.c.l.b16 %v1414
      %v1444 = vunpack.c.l.b16 %v1415
      %v1445 = vunpack.c.l.b16 %v1416
      %v1446 = vunpack.c.l.b16 %v1417
      %v1447 = vpack.c.b16 %v1442, %v1441
      %v1448 = vpack.c.b16 %v1444, %v1443
      %v1449 = vpack.c.b16 %v1446, %v1445
      %v1450 = vrot.slane %v1447, 3
      %v1451 = vrot.slane %v1448, 3
      %v1452 = vsel %vm1292, %v1450, %v1451
      %v1453 = vrot.slane %v1449, 3
      %v1454 = vsel %vm1292, %v1451, %v1453
      %v1474 = vunpack.c.l.b16 %v1419
      %v1475 = vunpack.c.l.b16 %v1420
      %v1476 = vunpack.c.l.b16 %v1421
      %v1477 = vunpack.c.l.b16 %v1422
      %v1478 = vunpack.c.l.b16 %v1423
      %v1479 = vunpack.c.l.b16 %v1424
      %v1480 = vunpack.c.l.b16 %v1425
      %v1481 = vunpack.c.l.b16 %v1426
      %v1482 = vunpack.c.l.b16 %v1427
      %v1483 = vunpack.c.l.b16 %v1428
      %v1484 = vunpack.c.l.b16 %v1429
      %v1485 = vunpack.c.l.b16 %v1430
      %v1486 = vunpack.c.l.b16 %v1431
      %v1487 = vunpack.c.l.b16 %v1432
      %v1488 = vunpack.c.l.b16 %v1433
      %v1489 = vunpack.c.l.b16 %v1434
      %v1490 = vpack.c.b16 %v1475, %v1474
      %v1491 = vpack.c.b16 %v1477, %v1476
      %v1492 = vpack.c.b16 %v1479, %v1478
      %v1493 = vpack.c.b16 %v1481, %v1480
      %v1494 = vpack.c.b16 %v1483, %v1482
      %v1495 = vpack.c.b16 %v1485, %v1484
      %v1496 = vpack.c.b16 %v1487, %v1486
      %v1497 = vpack.c.b16 %v1489, %v1488
      %1506 = vmatprep.subr.bf16.mxu0 0
      %1507 = vmatpush1.bf16.msra.mxu0 %v1490
      %1508 = vmatprep.subr.bf16.mxu0 0
      %1509 = vmatpush1.bf16.msra.mxu0 %v1491
      %1510 = vmatprep.subr.bf16.mxu0 0
      %1511 = vmatpush1.bf16.msra.mxu0 %v1492
      %1512 = vmatprep.subr.bf16.mxu0 0
      %1513 = vmatpush1.bf16.msra.mxu0 %v1493
      %1514 = vmatprep.subr.bf16.mxu0 0
      %1515 = vmatpush1.bf16.msra.mxu0 %v1494
      %1516 = vmatprep.subr.bf16.mxu0 0
      %1517 = vmatpush1.bf16.msra.mxu0 %v1495
      %1518 = vmatprep.subr.bf16.mxu0 0
      %1519 = vmatpush1.bf16.msra.mxu0 %v1496
      %1520 = vmatprep.subr.bf16.mxu0 0
      %1521 = vmatpush1.bf16.msra.mxu0 %v1497
      %1522 = vmatprep.subr.bf16.mxu0 0
      %1523 = vmatpush1.bf16.msra.mxu0 0
      %1524 = vmatprep.subr.bf16.mxu0 0
      %1525 = vmatpush1.bf16.msra.mxu0 0
      %1526 = vmatprep.subr.bf16.mxu0 0
      %1527 = vmatpush1.bf16.msra.mxu0 0
      %1528 = vmatprep.subr.bf16.mxu0 0
      %1529 = vmatpush1.bf16.msra.mxu0 0
      %1530 = vmatprep.subr.bf16.mxu0 0
      %1531 = vmatpush1.bf16.msra.mxu0 0
      %1532 = vmatprep.subr.bf16.mxu0 0
      %1533 = vmatpush1.bf16.msra.mxu0 0
      %1534 = vmatprep.subr.bf16.mxu0 0
      %1535 = vmatpush1.bf16.msra.mxu0 0
      %1536 = vmatprep.subr.bf16.mxu0 0
      %1537 = vmatpush1.bf16.msra.mxu0 0
      %1538 = vmatprep.mubr.bf16.mxu0 0
      %1539 = vmatmul.mubr.bf16.gmra.mrb[0].mxu0 %v1452
      %v1540 = vpop.f32.mrb[0].mxu0
      %v1541 = vadd.f32 0.0, %v1540
      %v1542 = vpop.f32.mrb[0].mxu0
      %v1543 = vpop.f32.mrb[0].mxu0
      %v1544 = vadd.f32 0.0, %v1543
      %v1545 = vpop.f32.mrb[0].mxu0
      %1546 = vmatprep.mubr.bf16.mxu0 0
      %1547 = vmatmul.mubr.bf16.gmra.mrb[0].mxu0 %v1454
      %v1548 = vpop.f32.mrb[0].mxu0
      %v1549 = vadd.f32 0.0, %v1548
      %v1550 = vpop.f32.mrb[0].mxu0
      %v1551 = vpop.f32.mrb[0].mxu0
      %v1552 = vadd.f32 0.0, %v1551
      %v1553 = vpop.f32.mrb[0].mxu0
      %1554 = vmatprep.mubr.bf16.mxu0 0
      %1555 = vmatmul.mubr.bf16.gmra.mrb[0].mxu0 %v1453
      %v1556 = vpop.f32.mrb[0].mxu0
      %v1557 = vadd.f32 0.0, %v1556
      %v1558 = vpop.f32.mrb[0].mxu0
      %v1559 = vpop.f32.mrb[0].mxu0
      %v1560 = vadd.f32 0.0, %v1559
      %v1561 = vpop.f32.mrb[0].mxu0
      %1562 = vdwg.mxu0
      %v1563 = vadd.f32 %v1406, %v1541
      %v1564 = vadd.f32 %v1407, %v1544
      %v1565 = vadd.f32 %v1408, %v1549
      %v1566 = vadd.f32 %v1409, %v1552
      %v1567 = vadd.f32 %v1410, %v1557
      %v1568 = vadd.f32 %v1411, %v1560
      %s1569 = scalar_lea.vmem %s1, 576
      %v1570 = vld [vmem:[%s1569] sm:$0xf]
      %v1571 = vld [vmem:[%s1569 + $0x4] sm:$0xf]
      %v1572 = vld [vmem:[%s1569 + $0x8] sm:$0xf]
      %v1573 = vld [vmem:[%s1569 + $0xc] sm:$0xf]
      %v1574 = vld [vmem:[%s1569 + $0x10] sm:$0xf]
      %v1575 = vld [vmem:[%s1569 + $0x14] sm:$0xf]
      %v1576 = vld [vmem:[%s1569 + $0x18] sm:$0xf]
      %v1577 = vld [vmem:[%s1569 + $0x1c] sm:$0xf]
      %v1578 = vld [vmem:[%s1569 + $0x20] sm:$0xf]
      %v1579 = vld [vmem:[%s1569 + $0x24] sm:$0xf]
      %v1580 = vld [vmem:[%s1569 + $0x28] sm:$0xf]
      %v1581 = vld [vmem:[%s1569 + $0x2c] sm:$0xf]
      %v1582 = vld [vmem:[%s1569 + $0x30] sm:$0xf]
      %v1583 = vld [vmem:[%s1569 + $0x34] sm:$0xf]
      %v1584 = vld [vmem:[%s1569 + $0x38] sm:$0xf]
      %v1585 = vld [vmem:[%s1569 + $0x3c] sm:$0xf]
      %vm1586 = vsmask.f32 4352
      %v1588 = vshrl.u32 %v1447, 16
      %v1590 = vrot.slane %v1588, 3
      %v1591 = vshll.u32 %v1447, 16
      %v1593 = vrot.slane %v1591, 4
      %v1594 = vor.u32 %v1590, %v1593
      %v1596 = vshrl.u32 %v1448, 16
      %v1598 = vrot.slane %v1596, 3
      %v1599 = vshll.u32 %v1448, 16
      %v1601 = vrot.slane %v1599, 4
      %v1602 = vor.u32 %v1598, %v1601
      %v1603 = vsel %vm1586, %v1594, %v1602
      %v1605 = vshrl.u32 %v1449, 16
      %v1607 = vrot.slane %v1605, 3
      %v1608 = vshll.u32 %v1449, 16
      %v1610 = vrot.slane %v1608, 4
      %v1611 = vor.u32 %v1607, %v1610
      %v1612 = vsel %vm1586, %v1602, %v1611
      %v1632 = vunpack.c.l.b16 %v1570
      %v1633 = vunpack.c.l.b16 %v1571
      %v1634 = vunpack.c.l.b16 %v1572
      %v1635 = vunpack.c.l.b16 %v1573
      %v1636 = vunpack.c.l.b16 %v1574
      %v1637 = vunpack.c.l.b16 %v1575
      %v1638 = vunpack.c.l.b16 %v1576
      %v1639 = vunpack.c.l.b16 %v1577
      %v1640 = vunpack.c.l.b16 %v1578
      %v1641 = vunpack.c.l.b16 %v1579
      %v1642 = vunpack.c.l.b16 %v1580
      %v1643 = vunpack.c.l.b16 %v1581
      %v1644 = vunpack.c.l.b16 %v1582
      %v1645 = vunpack.c.l.b16 %v1583
      %v1646 = vunpack.c.l.b16 %v1584
      %v1647 = vunpack.c.l.b16 %v1585
      %v1648 = vpack.c.b16 %v1633, %v1632
      %v1649 = vpack.c.b16 %v1635, %v1634
      %v1650 = vpack.c.b16 %v1637, %v1636
      %v1651 = vpack.c.b16 %v1639, %v1638
      %v1652 = vpack.c.b16 %v1641, %v1640
      %v1653 = vpack.c.b16 %v1643, %v1642
      %v1654 = vpack.c.b16 %v1645, %v1644
      %v1655 = vpack.c.b16 %v1647, %v1646
      %1664 = vmatprep.subr.bf16.mxu0 0
      %1665 = vmatpush1.bf16.msra.mxu0 %v1648
      %1666 = vmatprep.subr.bf16.mxu0 0
      %1667 = vmatpush1.bf16.msra.mxu0 %v1649
      %1668 = vmatprep.subr.bf16.mxu0 0
      %1669 = vmatpush1.bf16.msra.mxu0 %v1650
      %1670 = vmatprep.subr.bf16.mxu0 0
      %1671 = vmatpush1.bf16.msra.mxu0 %v1651
      %1672 = vmatprep.subr.bf16.mxu0 0
      %1673 = vmatpush1.bf16.msra.mxu0 %v1652
      %1674 = vmatprep.subr.bf16.mxu0 0
      %1675 = vmatpush1.bf16.msra.mxu0 %v1653
      %1676 = vmatprep.subr.bf16.mxu0 0
      %1677 = vmatpush1.bf16.msra.mxu0 %v1654
      %1678 = vmatprep.subr.bf16.mxu0 0
      %1679 = vmatpush1.bf16.msra.mxu0 %v1655
      %1680 = vmatprep.subr.bf16.mxu0 0
      %1681 = vmatpush1.bf16.msra.mxu0 0
      %1682 = vmatprep.subr.bf16.mxu0 0
      %1683 = vmatpush1.bf16.msra.mxu0 0
      %1684 = vmatprep.subr.bf16.mxu0 0
      %1685 = vmatpush1.bf16.msra.mxu0 0
      %1686 = vmatprep.subr.bf16.mxu0 0
      %1687 = vmatpush1.bf16.msra.mxu0 0
      %1688 = vmatprep.subr.bf16.mxu0 0
      %1689 = vmatpush1.bf16.msra.mxu0 0
      %1690 = vmatprep.subr.bf16.mxu0 0
      %1691 = vmatpush1.bf16.msra.mxu0 0
      %1692 = vmatprep.subr.bf16.mxu0 0
      %1693 = vmatpush1.bf16.msra.mxu0 0
      %1694 = vmatprep.subr.bf16.mxu0 0
      %1695 = vmatpush1.bf16.msra.mxu0 0
      %1696 = vmatprep.mubr.bf16.mxu0 0
      %1697 = vmatmul.mubr.bf16.gmra.mrb[0].mxu0 %v1603
      %v1698 = vpop.f32.mrb[0].mxu0
      %v1699 = vadd.f32 0.0, %v1698
      %v1700 = vpop.f32.mrb[0].mxu0
      %v1701 = vpop.f32.mrb[0].mxu0
      %v1702 = vadd.f32 0.0, %v1701
      %v1703 = vpop.f32.mrb[0].mxu0
      %1704 = vmatprep.mubr.bf16.mxu0 0
      %1705 = vmatmul.mubr.bf16.gmra.mrb[0].mxu0 %v1612
      %v1706 = vpop.f32.mrb[0].mxu0
      %v1707 = vadd.f32 0.0, %v1706
      %v1708 = vpop.f32.mrb[0].mxu0
      %v1709 = vpop.f32.mrb[0].mxu0
      %v1710 = vadd.f32 0.0, %v1709
      %v1711 = vpop.f32.mrb[0].mxu0
      %1712 = vmatprep.mubr.bf16.mxu0 0
      %1713 = vmatmul.mubr.bf16.gmra.mrb[0].mxu0 %v1611
      %v1714 = vpop.f32.mrb[0].mxu0
      %v1715 = vadd.f32 0.0, %v1714
      %v1716 = vpop.f32.mrb[0].mxu0
      %v1717 = vpop.f32.mrb[0].mxu0
      %v1718 = vadd.f32 0.0, %v1717
      %v1719 = vpop.f32.mrb[0].mxu0
      %1720 = vdwg.mxu0
      %v1721 = vadd.f32 %v1563, %v1699
      %v1722 = vadd.f32 %v1564, %v1702
      %v1723 = vadd.f32 %v1565, %v1707
      %v1724 = vadd.f32 %v1566, %v1710
      %v1725 = vadd.f32 %v1567, %v1715
      %v1726 = vadd.f32 %v1568, %v1718
      %v1727 = vld [vmem:[%s192 + $0xc] sm:$0xf]
      %v1728 = vld [vmem:[%s192 + $0x10] sm:$0xf]
      %v1729 = vld [vmem:[%s192 + $0x14] sm:$0xf]
      %v1730 = vld [vmem:[%s192 + $0x18] sm:$0xf]
      %v1731 = vld [vmem:[%s192 + $0x1c] sm:$0xf]
      %v1732 = vld [vmem:[%s192 + $0x20] sm:$0x1]
      %s1733 = scalar_lea.vmem %s1, 640
      %v1734 = vld [vmem:[%s1733] sm:$0xf]
      %v1735 = vld [vmem:[%s1733 + $0x4] sm:$0xf]
      %v1736 = vld [vmem:[%s1733 + $0x8] sm:$0xf]
      %v1737 = vld [vmem:[%s1733 + $0xc] sm:$0xf]
      %v1738 = vld [vmem:[%s1733 + $0x10] sm:$0xf]
      %v1739 = vld [vmem:[%s1733 + $0x14] sm:$0xf]
      %v1740 = vld [vmem:[%s1733 + $0x18] sm:$0xf]
      %v1741 = vld [vmem:[%s1733 + $0x1c] sm:$0xf]
      %v1742 = vld [vmem:[%s1733 + $0x20] sm:$0xf]
      %v1743 = vld [vmem:[%s1733 + $0x24] sm:$0xf]
      %v1744 = vld [vmem:[%s1733 + $0x28] sm:$0xf]
      %v1745 = vld [vmem:[%s1733 + $0x2c] sm:$0xf]
      %v1746 = vld [vmem:[%s1733 + $0x30] sm:$0xf]
      %v1747 = vld [vmem:[%s1733 + $0x34] sm:$0xf]
      %v1748 = vld [vmem:[%s1733 + $0x38] sm:$0xf]
      %v1749 = vld [vmem:[%s1733 + $0x3c] sm:$0xf]
      %v1756 = vunpack.c.l.b16 %v1727
      %v1757 = vunpack.c.l.b16 %v1728
      %v1758 = vunpack.c.l.b16 %v1729
      %v1759 = vunpack.c.l.b16 %v1730
      %v1760 = vunpack.c.l.b16 %v1731
      %v1761 = vunpack.c.l.b16 %v1732
      %v1762 = vpack.c.b16 %v1757, %v1756
      %v1763 = vpack.c.b16 %v1759, %v1758
      %v1764 = vpack.c.b16 %v1761, %v1760
      %v1784 = vunpack.c.l.b16 %v1734
      %v1785 = vunpack.c.l.b16 %v1735
      %v1786 = vunpack.c.l.b16 %v1736
      %v1787 = vunpack.c.l.b16 %v1737
      %v1788 = vunpack.c.l.b16 %v1738
      %v1789 = vunpack.c.l.b16 %v1739
      %v1790 = vunpack.c.l.b16 %v1740
      %v1791 = vunpack.c.l.b16 %v1741
      %v1792 = vunpack.c.l.b16 %v1742
      %v1793 = vunpack.c.l.b16 %v1743
      %v1794 = vunpack.c.l.b16 %v1744
      %v1795 = vunpack.c.l.b16 %v1745
      %v1796 = vunpack.c.l.b16 %v1746
      %v1797 = vunpack.c.l.b16 %v1747
      %v1798 = vunpack.c.l.b16 %v1748
      %v1799 = vunpack.c.l.b16 %v1749
      %v1800 = vpack.c.b16 %v1785, %v1784
      %v1801 = vpack.c.b16 %v1787, %v1786
      %v1802 = vpack.c.b16 %v1789, %v1788
      %v1803 = vpack.c.b16 %v1791, %v1790
      %v1804 = vpack.c.b16 %v1793, %v1792
      %v1805 = vpack.c.b16 %v1795, %v1794
      %v1806 = vpack.c.b16 %v1797, %v1796
      %v1807 = vpack.c.b16 %v1799, %v1798
      %1816 = vmatprep.subr.bf16.mxu0 0
      %1817 = vmatpush1.bf16.msra.mxu0 %v1800
      %1818 = vmatprep.subr.bf16.mxu0 0
      %1819 = vmatpush1.bf16.msra.mxu0 %v1801
      %1820 = vmatprep.subr.bf16.mxu0 0
      %1821 = vmatpush1.bf16.msra.mxu0 %v1802
      %1822 = vmatprep.subr.bf16.mxu0 0
      %1823 = vmatpush1.bf16.msra.mxu0 %v1803
      %1824 = vmatprep.subr.bf16.mxu0 0
      %1825 = vmatpush1.bf16.msra.mxu0 %v1804
      %1826 = vmatprep.subr.bf16.mxu0 0
      %1827 = vmatpush1.bf16.msra.mxu0 %v1805
      %1828 = vmatprep.subr.bf16.mxu0 0
      %1829 = vmatpush1.bf16.msra.mxu0 %v1806
      %1830 = vmatprep.subr.bf16.mxu0 0
      %1831 = vmatpush1.bf16.msra.mxu0 %v1807
      %1832 = vmatprep.subr.bf16.mxu0 0
      %1833 = vmatpush1.bf16.msra.mxu0 0
      %1834 = vmatprep.subr.bf16.mxu0 0
      %1835 = vmatpush1.bf16.msra.mxu0 0
      %1836 = vmatprep.subr.bf16.mxu0 0
      %1837 = vmatpush1.bf16.msra.mxu0 0
      %1838 = vmatprep.subr.bf16.mxu0 0
      %1839 = vmatpush1.bf16.msra.mxu0 0
      %1840 = vmatprep.subr.bf16.mxu0 0
      %1841 = vmatpush1.bf16.msra.mxu0 0
      %1842 = vmatprep.subr.bf16.mxu0 0
      %1843 = vmatpush1.bf16.msra.mxu0 0
      %1844 = vmatprep.subr.bf16.mxu0 0
      %1845 = vmatpush1.bf16.msra.mxu0 0
      %1846 = vmatprep.subr.bf16.mxu0 0
      %1847 = vmatpush1.bf16.msra.mxu0 0
      %1848 = vmatprep.mubr.bf16.mxu0 0
      %1849 = vmatmul.mubr.bf16.gmra.mrb[0].mxu0 %v1762
      %v1850 = vpop.f32.mrb[0].mxu0
      %v1851 = vadd.f32 0.0, %v1850
      %v1852 = vpop.f32.mrb[0].mxu0
      %v1853 = vpop.f32.mrb[0].mxu0
      %v1854 = vadd.f32 0.0, %v1853
      %v1855 = vpop.f32.mrb[0].mxu0
      %1856 = vmatprep.mubr.bf16.mxu0 0
      %1857 = vmatmul.mubr.bf16.gmra.mrb[0].mxu0 %v1763
      %v1858 = vpop.f32.mrb[0].mxu0
      %v1859 = vadd.f32 0.0, %v1858
      %v1860 = vpop.f32.mrb[0].mxu0
      %v1861 = vpop.f32.mrb[0].mxu0
      %v1862 = vadd.f32 0.0, %v1861
      %v1863 = vpop.f32.mrb[0].mxu0
      %1864 = vmatprep.mubr.bf16.mxu0 0
      %1865 = vmatmul.mubr.bf16.gmra.mrb[0].mxu0 %v1764
      %v1866 = vpop.f32.mrb[0].mxu0
      %v1867 = vadd.f32 0.0, %v1866
      %v1868 = vpop.f32.mrb[0].mxu0
      %v1869 = vpop.f32.mrb[0].mxu0
      %v1870 = vadd.f32 0.0, %v1869
      %v1871 = vpop.f32.mrb[0].mxu0
      %1872 = vdwg.mxu0
      %v1873 = vadd.f32 %v1721, %v1851
      %v1874 = vadd.f32 %v1722, %v1854
      %v1875 = vadd.f32 %v1723, %v1859
      %v1876 = vadd.f32 %v1724, %v1862
      %v1877 = vadd.f32 %v1725, %v1867
      %v1878 = vadd.f32 %v1726, %v1870
      %s1879 = scalar_lea.vmem %s1, 704
      %v1880 = vld [vmem:[%s1879] sm:$0xf]
      %v1881 = vld [vmem:[%s1879 + $0x4] sm:$0xf]
      %v1882 = vld [vmem:[%s1879 + $0x8] sm:$0xf]
      %v1883 = vld [vmem:[%s1879 + $0xc] sm:$0xf]
      %v1884 = vld [vmem:[%s1879 + $0x10] sm:$0xf]
      %v1885 = vld [vmem:[%s1879 + $0x14] sm:$0xf]
      %v1886 = vld [vmem:[%s1879 + $0x18] sm:$0xf]
      %v1887 = vld [vmem:[%s1879 + $0x1c] sm:$0xf]
      %v1888 = vld [vmem:[%s1879 + $0x20] sm:$0xf]
      %v1889 = vld [vmem:[%s1879 + $0x24] sm:$0xf]
      %v1890 = vld [vmem:[%s1879 + $0x28] sm:$0xf]
      %v1891 = vld [vmem:[%s1879 + $0x2c] sm:$0xf]
      %v1892 = vld [vmem:[%s1879 + $0x30] sm:$0xf]
      %v1893 = vld [vmem:[%s1879 + $0x34] sm:$0xf]
      %v1894 = vld [vmem:[%s1879 + $0x38] sm:$0xf]
      %v1895 = vld [vmem:[%s1879 + $0x3c] sm:$0xf]
      %v1897 = vshrl.u32 %v1762, 16
      %v1899 = vshll.u32 %v1762, 16
      %v1901 = vrot.slane %v1899, 1
      %v1902 = vor.u32 %v1897, %v1901
      %v1904 = vshll.u32 %v1763, 16
      %v1906 = vrot.slane %v1904, 1
      %v1907 = vsel %vm253, %v1902, %v1906
      %v1908 = vshrl.u32 %v1763, 16
      %v1910 = vor.u32 %v1908, %v1906
      %v1912 = vshll.u32 %v1764, 16
      %v1914 = vrot.slane %v1912, 1
      %v1915 = vsel %vm253, %v1910, %v1914
      %v1916 = vshrl.u32 %v1764, 16
      %v1918 = vor.u32 %v1916, %v1914
      %v1938 = vunpack.c.l.b16 %v1880
      %v1939 = vunpack.c.l.b16 %v1881
      %v1940 = vunpack.c.l.b16 %v1882
      %v1941 = vunpack.c.l.b16 %v1883
      %v1942 = vunpack.c.l.b16 %v1884
      %v1943 = vunpack.c.l.b16 %v1885
      %v1944 = vunpack.c.l.b16 %v1886
      %v1945 = vunpack.c.l.b16 %v1887
      %v1946 = vunpack.c.l.b16 %v1888
      %v1947 = vunpack.c.l.b16 %v1889
      %v1948 = vunpack.c.l.b16 %v1890
      %v1949 = vunpack.c.l.b16 %v1891
      %v1950 = vunpack.c.l.b16 %v1892
      %v1951 = vunpack.c.l.b16 %v1893
      %v1952 = vunpack.c.l.b16 %v1894
      %v1953 = vunpack.c.l.b16 %v1895
      %v1954 = vpack.c.b16 %v1939, %v1938
      %v1955 = vpack.c.b16 %v1941, %v1940
      %v1956 = vpack.c.b16 %v1943, %v1942
      %v1957 = vpack.c.b16 %v1945, %v1944
      %v1958 = vpack.c.b16 %v1947, %v1946
      %v1959 = vpack.c.b16 %v1949, %v1948
      %v1960 = vpack.c.b16 %v1951, %v1950
      %v1961 = vpack.c.b16 %v1953, %v1952
      %1970 = vmatprep.subr.bf16.mxu0 0
      %1971 = vmatpush1.bf16.msra.mxu0 %v1954
      %1972 = vmatprep.subr.bf16.mxu0 0
      %1973 = vmatpush1.bf16.msra.mxu0 %v1955
      %1974 = vmatprep.subr.bf16.mxu0 0
      %1975 = vmatpush1.bf16.msra.mxu0 %v1956
      %1976 = vmatprep.subr.bf16.mxu0 0
      %1977 = vmatpush1.bf16.msra.mxu0 %v1957
      %1978 = vmatprep.subr.bf16.mxu0 0
      %1979 = vmatpush1.bf16.msra.mxu0 %v1958
      %1980 = vmatprep.subr.bf16.mxu0 0
      %1981 = vmatpush1.bf16.msra.mxu0 %v1959
      %1982 = vmatprep.subr.bf16.mxu0 0
      %1983 = vmatpush1.bf16.msra.mxu0 %v1960
      %1984 = vmatprep.subr.bf16.mxu0 0
      %1985 = vmatpush1.bf16.msra.mxu0 %v1961
      %1986 = vmatprep.subr.bf16.mxu0 0
      %1987 = vmatpush1.bf16.msra.mxu0 0
      %1988 = vmatprep.subr.bf16.mxu0 0
      %1989 = vmatpush1.bf16.msra.mxu0 0
      %1990 = vmatprep.subr.bf16.mxu0 0
      %1991 = vmatpush1.bf16.msra.mxu0 0
      %1992 = vmatprep.subr.bf16.mxu0 0
      %1993 = vmatpush1.bf16.msra.mxu0 0
      %1994 = vmatprep.subr.bf16.mxu0 0
      %1995 = vmatpush1.bf16.msra.mxu0 0
      %1996 = vmatprep.subr.bf16.mxu0 0
      %1997 = vmatpush1.bf16.msra.mxu0 0
      %1998 = vmatprep.subr.bf16.mxu0 0
      %1999 = vmatpush1.bf16.msra.mxu0 0
      %2000 = vmatprep.subr.bf16.mxu0 0
      %2001 = vmatpush1.bf16.msra.mxu0 0
      %2002 = vmatprep.mubr.bf16.mxu0 0
      %2003 = vmatmul.mubr.bf16.gmra.mrb[0].mxu0 %v1907
      %v2004 = vpop.f32.mrb[0].mxu0
      %v2005 = vadd.f32 0.0, %v2004
      %v2006 = vpop.f32.mrb[0].mxu0
      %v2007 = vpop.f32.mrb[0].mxu0
      %v2008 = vadd.f32 0.0, %v2007
      %v2009 = vpop.f32.mrb[0].mxu0
      %2010 = vmatprep.mubr.bf16.mxu0 0
      %2011 = vmatmul.mubr.bf16.gmra.mrb[0].mxu0 %v1915
      %v2012 = vpop.f32.mrb[0].mxu0
      %v2013 = vadd.f32 0.0, %v2012
      %v2014 = vpop.f32.mrb[0].mxu0
      %v2015 = vpop.f32.mrb[0].mxu0
      %v2016 = vadd.f32 0.0, %v2015
      %v2017 = vpop.f32.mrb[0].mxu0
      %2018 = vmatprep.mubr.bf16.mxu0 0
      %2019 = vmatmul.mubr.bf16.gmra.mrb[0].mxu0 %v1918
      %v2020 = vpop.f32.mrb[0].mxu0
      %v2021 = vadd.f32 0.0, %v2020
      %v2022 = vpop.f32.mrb[0].mxu0
      %v2023 = vpop.f32.mrb[0].mxu0
      %v2024 = vadd.f32 0.0, %v2023
      %v2025 = vpop.f32.mrb[0].mxu0
      %2026 = vdwg.mxu0
      %v2027 = vadd.f32 %v1873, %v2005
      %v2028 = vadd.f32 %v1874, %v2008
      %v2029 = vadd.f32 %v1875, %v2013
      %v2030 = vadd.f32 %v1876, %v2016
      %v2031 = vadd.f32 %v1877, %v2021
      %v2032 = vadd.f32 %v1878, %v2024
      %v2033 = vld [vmem:[%s192 + $0x10] sm:$0xf]
      %v2034 = vld [vmem:[%s192 + $0x14] sm:$0xf]
      %v2035 = vld [vmem:[%s192 + $0x18] sm:$0xf]
      %v2036 = vld [vmem:[%s192 + $0x1c] sm:$0xf]
      %v2037 = vld [vmem:[%s192 + $0x20] sm:$0xf]
      %v2038 = vld [vmem:[%s192 + $0x24] sm:$0x1]
      %s2039 = scalar_lea.vmem %s1, 768
      %v2040 = vld [vmem:[%s2039] sm:$0xf]
      %v2041 = vld [vmem:[%s2039 + $0x4] sm:$0xf]
      %v2042 = vld [vmem:[%s2039 + $0x8] sm:$0xf]
      %v2043 = vld [vmem:[%s2039 + $0xc] sm:$0xf]
      %v2044 = vld [vmem:[%s2039 + $0x10] sm:$0xf]
      %v2045 = vld [vmem:[%s2039 + $0x14] sm:$0xf]
      %v2046 = vld [vmem:[%s2039 + $0x18] sm:$0xf]
      %v2047 = vld [vmem:[%s2039 + $0x1c] sm:$0xf]
      %v2048 = vld [vmem:[%s2039 + $0x20] sm:$0xf]
      %v2049 = vld [vmem:[%s2039 + $0x24] sm:$0xf]
      %v2050 = vld [vmem:[%s2039 + $0x28] sm:$0xf]
      %v2051 = vld [vmem:[%s2039 + $0x2c] sm:$0xf]
      %v2052 = vld [vmem:[%s2039 + $0x30] sm:$0xf]
      %v2053 = vld [vmem:[%s2039 + $0x34] sm:$0xf]
      %v2054 = vld [vmem:[%s2039 + $0x38] sm:$0xf]
      %v2055 = vld [vmem:[%s2039 + $0x3c] sm:$0xf]
      %v2062 = vunpack.c.l.b16 %v2033
      %v2063 = vunpack.c.l.b16 %v2034
      %v2064 = vunpack.c.l.b16 %v2035
      %v2065 = vunpack.c.l.b16 %v2036
      %v2066 = vunpack.c.l.b16 %v2037
      %v2067 = vunpack.c.l.b16 %v2038
      %v2068 = vpack.c.b16 %v2063, %v2062
      %v2069 = vpack.c.b16 %v2065, %v2064
      %v2070 = vpack.c.b16 %v2067, %v2066
      %v2072 = vshrl.u32 %v2068, 16
      %v2074 = vshll.u32 %v2068, 16
      %v2076 = vrot.slane %v2074, 1
      %v2077 = vor.u32 %v2072, %v2076
      %v2079 = vshll.u32 %v2069, 16
      %v2081 = vrot.slane %v2079, 1
      %v2082 = vsel %vm253, %v2077, %v2081
      %v2083 = vshrl.u32 %v2069, 16
      %v2085 = vor.u32 %v2083, %v2081
      %v2087 = vshll.u32 %v2070, 16
      %v2089 = vrot.slane %v2087, 1
      %v2090 = vsel %vm253, %v2085, %v2089
      %v2091 = vshrl.u32 %v2070, 16
      %v2093 = vor.u32 %v2091, %v2089
      %v2113 = vunpack.c.l.b16 %v2040
      %v2114 = vunpack.c.l.b16 %v2041
      %v2115 = vunpack.c.l.b16 %v2042
      %v2116 = vunpack.c.l.b16 %v2043
      %v2117 = vunpack.c.l.b16 %v2044
      %v2118 = vunpack.c.l.b16 %v2045
      %v2119 = vunpack.c.l.b16 %v2046
      %v2120 = vunpack.c.l.b16 %v2047
      %v2121 = vunpack.c.l.b16 %v2048
      %v2122 = vunpack.c.l.b16 %v2049
      %v2123 = vunpack.c.l.b16 %v2050
      %v2124 = vunpack.c.l.b16 %v2051
      %v2125 = vunpack.c.l.b16 %v2052
      %v2126 = vunpack.c.l.b16 %v2053
      %v2127 = vunpack.c.l.b16 %v2054
      %v2128 = vunpack.c.l.b16 %v2055
      %v2129 = vpack.c.b16 %v2114, %v2113
      %v2130 = vpack.c.b16 %v2116, %v2115
      %v2131 = vpack.c.b16 %v2118, %v2117
      %v2132 = vpack.c.b16 %v2120, %v2119
      %v2133 = vpack.c.b16 %v2122, %v2121
      %v2134 = vpack.c.b16 %v2124, %v2123
      %v2135 = vpack.c.b16 %v2126, %v2125
      %v2136 = vpack.c.b16 %v2128, %v2127
      %2145 = vmatprep.subr.bf16.mxu0 0
      %2146 = vmatpush1.bf16.msra.mxu0 %v2129
      %2147 = vmatprep.subr.bf16.mxu0 0
      %2148 = vmatpush1.bf16.msra.mxu0 %v2130
      %2149 = vmatprep.subr.bf16.mxu0 0
      %2150 = vmatpush1.bf16.msra.mxu0 %v2131
      %2151 = vmatprep.subr.bf16.mxu0 0
      %2152 = vmatpush1.bf16.msra.mxu0 %v2132
      %2153 = vmatprep.subr.bf16.mxu0 0
      %2154 = vmatpush1.bf16.msra.mxu0 %v2133
      %2155 = vmatprep.subr.bf16.mxu0 0
      %2156 = vmatpush1.bf16.msra.mxu0 %v2134
      %2157 = vmatprep.subr.bf16.mxu0 0
      %2158 = vmatpush1.bf16.msra.mxu0 %v2135
      %2159 = vmatprep.subr.bf16.mxu0 0
      %2160 = vmatpush1.bf16.msra.mxu0 %v2136
      %2161 = vmatprep.subr.bf16.mxu0 0
      %2162 = vmatpush1.bf16.msra.mxu0 0
      %2163 = vmatprep.subr.bf16.mxu0 0
      %2164 = vmatpush1.bf16.msra.mxu0 0
      %2165 = vmatprep.subr.bf16.mxu0 0
      %2166 = vmatpush1.bf16.msra.mxu0 0
      %2167 = vmatprep.subr.bf16.mxu0 0
      %2168 = vmatpush1.bf16.msra.mxu0 0
      %2169 = vmatprep.subr.bf16.mxu0 0
      %2170 = vmatpush1.bf16.msra.mxu0 0
      %2171 = vmatprep.subr.bf16.mxu0 0
      %2172 = vmatpush1.bf16.msra.mxu0 0
      %2173 = vmatprep.subr.bf16.mxu0 0
      %2174 = vmatpush1.bf16.msra.mxu0 0
      %2175 = vmatprep.subr.bf16.mxu0 0
      %2176 = vmatpush1.bf16.msra.mxu0 0
      %2177 = vmatprep.mubr.bf16.mxu0 0
      %2178 = vmatmul.mubr.bf16.gmra.mrb[0].mxu0 %v2082
      %v2179 = vpop.f32.mrb[0].mxu0
      %v2180 = vadd.f32 0.0, %v2179
      %v2181 = vpop.f32.mrb[0].mxu0
      %v2182 = vpop.f32.mrb[0].mxu0
      %v2183 = vadd.f32 0.0, %v2182
      %v2184 = vpop.f32.mrb[0].mxu0
      %2185 = vmatprep.mubr.bf16.mxu0 0
      %2186 = vmatmul.mubr.bf16.gmra.mrb[0].mxu0 %v2090
      %v2187 = vpop.f32.mrb[0].mxu0
      %v2188 = vadd.f32 0.0, %v2187
      %v2189 = vpop.f32.mrb[0].mxu0
      %v2190 = vpop.f32.mrb[0].mxu0
      %v2191 = vadd.f32 0.0, %v2190
      %v2192 = vpop.f32.mrb[0].mxu0
      %2193 = vmatprep.mubr.bf16.mxu0 0
      %2194 = vmatmul.mubr.bf16.gmra.mrb[0].mxu0 %v2093
      %v2195 = vpop.f32.mrb[0].mxu0
      %v2196 = vadd.f32 0.0, %v2195
      %v2197 = vpop.f32.mrb[0].mxu0
      %v2198 = vpop.f32.mrb[0].mxu0
      %v2199 = vadd.f32 0.0, %v2198
      %v2200 = vpop.f32.mrb[0].mxu0
      %2201 = vdwg.mxu0
      %v2202 = vadd.f32 %v2027, %v2180
      %v2203 = vadd.f32 %v2028, %v2183
      %v2204 = vadd.f32 %v2029, %v2188
      %v2205 = vadd.f32 %v2030, %v2191
      %v2206 = vadd.f32 %v2031, %v2196
      %v2207 = vadd.f32 %v2032, %v2199
      %v2208 = vld [vmem:[%s192 + $0x10] sm:$0xe]
      %v2209 = vld [vmem:[%s192 + $0x24] sm:$0x3]
      %s2210 = scalar_lea.vmem %s1, 832
      %v2211 = vld [vmem:[%s2210] sm:$0xf]
      %v2212 = vld [vmem:[%s2210 + $0x4] sm:$0xf]
      %v2213 = vld [vmem:[%s2210 + $0x8] sm:$0xf]
      %v2214 = vld [vmem:[%s2210 + $0xc] sm:$0xf]
      %v2215 = vld [vmem:[%s2210 + $0x10] sm:$0xf]
      %v2216 = vld [vmem:[%s2210 + $0x14] sm:$0xf]
      %v2217 = vld [vmem:[%s2210 + $0x18] sm:$0xf]
      %v2218 = vld [vmem:[%s2210 + $0x1c] sm:$0xf]
      %v2219 = vld [vmem:[%s2210 + $0x20] sm:$0xf]
      %v2220 = vld [vmem:[%s2210 + $0x24] sm:$0xf]
      %v2221 = vld [vmem:[%s2210 + $0x28] sm:$0xf]
      %v2222 = vld [vmem:[%s2210 + $0x2c] sm:$0xf]
      %v2223 = vld [vmem:[%s2210 + $0x30] sm:$0xf]
      %v2224 = vld [vmem:[%s2210 + $0x34] sm:$0xf]
      %v2225 = vld [vmem:[%s2210 + $0x38] sm:$0xf]
      %v2226 = vld [vmem:[%s2210 + $0x3c] sm:$0xf]
      %v2229 = vunpack.c.l.b16 %v2208
      %v2230 = vunpack.c.l.b16 %v2209
      %v2231 = vpack.c.b16 %v2063, %v2229
      %v2232 = vpack.c.b16 %v2230, %v2066
      %v2233 = vrot.slane %v2231, 1
      %v2234 = vrot.slane %v2069, 1
      %v2235 = vsel %vm518, %v2233, %v2234
      %v2236 = vrot.slane %v2232, 1
      %v2237 = vsel %vm518, %v2234, %v2236
      %v2257 = vunpack.c.l.b16 %v2211
      %v2258 = vunpack.c.l.b16 %v2212
      %v2259 = vunpack.c.l.b16 %v2213
      %v2260 = vunpack.c.l.b16 %v2214
      %v2261 = vunpack.c.l.b16 %v2215
      %v2262 = vunpack.c.l.b16 %v2216
      %v2263 = vunpack.c.l.b16 %v2217
      %v2264 = vunpack.c.l.b16 %v2218
      %v2265 = vunpack.c.l.b16 %v2219
      %v2266 = vunpack.c.l.b16 %v2220
      %v2267 = vunpack.c.l.b16 %v2221
      %v2268 = vunpack.c.l.b16 %v2222
      %v2269 = vunpack.c.l.b16 %v2223
      %v2270 = vunpack.c.l.b16 %v2224
      %v2271 = vunpack.c.l.b16 %v2225
      %v2272 = vunpack.c.l.b16 %v2226
      %v2273 = vpack.c.b16 %v2258, %v2257
      %v2274 = vpack.c.b16 %v2260, %v2259
      %v2275 = vpack.c.b16 %v2262, %v2261
      %v2276 = vpack.c.b16 %v2264, %v2263
      %v2277 = vpack.c.b16 %v2266, %v2265
      %v2278 = vpack.c.b16 %v2268, %v2267
      %v2279 = vpack.c.b16 %v2270, %v2269
      %v2280 = vpack.c.b16 %v2272, %v2271
      %2289 = vmatprep.subr.bf16.mxu0 0
      %2290 = vmatpush1.bf16.msra.mxu0 %v2273
      %2291 = vmatprep.subr.bf16.mxu0 0
      %2292 = vmatpush1.bf16.msra.mxu0 %v2274
      %2293 = vmatprep.subr.bf16.mxu0 0
      %2294 = vmatpush1.bf16.msra.mxu0 %v2275
      %2295 = vmatprep.subr.bf16.mxu0 0
      %2296 = vmatpush1.bf16.msra.mxu0 %v2276
      %2297 = vmatprep.subr.bf16.mxu0 0
      %2298 = vmatpush1.bf16.msra.mxu0 %v2277
      %2299 = vmatprep.subr.bf16.mxu0 0
      %2300 = vmatpush1.bf16.msra.mxu0 %v2278
      %2301 = vmatprep.subr.bf16.mxu0 0
      %2302 = vmatpush1.bf16.msra.mxu0 %v2279
      %2303 = vmatprep.subr.bf16.mxu0 0
      %2304 = vmatpush1.bf16.msra.mxu0 %v2280
      %2305 = vmatprep.subr.bf16.mxu0 0
      %2306 = vmatpush1.bf16.msra.mxu0 0
      %2307 = vmatprep.subr.bf16.mxu0 0
      %2308 = vmatpush1.bf16.msra.mxu0 0
      %2309 = vmatprep.subr.bf16.mxu0 0
      %2310 = vmatpush1.bf16.msra.mxu0 0
      %2311 = vmatprep.subr.bf16.mxu0 0
      %2312 = vmatpush1.bf16.msra.mxu0 0
      %2313 = vmatprep.subr.bf16.mxu0 0
      %2314 = vmatpush1.bf16.msra.mxu0 0
      %2315 = vmatprep.subr.bf16.mxu0 0
      %2316 = vmatpush1.bf16.msra.mxu0 0
      %2317 = vmatprep.subr.bf16.mxu0 0
      %2318 = vmatpush1.bf16.msra.mxu0 0
      %2319 = vmatprep.subr.bf16.mxu0 0
      %2320 = vmatpush1.bf16.msra.mxu0 0
      %2321 = vmatprep.mubr.bf16.mxu0 0
      %2322 = vmatmul.mubr.bf16.gmra.mrb[0].mxu0 %v2235
      %v2323 = vpop.f32.mrb[0].mxu0
      %v2324 = vadd.f32 0.0, %v2323
      %v2325 = vpop.f32.mrb[0].mxu0
      %v2326 = vpop.f32.mrb[0].mxu0
      %v2327 = vadd.f32 0.0, %v2326
      %v2328 = vpop.f32.mrb[0].mxu0
      %2329 = vmatprep.mubr.bf16.mxu0 0
      %2330 = vmatmul.mubr.bf16.gmra.mrb[0].mxu0 %v2237
      %v2331 = vpop.f32.mrb[0].mxu0
      %v2332 = vadd.f32 0.0, %v2331
      %v2333 = vpop.f32.mrb[0].mxu0
      %v2334 = vpop.f32.mrb[0].mxu0
      %v2335 = vadd.f32 0.0, %v2334
      %v2336 = vpop.f32.mrb[0].mxu0
      %2337 = vmatprep.mubr.bf16.mxu0 0
      %2338 = vmatmul.mubr.bf16.gmra.mrb[0].mxu0 %v2236
      %v2339 = vpop.f32.mrb[0].mxu0
      %v2340 = vadd.f32 0.0, %v2339
      %v2341 = vpop.f32.mrb[0].mxu0
      %v2342 = vpop.f32.mrb[0].mxu0
      %v2343 = vadd.f32 0.0, %v2342
      %v2344 = vpop.f32.mrb[0].mxu0
      %2345 = vdwg.mxu0
      %v2346 = vadd.f32 %v2202, %v2324
      %v2347 = vadd.f32 %v2203, %v2327
      %v2348 = vadd.f32 %v2204, %v2332
      %v2349 = vadd.f32 %v2205, %v2335
      %v2350 = vadd.f32 %v2206, %v2340
      %v2351 = vadd.f32 %v2207, %v2343
      %s2352 = scalar_lea.vmem %s1, 896
      %v2353 = vld [vmem:[%s2352] sm:$0xf]
      %v2354 = vld [vmem:[%s2352 + $0x4] sm:$0xf]
      %v2355 = vld [vmem:[%s2352 + $0x8] sm:$0xf]
      %v2356 = vld [vmem:[%s2352 + $0xc] sm:$0xf]
      %v2357 = vld [vmem:[%s2352 + $0x10] sm:$0xf]
      %v2358 = vld [vmem:[%s2352 + $0x14] sm:$0xf]
      %v2359 = vld [vmem:[%s2352 + $0x18] sm:$0xf]
      %v2360 = vld [vmem:[%s2352 + $0x1c] sm:$0xf]
      %v2361 = vld [vmem:[%s2352 + $0x20] sm:$0xf]
      %v2362 = vld [vmem:[%s2352 + $0x24] sm:$0xf]
      %v2363 = vld [vmem:[%s2352 + $0x28] sm:$0xf]
      %v2364 = vld [vmem:[%s2352 + $0x2c] sm:$0xf]
      %v2365 = vld [vmem:[%s2352 + $0x30] sm:$0xf]
      %v2366 = vld [vmem:[%s2352 + $0x34] sm:$0xf]
      %v2367 = vld [vmem:[%s2352 + $0x38] sm:$0xf]
      %v2368 = vld [vmem:[%s2352 + $0x3c] sm:$0xf]
      %v2370 = vshrl.u32 %v2231, 16
      %v2372 = vrot.slane %v2370, 1
      %v2373 = vshll.u32 %v2231, 16
      %v2375 = vrot.slane %v2373, 2
      %v2376 = vor.u32 %v2372, %v2375
      %v2377 = vrot.slane %v2083, 1
      %v2378 = vrot.slane %v2079, 2
      %v2379 = vor.u32 %v2377, %v2378
      %v2380 = vsel %vm655, %v2376, %v2379
      %v2382 = vshrl.u32 %v2232, 16
      %v2384 = vrot.slane %v2382, 1
      %v2385 = vshll.u32 %v2232, 16
      %v2387 = vrot.slane %v2385, 2
      %v2388 = vor.u32 %v2384, %v2387
      %v2389 = vsel %vm655, %v2379, %v2388
      %v2409 = vunpack.c.l.b16 %v2353
      %v2410 = vunpack.c.l.b16 %v2354
      %v2411 = vunpack.c.l.b16 %v2355
      %v2412 = vunpack.c.l.b16 %v2356
      %v2413 = vunpack.c.l.b16 %v2357
      %v2414 = vunpack.c.l.b16 %v2358
      %v2415 = vunpack.c.l.b16 %v2359
      %v2416 = vunpack.c.l.b16 %v2360
      %v2417 = vunpack.c.l.b16 %v2361
      %v2418 = vunpack.c.l.b16 %v2362
      %v2419 = vunpack.c.l.b16 %v2363
      %v2420 = vunpack.c.l.b16 %v2364
      %v2421 = vunpack.c.l.b16 %v2365
      %v2422 = vunpack.c.l.b16 %v2366
      %v2423 = vunpack.c.l.b16 %v2367
      %v2424 = vunpack.c.l.b16 %v2368
      %v2425 = vpack.c.b16 %v2410, %v2409
      %v2426 = vpack.c.b16 %v2412, %v2411
      %v2427 = vpack.c.b16 %v2414, %v2413
      %v2428 = vpack.c.b16 %v2416, %v2415
      %v2429 = vpack.c.b16 %v2418, %v2417
      %v2430 = vpack.c.b16 %v2420, %v2419
      %v2431 = vpack.c.b16 %v2422, %v2421
      %v2432 = vpack.c.b16 %v2424, %v2423
      %2441 = vmatprep.subr.bf16.mxu0 0
      %2442 = vmatpush1.bf16.msra.mxu0 %v2425
      %2443 = vmatprep.subr.bf16.mxu0 0
      %2444 = vmatpush1.bf16.msra.mxu0 %v2426
      %2445 = vmatprep.subr.bf16.mxu0 0
      %2446 = vmatpush1.bf16.msra.mxu0 %v2427
      %2447 = vmatprep.subr.bf16.mxu0 0
      %2448 = vmatpush1.bf16.msra.mxu0 %v2428
      %2449 = vmatprep.subr.bf16.mxu0 0
      %2450 = vmatpush1.bf16.msra.mxu0 %v2429
      %2451 = vmatprep.subr.bf16.mxu0 0
      %2452 = vmatpush1.bf16.msra.mxu0 %v2430
      %2453 = vmatprep.subr.bf16.mxu0 0
      %2454 = vmatpush1.bf16.msra.mxu0 %v2431
      %2455 = vmatprep.subr.bf16.mxu0 0
      %2456 = vmatpush1.bf16.msra.mxu0 %v2432
      %2457 = vmatprep.subr.bf16.mxu0 0
      %2458 = vmatpush1.bf16.msra.mxu0 0
      %2459 = vmatprep.subr.bf16.mxu0 0
      %2460 = vmatpush1.bf16.msra.mxu0 0
      %2461 = vmatprep.subr.bf16.mxu0 0
      %2462 = vmatpush1.bf16.msra.mxu0 0
      %2463 = vmatprep.subr.bf16.mxu0 0
      %2464 = vmatpush1.bf16.msra.mxu0 0
      %2465 = vmatprep.subr.bf16.mxu0 0
      %2466 = vmatpush1.bf16.msra.mxu0 0
      %2467 = vmatprep.subr.bf16.mxu0 0
      %2468 = vmatpush1.bf16.msra.mxu0 0
      %2469 = vmatprep.subr.bf16.mxu0 0
      %2470 = vmatpush1.bf16.msra.mxu0 0
      %2471 = vmatprep.subr.bf16.mxu0 0
      %2472 = vmatpush1.bf16.msra.mxu0 0
      %2473 = vmatprep.mubr.bf16.mxu0 0
      %2474 = vmatmul.mubr.bf16.gmra.mrb[0].mxu0 %v2380
      %v2475 = vpop.f32.mrb[0].mxu0
      %v2476 = vadd.f32 0.0, %v2475
      %v2477 = vpop.f32.mrb[0].mxu0
      %v2478 = vpop.f32.mrb[0].mxu0
      %v2479 = vadd.f32 0.0, %v2478
      %v2480 = vpop.f32.mrb[0].mxu0
      %2481 = vmatprep.mubr.bf16.mxu0 0
      %2482 = vmatmul.mubr.bf16.gmra.mrb[0].mxu0 %v2389
      %v2483 = vpop.f32.mrb[0].mxu0
      %v2484 = vadd.f32 0.0, %v2483
      %v2485 = vpop.f32.mrb[0].mxu0
      %v2486 = vpop.f32.mrb[0].mxu0
      %v2487 = vadd.f32 0.0, %v2486
      %v2488 = vpop.f32.mrb[0].mxu0
      %2489 = vmatprep.mubr.bf16.mxu0 0
      %2490 = vmatmul.mubr.bf16.gmra.mrb[0].mxu0 %v2388
      %v2491 = vpop.f32.mrb[0].mxu0
      %v2492 = vadd.f32 0.0, %v2491
      %v2493 = vpop.f32.mrb[0].mxu0
      %v2494 = vpop.f32.mrb[0].mxu0
      %v2495 = vadd.f32 0.0, %v2494
      %v2496 = vpop.f32.mrb[0].mxu0
      %2497 = vdwg.mxu0
      %v2498 = vadd.f32 %v2346, %v2476
      %v2499 = vadd.f32 %v2347, %v2479
      %v2500 = vadd.f32 %v2348, %v2484
      %v2501 = vadd.f32 %v2349, %v2487
      %v2502 = vadd.f32 %v2350, %v2492
      %v2503 = vadd.f32 %v2351, %v2495
      %v2504 = vld [vmem:[%s192 + $0x10] sm:$0xc]
      %v2505 = vld [vmem:[%s192 + $0x24] sm:$0x7]
      %s2506 = scalar_lea.vmem %s1, 960
      %v2507 = vld [vmem:[%s2506] sm:$0xf]
      %v2508 = vld [vmem:[%s2506 + $0x4] sm:$0xf]
      %v2509 = vld [vmem:[%s2506 + $0x8] sm:$0xf]
      %v2510 = vld [vmem:[%s2506 + $0xc] sm:$0xf]
      %v2511 = vld [vmem:[%s2506 + $0x10] sm:$0xf]
      %v2512 = vld [vmem:[%s2506 + $0x14] sm:$0xf]
      %v2513 = vld [vmem:[%s2506 + $0x18] sm:$0xf]
      %v2514 = vld [vmem:[%s2506 + $0x1c] sm:$0xf]
      %v2515 = vld [vmem:[%s2506 + $0x20] sm:$0xf]
      %v2516 = vld [vmem:[%s2506 + $0x24] sm:$0xf]
      %v2517 = vld [vmem:[%s2506 + $0x28] sm:$0xf]
      %v2518 = vld [vmem:[%s2506 + $0x2c] sm:$0xf]
      %v2519 = vld [vmem:[%s2506 + $0x30] sm:$0xf]
      %v2520 = vld [vmem:[%s2506 + $0x34] sm:$0xf]
      %v2521 = vld [vmem:[%s2506 + $0x38] sm:$0xf]
      %v2522 = vld [vmem:[%s2506 + $0x3c] sm:$0xf]
      %v2525 = vunpack.c.l.b16 %v2504
      %v2526 = vunpack.c.l.b16 %v2505
      %v2527 = vpack.c.b16 %v2063, %v2525
      %v2528 = vpack.c.b16 %v2526, %v2066
      %v2529 = vrot.slane %v2527, 2
      %v2530 = vrot.slane %v2069, 2
      %v2531 = vsel %vm994, %v2529, %v2530
      %v2532 = vrot.slane %v2528, 2
      %v2533 = vsel %vm994, %v2530, %v2532
      %v2553 = vunpack.c.l.b16 %v2507
      %v2554 = vunpack.c.l.b16 %v2508
      %v2555 = vunpack.c.l.b16 %v2509
      %v2556 = vunpack.c.l.b16 %v2510
      %v2557 = vunpack.c.l.b16 %v2511
      %v2558 = vunpack.c.l.b16 %v2512
      %v2559 = vunpack.c.l.b16 %v2513
      %v2560 = vunpack.c.l.b16 %v2514
      %v2561 = vunpack.c.l.b16 %v2515
      %v2562 = vunpack.c.l.b16 %v2516
      %v2563 = vunpack.c.l.b16 %v2517
      %v2564 = vunpack.c.l.b16 %v2518
      %v2565 = vunpack.c.l.b16 %v2519
      %v2566 = vunpack.c.l.b16 %v2520
      %v2567 = vunpack.c.l.b16 %v2521
      %v2568 = vunpack.c.l.b16 %v2522
      %v2569 = vpack.c.b16 %v2554, %v2553
      %v2570 = vpack.c.b16 %v2556, %v2555
      %v2571 = vpack.c.b16 %v2558, %v2557
      %v2572 = vpack.c.b16 %v2560, %v2559
      %v2573 = vpack.c.b16 %v2562, %v2561
      %v2574 = vpack.c.b16 %v2564, %v2563
      %v2575 = vpack.c.b16 %v2566, %v2565
      %v2576 = vpack.c.b16 %v2568, %v2567
      %2585 = vmatprep.subr.bf16.mxu0 0
      %2586 = vmatpush1.bf16.msra.mxu0 %v2569
      %2587 = vmatprep.subr.bf16.mxu0 0
      %2588 = vmatpush1.bf16.msra.mxu0 %v2570
      %2589 = vmatprep.subr.bf16.mxu0 0
      %2590 = vmatpush1.bf16.msra.mxu0 %v2571
      %2591 = vmatprep.subr.bf16.mxu0 0
      %2592 = vmatpush1.bf16.msra.mxu0 %v2572
      %2593 = vmatprep.subr.bf16.mxu0 0
      %2594 = vmatpush1.bf16.msra.mxu0 %v2573
      %2595 = vmatprep.subr.bf16.mxu0 0
      %2596 = vmatpush1.bf16.msra.mxu0 %v2574
      %2597 = vmatprep.subr.bf16.mxu0 0
      %2598 = vmatpush1.bf16.msra.mxu0 %v2575
      %2599 = vmatprep.subr.bf16.mxu0 0
      %2600 = vmatpush1.bf16.msra.mxu0 %v2576
      %2601 = vmatprep.subr.bf16.mxu0 0
      %2602 = vmatpush1.bf16.msra.mxu0 0
      %2603 = vmatprep.subr.bf16.mxu0 0
      %2604 = vmatpush1.bf16.msra.mxu0 0
      %2605 = vmatprep.subr.bf16.mxu0 0
      %2606 = vmatpush1.bf16.msra.mxu0 0
      %2607 = vmatprep.subr.bf16.mxu0 0
      %2608 = vmatpush1.bf16.msra.mxu0 0
      %2609 = vmatprep.subr.bf16.mxu0 0
      %2610 = vmatpush1.bf16.msra.mxu0 0
      %2611 = vmatprep.subr.bf16.mxu0 0
      %2612 = vmatpush1.bf16.msra.mxu0 0
      %2613 = vmatprep.subr.bf16.mxu0 0
      %2614 = vmatpush1.bf16.msra.mxu0 0
      %2615 = vmatprep.subr.bf16.mxu0 0
      %2616 = vmatpush1.bf16.msra.mxu0 0
      %2617 = vmatprep.mubr.bf16.mxu0 0
      %2618 = vmatmul.mubr.bf16.gmra.mrb[0].mxu0 %v2531
      %v2619 = vpop.f32.mrb[0].mxu0
      %v2620 = vadd.f32 0.0, %v2619
      %v2621 = vpop.f32.mrb[0].mxu0
      %v2622 = vpop.f32.mrb[0].mxu0
      %v2623 = vadd.f32 0.0, %v2622
      %v2624 = vpop.f32.mrb[0].mxu0
      %2625 = vmatprep.mubr.bf16.mxu0 0
      %2626 = vmatmul.mubr.bf16.gmra.mrb[0].mxu0 %v2533
      %v2627 = vpop.f32.mrb[0].mxu0
      %v2628 = vadd.f32 0.0, %v2627
      %v2629 = vpop.f32.mrb[0].mxu0
      %v2630 = vpop.f32.mrb[0].mxu0
      %v2631 = vadd.f32 0.0, %v2630
      %v2632 = vpop.f32.mrb[0].mxu0
      %2633 = vmatprep.mubr.bf16.mxu0 0
      %2634 = vmatmul.mubr.bf16.gmra.mrb[0].mxu0 %v2532
      %v2635 = vpop.f32.mrb[0].mxu0
      %v2636 = vadd.f32 0.0, %v2635
      %v2637 = vpop.f32.mrb[0].mxu0
      %v2638 = vpop.f32.mrb[0].mxu0
      %v2639 = vadd.f32 0.0, %v2638
      %v2640 = vpop.f32.mrb[0].mxu0
      %2641 = vdwg.mxu0
      %v2642 = vadd.f32 %v2498, %v2620
      %v2643 = vadd.f32 %v2499, %v2623
      %v2644 = vadd.f32 %v2500, %v2628
      %v2645 = vadd.f32 %v2501, %v2631
      %v2646 = vadd.f32 %v2502, %v2636
      %v2647 = vadd.f32 %v2503, %v2639
      %v2648 = vld [vmem:[%s2] sm:$0x1]
      %v2650 = vlaneseq
      %v2651 = vshrl.u32 %v2650, 7
      %v2652 = vsub.s32 0, %v2651
      %v2653 = vrot.slane %v2648, %v2652
      %v2655 = vmul.f32 %v2642, %v2653
      %v2656 = vmul.f32 %v2643, %v2653
      %v2657 = vmul.f32 %v2644, %v2653
      %v2658 = vmul.f32 %v2645, %v2653
      %v2659 = vmul.f32 %v2646, %v2653
      %v2660 = vmul.f32 %v2647, %v2653
      %v2661 = vld [vmem:[%s3] sm:$0x1]
      %v2663 = vlaneseq
      %v2664 = vshrl.u32 %v2663, 7
      %v2665 = vsub.s32 0, %v2664
      %v2666 = vrot.slane %v2661, %v2665
      %v2668 = vadd.f32 %v2655, %v2666
      %v2669 = vadd.f32 %v2656, %v2666
      %v2670 = vadd.f32 %v2657, %v2666
      %v2671 = vadd.f32 %v2658, %v2666
      %v2672 = vadd.f32 %v2659, %v2666
      %v2673 = vadd.f32 %v2660, %v2666
      %vm2674 = vcmp.ge.f32.partialorder %v2668, 0.0
      %vm2675 = vcmp.ge.f32.partialorder %v2669, 0.0
      %vm2676 = vcmp.ge.f32.partialorder %v2670, 0.0
      %vm2677 = vcmp.ge.f32.partialorder %v2671, 0.0
      %vm2678 = vcmp.ge.f32.partialorder %v2672, 0.0
      %vm2679 = vcmp.ge.f32.partialorder %v2673, 0.0
      %v2680 = vmul.f32 %v2668, 0.2
      %v2681 = vmul.f32 %v2669, 0.2
      %v2682 = vmul.f32 %v2670, 0.2
      %v2683 = vmul.f32 %v2671, 0.2
      %v2684 = vmul.f32 %v2672, 0.2
      %v2685 = vmul.f32 %v2673, 0.2
      %v2686 = vsel %vm2674, %v2668, %v2680
      %v2687 = vsel %vm2675, %v2669, %v2681
      %v2688 = vsel %vm2676, %v2670, %v2682
      %v2689 = vsel %vm2677, %v2671, %v2683
      %v2690 = vsel %vm2678, %v2672, %v2684
      %v2691 = vsel %vm2679, %v2673, %v2685
      %v2692 = vpack.c.bf16 %v2687, %v2686
      %v2693 = vpack.c.bf16 %v2689, %v2688
      %v2694 = vpack.c.bf16 %v2691, %v2690
      %v2698 = vunpack.c.l.b16 %v2692
      %v2699 = vunpack.c.h.b16 %v2692
      %v2700 = vunpack.c.l.b16 %v2693
      %v2701 = vunpack.c.h.b16 %v2693
      %v2702 = vunpack.c.l.b16 %v2694
      %v2703 = vunpack.c.h.b16 %v2694
      %v2704 = vpack.c.b16 %v2698, %v2698
      %v2705 = vpack.c.b16 %v2699, %v2699
      %v2706 = vpack.c.b16 %v2700, %v2700
      %v2707 = vpack.c.b16 %v2701, %v2701
      %v2708 = vpack.c.b16 %v2702, %v2702
      %v2709 = vpack.c.b16 %v2703, %v2703
      %2716 = vst [vmem:[%s197] sm:$0xf] %v2704
      %2717 = vst [vmem:[%s197 + $0x4] sm:$0xf] %v2705
      %2718 = vst [vmem:[%s197 + $0x8] sm:$0xf] %v2706
      %2719 = vst [vmem:[%s197 + $0xc] sm:$0xf] %v2707
      %2720 = vst [vmem:[%s197 + $0x10] sm:$0xf] %v2708
      %vm2721 = vcmask 1040384
      %vm2722 = vsmask.f32 256
      %vm2723 = vmand %vm2721, %vm2722
      %v2724 = vld [vmem:[%s197 + $0x14] sm:$0x1]
      %v2725 = vsel %vm2723, %v2709, %v2724
      %2726 = vst [vmem:[%s197 + $0x14] sm:$0x1] %v2725
      %p2727 = scmp.lt.s32.totalorder %s15, 1
      %s2728 = scalar_select %p2727, %s15, 1
      %s2729 = smul.addr %s2728, 6
      %s2730 = smul.addr %s2729, 4
      %s2731 = scalar_lea.vmem %s4, %s2730
      // Predicated region
      $region37: #{nlayer_discriminator_forward.8} parent=35 // pred_check
        %p2732 = pneg %p122
      $region38: #{nlayer_discriminator_forward.8} parent=35 // pred_check_branch
        %2734 = sbr.rel (%p2732) target = $region40
      $region39: #{nlayer_discriminator_forward.8} parent=35 // pred_region
        _
      $region40: #{nlayer_discriminator_forward.8} parent=35 // pred_fallthru
        _
    $region36: #{nlayer_discriminator_forward.8} parent=5 // pred_fallthru
      _
    %p2735 = scmp.le.s32.totalorder 2, %s10
    // Predicated region
    $region41: #{nlayer_discriminator_forward.8} parent=5 // pred_check
      %p2736 = pneg %p2735
    $region42: #{nlayer_discriminator_forward.8} parent=5 // pred_check_branch
      %2738 = sbr.rel (%p2736) target = $region44
    $region43: #{nlayer_discriminator_forward.8} parent=5 // pred_region
      %s2739 = ssub.s32 %s10, 2
      // Predicated region
      $region45: #{nlayer_discriminator_forward.8} parent=43 // pred_check
        %p2740 = pneg %p128
      $region46: #{nlayer_discriminator_forward.8} parent=43 // pred_check_branch
        %2742 = sbr.rel (%p2740) target = $region48
      $region47: #{nlayer_discriminator_forward.8} parent=43 // pred_region
        %p2743 = scmp.lt.s32.totalorder %s16, 1
        %s2744 = scalar_select %p2743, %s16, 1
        %s2745 = smul.addr %s2744, 6
        %s2746 = smul.addr %s2745, 4
        %s2747 = scalar_lea.vmem %s4, %s2746
      $region48: #{nlayer_discriminator_forward.8} parent=43 // pred_fallthru
        _
    $region44: #{nlayer_discriminator_forward.8} parent=5 // pred_fallthru
      _
  $region6: #{nlayer_discriminator_forward.8} parent=0 // loop_footer
    %s14 = sadd.s32 1, %s10
  $region7: #{nlayer_discriminator_forward.8} parent=0 // loop_footer_branch
    %9 = sbr.rel target = $region3
  $region8: #{nlayer_discriminator_forward.8} parent=0 // loop_exit
    _

// kernel: nlayer_discriminator_forward.9
$region0: #{nlayer_discriminator_forward.9}
  #allocation0 [shape = 'u32[]', space=smem, size = 0x4, offset = 0x4, fixed_abs, tag = 'smem constant byte address 0x4 - core index']
  #allocation1 [shape = 'u32[144,128]{1,0:T(1,128)}', space=vmem, size = 0x12000, scoped, tag = 'internal scratch']
  %s0 = inlined_call_operand.vmem [shape: bf16[2,88,128], index: 0, kind: input, shape index: {}]
  %s1 = inlined_call_operand.vmem [shape: bf16[16,128,128], index: 1, kind: input, shape index: {}]
  %s2 = inlined_call_operand.vmem [shape: f32[1,128], index: 2, kind: input, shape index: {}]
  %s3 = inlined_call_operand.vmem [shape: f32[1,128], index: 3, kind: input, shape index: {}]
  %s4 = inlined_call_operand.vmem [shape: f32[2,52,128], index: 4, kind: output, shape index: {}]
  %s5 = sld [smem:[#allocation0]]
  $region49: #{nlayer_discriminator_forward.9} parent=0
    _
  %s7 = ssub.s32 1, %s5
  %s8 = scalar_select 0, %s7, %s5
  loop: start=0, step=1, limit=4
  $region2: #{nlayer_discriminator_forward.9} parent=0 // loop_pre_header
    _
  $region3: #{nlayer_discriminator_forward.9} parent=0 // loop_header
    %s10 = sphi 0, %s14
    %p11 = scmp.ge.s32.totalorder %s10, 4
    %s20 = sphi 0, %s22
    %s23 = sphi 0, %s20
    %s24 = sphi 0, %s23
    %s40 = sphi 0, %s24
    %s44 = sphi 0, %s44
    %s46 = sphi 0, %s44
    %s47 = sphi 0, %s46
    %s61 = sphi 0, %s47
    %s65 = sphi 0, %s65
    %s67 = sphi 0, %s65
    %s68 = sphi 0, %s67
    %s82 = sphi 0, %s68
    %s86 = sphi 0, %s86
    %s88 = sphi 0, %s86
    %s89 = sphi 0, %s88
    %s103 = sphi 0, %s89
    %s109 = sphi 0, %s111
    %s112 = sphi 0, %s109
    %s113 = sphi 0, %s112
    %s129 = sphi 0, %s113
  $region4: #{nlayer_discriminator_forward.9} parent=0 // loop_header_branch
    %13 = sbr.rel (%p11) target = $region8
  $region5: #{nlayer_discriminator_forward.9} parent=0 // loop_body
    %s15 = ssub.s32 %s10, 1
    %s16 = ssub.s32 %s10, 2
    %s17 = sadd.s32 %s10, 1
    %s18 = ssub.s32 %s10, %s17
    %p19 = scmp.eq.s32.totalorder %s18, 0
    %s21 = sadd.s32 %s20, 1
    %s22 = scalar_select %p19, %s20, %s21
    %p25 = pneg %p19
    %p26 = scmp.eq.s32.totalorder %s10, 1
    %p27 = por %p25, %p26
    %p28 = scmp.ne.s32.totalorder %s20, %s23
    %p29 = scmp.eq.s32.totalorder %s10, 0
    %p30 = por %p28, %p29
    %p31 = scmp.ne.s32.totalorder %s20, %s23
    %p32 = scmp.eq.s32.totalorder %s15, 1
    %p33 = por %p31, %p32
    %p34 = scmp.ne.s32.totalorder %s23, %s24
    %p35 = scmp.eq.s32.totalorder %s15, 0
    %p36 = por %p34, %p35
    %p37 = scmp.ne.s32.totalorder %s23, %s24
    %p38 = scmp.eq.s32.totalorder %s16, 1
    %p39 = por %p37, %p38
    %p41 = scmp.ne.s32.totalorder %s24, %s40
    %p42 = scmp.eq.s32.totalorder %s16, 0
    %p43 = por %p41, %p42
    %s45 = sadd.s32 %s44, 1
    %p48 = scmp.eq.s32.totalorder %s10, 1
    %p49 = scmp.ne.s32.totalorder %s44, %s46
    %p50 = scmp.eq.s32.totalorder %s10, 0
    %p51 = por %p49, %p50
    %p52 = scmp.ne.s32.totalorder %s44, %s46
    %p53 = scmp.eq.s32.totalorder %s15, 1
    %p54 = por %p52, %p53
    %p55 = scmp.ne.s32.totalorder %s46, %s47
    %p56 = scmp.eq.s32.totalorder %s15, 0
    %p57 = por %p55, %p56
    %p58 = scmp.ne.s32.totalorder %s46, %s47
    %p59 = scmp.eq.s32.totalorder %s16, 1
    %p60 = por %p58, %p59
    %p62 = scmp.ne.s32.totalorder %s47, %s61
    %p63 = scmp.eq.s32.totalorder %s16, 0
    %p64 = por %p62, %p63
    %s66 = sadd.s32 %s65, 1
    %p69 = scmp.eq.s32.totalorder %s10, 1
    %p70 = scmp.ne.s32.totalorder %s65, %s67
    %p71 = scmp.eq.s32.totalorder %s10, 0
    %p72 = por %p70, %p71
    %p73 = scmp.ne.s32.totalorder %s65, %s67
    %p74 = scmp.eq.s32.totalorder %s15, 1
    %p75 = por %p73, %p74
    %p76 = scmp.ne.s32.totalorder %s67, %s68
    %p77 = scmp.eq.s32.totalorder %s15, 0
    %p78 = por %p76, %p77
    %p79 = scmp.ne.s32.totalorder %s67, %s68
    %p80 = scmp.eq.s32.totalorder %s16, 1
    %p81 = por %p79, %p80
    %p83 = scmp.ne.s32.totalorder %s68, %s82
    %p84 = scmp.eq.s32.totalorder %s16, 0
    %p85 = por %p83, %p84
    %s87 = sadd.s32 %s86, 1
    %p90 = scmp.eq.s32.totalorder %s10, 1
    %p91 = scmp.ne.s32.totalorder %s86, %s88
    %p92 = scmp.eq.s32.totalorder %s10, 0
    %p93 = por %p91, %p92
    %p94 = scmp.ne.s32.totalorder %s86, %s88
    %p95 = scmp.eq.s32.totalorder %s15, 1
    %p96 = por %p94, %p95
    %p97 = scmp.ne.s32.totalorder %s88, %s89
    %p98 = scmp.eq.s32.totalorder %s15, 0
    %p99 = por %p97, %p98
    %p100 = scmp.ne.s32.totalorder %s88, %s89
    %p101 = scmp.eq.s32.totalorder %s16, 1
    %p102 = por %p100, %p101
    %p104 = scmp.ne.s32.totalorder %s89, %s103
    %p105 = scmp.eq.s32.totalorder %s16, 0
    %p106 = por %p104, %p105
    %s107 = ssub.s32 %s10, %s17
    %p108 = scmp.eq.s32.totalorder %s107, 0
    %s110 = sadd.s32 %s109, 1
    %s111 = scalar_select %p108, %s109, %s110
    %p114 = pneg %p108
    %p115 = scmp.eq.s32.totalorder %s10, 1
    %p116 = por %p114, %p115
    %p117 = scmp.ne.s32.totalorder %s109, %s112
    %p118 = scmp.eq.s32.totalorder %s10, 0
    %p119 = por %p117, %p118
    %p120 = scmp.ne.s32.totalorder %s109, %s112
    %p121 = scmp.eq.s32.totalorder %s15, 1
    %p122 = por %p120, %p121
    %p123 = scmp.ne.s32.totalorder %s112, %s113
    %p124 = scmp.eq.s32.totalorder %s15, 0
    %p125 = por %p123, %p124
    %p126 = scmp.ne.s32.totalorder %s112, %s113
    %p127 = scmp.eq.s32.totalorder %s16, 1
    %p128 = por %p126, %p127
    %p130 = scmp.ne.s32.totalorder %s113, %s129
    %p131 = scmp.eq.s32.totalorder %s16, 0
    %p132 = por %p130, %p131
    %p133 = scmp.le.s32.totalorder 1, %s10
    %p134 = scmp.lt.s32.totalorder %s10, 3
    %p135 = pnand %p133, %p134
    %p136 = pneg %p135
    // Predicated region
    $region9: #{nlayer_discriminator_forward.9} parent=5 // pred_check
      _
    $region10: #{nlayer_discriminator_forward.9} parent=5 // pred_check_branch
      %138 = sbr.rel (%p135) target = $region12
    $region11: #{nlayer_discriminator_forward.9} parent=5 // pred_region
      %s139 = ssub.s32 %s10, 1
      // Predicated region
      $region13: #{nlayer_discriminator_forward.9} parent=11 // pred_check
        %p140 = pneg %p57
      $region14: #{nlayer_discriminator_forward.9} parent=11 // pred_check_branch
        %142 = sbr.rel (%p140) target = $region16
      $region15: #{nlayer_discriminator_forward.9} parent=11 // pred_region
        _
      $region16: #{nlayer_discriminator_forward.9} parent=11 // pred_fallthru
        _
      // Predicated region
      $region17: #{nlayer_discriminator_forward.9} parent=11 // pred_check
        %p143 = pneg %p78
      $region18: #{nlayer_discriminator_forward.9} parent=11 // pred_check_branch
        %145 = sbr.rel (%p143) target = $region20
      $region19: #{nlayer_discriminator_forward.9} parent=11 // pred_region
        _
      $region20: #{nlayer_discriminator_forward.9} parent=11 // pred_fallthru
        _
      // Predicated region
      $region21: #{nlayer_discriminator_forward.9} parent=11 // pred_check
        %p146 = pneg %p99
      $region22: #{nlayer_discriminator_forward.9} parent=11 // pred_check_branch
        %148 = sbr.rel (%p146) target = $region24
      $region23: #{nlayer_discriminator_forward.9} parent=11 // pred_region
        _
      $region24: #{nlayer_discriminator_forward.9} parent=11 // pred_fallthru
        _
    $region12: #{nlayer_discriminator_forward.9} parent=5 // pred_fallthru
      _
    %p149 = scmp.lt.s32.totalorder %s10, 2
    // Predicated region
    $region25: #{nlayer_discriminator_forward.9} parent=5 // pred_check
      %p150 = pneg %p149
    $region26: #{nlayer_discriminator_forward.9} parent=5 // pred_check_branch
      %152 = sbr.rel (%p150) target = $region28
    $region27: #{nlayer_discriminator_forward.9} parent=5 // pred_region
      // Predicated region
      $region29: #{nlayer_discriminator_forward.9} parent=27 // pred_check
        %p153 = pneg %p30
      $region30: #{nlayer_discriminator_forward.9} parent=27 // pred_check_branch
        %155 = sbr.rel (%p153) target = $region32
      $region31: #{nlayer_discriminator_forward.9} parent=27 // pred_region
        %p156 = scmp.lt.s32.totalorder %s10, 1
        %s157 = scalar_select %p156, %s10, 1
        %s158 = smul.addr %s157, 11
        %s159 = smul.addr %s158, 4
        %s160 = scalar_lea.vmem %s0, %s159
      $region32: #{nlayer_discriminator_forward.9} parent=27 // pred_fallthru
        _
    $region28: #{nlayer_discriminator_forward.9} parent=5 // pred_fallthru
      _
    %p161 = scmp.le.s32.totalorder 1, %s10
    %p162 = scmp.lt.s32.totalorder %s10, 3
    %p163 = pnand %p161, %p162
    %p164 = pneg %p163
    // Predicated region
    $region33: #{nlayer_discriminator_forward.9} parent=5 // pred_check
      _
    $region34: #{nlayer_discriminator_forward.9} parent=5 // pred_check_branch
      %166 = sbr.rel (%p163) target = $region36
    $region35: #{nlayer_discriminator_forward.9} parent=5 // pred_region
      %s167 = ssub.s32 %s10, 1
      %p168 = scmp.lt.s32.totalorder %s15, 1
      %s169 = scalar_select %p168, %s15, 1
      %s170 = smul.addr %s169, 11
      %s171 = smul.addr %s170, 4
      %s172 = scalar_lea.vmem %s0, %s171
      %p173 = pneg %p36
      %p174 = pneg %p33
      %p175 = pneg %p57
      %p176 = pneg %p54
      %p177 = pneg %p78
      %p178 = pneg %p75
      %p179 = pneg %p99
      %p180 = pneg %p96
      %p181 = pneg %p125
      %p182 = pneg %p122
      %p183 = scmp.lt.s32.totalorder %s15, 1
      %s184 = scalar_select %p183, %s15, 1
      %s185 = smul.addr %s184, 7
      %s186 = smul.addr %s185, 8
      %s187 = scalar_lea.vmem %s4, %s186
      %p188 = scmp.lt.s32.totalorder %s15, 1
      %s189 = scalar_select %p188, %s15, 1
      %s190 = smul.addr %s189, 11
      %s191 = smul.addr %s190, 4
      %s192 = scalar_lea.vmem %s0, %s191
      %p193 = scmp.lt.s32.totalorder %s15, 1
      %s194 = scalar_select %p193, %s15, 1
      %s195 = smul.addr %s194, 7
      %s196 = smul.addr %s195, 8
      %s197 = scalar_lea.vmem %s4, %s196
      %v199 = vld [vmem:[%s192] sm:$0xf]
      %v200 = vld [vmem:[%s192 + $0x4] sm:$0xf]
      %v201 = vld [vmem:[%s192 + $0x8] sm:$0xf]
      %v202 = vld [vmem:[%s192 + $0xc] sm:$0xf]
      %v203 = vld [vmem:[%s192 + $0x10] sm:$0xf]
      %v204 = vld [vmem:[%s192 + $0x14] sm:$0xf]
      %v205 = vld [vmem:[%s192 + $0x18] sm:$0x3]
      %v206 = vld [vmem:[%s1] sm:$0xf]
      %v207 = vld [vmem:[%s1 + $0x4] sm:$0xf]
      %v208 = vld [vmem:[%s1 + $0x8] sm:$0xf]
      %v209 = vld [vmem:[%s1 + $0xc] sm:$0xf]
      %v210 = vld [vmem:[%s1 + $0x10] sm:$0xf]
      %v211 = vld [vmem:[%s1 + $0x14] sm:$0xf]
      %v212 = vld [vmem:[%s1 + $0x18] sm:$0xf]
      %v213 = vld [vmem:[%s1 + $0x1c] sm:$0xf]
      %v214 = vld [vmem:[%s1 + $0x20] sm:$0xf]
      %v215 = vld [vmem:[%s1 + $0x24] sm:$0xf]
      %v216 = vld [vmem:[%s1 + $0x28] sm:$0xf]
      %v217 = vld [vmem:[%s1 + $0x2c] sm:$0xf]
      %v218 = vld [vmem:[%s1 + $0x30] sm:$0xf]
      %v219 = vld [vmem:[%s1 + $0x34] sm:$0xf]
      %v220 = vld [vmem:[%s1 + $0x38] sm:$0xf]
      %v221 = vld [vmem:[%s1 + $0x3c] sm:$0xf]
      %v222 = vld [vmem:[%s192 + $0x18] sm:$0x7]
      %s223 = scalar_lea.vmem %s1, 64
      %v224 = vld [vmem:[%s223] sm:$0xf]
      %v225 = vld [vmem:[%s223 + $0x4] sm:$0xf]
      %v226 = vld [vmem:[%s223 + $0x8] sm:$0xf]
      %v227 = vld [vmem:[%s223 + $0xc] sm:$0xf]
      %v228 = vld [vmem:[%s223 + $0x10] sm:$0xf]
      %v229 = vld [vmem:[%s223 + $0x14] sm:$0xf]
      %v230 = vld [vmem:[%s223 + $0x18] sm:$0xf]
      %v231 = vld [vmem:[%s223 + $0x1c] sm:$0xf]
      %v232 = vld [vmem:[%s223 + $0x20] sm:$0xf]
      %v233 = vld [vmem:[%s223 + $0x24] sm:$0xf]
      %v234 = vld [vmem:[%s223 + $0x28] sm:$0xf]
      %v235 = vld [vmem:[%s223 + $0x2c] sm:$0xf]
      %v236 = vld [vmem:[%s223 + $0x30] sm:$0xf]
      %v237 = vld [vmem:[%s223 + $0x34] sm:$0xf]
      %v238 = vld [vmem:[%s223 + $0x38] sm:$0xf]
      %v239 = vld [vmem:[%s223 + $0x3c] sm:$0xf]
      %v247 = vunpack.c.l.b16 %v199
      %v248 = vunpack.c.l.b16 %v200
      %v249 = vunpack.c.l.b16 %v201
      %v250 = vunpack.c.l.b16 %v202
      %v251 = vunpack.c.l.b16 %v203
      %v252 = vunpack.c.l.b16 %v204
      %v253 = vunpack.c.l.b16 %v222
      %v254 = vpack.c.b16 %v248, %v247
      %v255 = vpack.c.b16 %v250, %v249
      %v256 = vpack.c.b16 %v252, %v251
      %v257 = vpack.c.b16 %v253, %v253
      %vm258 = vsmask.f32 7424
      %v260 = vshrl.u32 %v254, 16
      %v262 = vshll.u32 %v254, 16
      %v264 = vrot.slane %v262, 1
      %v265 = vor.u32 %v260, %v264
      %v267 = vshll.u32 %v255, 16
      %v269 = vrot.slane %v267, 1
      %v270 = vsel %vm258, %v265, %v269
      %v271 = vshrl.u32 %v255, 16
      %v273 = vor.u32 %v271, %v269
      %v275 = vshll.u32 %v256, 16
      %v277 = vrot.slane %v275, 1
      %v278 = vsel %vm258, %v273, %v277
      %v279 = vshrl.u32 %v256, 16
      %v281 = vor.u32 %v279, %v277
      %v283 = vshll.u32 %v257, 16
      %v285 = vrot.slane %v283, 1
      %v286 = vsel %vm258, %v281, %v285
      %v287 = vshrl.u32 %v257, 16
      %v289 = vor.u32 %v287, %v285
      %v310 = vunpack.c.l.b16 %v224
      %v311 = vunpack.c.l.b16 %v225
      %v312 = vunpack.c.l.b16 %v226
      %v313 = vunpack.c.l.b16 %v227
      %v314 = vunpack.c.l.b16 %v228
      %v315 = vunpack.c.l.b16 %v229
      %v316 = vunpack.c.l.b16 %v230
      %v317 = vunpack.c.l.b16 %v231
      %v318 = vunpack.c.l.b16 %v232
      %v319 = vunpack.c.l.b16 %v233
      %v320 = vunpack.c.l.b16 %v234
      %v321 = vunpack.c.l.b16 %v235
      %v322 = vunpack.c.l.b16 %v236
      %v323 = vunpack.c.l.b16 %v237
      %v324 = vunpack.c.l.b16 %v238
      %v325 = vunpack.c.l.b16 %v239
      %v326 = vpack.c.b16 %v311, %v310
      %v327 = vpack.c.b16 %v313, %v312
      %v328 = vpack.c.b16 %v315, %v314
      %v329 = vpack.c.b16 %v317, %v316
      %v330 = vpack.c.b16 %v319, %v318
      %v331 = vpack.c.b16 %v321, %v320
      %v332 = vpack.c.b16 %v323, %v322
      %v333 = vpack.c.b16 %v325, %v324
      %342 = vmatprep.subr.bf16.mxu0 0
      %343 = vmatpush1.bf16.msra.mxu0 %v326
      %344 = vmatprep.subr.bf16.mxu0 0
      %345 = vmatpush1.bf16.msra.mxu0 %v327
      %346 = vmatprep.subr.bf16.mxu0 0
      %347 = vmatpush1.bf16.msra.mxu0 %v328
      %348 = vmatprep.subr.bf16.mxu0 0
      %349 = vmatpush1.bf16.msra.mxu0 %v329
      %350 = vmatprep.subr.bf16.mxu0 0
      %351 = vmatpush1.bf16.msra.mxu0 %v330
      %352 = vmatprep.subr.bf16.mxu0 0
      %353 = vmatpush1.bf16.msra.mxu0 %v331
      %354 = vmatprep.subr.bf16.mxu0 0
      %355 = vmatpush1.bf16.msra.mxu0 %v332
      %356 = vmatprep.subr.bf16.mxu0 0
      %357 = vmatpush1.bf16.msra.mxu0 %v333
      %358 = vmatprep.subr.bf16.mxu0 0
      %359 = vmatpush1.bf16.msra.mxu0 0
      %360 = vmatprep.subr.bf16.mxu0 0
      %361 = vmatpush1.bf16.msra.mxu0 0
      %362 = vmatprep.subr.bf16.mxu0 0
      %363 = vmatpush1.bf16.msra.mxu0 0
      %364 = vmatprep.subr.bf16.mxu0 0
      %365 = vmatpush1.bf16.msra.mxu0 0
      %366 = vmatprep.subr.bf16.mxu0 0
      %367 = vmatpush1.bf16.msra.mxu0 0
      %368 = vmatprep.subr.bf16.mxu0 0
      %369 = vmatpush1.bf16.msra.mxu0 0
      %370 = vmatprep.subr.bf16.mxu0 0
      %371 = vmatpush1.bf16.msra.mxu0 0
      %372 = vmatprep.subr.bf16.mxu0 0
      %373 = vmatpush1.bf16.msra.mxu0 0
      %374 = vmatprep.mubr.bf16.mxu0 0
      %375 = vmatmul.mubr.bf16.gmra.mrb[0].mxu0 %v270
      %v376 = vpop.f32.mrb[0].mxu0
      %v377 = vadd.f32 0.0, %v376
      %v378 = vpop.f32.mrb[0].mxu0
      %v379 = vpop.f32.mrb[0].mxu0
      %v380 = vadd.f32 0.0, %v379
      %v381 = vpop.f32.mrb[0].mxu0
      %382 = vmatprep.mubr.bf16.mxu0 0
      %383 = vmatmul.mubr.bf16.gmra.mrb[0].mxu0 %v278
      %v384 = vpop.f32.mrb[0].mxu0
      %v385 = vadd.f32 0.0, %v384
      %v386 = vpop.f32.mrb[0].mxu0
      %v387 = vpop.f32.mrb[0].mxu0
      %v388 = vadd.f32 0.0, %v387
      %v389 = vpop.f32.mrb[0].mxu0
      %390 = vmatprep.mubr.bf16.mxu0 0
      %391 = vmatmul.mubr.bf16.gmra.mrb[0].mxu0 %v286
      %v392 = vpop.f32.mrb[0].mxu0
      %v393 = vadd.f32 0.0, %v392
      %v394 = vpop.f32.mrb[0].mxu0
      %v395 = vpop.f32.mrb[0].mxu0
      %v396 = vadd.f32 0.0, %v395
      %v397 = vpop.f32.mrb[0].mxu0
      %398 = vmatprep.mubr.bf16.mxu0 0
      %399 = vmatmul.mubr.bf16.gmra.mrb[0].mxu0 %v289
      %v400 = vpop.f32.mrb[0].mxu0
      %v401 = vadd.f32 0.0, %v400
      %v402 = vpop.f32.mrb[0].mxu0
      %v403 = vpop.f32.mrb[0].mxu0
      %v404 = vpop.f32.mrb[0].mxu0
      %405 = vdwg.mxu0
      %v407 = vunpack.c.l.b16 %v205
      %v408 = vpack.c.b16 %v407, %v407
      %v429 = vunpack.c.l.b16 %v206
      %v430 = vunpack.c.l.b16 %v207
      %v431 = vunpack.c.l.b16 %v208
      %v432 = vunpack.c.l.b16 %v209
      %v433 = vunpack.c.l.b16 %v210
      %v434 = vunpack.c.l.b16 %v211
      %v435 = vunpack.c.l.b16 %v212
      %v436 = vunpack.c.l.b16 %v213
      %v437 = vunpack.c.l.b16 %v214
      %v438 = vunpack.c.l.b16 %v215
      %v439 = vunpack.c.l.b16 %v216
      %v440 = vunpack.c.l.b16 %v217
      %v441 = vunpack.c.l.b16 %v218
      %v442 = vunpack.c.l.b16 %v219
      %v443 = vunpack.c.l.b16 %v220
      %v444 = vunpack.c.l.b16 %v221
      %v445 = vpack.c.b16 %v430, %v429
      %v446 = vpack.c.b16 %v432, %v431
      %v447 = vpack.c.b16 %v434, %v433
      %v448 = vpack.c.b16 %v436, %v435
      %v449 = vpack.c.b16 %v438, %v437
      %v450 = vpack.c.b16 %v440, %v439
      %v451 = vpack.c.b16 %v442, %v441
      %v452 = vpack.c.b16 %v444, %v443
      %461 = vmatprep.subr.bf16.mxu0 0
      %462 = vmatpush1.bf16.msra.mxu0 %v445
      %463 = vmatprep.subr.bf16.mxu0 0
      %464 = vmatpush1.bf16.msra.mxu0 %v446
      %465 = vmatprep.subr.bf16.mxu0 0
      %466 = vmatpush1.bf16.msra.mxu0 %v447
      %467 = vmatprep.subr.bf16.mxu0 0
      %468 = vmatpush1.bf16.msra.mxu0 %v448
      %469 = vmatprep.subr.bf16.mxu0 0
      %470 = vmatpush1.bf16.msra.mxu0 %v449
      %471 = vmatprep.subr.bf16.mxu0 0
      %472 = vmatpush1.bf16.msra.mxu0 %v450
      %473 = vmatprep.subr.bf16.mxu0 0
      %474 = vmatpush1.bf16.msra.mxu0 %v451
      %475 = vmatprep.subr.bf16.mxu0 0
      %476 = vmatpush1.bf16.msra.mxu0 %v452
      %477 = vmatprep.subr.bf16.mxu0 0
      %478 = vmatpush1.bf16.msra.mxu0 0
      %479 = vmatprep.subr.bf16.mxu0 0
      %480 = vmatpush1.bf16.msra.mxu0 0
      %481 = vmatprep.subr.bf16.mxu0 0
      %482 = vmatpush1.bf16.msra.mxu0 0
      %483 = vmatprep.subr.bf16.mxu0 0
      %484 = vmatpush1.bf16.msra.mxu0 0
      %485 = vmatprep.subr.bf16.mxu0 0
      %486 = vmatpush1.bf16.msra.mxu0 0
      %487 = vmatprep.subr.bf16.mxu0 0
      %488 = vmatpush1.bf16.msra.mxu0 0
      %489 = vmatprep.subr.bf16.mxu0 0
      %490 = vmatpush1.bf16.msra.mxu0 0
      %491 = vmatprep.subr.bf16.mxu0 0
      %492 = vmatpush1.bf16.msra.mxu0 0
      %493 = vmatprep.mubr.bf16.mxu0 0
      %494 = vmatmul.mubr.bf16.gmra.mrb[0].mxu0 %v254
      %v495 = vpop.f32.mrb[0].mxu0
      %v496 = vadd.f32 %v377, %v495
      %v497 = vpop.f32.mrb[0].mxu0
      %v498 = vpop.f32.mrb[0].mxu0
      %v499 = vadd.f32 %v380, %v498
      %v500 = vpop.f32.mrb[0].mxu0
      %501 = vmatprep.mubr.bf16.mxu0 0
      %502 = vmatmul.mubr.bf16.gmra.mrb[0].mxu0 %v255
      %v503 = vpop.f32.mrb[0].mxu0
      %v504 = vadd.f32 %v385, %v503
      %v505 = vpop.f32.mrb[0].mxu0
      %v506 = vpop.f32.mrb[0].mxu0
      %v507 = vadd.f32 %v388, %v506
      %v508 = vpop.f32.mrb[0].mxu0
      %509 = vmatprep.mubr.bf16.mxu0 0
      %510 = vmatmul.mubr.bf16.gmra.mrb[0].mxu0 %v256
      %v511 = vpop.f32.mrb[0].mxu0
      %v512 = vadd.f32 %v393, %v511
      %v513 = vpop.f32.mrb[0].mxu0
      %v514 = vpop.f32.mrb[0].mxu0
      %v515 = vadd.f32 %v396, %v514
      %v516 = vpop.f32.mrb[0].mxu0
      %517 = vmatprep.mubr.bf16.mxu0 0
      %518 = vmatmul.mubr.bf16.gmra.mrb[0].mxu0 %v408
      %v519 = vpop.f32.mrb[0].mxu0
      %v520 = vadd.f32 %v401, %v519
      %v521 = vpop.f32.mrb[0].mxu0
      %v522 = vpop.f32.mrb[0].mxu0
      %v523 = vpop.f32.mrb[0].mxu0
      %524 = vdwg.mxu0
      %v525 = vld [vmem:[%s192] sm:$0xe]
      %s526 = scalar_lea.vmem %s1, 128
      %v527 = vld [vmem:[%s526] sm:$0xf]
      %v528 = vld [vmem:[%s526 + $0x4] sm:$0xf]
      %v529 = vld [vmem:[%s526 + $0x8] sm:$0xf]
      %v530 = vld [vmem:[%s526 + $0xc] sm:$0xf]
      %v531 = vld [vmem:[%s526 + $0x10] sm:$0xf]
      %v532 = vld [vmem:[%s526 + $0x14] sm:$0xf]
      %v533 = vld [vmem:[%s526 + $0x18] sm:$0xf]
      %v534 = vld [vmem:[%s526 + $0x1c] sm:$0xf]
      %v535 = vld [vmem:[%s526 + $0x20] sm:$0xf]
      %v536 = vld [vmem:[%s526 + $0x24] sm:$0xf]
      %v537 = vld [vmem:[%s526 + $0x28] sm:$0xf]
      %v538 = vld [vmem:[%s526 + $0x2c] sm:$0xf]
      %v539 = vld [vmem:[%s526 + $0x30] sm:$0xf]
      %v540 = vld [vmem:[%s526 + $0x34] sm:$0xf]
      %v541 = vld [vmem:[%s526 + $0x38] sm:$0xf]
      %v542 = vld [vmem:[%s526 + $0x3c] sm:$0xf]
      %v544 = vunpack.c.l.b16 %v525
      %v545 = vpack.c.b16 %v248, %v544
      %vm546 = vcmask 1046528
      %v547 = vrot.slane %v545, 1
      %v548 = vrot.slane %v255, 1
      %v549 = vsel %vm546, %v547, %v548
      %v550 = vrot.slane %v256, 1
      %v551 = vsel %vm546, %v548, %v550
      %v552 = vrot.slane %v257, 1
      %v553 = vsel %vm546, %v550, %v552
      %v574 = vunpack.c.l.b16 %v527
      %v575 = vunpack.c.l.b16 %v528
      %v576 = vunpack.c.l.b16 %v529
      %v577 = vunpack.c.l.b16 %v530
      %v578 = vunpack.c.l.b16 %v531
      %v579 = vunpack.c.l.b16 %v532
      %v580 = vunpack.c.l.b16 %v533
      %v581 = vunpack.c.l.b16 %v534
      %v582 = vunpack.c.l.b16 %v535
      %v583 = vunpack.c.l.b16 %v536
      %v584 = vunpack.c.l.b16 %v537
      %v585 = vunpack.c.l.b16 %v538
      %v586 = vunpack.c.l.b16 %v539
      %v587 = vunpack.c.l.b16 %v540
      %v588 = vunpack.c.l.b16 %v541
      %v589 = vunpack.c.l.b16 %v542
      %v590 = vpack.c.b16 %v575, %v574
      %v591 = vpack.c.b16 %v577, %v576
      %v592 = vpack.c.b16 %v579, %v578
      %v593 = vpack.c.b16 %v581, %v580
      %v594 = vpack.c.b16 %v583, %v582
      %v595 = vpack.c.b16 %v585, %v584
      %v596 = vpack.c.b16 %v587, %v586
      %v597 = vpack.c.b16 %v589, %v588
      %606 = vmatprep.subr.bf16.mxu0 0
      %607 = vmatpush1.bf16.msra.mxu0 %v590
      %608 = vmatprep.subr.bf16.mxu0 0
      %609 = vmatpush1.bf16.msra.mxu0 %v591
      %610 = vmatprep.subr.bf16.mxu0 0
      %611 = vmatpush1.bf16.msra.mxu0 %v592
      %612 = vmatprep.subr.bf16.mxu0 0
      %613 = vmatpush1.bf16.msra.mxu0 %v593
      %614 = vmatprep.subr.bf16.mxu0 0
      %615 = vmatpush1.bf16.msra.mxu0 %v594
      %616 = vmatprep.subr.bf16.mxu0 0
      %617 = vmatpush1.bf16.msra.mxu0 %v595
      %618 = vmatprep.subr.bf16.mxu0 0
      %619 = vmatpush1.bf16.msra.mxu0 %v596
      %620 = vmatprep.subr.bf16.mxu0 0
      %621 = vmatpush1.bf16.msra.mxu0 %v597
      %622 = vmatprep.subr.bf16.mxu0 0
      %623 = vmatpush1.bf16.msra.mxu0 0
      %624 = vmatprep.subr.bf16.mxu0 0
      %625 = vmatpush1.bf16.msra.mxu0 0
      %626 = vmatprep.subr.bf16.mxu0 0
      %627 = vmatpush1.bf16.msra.mxu0 0
      %628 = vmatprep.subr.bf16.mxu0 0
      %629 = vmatpush1.bf16.msra.mxu0 0
      %630 = vmatprep.subr.bf16.mxu0 0
      %631 = vmatpush1.bf16.msra.mxu0 0
      %632 = vmatprep.subr.bf16.mxu0 0
      %633 = vmatpush1.bf16.msra.mxu0 0
      %634 = vmatprep.subr.bf16.mxu0 0
      %635 = vmatpush1.bf16.msra.mxu0 0
      %636 = vmatprep.subr.bf16.mxu0 0
      %637 = vmatpush1.bf16.msra.mxu0 0
      %638 = vmatprep.mubr.bf16.mxu0 0
      %639 = vmatmul.mubr.bf16.gmra.mrb[0].mxu0 %v549
      %v640 = vpop.f32.mrb[0].mxu0
      %v641 = vadd.f32 0.0, %v640
      %v642 = vpop.f32.mrb[0].mxu0
      %v643 = vpop.f32.mrb[0].mxu0
      %v644 = vadd.f32 0.0, %v643
      %v645 = vpop.f32.mrb[0].mxu0
      %646 = vmatprep.mubr.bf16.mxu0 0
      %647 = vmatmul.mubr.bf16.gmra.mrb[0].mxu0 %v551
      %v648 = vpop.f32.mrb[0].mxu0
      %v649 = vadd.f32 0.0, %v648
      %v650 = vpop.f32.mrb[0].mxu0
      %v651 = vpop.f32.mrb[0].mxu0
      %v652 = vadd.f32 0.0, %v651
      %v653 = vpop.f32.mrb[0].mxu0
      %654 = vmatprep.mubr.bf16.mxu0 0
      %655 = vmatmul.mubr.bf16.gmra.mrb[0].mxu0 %v553
      %v656 = vpop.f32.mrb[0].mxu0
      %v657 = vadd.f32 0.0, %v656
      %v658 = vpop.f32.mrb[0].mxu0
      %v659 = vpop.f32.mrb[0].mxu0
      %v660 = vadd.f32 0.0, %v659
      %v661 = vpop.f32.mrb[0].mxu0
      %662 = vmatprep.mubr.bf16.mxu0 0
      %663 = vmatmul.mubr.bf16.gmra.mrb[0].mxu0 %v552
      %v664 = vpop.f32.mrb[0].mxu0
      %v665 = vadd.f32 0.0, %v664
      %v666 = vpop.f32.mrb[0].mxu0
      %v667 = vpop.f32.mrb[0].mxu0
      %v668 = vpop.f32.mrb[0].mxu0
      %669 = vdwg.mxu0
      %v670 = vadd.f32 %v496, %v641
      %v671 = vadd.f32 %v499, %v644
      %v672 = vadd.f32 %v504, %v649
      %v673 = vadd.f32 %v507, %v652
      %v674 = vadd.f32 %v512, %v657
      %v675 = vadd.f32 %v515, %v660
      %v676 = vadd.f32 %v520, %v665
      %v677 = vld [vmem:[%s192 + $0x18] sm:$0xf]
      %s678 = scalar_lea.vmem %s1, 192
      %v679 = vld [vmem:[%s678] sm:$0xf]
      %v680 = vld [vmem:[%s678 + $0x4] sm:$0xf]
      %v681 = vld [vmem:[%s678 + $0x8] sm:$0xf]
      %v682 = vld [vmem:[%s678 + $0xc] sm:$0xf]
      %v683 = vld [vmem:[%s678 + $0x10] sm:$0xf]
      %v684 = vld [vmem:[%s678 + $0x14] sm:$0xf]
      %v685 = vld [vmem:[%s678 + $0x18] sm:$0xf]
      %v686 = vld [vmem:[%s678 + $0x1c] sm:$0xf]
      %v687 = vld [vmem:[%s678 + $0x20] sm:$0xf]
      %v688 = vld [vmem:[%s678 + $0x24] sm:$0xf]
      %v689 = vld [vmem:[%s678 + $0x28] sm:$0xf]
      %v690 = vld [vmem:[%s678 + $0x2c] sm:$0xf]
      %v691 = vld [vmem:[%s678 + $0x30] sm:$0xf]
      %v692 = vld [vmem:[%s678 + $0x34] sm:$0xf]
      %v693 = vld [vmem:[%s678 + $0x38] sm:$0xf]
      %v694 = vld [vmem:[%s678 + $0x3c] sm:$0xf]
      %v696 = vunpack.c.l.b16 %v677
      %v697 = vpack.c.b16 %v696, %v696
      %vm698 = vsmask.f32 6400
      %v700 = vshrl.u32 %v545, 16
      %v702 = vrot.slane %v700, 1
      %v703 = vshll.u32 %v545, 16
      %v705 = vrot.slane %v703, 2
      %v706 = vor.u32 %v702, %v705
      %v707 = vrot.slane %v271, 1
      %v708 = vrot.slane %v267, 2
      %v709 = vor.u32 %v707, %v708
      %v710 = vsel %vm698, %v706, %v709
      %v711 = vrot.slane %v279, 1
      %v712 = vrot.slane %v275, 2
      %v713 = vor.u32 %v711, %v712
      %v714 = vsel %vm698, %v709, %v713
      %v716 = vshrl.u32 %v697, 16
      %v718 = vrot.slane %v716, 1
      %v719 = vshll.u32 %v697, 16
      %v721 = vrot.slane %v719, 2
      %v722 = vor.u32 %v718, %v721
      %v723 = vsel %vm698, %v713, %v722
      %v744 = vunpack.c.l.b16 %v679
      %v745 = vunpack.c.l.b16 %v680
      %v746 = vunpack.c.l.b16 %v681
      %v747 = vunpack.c.l.b16 %v682
      %v748 = vunpack.c.l.b16 %v683
      %v749 = vunpack.c.l.b16 %v684
      %v750 = vunpack.c.l.b16 %v685
      %v751 = vunpack.c.l.b16 %v686
      %v752 = vunpack.c.l.b16 %v687
      %v753 = vunpack.c.l.b16 %v688
      %v754 = vunpack.c.l.b16 %v689
      %v755 = vunpack.c.l.b16 %v690
      %v756 = vunpack.c.l.b16 %v691
      %v757 = vunpack.c.l.b16 %v692
      %v758 = vunpack.c.l.b16 %v693
      %v759 = vunpack.c.l.b16 %v694
      %v760 = vpack.c.b16 %v745, %v744
      %v761 = vpack.c.b16 %v747, %v746
      %v762 = vpack.c.b16 %v749, %v748
      %v763 = vpack.c.b16 %v751, %v750
      %v764 = vpack.c.b16 %v753, %v752
      %v765 = vpack.c.b16 %v755, %v754
      %v766 = vpack.c.b16 %v757, %v756
      %v767 = vpack.c.b16 %v759, %v758
      %776 = vmatprep.subr.bf16.mxu0 0
      %777 = vmatpush1.bf16.msra.mxu0 %v760
      %778 = vmatprep.subr.bf16.mxu0 0
      %779 = vmatpush1.bf16.msra.mxu0 %v761
      %780 = vmatprep.subr.bf16.mxu0 0
      %781 = vmatpush1.bf16.msra.mxu0 %v762
      %782 = vmatprep.subr.bf16.mxu0 0
      %783 = vmatpush1.bf16.msra.mxu0 %v763
      %784 = vmatprep.subr.bf16.mxu0 0
      %785 = vmatpush1.bf16.msra.mxu0 %v764
      %786 = vmatprep.subr.bf16.mxu0 0
      %787 = vmatpush1.bf16.msra.mxu0 %v765
      %788 = vmatprep.subr.bf16.mxu0 0
      %789 = vmatpush1.bf16.msra.mxu0 %v766
      %790 = vmatprep.subr.bf16.mxu0 0
      %791 = vmatpush1.bf16.msra.mxu0 %v767
      %792 = vmatprep.subr.bf16.mxu0 0
      %793 = vmatpush1.bf16.msra.mxu0 0
      %794 = vmatprep.subr.bf16.mxu0 0
      %795 = vmatpush1.bf16.msra.mxu0 0
      %796 = vmatprep.subr.bf16.mxu0 0
      %797 = vmatpush1.bf16.msra.mxu0 0
      %798 = vmatprep.subr.bf16.mxu0 0
      %799 = vmatpush1.bf16.msra.mxu0 0
      %800 = vmatprep.subr.bf16.mxu0 0
      %801 = vmatpush1.bf16.msra.mxu0 0
      %802 = vmatprep.subr.bf16.mxu0 0
      %803 = vmatpush1.bf16.msra.mxu0 0
      %804 = vmatprep.subr.bf16.mxu0 0
      %805 = vmatpush1.bf16.msra.mxu0 0
      %806 = vmatprep.subr.bf16.mxu0 0
      %807 = vmatpush1.bf16.msra.mxu0 0
      %808 = vmatprep.mubr.bf16.mxu0 0
      %809 = vmatmul.mubr.bf16.gmra.mrb[0].mxu0 %v710
      %v810 = vpop.f32.mrb[0].mxu0
      %v811 = vadd.f32 0.0, %v810
      %v812 = vpop.f32.mrb[0].mxu0
      %v813 = vpop.f32.mrb[0].mxu0
      %v814 = vadd.f32 0.0, %v813
      %v815 = vpop.f32.mrb[0].mxu0
      %816 = vmatprep.mubr.bf16.mxu0 0
      %817 = vmatmul.mubr.bf16.gmra.mrb[0].mxu0 %v714
      %v818 = vpop.f32.mrb[0].mxu0
      %v819 = vadd.f32 0.0, %v818
      %v820 = vpop.f32.mrb[0].mxu0
      %v821 = vpop.f32.mrb[0].mxu0
      %v822 = vadd.f32 0.0, %v821
      %v823 = vpop.f32.mrb[0].mxu0
      %824 = vmatprep.mubr.bf16.mxu0 0
      %825 = vmatmul.mubr.bf16.gmra.mrb[0].mxu0 %v723
      %v826 = vpop.f32.mrb[0].mxu0
      %v827 = vadd.f32 0.0, %v826
      %v828 = vpop.f32.mrb[0].mxu0
      %v829 = vpop.f32.mrb[0].mxu0
      %v830 = vadd.f32 0.0, %v829
      %v831 = vpop.f32.mrb[0].mxu0
      %832 = vmatprep.mubr.bf16.mxu0 0
      %833 = vmatmul.mubr.bf16.gmra.mrb[0].mxu0 %v722
      %v834 = vpop.f32.mrb[0].mxu0
      %v835 = vadd.f32 0.0, %v834
      %v836 = vpop.f32.mrb[0].mxu0
      %v837 = vpop.f32.mrb[0].mxu0
      %v838 = vpop.f32.mrb[0].mxu0
      %839 = vdwg.mxu0
      %v840 = vadd.f32 %v670, %v811
      %v841 = vadd.f32 %v671, %v814
      %v842 = vadd.f32 %v672, %v819
      %v843 = vadd.f32 %v673, %v822
      %v844 = vadd.f32 %v674, %v827
      %v845 = vadd.f32 %v675, %v830
      %v846 = vadd.f32 %v676, %v835
      %v847 = vld [vmem:[%s192 + $0x4] sm:$0xe]
      %v848 = vld [vmem:[%s192 + $0x8] sm:$0xf]
      %v849 = vld [vmem:[%s192 + $0xc] sm:$0xf]
      %v850 = vld [vmem:[%s192 + $0x10] sm:$0xf]
      %v851 = vld [vmem:[%s192 + $0x14] sm:$0xf]
      %v852 = vld [vmem:[%s192 + $0x18] sm:$0xf]
      %v853 = vld [vmem:[%s192 + $0x1c] sm:$0xf]
      %s854 = scalar_lea.vmem %s1, 256
      %v855 = vld [vmem:[%s854] sm:$0xf]
      %v856 = vld [vmem:[%s854 + $0x4] sm:$0xf]
      %v857 = vld [vmem:[%s854 + $0x8] sm:$0xf]
      %v858 = vld [vmem:[%s854 + $0xc] sm:$0xf]
      %v859 = vld [vmem:[%s854 + $0x10] sm:$0xf]
      %v860 = vld [vmem:[%s854 + $0x14] sm:$0xf]
      %v861 = vld [vmem:[%s854 + $0x18] sm:$0xf]
      %v862 = vld [vmem:[%s854 + $0x1c] sm:$0xf]
      %v863 = vld [vmem:[%s854 + $0x20] sm:$0xf]
      %v864 = vld [vmem:[%s854 + $0x24] sm:$0xf]
      %v865 = vld [vmem:[%s854 + $0x28] sm:$0xf]
      %v866 = vld [vmem:[%s854 + $0x2c] sm:$0xf]
      %v867 = vld [vmem:[%s854 + $0x30] sm:$0xf]
      %v868 = vld [vmem:[%s854 + $0x34] sm:$0xf]
      %v869 = vld [vmem:[%s854 + $0x38] sm:$0xf]
      %v870 = vld [vmem:[%s854 + $0x3c] sm:$0xf]
      %v878 = vunpack.c.l.b16 %v847
      %v879 = vunpack.c.l.b16 %v848
      %v880 = vunpack.c.l.b16 %v849
      %v881 = vunpack.c.l.b16 %v850
      %v882 = vunpack.c.l.b16 %v851
      %v883 = vunpack.c.l.b16 %v852
      %v884 = vunpack.c.l.b16 %v853
      %v885 = vpack.c.b16 %v879, %v878
      %v886 = vpack.c.b16 %v881, %v880
      %v887 = vpack.c.b16 %v883, %v882
      %v888 = vpack.c.b16 %v884, %v884
      %v890 = vshrl.u32 %v885, 16
      %v892 = vrot.slane %v890, 1
      %v893 = vshll.u32 %v885, 16
      %v895 = vrot.slane %v893, 2
      %v896 = vor.u32 %v892, %v895
      %v898 = vshrl.u32 %v886, 16
      %v900 = vrot.slane %v898, 1
      %v901 = vshll.u32 %v886, 16
      %v903 = vrot.slane %v901, 2
      %v904 = vor.u32 %v900, %v903
      %v905 = vsel %vm698, %v896, %v904
      %v907 = vshrl.u32 %v887, 16
      %v909 = vrot.slane %v907, 1
      %v910 = vshll.u32 %v887, 16
      %v912 = vrot.slane %v910, 2
      %v913 = vor.u32 %v909, %v912
      %v914 = vsel %vm698, %v904, %v913
      %v916 = vshrl.u32 %v888, 16
      %v918 = vrot.slane %v916, 1
      %v919 = vshll.u32 %v888, 16
      %v921 = vrot.slane %v919, 2
      %v922 = vor.u32 %v918, %v921
      %v923 = vsel %vm698, %v913, %v922
      %v944 = vunpack.c.l.b16 %v855
      %v945 = vunpack.c.l.b16 %v856
      %v946 = vunpack.c.l.b16 %v857
      %v947 = vunpack.c.l.b16 %v858
      %v948 = vunpack.c.l.b16 %v859
      %v949 = vunpack.c.l.b16 %v860
      %v950 = vunpack.c.l.b16 %v861
      %v951 = vunpack.c.l.b16 %v862
      %v952 = vunpack.c.l.b16 %v863
      %v953 = vunpack.c.l.b16 %v864
      %v954 = vunpack.c.l.b16 %v865
      %v955 = vunpack.c.l.b16 %v866
      %v956 = vunpack.c.l.b16 %v867
      %v957 = vunpack.c.l.b16 %v868
      %v958 = vunpack.c.l.b16 %v869
      %v959 = vunpack.c.l.b16 %v870
      %v960 = vpack.c.b16 %v945, %v944
      %v961 = vpack.c.b16 %v947, %v946
      %v962 = vpack.c.b16 %v949, %v948
      %v963 = vpack.c.b16 %v951, %v950
      %v964 = vpack.c.b16 %v953, %v952
      %v965 = vpack.c.b16 %v955, %v954
      %v966 = vpack.c.b16 %v957, %v956
      %v967 = vpack.c.b16 %v959, %v958
      %976 = vmatprep.subr.bf16.mxu0 0
      %977 = vmatpush1.bf16.msra.mxu0 %v960
      %978 = vmatprep.subr.bf16.mxu0 0
      %979 = vmatpush1.bf16.msra.mxu0 %v961
      %980 = vmatprep.subr.bf16.mxu0 0
      %981 = vmatpush1.bf16.msra.mxu0 %v962
      %982 = vmatprep.subr.bf16.mxu0 0
      %983 = vmatpush1.bf16.msra.mxu0 %v963
      %984 = vmatprep.subr.bf16.mxu0 0
      %985 = vmatpush1.bf16.msra.mxu0 %v964
      %986 = vmatprep.subr.bf16.mxu0 0
      %987 = vmatpush1.bf16.msra.mxu0 %v965
      %988 = vmatprep.subr.bf16.mxu0 0
      %989 = vmatpush1.bf16.msra.mxu0 %v966
      %990 = vmatprep.subr.bf16.mxu0 0
      %991 = vmatpush1.bf16.msra.mxu0 %v967
      %992 = vmatprep.subr.bf16.mxu0 0
      %993 = vmatpush1.bf16.msra.mxu0 0
      %994 = vmatprep.subr.bf16.mxu0 0
      %995 = vmatpush1.bf16.msra.mxu0 0
      %996 = vmatprep.subr.bf16.mxu0 0
      %997 = vmatpush1.bf16.msra.mxu0 0
      %998 = vmatprep.subr.bf16.mxu0 0
      %999 = vmatpush1.bf16.msra.mxu0 0
      %1000 = vmatprep.subr.bf16.mxu0 0
      %1001 = vmatpush1.bf16.msra.mxu0 0
      %1002 = vmatprep.subr.bf16.mxu0 0
      %1003 = vmatpush1.bf16.msra.mxu0 0
      %1004 = vmatprep.subr.bf16.mxu0 0
      %1005 = vmatpush1.bf16.msra.mxu0 0
      %1006 = vmatprep.subr.bf16.mxu0 0
      %1007 = vmatpush1.bf16.msra.mxu0 0
      %1008 = vmatprep.mubr.bf16.mxu0 0
      %1009 = vmatmul.mubr.bf16.gmra.mrb[0].mxu0 %v905
      %v1010 = vpop.f32.mrb[0].mxu0
      %v1011 = vadd.f32 0.0, %v1010
      %v1012 = vpop.f32.mrb[0].mxu0
      %v1013 = vpop.f32.mrb[0].mxu0
      %v1014 = vadd.f32 0.0, %v1013
      %v1015 = vpop.f32.mrb[0].mxu0
      %1016 = vmatprep.mubr.bf16.mxu0 0
      %1017 = vmatmul.mubr.bf16.gmra.mrb[0].mxu0 %v914
      %v1018 = vpop.f32.mrb[0].mxu0
      %v1019 = vadd.f32 0.0, %v1018
      %v1020 = vpop.f32.mrb[0].mxu0
      %v1021 = vpop.f32.mrb[0].mxu0
      %v1022 = vadd.f32 0.0, %v1021
      %v1023 = vpop.f32.mrb[0].mxu0
      %1024 = vmatprep.mubr.bf16.mxu0 0
      %1025 = vmatmul.mubr.bf16.gmra.mrb[0].mxu0 %v923
      %v1026 = vpop.f32.mrb[0].mxu0
      %v1027 = vadd.f32 0.0, %v1026
      %v1028 = vpop.f32.mrb[0].mxu0
      %v1029 = vpop.f32.mrb[0].mxu0
      %v1030 = vadd.f32 0.0, %v1029
      %v1031 = vpop.f32.mrb[0].mxu0
      %1032 = vmatprep.mubr.bf16.mxu0 0
      %1033 = vmatmul.mubr.bf16.gmra.mrb[0].mxu0 %v922
      %v1034 = vpop.f32.mrb[0].mxu0
      %v1035 = vadd.f32 0.0, %v1034
      %v1036 = vpop.f32.mrb[0].mxu0
      %v1037 = vpop.f32.mrb[0].mxu0
      %v1038 = vpop.f32.mrb[0].mxu0
      %1039 = vdwg.mxu0
      %v1040 = vadd.f32 %v840, %v1011
      %v1041 = vadd.f32 %v841, %v1014
      %v1042 = vadd.f32 %v842, %v1019
      %v1043 = vadd.f32 %v843, %v1022
      %v1044 = vadd.f32 %v844, %v1027
      %v1045 = vadd.f32 %v845, %v1030
      %v1046 = vadd.f32 %v846, %v1035
      %v1047 = vld [vmem:[%s192 + $0x4] sm:$0xc]
      %s1048 = scalar_lea.vmem %s1, 320
      %v1049 = vld [vmem:[%s1048] sm:$0xf]
      %v1050 = vld [vmem:[%s1048 + $0x4] sm:$0xf]
      %v1051 = vld [vmem:[%s1048 + $0x8] sm:$0xf]
      %v1052 = vld [vmem:[%s1048 + $0xc] sm:$0xf]
      %v1053 = vld [vmem:[%s1048 + $0x10] sm:$0xf]
      %v1054 = vld [vmem:[%s1048 + $0x14] sm:$0xf]
      %v1055 = vld [vmem:[%s1048 + $0x18] sm:$0xf]
      %v1056 = vld [vmem:[%s1048 + $0x1c] sm:$0xf]
      %v1057 = vld [vmem:[%s1048 + $0x20] sm:$0xf]
      %v1058 = vld [vmem:[%s1048 + $0x24] sm:$0xf]
      %v1059 = vld [vmem:[%s1048 + $0x28] sm:$0xf]
      %v1060 = vld [vmem:[%s1048 + $0x2c] sm:$0xf]
      %v1061 = vld [vmem:[%s1048 + $0x30] sm:$0xf]
      %v1062 = vld [vmem:[%s1048 + $0x34] sm:$0xf]
      %v1063 = vld [vmem:[%s1048 + $0x38] sm:$0xf]
      %v1064 = vld [vmem:[%s1048 + $0x3c] sm:$0xf]
      %v1066 = vunpack.c.l.b16 %v1047
      %v1067 = vpack.c.b16 %v879, %v1066
      %vm1068 = vcmask 1045504
      %v1069 = vrot.slane %v1067, 2
      %v1070 = vrot.slane %v886, 2
      %v1071 = vsel %vm1068, %v1069, %v1070
      %v1072 = vrot.slane %v887, 2
      %v1073 = vsel %vm1068, %v1070, %v1072
      %v1074 = vrot.slane %v888, 2
      %v1075 = vsel %vm1068, %v1072, %v1074
      %v1096 = vunpack.c.l.b16 %v1049
      %v1097 = vunpack.c.l.b16 %v1050
      %v1098 = vunpack.c.l.b16 %v1051
      %v1099 = vunpack.c.l.b16 %v1052
      %v1100 = vunpack.c.l.b16 %v1053
      %v1101 = vunpack.c.l.b16 %v1054
      %v1102 = vunpack.c.l.b16 %v1055
      %v1103 = vunpack.c.l.b16 %v1056
      %v1104 = vunpack.c.l.b16 %v1057
      %v1105 = vunpack.c.l.b16 %v1058
      %v1106 = vunpack.c.l.b16 %v1059
      %v1107 = vunpack.c.l.b16 %v1060
      %v1108 = vunpack.c.l.b16 %v1061
      %v1109 = vunpack.c.l.b16 %v1062
      %v1110 = vunpack.c.l.b16 %v1063
      %v1111 = vunpack.c.l.b16 %v1064
      %v1112 = vpack.c.b16 %v1097, %v1096
      %v1113 = vpack.c.b16 %v1099, %v1098
      %v1114 = vpack.c.b16 %v1101, %v1100
      %v1115 = vpack.c.b16 %v1103, %v1102
      %v1116 = vpack.c.b16 %v1105, %v1104
      %v1117 = vpack.c.b16 %v1107, %v1106
      %v1118 = vpack.c.b16 %v1109, %v1108
      %v1119 = vpack.c.b16 %v1111, %v1110
      %1128 = vmatprep.subr.bf16.mxu0 0
      %1129 = vmatpush1.bf16.msra.mxu0 %v1112
      %1130 = vmatprep.subr.bf16.mxu0 0
      %1131 = vmatpush1.bf16.msra.mxu0 %v1113
      %1132 = vmatprep.subr.bf16.mxu0 0
      %1133 = vmatpush1.bf16.msra.mxu0 %v1114
      %1134 = vmatprep.subr.bf16.mxu0 0
      %1135 = vmatpush1.bf16.msra.mxu0 %v1115
      %1136 = vmatprep.subr.bf16.mxu0 0
      %1137 = vmatpush1.bf16.msra.mxu0 %v1116
      %1138 = vmatprep.subr.bf16.mxu0 0
      %1139 = vmatpush1.bf16.msra.mxu0 %v1117
      %1140 = vmatprep.subr.bf16.mxu0 0
      %1141 = vmatpush1.bf16.msra.mxu0 %v1118
      %1142 = vmatprep.subr.bf16.mxu0 0
      %1143 = vmatpush1.bf16.msra.mxu0 %v1119
      %1144 = vmatprep.subr.bf16.mxu0 0
      %1145 = vmatpush1.bf16.msra.mxu0 0
      %1146 = vmatprep.subr.bf16.mxu0 0
      %1147 = vmatpush1.bf16.msra.mxu0 0
      %1148 = vmatprep.subr.bf16.mxu0 0
      %1149 = vmatpush1.bf16.msra.mxu0 0
      %1150 = vmatprep.subr.bf16.mxu0 0
      %1151 = vmatpush1.bf16.msra.mxu0 0
      %1152 = vmatprep.subr.bf16.mxu0 0
      %1153 = vmatpush1.bf16.msra.mxu0 0
      %1154 = vmatprep.subr.bf16.mxu0 0
      %1155 = vmatpush1.bf16.msra.mxu0 0
      %1156 = vmatprep.subr.bf16.mxu0 0
      %1157 = vmatpush1.bf16.msra.mxu0 0
      %1158 = vmatprep.subr.bf16.mxu0 0
      %1159 = vmatpush1.bf16.msra.mxu0 0
      %1160 = vmatprep.mubr.bf16.mxu0 0
      %1161 = vmatmul.mubr.bf16.gmra.mrb[0].mxu0 %v1071
      %v1162 = vpop.f32.mrb[0].mxu0
      %v1163 = vadd.f32 0.0, %v1162
      %v1164 = vpop.f32.mrb[0].mxu0
      %v1165 = vpop.f32.mrb[0].mxu0
      %v1166 = vadd.f32 0.0, %v1165
      %v1167 = vpop.f32.mrb[0].mxu0
      %1168 = vmatprep.mubr.bf16.mxu0 0
      %1169 = vmatmul.mubr.bf16.gmra.mrb[0].mxu0 %v1073
      %v1170 = vpop.f32.mrb[0].mxu0
      %v1171 = vadd.f32 0.0, %v1170
      %v1172 = vpop.f32.mrb[0].mxu0
      %v1173 = vpop.f32.mrb[0].mxu0
      %v1174 = vadd.f32 0.0, %v1173
      %v1175 = vpop.f32.mrb[0].mxu0
      %1176 = vmatprep.mubr.bf16.mxu0 0
      %1177 = vmatmul.mubr.bf16.gmra.mrb[0].mxu0 %v1075
      %v1178 = vpop.f32.mrb[0].mxu0
      %v1179 = vadd.f32 0.0, %v1178
      %v1180 = vpop.f32.mrb[0].mxu0
      %v1181 = vpop.f32.mrb[0].mxu0
      %v1182 = vadd.f32 0.0, %v1181
      %v1183 = vpop.f32.mrb[0].mxu0
      %1184 = vmatprep.mubr.bf16.mxu0 0
      %1185 = vmatmul.mubr.bf16.gmra.mrb[0].mxu0 %v1074
      %v1186 = vpop.f32.mrb[0].mxu0
      %v1187 = vadd.f32 0.0, %v1186
      %v1188 = vpop.f32.mrb[0].mxu0
      %v1189 = vpop.f32.mrb[0].mxu0
      %v1190 = vpop.f32.mrb[0].mxu0
      %1191 = vdwg.mxu0
      %v1192 = vadd.f32 %v1040, %v1163
      %v1193 = vadd.f32 %v1041, %v1166
      %v1194 = vadd.f32 %v1042, %v1171
      %v1195 = vadd.f32 %v1043, %v1174
      %v1196 = vadd.f32 %v1044, %v1179
      %v1197 = vadd.f32 %v1045, %v1182
      %v1198 = vadd.f32 %v1046, %v1187
      %v1199 = vld [vmem:[%s192 + $0x4] sm:$0xc]
      %v1200 = vld [vmem:[%s192 + $0x8] sm:$0xf]
      %v1201 = vld [vmem:[%s192 + $0xc] sm:$0xf]
      %v1202 = vld [vmem:[%s192 + $0x10] sm:$0xf]
      %v1203 = vld [vmem:[%s192 + $0x14] sm:$0xf]
      %v1204 = vld [vmem:[%s192 + $0x18] sm:$0xf]
      %v1205 = vld [vmem:[%s192 + $0x1c] sm:$0xf]
      %v1206 = vld [vmem:[%s192 + $0x20] sm:$0x1]
      %s1207 = scalar_lea.vmem %s1, 384
      %v1208 = vld [vmem:[%s1207] sm:$0xf]
      %v1209 = vld [vmem:[%s1207 + $0x4] sm:$0xf]
      %v1210 = vld [vmem:[%s1207 + $0x8] sm:$0xf]
      %v1211 = vld [vmem:[%s1207 + $0xc] sm:$0xf]
      %v1212 = vld [vmem:[%s1207 + $0x10] sm:$0xf]
      %v1213 = vld [vmem:[%s1207 + $0x14] sm:$0xf]
      %v1214 = vld [vmem:[%s1207 + $0x18] sm:$0xf]
      %v1215 = vld [vmem:[%s1207 + $0x1c] sm:$0xf]
      %v1216 = vld [vmem:[%s1207 + $0x20] sm:$0xf]
      %v1217 = vld [vmem:[%s1207 + $0x24] sm:$0xf]
      %v1218 = vld [vmem:[%s1207 + $0x28] sm:$0xf]
      %v1219 = vld [vmem:[%s1207 + $0x2c] sm:$0xf]
      %v1220 = vld [vmem:[%s1207 + $0x30] sm:$0xf]
      %v1221 = vld [vmem:[%s1207 + $0x34] sm:$0xf]
      %v1222 = vld [vmem:[%s1207 + $0x38] sm:$0xf]
      %v1223 = vld [vmem:[%s1207 + $0x3c] sm:$0xf]
      %v1232 = vunpack.c.l.b16 %v1199
      %v1233 = vunpack.c.l.b16 %v1200
      %v1234 = vunpack.c.l.b16 %v1201
      %v1235 = vunpack.c.l.b16 %v1202
      %v1236 = vunpack.c.l.b16 %v1203
      %v1237 = vunpack.c.l.b16 %v1204
      %v1238 = vunpack.c.l.b16 %v1205
      %v1239 = vunpack.c.l.b16 %v1206
      %v1240 = vpack.c.b16 %v1233, %v1232
      %v1241 = vpack.c.b16 %v1235, %v1234
      %v1242 = vpack.c.b16 %v1237, %v1236
      %v1243 = vpack.c.b16 %v1239, %v1238
      %vm1244 = vsmask.f32 5376
      %v1246 = vshrl.u32 %v1240, 16
      %v1248 = vrot.slane %v1246, 2
      %v1249 = vshll.u32 %v1240, 16
      %v1251 = vrot.slane %v1249, 3
      %v1252 = vor.u32 %v1248, %v1251
      %v1254 = vshrl.u32 %v1241, 16
      %v1256 = vrot.slane %v1254, 2
      %v1257 = vshll.u32 %v1241, 16
      %v1259 = vrot.slane %v1257, 3
      %v1260 = vor.u32 %v1256, %v1259
      %v1261 = vsel %vm1244, %v1252, %v1260
      %v1263 = vshrl.u32 %v1242, 16
      %v1265 = vrot.slane %v1263, 2
      %v1266 = vshll.u32 %v1242, 16
      %v1268 = vrot.slane %v1266, 3
      %v1269 = vor.u32 %v1265, %v1268
      %v1270 = vsel %vm1244, %v1260, %v1269
      %v1272 = vshrl.u32 %v1243, 16
      %v1274 = vrot.slane %v1272, 2
      %v1275 = vshll.u32 %v1243, 16
      %v1277 = vrot.slane %v1275, 3
      %v1278 = vor.u32 %v1274, %v1277
      %v1279 = vsel %vm1244, %v1269, %v1278
      %v1300 = vunpack.c.l.b16 %v1208
      %v1301 = vunpack.c.l.b16 %v1209
      %v1302 = vunpack.c.l.b16 %v1210
      %v1303 = vunpack.c.l.b16 %v1211
      %v1304 = vunpack.c.l.b16 %v1212
      %v1305 = vunpack.c.l.b16 %v1213
      %v1306 = vunpack.c.l.b16 %v1214
      %v1307 = vunpack.c.l.b16 %v1215
      %v1308 = vunpack.c.l.b16 %v1216
      %v1309 = vunpack.c.l.b16 %v1217
      %v1310 = vunpack.c.l.b16 %v1218
      %v1311 = vunpack.c.l.b16 %v1219
      %v1312 = vunpack.c.l.b16 %v1220
      %v1313 = vunpack.c.l.b16 %v1221
      %v1314 = vunpack.c.l.b16 %v1222
      %v1315 = vunpack.c.l.b16 %v1223
      %v1316 = vpack.c.b16 %v1301, %v1300
      %v1317 = vpack.c.b16 %v1303, %v1302
      %v1318 = vpack.c.b16 %v1305, %v1304
      %v1319 = vpack.c.b16 %v1307, %v1306
      %v1320 = vpack.c.b16 %v1309, %v1308
      %v1321 = vpack.c.b16 %v1311, %v1310
      %v1322 = vpack.c.b16 %v1313, %v1312
      %v1323 = vpack.c.b16 %v1315, %v1314
      %1332 = vmatprep.subr.bf16.mxu0 0
      %1333 = vmatpush1.bf16.msra.mxu0 %v1316
      %1334 = vmatprep.subr.bf16.mxu0 0
      %1335 = vmatpush1.bf16.msra.mxu0 %v1317
      %1336 = vmatprep.subr.bf16.mxu0 0
      %1337 = vmatpush1.bf16.msra.mxu0 %v1318
      %1338 = vmatprep.subr.bf16.mxu0 0
      %1339 = vmatpush1.bf16.msra.mxu0 %v1319
      %1340 = vmatprep.subr.bf16.mxu0 0
      %1341 = vmatpush1.bf16.msra.mxu0 %v1320
      %1342 = vmatprep.subr.bf16.mxu0 0
      %1343 = vmatpush1.bf16.msra.mxu0 %v1321
      %1344 = vmatprep.subr.bf16.mxu0 0
      %1345 = vmatpush1.bf16.msra.mxu0 %v1322
      %1346 = vmatprep.subr.bf16.mxu0 0
      %1347 = vmatpush1.bf16.msra.mxu0 %v1323
      %1348 = vmatprep.subr.bf16.mxu0 0
      %1349 = vmatpush1.bf16.msra.mxu0 0
      %1350 = vmatprep.subr.bf16.mxu0 0
      %1351 = vmatpush1.bf16.msra.mxu0 0
      %1352 = vmatprep.subr.bf16.mxu0 0
      %1353 = vmatpush1.bf16.msra.mxu0 0
      %1354 = vmatprep.subr.bf16.mxu0 0
      %1355 = vmatpush1.bf16.msra.mxu0 0
      %1356 = vmatprep.subr.bf16.mxu0 0
      %1357 = vmatpush1.bf16.msra.mxu0 0
      %1358 = vmatprep.subr.bf16.mxu0 0
      %1359 = vmatpush1.bf16.msra.mxu0 0
      %1360 = vmatprep.subr.bf16.mxu0 0
      %1361 = vmatpush1.bf16.msra.mxu0 0
      %1362 = vmatprep.subr.bf16.mxu0 0
      %1363 = vmatpush1.bf16.msra.mxu0 0
      %1364 = vmatprep.mubr.bf16.mxu0 0
      %1365 = vmatmul.mubr.bf16.gmra.mrb[0].mxu0 %v1261
      %v1366 = vpop.f32.mrb[0].mxu0
      %v1367 = vadd.f32 0.0, %v1366
      %v1368 = vpop.f32.mrb[0].mxu0
      %v1369 = vpop.f32.mrb[0].mxu0
      %v1370 = vadd.f32 0.0, %v1369
      %v1371 = vpop.f32.mrb[0].mxu0
      %1372 = vmatprep.mubr.bf16.mxu0 0
      %1373 = vmatmul.mubr.bf16.gmra.mrb[0].mxu0 %v1270
      %v1374 = vpop.f32.mrb[0].mxu0
      %v1375 = vadd.f32 0.0, %v1374
      %v1376 = vpop.f32.mrb[0].mxu0
      %v1377 = vpop.f32.mrb[0].mxu0
      %v1378 = vadd.f32 0.0, %v1377
      %v1379 = vpop.f32.mrb[0].mxu0
      %1380 = vmatprep.mubr.bf16.mxu0 0
      %1381 = vmatmul.mubr.bf16.gmra.mrb[0].mxu0 %v1279
      %v1382 = vpop.f32.mrb[0].mxu0
      %v1383 = vadd.f32 0.0, %v1382
      %v1384 = vpop.f32.mrb[0].mxu0
      %v1385 = vpop.f32.mrb[0].mxu0
      %v1386 = vadd.f32 0.0, %v1385
      %v1387 = vpop.f32.mrb[0].mxu0
      %1388 = vmatprep.mubr.bf16.mxu0 0
      %1389 = vmatmul.mubr.bf16.gmra.mrb[0].mxu0 %v1278
      %v1390 = vpop.f32.mrb[0].mxu0
      %v1391 = vadd.f32 0.0, %v1390
      %v1392 = vpop.f32.mrb[0].mxu0
      %v1393 = vpop.f32.mrb[0].mxu0
      %v1394 = vpop.f32.mrb[0].mxu0
      %1395 = vdwg.mxu0
      %v1396 = vadd.f32 %v1192, %v1367
      %v1397 = vadd.f32 %v1193, %v1370
      %v1398 = vadd.f32 %v1194, %v1375
      %v1399 = vadd.f32 %v1195, %v1378
      %v1400 = vadd.f32 %v1196, %v1383
      %v1401 = vadd.f32 %v1197, %v1386
      %v1402 = vadd.f32 %v1198, %v1391
      %v1403 = vld [vmem:[%s192 + $0x4] sm:$0x8]
      %s1404 = scalar_lea.vmem %s1, 448
      %v1405 = vld [vmem:[%s1404] sm:$0xf]
      %v1406 = vld [vmem:[%s1404 + $0x4] sm:$0xf]
      %v1407 = vld [vmem:[%s1404 + $0x8] sm:$0xf]
      %v1408 = vld [vmem:[%s1404 + $0xc] sm:$0xf]
      %v1409 = vld [vmem:[%s1404 + $0x10] sm:$0xf]
      %v1410 = vld [vmem:[%s1404 + $0x14] sm:$0xf]
      %v1411 = vld [vmem:[%s1404 + $0x18] sm:$0xf]
      %v1412 = vld [vmem:[%s1404 + $0x1c] sm:$0xf]
      %v1413 = vld [vmem:[%s1404 + $0x20] sm:$0xf]
      %v1414 = vld [vmem:[%s1404 + $0x24] sm:$0xf]
      %v1415 = vld [vmem:[%s1404 + $0x28] sm:$0xf]
      %v1416 = vld [vmem:[%s1404 + $0x2c] sm:$0xf]
      %v1417 = vld [vmem:[%s1404 + $0x30] sm:$0xf]
      %v1418 = vld [vmem:[%s1404 + $0x34] sm:$0xf]
      %v1419 = vld [vmem:[%s1404 + $0x38] sm:$0xf]
      %v1420 = vld [vmem:[%s1404 + $0x3c] sm:$0xf]
      %v1422 = vunpack.c.l.b16 %v1403
      %v1423 = vpack.c.b16 %v1233, %v1422
      %vm1424 = vcmask 1044480
      %v1425 = vrot.slane %v1423, 3
      %v1426 = vrot.slane %v1241, 3
      %v1427 = vsel %vm1424, %v1425, %v1426
      %v1428 = vrot.slane %v1242, 3
      %v1429 = vsel %vm1424, %v1426, %v1428
      %v1430 = vrot.slane %v1243, 3
      %v1431 = vsel %vm1424, %v1428, %v1430
      %v1452 = vunpack.c.l.b16 %v1405
      %v1453 = vunpack.c.l.b16 %v1406
      %v1454 = vunpack.c.l.b16 %v1407
      %v1455 = vunpack.c.l.b16 %v1408
      %v1456 = vunpack.c.l.b16 %v1409
      %v1457 = vunpack.c.l.b16 %v1410
      %v1458 = vunpack.c.l.b16 %v1411
      %v1459 = vunpack.c.l.b16 %v1412
      %v1460 = vunpack.c.l.b16 %v1413
      %v1461 = vunpack.c.l.b16 %v1414
      %v1462 = vunpack.c.l.b16 %v1415
      %v1463 = vunpack.c.l.b16 %v1416
      %v1464 = vunpack.c.l.b16 %v1417
      %v1465 = vunpack.c.l.b16 %v1418
      %v1466 = vunpack.c.l.b16 %v1419
      %v1467 = vunpack.c.l.b16 %v1420
      %v1468 = vpack.c.b16 %v1453, %v1452
      %v1469 = vpack.c.b16 %v1455, %v1454
      %v1470 = vpack.c.b16 %v1457, %v1456
      %v1471 = vpack.c.b16 %v1459, %v1458
      %v1472 = vpack.c.b16 %v1461, %v1460
      %v1473 = vpack.c.b16 %v1463, %v1462
      %v1474 = vpack.c.b16 %v1465, %v1464
      %v1475 = vpack.c.b16 %v1467, %v1466
      %1484 = vmatprep.subr.bf16.mxu0 0
      %1485 = vmatpush1.bf16.msra.mxu0 %v1468
      %1486 = vmatprep.subr.bf16.mxu0 0
      %1487 = vmatpush1.bf16.msra.mxu0 %v1469
      %1488 = vmatprep.subr.bf16.mxu0 0
      %1489 = vmatpush1.bf16.msra.mxu0 %v1470
      %1490 = vmatprep.subr.bf16.mxu0 0
      %1491 = vmatpush1.bf16.msra.mxu0 %v1471
      %1492 = vmatprep.subr.bf16.mxu0 0
      %1493 = vmatpush1.bf16.msra.mxu0 %v1472
      %1494 = vmatprep.subr.bf16.mxu0 0
      %1495 = vmatpush1.bf16.msra.mxu0 %v1473
      %1496 = vmatprep.subr.bf16.mxu0 0
      %1497 = vmatpush1.bf16.msra.mxu0 %v1474
      %1498 = vmatprep.subr.bf16.mxu0 0
      %1499 = vmatpush1.bf16.msra.mxu0 %v1475
      %1500 = vmatprep.subr.bf16.mxu0 0
      %1501 = vmatpush1.bf16.msra.mxu0 0
      %1502 = vmatprep.subr.bf16.mxu0 0
      %1503 = vmatpush1.bf16.msra.mxu0 0
      %1504 = vmatprep.subr.bf16.mxu0 0
      %1505 = vmatpush1.bf16.msra.mxu0 0
      %1506 = vmatprep.subr.bf16.mxu0 0
      %1507 = vmatpush1.bf16.msra.mxu0 0
      %1508 = vmatprep.subr.bf16.mxu0 0
      %1509 = vmatpush1.bf16.msra.mxu0 0
      %1510 = vmatprep.subr.bf16.mxu0 0
      %1511 = vmatpush1.bf16.msra.mxu0 0
      %1512 = vmatprep.subr.bf16.mxu0 0
      %1513 = vmatpush1.bf16.msra.mxu0 0
      %1514 = vmatprep.subr.bf16.mxu0 0
      %1515 = vmatpush1.bf16.msra.mxu0 0
      %1516 = vmatprep.mubr.bf16.mxu0 0
      %1517 = vmatmul.mubr.bf16.gmra.mrb[0].mxu0 %v1427
      %v1518 = vpop.f32.mrb[0].mxu0
      %v1519 = vadd.f32 0.0, %v1518
      %v1520 = vpop.f32.mrb[0].mxu0
      %v1521 = vpop.f32.mrb[0].mxu0
      %v1522 = vadd.f32 0.0, %v1521
      %v1523 = vpop.f32.mrb[0].mxu0
      %1524 = vmatprep.mubr.bf16.mxu0 0
      %1525 = vmatmul.mubr.bf16.gmra.mrb[0].mxu0 %v1429
      %v1526 = vpop.f32.mrb[0].mxu0
      %v1527 = vadd.f32 0.0, %v1526
      %v1528 = vpop.f32.mrb[0].mxu0
      %v1529 = vpop.f32.mrb[0].mxu0
      %v1530 = vadd.f32 0.0, %v1529
      %v1531 = vpop.f32.mrb[0].mxu0
      %1532 = vmatprep.mubr.bf16.mxu0 0
      %1533 = vmatmul.mubr.bf16.gmra.mrb[0].mxu0 %v1431
      %v1534 = vpop.f32.mrb[0].mxu0
      %v1535 = vadd.f32 0.0, %v1534
      %v1536 = vpop.f32.mrb[0].mxu0
      %v1537 = vpop.f32.mrb[0].mxu0
      %v1538 = vadd.f32 0.0, %v1537
      %v1539 = vpop.f32.mrb[0].mxu0
      %1540 = vmatprep.mubr.bf16.mxu0 0
      %1541 = vmatmul.mubr.bf16.gmra.mrb[0].mxu0 %v1430
      %v1542 = vpop.f32.mrb[0].mxu0
      %v1543 = vadd.f32 0.0, %v1542
      %v1544 = vpop.f32.mrb[0].mxu0
      %v1545 = vpop.f32.mrb[0].mxu0
      %v1546 = vpop.f32.mrb[0].mxu0
      %1547 = vdwg.mxu0
      %v1548 = vadd.f32 %v1396, %v1519
      %v1549 = vadd.f32 %v1397, %v1522
      %v1550 = vadd.f32 %v1398, %v1527
      %v1551 = vadd.f32 %v1399, %v1530
      %v1552 = vadd.f32 %v1400, %v1535
      %v1553 = vadd.f32 %v1401, %v1538
      %v1554 = vadd.f32 %v1402, %v1543
      %v1555 = vld [vmem:[%s192 + $0x8] sm:$0x8]
      %v1556 = vld [vmem:[%s192 + $0xc] sm:$0xf]
      %v1557 = vld [vmem:[%s192 + $0x10] sm:$0xf]
      %v1558 = vld [vmem:[%s192 + $0x14] sm:$0xf]
      %v1559 = vld [vmem:[%s192 + $0x18] sm:$0xf]
      %v1560 = vld [vmem:[%s192 + $0x1c] sm:$0xf]
      %v1561 = vld [vmem:[%s192 + $0x20] sm:$0xf]
      %v1562 = vld [vmem:[%s192 + $0x24] sm:$0x1]
      %s1563 = scalar_lea.vmem %s1, 512
      %v1564 = vld [vmem:[%s1563] sm:$0xf]
      %v1565 = vld [vmem:[%s1563 + $0x4] sm:$0xf]
      %v1566 = vld [vmem:[%s1563 + $0x8] sm:$0xf]
      %v1567 = vld [vmem:[%s1563 + $0xc] sm:$0xf]
      %v1568 = vld [vmem:[%s1563 + $0x10] sm:$0xf]
      %v1569 = vld [vmem:[%s1563 + $0x14] sm:$0xf]
      %v1570 = vld [vmem:[%s1563 + $0x18] sm:$0xf]
      %v1571 = vld [vmem:[%s1563 + $0x1c] sm:$0xf]
      %v1572 = vld [vmem:[%s1563 + $0x20] sm:$0xf]
      %v1573 = vld [vmem:[%s1563 + $0x24] sm:$0xf]
      %v1574 = vld [vmem:[%s1563 + $0x28] sm:$0xf]
      %v1575 = vld [vmem:[%s1563 + $0x2c] sm:$0xf]
      %v1576 = vld [vmem:[%s1563 + $0x30] sm:$0xf]
      %v1577 = vld [vmem:[%s1563 + $0x34] sm:$0xf]
      %v1578 = vld [vmem:[%s1563 + $0x38] sm:$0xf]
      %v1579 = vld [vmem:[%s1563 + $0x3c] sm:$0xf]
      %v1588 = vunpack.c.l.b16 %v1555
      %v1589 = vunpack.c.l.b16 %v1556
      %v1590 = vunpack.c.l.b16 %v1557
      %v1591 = vunpack.c.l.b16 %v1558
      %v1592 = vunpack.c.l.b16 %v1559
      %v1593 = vunpack.c.l.b16 %v1560
      %v1594 = vunpack.c.l.b16 %v1561
      %v1595 = vunpack.c.l.b16 %v1562
      %v1596 = vpack.c.b16 %v1589, %v1588
      %v1597 = vpack.c.b16 %v1591, %v1590
      %v1598 = vpack.c.b16 %v1593, %v1592
      %v1599 = vpack.c.b16 %v1595, %v1594
      %v1600 = vrot.slane %v1596, 3
      %v1601 = vrot.slane %v1597, 3
      %v1602 = vsel %vm1424, %v1600, %v1601
      %v1603 = vrot.slane %v1598, 3
      %v1604 = vsel %vm1424, %v1601, %v1603
      %v1605 = vrot.slane %v1599, 3
      %v1606 = vsel %vm1424, %v1603, %v1605
      %v1627 = vunpack.c.l.b16 %v1564
      %v1628 = vunpack.c.l.b16 %v1565
      %v1629 = vunpack.c.l.b16 %v1566
      %v1630 = vunpack.c.l.b16 %v1567
      %v1631 = vunpack.c.l.b16 %v1568
      %v1632 = vunpack.c.l.b16 %v1569
      %v1633 = vunpack.c.l.b16 %v1570
      %v1634 = vunpack.c.l.b16 %v1571
      %v1635 = vunpack.c.l.b16 %v1572
      %v1636 = vunpack.c.l.b16 %v1573
      %v1637 = vunpack.c.l.b16 %v1574
      %v1638 = vunpack.c.l.b16 %v1575
      %v1639 = vunpack.c.l.b16 %v1576
      %v1640 = vunpack.c.l.b16 %v1577
      %v1641 = vunpack.c.l.b16 %v1578
      %v1642 = vunpack.c.l.b16 %v1579
      %v1643 = vpack.c.b16 %v1628, %v1627
      %v1644 = vpack.c.b16 %v1630, %v1629
      %v1645 = vpack.c.b16 %v1632, %v1631
      %v1646 = vpack.c.b16 %v1634, %v1633
      %v1647 = vpack.c.b16 %v1636, %v1635
      %v1648 = vpack.c.b16 %v1638, %v1637
      %v1649 = vpack.c.b16 %v1640, %v1639
      %v1650 = vpack.c.b16 %v1642, %v1641
      %1659 = vmatprep.subr.bf16.mxu0 0
      %1660 = vmatpush1.bf16.msra.mxu0 %v1643
      %1661 = vmatprep.subr.bf16.mxu0 0
      %1662 = vmatpush1.bf16.msra.mxu0 %v1644
      %1663 = vmatprep.subr.bf16.mxu0 0
      %1664 = vmatpush1.bf16.msra.mxu0 %v1645
      %1665 = vmatprep.subr.bf16.mxu0 0
      %1666 = vmatpush1.bf16.msra.mxu0 %v1646
      %1667 = vmatprep.subr.bf16.mxu0 0
      %1668 = vmatpush1.bf16.msra.mxu0 %v1647
      %1669 = vmatprep.subr.bf16.mxu0 0
      %1670 = vmatpush1.bf16.msra.mxu0 %v1648
      %1671 = vmatprep.subr.bf16.mxu0 0
      %1672 = vmatpush1.bf16.msra.mxu0 %v1649
      %1673 = vmatprep.subr.bf16.mxu0 0
      %1674 = vmatpush1.bf16.msra.mxu0 %v1650
      %1675 = vmatprep.subr.bf16.mxu0 0
      %1676 = vmatpush1.bf16.msra.mxu0 0
      %1677 = vmatprep.subr.bf16.mxu0 0
      %1678 = vmatpush1.bf16.msra.mxu0 0
      %1679 = vmatprep.subr.bf16.mxu0 0
      %1680 = vmatpush1.bf16.msra.mxu0 0
      %1681 = vmatprep.subr.bf16.mxu0 0
      %1682 = vmatpush1.bf16.msra.mxu0 0
      %1683 = vmatprep.subr.bf16.mxu0 0
      %1684 = vmatpush1.bf16.msra.mxu0 0
      %1685 = vmatprep.subr.bf16.mxu0 0
      %1686 = vmatpush1.bf16.msra.mxu0 0
      %1687 = vmatprep.subr.bf16.mxu0 0
      %1688 = vmatpush1.bf16.msra.mxu0 0
      %1689 = vmatprep.subr.bf16.mxu0 0
      %1690 = vmatpush1.bf16.msra.mxu0 0
      %1691 = vmatprep.mubr.bf16.mxu0 0
      %1692 = vmatmul.mubr.bf16.gmra.mrb[0].mxu0 %v1602
      %v1693 = vpop.f32.mrb[0].mxu0
      %v1694 = vadd.f32 0.0, %v1693
      %v1695 = vpop.f32.mrb[0].mxu0
      %v1696 = vpop.f32.mrb[0].mxu0
      %v1697 = vadd.f32 0.0, %v1696
      %v1698 = vpop.f32.mrb[0].mxu0
      %1699 = vmatprep.mubr.bf16.mxu0 0
      %1700 = vmatmul.mubr.bf16.gmra.mrb[0].mxu0 %v1604
      %v1701 = vpop.f32.mrb[0].mxu0
      %v1702 = vadd.f32 0.0, %v1701
      %v1703 = vpop.f32.mrb[0].mxu0
      %v1704 = vpop.f32.mrb[0].mxu0
      %v1705 = vadd.f32 0.0, %v1704
      %v1706 = vpop.f32.mrb[0].mxu0
      %1707 = vmatprep.mubr.bf16.mxu0 0
      %1708 = vmatmul.mubr.bf16.gmra.mrb[0].mxu0 %v1606
      %v1709 = vpop.f32.mrb[0].mxu0
      %v1710 = vadd.f32 0.0, %v1709
      %v1711 = vpop.f32.mrb[0].mxu0
      %v1712 = vpop.f32.mrb[0].mxu0
      %v1713 = vadd.f32 0.0, %v1712
      %v1714 = vpop.f32.mrb[0].mxu0
      %1715 = vmatprep.mubr.bf16.mxu0 0
      %1716 = vmatmul.mubr.bf16.gmra.mrb[0].mxu0 %v1605
      %v1717 = vpop.f32.mrb[0].mxu0
      %v1718 = vadd.f32 0.0, %v1717
      %v1719 = vpop.f32.mrb[0].mxu0
      %v1720 = vpop.f32.mrb[0].mxu0
      %v1721 = vpop.f32.mrb[0].mxu0
      %1722 = vdwg.mxu0
      %v1723 = vadd.f32 %v1548, %v1694
      %v1724 = vadd.f32 %v1549, %v1697
      %v1725 = vadd.f32 %v1550, %v1702
      %v1726 = vadd.f32 %v1551, %v1705
      %v1727 = vadd.f32 %v1552, %v1710
      %v1728 = vadd.f32 %v1553, %v1713
      %v1729 = vadd.f32 %v1554, %v1718
      %v1730 = vld [vmem:[%s192 + $0x24] sm:$0x3]
      %s1731 = scalar_lea.vmem %s1, 576
      %v1732 = vld [vmem:[%s1731] sm:$0xf]
      %v1733 = vld [vmem:[%s1731 + $0x4] sm:$0xf]
      %v1734 = vld [vmem:[%s1731 + $0x8] sm:$0xf]
      %v1735 = vld [vmem:[%s1731 + $0xc] sm:$0xf]
      %v1736 = vld [vmem:[%s1731 + $0x10] sm:$0xf]
      %v1737 = vld [vmem:[%s1731 + $0x14] sm:$0xf]
      %v1738 = vld [vmem:[%s1731 + $0x18] sm:$0xf]
      %v1739 = vld [vmem:[%s1731 + $0x1c] sm:$0xf]
      %v1740 = vld [vmem:[%s1731 + $0x20] sm:$0xf]
      %v1741 = vld [vmem:[%s1731 + $0x24] sm:$0xf]
      %v1742 = vld [vmem:[%s1731 + $0x28] sm:$0xf]
      %v1743 = vld [vmem:[%s1731 + $0x2c] sm:$0xf]
      %v1744 = vld [vmem:[%s1731 + $0x30] sm:$0xf]
      %v1745 = vld [vmem:[%s1731 + $0x34] sm:$0xf]
      %v1746 = vld [vmem:[%s1731 + $0x38] sm:$0xf]
      %v1747 = vld [vmem:[%s1731 + $0x3c] sm:$0xf]
      %v1749 = vunpack.c.l.b16 %v1730
      %v1750 = vpack.c.b16 %v1749, %v1594
      %vm1751 = vsmask.f32 4352
      %v1753 = vshrl.u32 %v1596, 16
      %v1755 = vrot.slane %v1753, 3
      %v1756 = vshll.u32 %v1596, 16
      %v1758 = vrot.slane %v1756, 4
      %v1759 = vor.u32 %v1755, %v1758
      %v1761 = vshrl.u32 %v1597, 16
      %v1763 = vrot.slane %v1761, 3
      %v1764 = vshll.u32 %v1597, 16
      %v1766 = vrot.slane %v1764, 4
      %v1767 = vor.u32 %v1763, %v1766
      %v1768 = vsel %vm1751, %v1759, %v1767
      %v1770 = vshrl.u32 %v1598, 16
      %v1772 = vrot.slane %v1770, 3
      %v1773 = vshll.u32 %v1598, 16
      %v1775 = vrot.slane %v1773, 4
      %v1776 = vor.u32 %v1772, %v1775
      %v1777 = vsel %vm1751, %v1767, %v1776
      %v1779 = vshrl.u32 %v1750, 16
      %v1781 = vrot.slane %v1779, 3
      %v1782 = vshll.u32 %v1750, 16
      %v1784 = vrot.slane %v1782, 4
      %v1785 = vor.u32 %v1781, %v1784
      %v1786 = vsel %vm1751, %v1776, %v1785
      %v1807 = vunpack.c.l.b16 %v1732
      %v1808 = vunpack.c.l.b16 %v1733
      %v1809 = vunpack.c.l.b16 %v1734
      %v1810 = vunpack.c.l.b16 %v1735
      %v1811 = vunpack.c.l.b16 %v1736
      %v1812 = vunpack.c.l.b16 %v1737
      %v1813 = vunpack.c.l.b16 %v1738
      %v1814 = vunpack.c.l.b16 %v1739
      %v1815 = vunpack.c.l.b16 %v1740
      %v1816 = vunpack.c.l.b16 %v1741
      %v1817 = vunpack.c.l.b16 %v1742
      %v1818 = vunpack.c.l.b16 %v1743
      %v1819 = vunpack.c.l.b16 %v1744
      %v1820 = vunpack.c.l.b16 %v1745
      %v1821 = vunpack.c.l.b16 %v1746
      %v1822 = vunpack.c.l.b16 %v1747
      %v1823 = vpack.c.b16 %v1808, %v1807
      %v1824 = vpack.c.b16 %v1810, %v1809
      %v1825 = vpack.c.b16 %v1812, %v1811
      %v1826 = vpack.c.b16 %v1814, %v1813
      %v1827 = vpack.c.b16 %v1816, %v1815
      %v1828 = vpack.c.b16 %v1818, %v1817
      %v1829 = vpack.c.b16 %v1820, %v1819
      %v1830 = vpack.c.b16 %v1822, %v1821
      %1839 = vmatprep.subr.bf16.mxu0 0
      %1840 = vmatpush1.bf16.msra.mxu0 %v1823
      %1841 = vmatprep.subr.bf16.mxu0 0
      %1842 = vmatpush1.bf16.msra.mxu0 %v1824
      %1843 = vmatprep.subr.bf16.mxu0 0
      %1844 = vmatpush1.bf16.msra.mxu0 %v1825
      %1845 = vmatprep.subr.bf16.mxu0 0
      %1846 = vmatpush1.bf16.msra.mxu0 %v1826
      %1847 = vmatprep.subr.bf16.mxu0 0
      %1848 = vmatpush1.bf16.msra.mxu0 %v1827
      %1849 = vmatprep.subr.bf16.mxu0 0
      %1850 = vmatpush1.bf16.msra.mxu0 %v1828
      %1851 = vmatprep.subr.bf16.mxu0 0
      %1852 = vmatpush1.bf16.msra.mxu0 %v1829
      %1853 = vmatprep.subr.bf16.mxu0 0
      %1854 = vmatpush1.bf16.msra.mxu0 %v1830
      %1855 = vmatprep.subr.bf16.mxu0 0
      %1856 = vmatpush1.bf16.msra.mxu0 0
      %1857 = vmatprep.subr.bf16.mxu0 0
      %1858 = vmatpush1.bf16.msra.mxu0 0
      %1859 = vmatprep.subr.bf16.mxu0 0
      %1860 = vmatpush1.bf16.msra.mxu0 0
      %1861 = vmatprep.subr.bf16.mxu0 0
      %1862 = vmatpush1.bf16.msra.mxu0 0
      %1863 = vmatprep.subr.bf16.mxu0 0
      %1864 = vmatpush1.bf16.msra.mxu0 0
      %1865 = vmatprep.subr.bf16.mxu0 0
      %1866 = vmatpush1.bf16.msra.mxu0 0
      %1867 = vmatprep.subr.bf16.mxu0 0
      %1868 = vmatpush1.bf16.msra.mxu0 0
      %1869 = vmatprep.subr.bf16.mxu0 0
      %1870 = vmatpush1.bf16.msra.mxu0 0
      %1871 = vmatprep.mubr.bf16.mxu0 0
      %1872 = vmatmul.mubr.bf16.gmra.mrb[0].mxu0 %v1768
      %v1873 = vpop.f32.mrb[0].mxu0
      %v1874 = vadd.f32 0.0, %v1873
      %v1875 = vpop.f32.mrb[0].mxu0
      %v1876 = vpop.f32.mrb[0].mxu0
      %v1877 = vadd.f32 0.0, %v1876
      %v1878 = vpop.f32.mrb[0].mxu0
      %1879 = vmatprep.mubr.bf16.mxu0 0
      %1880 = vmatmul.mubr.bf16.gmra.mrb[0].mxu0 %v1777
      %v1881 = vpop.f32.mrb[0].mxu0
      %v1882 = vadd.f32 0.0, %v1881
      %v1883 = vpop.f32.mrb[0].mxu0
      %v1884 = vpop.f32.mrb[0].mxu0
      %v1885 = vadd.f32 0.0, %v1884
      %v1886 = vpop.f32.mrb[0].mxu0
      %1887 = vmatprep.mubr.bf16.mxu0 0
      %1888 = vmatmul.mubr.bf16.gmra.mrb[0].mxu0 %v1786
      %v1889 = vpop.f32.mrb[0].mxu0
      %v1890 = vadd.f32 0.0, %v1889
      %v1891 = vpop.f32.mrb[0].mxu0
      %v1892 = vpop.f32.mrb[0].mxu0
      %v1893 = vadd.f32 0.0, %v1892
      %v1894 = vpop.f32.mrb[0].mxu0
      %1895 = vmatprep.mubr.bf16.mxu0 0
      %1896 = vmatmul.mubr.bf16.gmra.mrb[0].mxu0 %v1785
      %v1897 = vpop.f32.mrb[0].mxu0
      %v1898 = vadd.f32 0.0, %v1897
      %v1899 = vpop.f32.mrb[0].mxu0
      %v1900 = vpop.f32.mrb[0].mxu0
      %v1901 = vpop.f32.mrb[0].mxu0
      %1902 = vdwg.mxu0
      %v1903 = vadd.f32 %v1723, %v1874
      %v1904 = vadd.f32 %v1724, %v1877
      %v1905 = vadd.f32 %v1725, %v1882
      %v1906 = vadd.f32 %v1726, %v1885
      %v1907 = vadd.f32 %v1727, %v1890
      %v1908 = vadd.f32 %v1728, %v1893
      %v1909 = vadd.f32 %v1729, %v1898
      %s1910 = scalar_lea.vmem %s1, 640
      %v1911 = vld [vmem:[%s1910] sm:$0xf]
      %v1912 = vld [vmem:[%s1910 + $0x4] sm:$0xf]
      %v1913 = vld [vmem:[%s1910 + $0x8] sm:$0xf]
      %v1914 = vld [vmem:[%s1910 + $0xc] sm:$0xf]
      %v1915 = vld [vmem:[%s1910 + $0x10] sm:$0xf]
      %v1916 = vld [vmem:[%s1910 + $0x14] sm:$0xf]
      %v1917 = vld [vmem:[%s1910 + $0x18] sm:$0xf]
      %v1918 = vld [vmem:[%s1910 + $0x1c] sm:$0xf]
      %v1919 = vld [vmem:[%s1910 + $0x20] sm:$0xf]
      %v1920 = vld [vmem:[%s1910 + $0x24] sm:$0xf]
      %v1921 = vld [vmem:[%s1910 + $0x28] sm:$0xf]
      %v1922 = vld [vmem:[%s1910 + $0x2c] sm:$0xf]
      %v1923 = vld [vmem:[%s1910 + $0x30] sm:$0xf]
      %v1924 = vld [vmem:[%s1910 + $0x34] sm:$0xf]
      %v1925 = vld [vmem:[%s1910 + $0x38] sm:$0xf]
      %v1926 = vld [vmem:[%s1910 + $0x3c] sm:$0xf]
      %v1927 = vpack.c.b16 %v1590, %v1589
      %v1928 = vpack.c.b16 %v1592, %v1591
      %v1929 = vpack.c.b16 %v1594, %v1593
      %v1930 = vpack.c.b16 %v1749, %v1749
      %v1951 = vunpack.c.l.b16 %v1911
      %v1952 = vunpack.c.l.b16 %v1912
      %v1953 = vunpack.c.l.b16 %v1913
      %v1954 = vunpack.c.l.b16 %v1914
      %v1955 = vunpack.c.l.b16 %v1915
      %v1956 = vunpack.c.l.b16 %v1916
      %v1957 = vunpack.c.l.b16 %v1917
      %v1958 = vunpack.c.l.b16 %v1918
      %v1959 = vunpack.c.l.b16 %v1919
      %v1960 = vunpack.c.l.b16 %v1920
      %v1961 = vunpack.c.l.b16 %v1921
      %v1962 = vunpack.c.l.b16 %v1922
      %v1963 = vunpack.c.l.b16 %v1923
      %v1964 = vunpack.c.l.b16 %v1924
      %v1965 = vunpack.c.l.b16 %v1925
      %v1966 = vunpack.c.l.b16 %v1926
      %v1967 = vpack.c.b16 %v1952, %v1951
      %v1968 = vpack.c.b16 %v1954, %v1953
      %v1969 = vpack.c.b16 %v1956, %v1955
      %v1970 = vpack.c.b16 %v1958, %v1957
      %v1971 = vpack.c.b16 %v1960, %v1959
      %v1972 = vpack.c.b16 %v1962, %v1961
      %v1973 = vpack.c.b16 %v1964, %v1963
      %v1974 = vpack.c.b16 %v1966, %v1965
      %1983 = vmatprep.subr.bf16.mxu0 0
      %1984 = vmatpush1.bf16.msra.mxu0 %v1967
      %1985 = vmatprep.subr.bf16.mxu0 0
      %1986 = vmatpush1.bf16.msra.mxu0 %v1968
      %1987 = vmatprep.subr.bf16.mxu0 0
      %1988 = vmatpush1.bf16.msra.mxu0 %v1969
      %1989 = vmatprep.subr.bf16.mxu0 0
      %1990 = vmatpush1.bf16.msra.mxu0 %v1970
      %1991 = vmatprep.subr.bf16.mxu0 0
      %1992 = vmatpush1.bf16.msra.mxu0 %v1971
      %1993 = vmatprep.subr.bf16.mxu0 0
      %1994 = vmatpush1.bf16.msra.mxu0 %v1972
      %1995 = vmatprep.subr.bf16.mxu0 0
      %1996 = vmatpush1.bf16.msra.mxu0 %v1973
      %1997 = vmatprep.subr.bf16.mxu0 0
      %1998 = vmatpush1.bf16.msra.mxu0 %v1974
      %1999 = vmatprep.subr.bf16.mxu0 0
      %2000 = vmatpush1.bf16.msra.mxu0 0
      %2001 = vmatprep.subr.bf16.mxu0 0
      %2002 = vmatpush1.bf16.msra.mxu0 0
      %2003 = vmatprep.subr.bf16.mxu0 0
      %2004 = vmatpush1.bf16.msra.mxu0 0
      %2005 = vmatprep.subr.bf16.mxu0 0
      %2006 = vmatpush1.bf16.msra.mxu0 0
      %2007 = vmatprep.subr.bf16.mxu0 0
      %2008 = vmatpush1.bf16.msra.mxu0 0
      %2009 = vmatprep.subr.bf16.mxu0 0
      %2010 = vmatpush1.bf16.msra.mxu0 0
      %2011 = vmatprep.subr.bf16.mxu0 0
      %2012 = vmatpush1.bf16.msra.mxu0 0
      %2013 = vmatprep.subr.bf16.mxu0 0
      %2014 = vmatpush1.bf16.msra.mxu0 0
      %2015 = vmatprep.mubr.bf16.mxu0 0
      %2016 = vmatmul.mubr.bf16.gmra.mrb[0].mxu0 %v1927
      %v2017 = vpop.f32.mrb[0].mxu0
      %v2018 = vadd.f32 0.0, %v2017
      %v2019 = vpop.f32.mrb[0].mxu0
      %v2020 = vpop.f32.mrb[0].mxu0
      %v2021 = vadd.f32 0.0, %v2020
      %v2022 = vpop.f32.mrb[0].mxu0
      %2023 = vmatprep.mubr.bf16.mxu0 0
      %2024 = vmatmul.mubr.bf16.gmra.mrb[0].mxu0 %v1928
      %v2025 = vpop.f32.mrb[0].mxu0
      %v2026 = vadd.f32 0.0, %v2025
      %v2027 = vpop.f32.mrb[0].mxu0
      %v2028 = vpop.f32.mrb[0].mxu0
      %v2029 = vadd.f32 0.0, %v2028
      %v2030 = vpop.f32.mrb[0].mxu0
      %2031 = vmatprep.mubr.bf16.mxu0 0
      %2032 = vmatmul.mubr.bf16.gmra.mrb[0].mxu0 %v1929
      %v2033 = vpop.f32.mrb[0].mxu0
      %v2034 = vadd.f32 0.0, %v2033
      %v2035 = vpop.f32.mrb[0].mxu0
      %v2036 = vpop.f32.mrb[0].mxu0
      %v2037 = vadd.f32 0.0, %v2036
      %v2038 = vpop.f32.mrb[0].mxu0
      %2039 = vmatprep.mubr.bf16.mxu0 0
      %2040 = vmatmul.mubr.bf16.gmra.mrb[0].mxu0 %v1930
      %v2041 = vpop.f32.mrb[0].mxu0
      %v2042 = vadd.f32 0.0, %v2041
      %v2043 = vpop.f32.mrb[0].mxu0
      %v2044 = vpop.f32.mrb[0].mxu0
      %v2045 = vpop.f32.mrb[0].mxu0
      %2046 = vdwg.mxu0
      %v2047 = vadd.f32 %v1903, %v2018
      %v2048 = vadd.f32 %v1904, %v2021
      %v2049 = vadd.f32 %v1905, %v2026
      %v2050 = vadd.f32 %v1906, %v2029
      %v2051 = vadd.f32 %v1907, %v2034
      %v2052 = vadd.f32 %v1908, %v2037
      %v2053 = vadd.f32 %v1909, %v2042
      %v2054 = vld [vmem:[%s192 + $0x24] sm:$0x7]
      %s2055 = scalar_lea.vmem %s1, 704
      %v2056 = vld [vmem:[%s2055] sm:$0xf]
      %v2057 = vld [vmem:[%s2055 + $0x4] sm:$0xf]
      %v2058 = vld [vmem:[%s2055 + $0x8] sm:$0xf]
      %v2059 = vld [vmem:[%s2055 + $0xc] sm:$0xf]
      %v2060 = vld [vmem:[%s2055 + $0x10] sm:$0xf]
      %v2061 = vld [vmem:[%s2055 + $0x14] sm:$0xf]
      %v2062 = vld [vmem:[%s2055 + $0x18] sm:$0xf]
      %v2063 = vld [vmem:[%s2055 + $0x1c] sm:$0xf]
      %v2064 = vld [vmem:[%s2055 + $0x20] sm:$0xf]
      %v2065 = vld [vmem:[%s2055 + $0x24] sm:$0xf]
      %v2066 = vld [vmem:[%s2055 + $0x28] sm:$0xf]
      %v2067 = vld [vmem:[%s2055 + $0x2c] sm:$0xf]
      %v2068 = vld [vmem:[%s2055 + $0x30] sm:$0xf]
      %v2069 = vld [vmem:[%s2055 + $0x34] sm:$0xf]
      %v2070 = vld [vmem:[%s2055 + $0x38] sm:$0xf]
      %v2071 = vld [vmem:[%s2055 + $0x3c] sm:$0xf]
      %v2073 = vunpack.c.l.b16 %v2054
      %v2074 = vpack.c.b16 %v2073, %v2073
      %v2076 = vshrl.u32 %v1927, 16
      %v2078 = vshll.u32 %v1927, 16
      %v2080 = vrot.slane %v2078, 1
      %v2081 = vor.u32 %v2076, %v2080
      %v2083 = vshll.u32 %v1928, 16
      %v2085 = vrot.slane %v2083, 1
      %v2086 = vsel %vm258, %v2081, %v2085
      %v2087 = vshrl.u32 %v1928, 16
      %v2089 = vor.u32 %v2087, %v2085
      %v2091 = vshll.u32 %v1929, 16
      %v2093 = vrot.slane %v2091, 1
      %v2094 = vsel %vm258, %v2089, %v2093
      %v2095 = vshrl.u32 %v1929, 16
      %v2097 = vor.u32 %v2095, %v2093
      %v2099 = vshll.u32 %v2074, 16
      %v2101 = vrot.slane %v2099, 1
      %v2102 = vsel %vm258, %v2097, %v2101
      %v2103 = vshrl.u32 %v2074, 16
      %v2105 = vor.u32 %v2103, %v2101
      %v2126 = vunpack.c.l.b16 %v2056
      %v2127 = vunpack.c.l.b16 %v2057
      %v2128 = vunpack.c.l.b16 %v2058
      %v2129 = vunpack.c.l.b16 %v2059
      %v2130 = vunpack.c.l.b16 %v2060
      %v2131 = vunpack.c.l.b16 %v2061
      %v2132 = vunpack.c.l.b16 %v2062
      %v2133 = vunpack.c.l.b16 %v2063
      %v2134 = vunpack.c.l.b16 %v2064
      %v2135 = vunpack.c.l.b16 %v2065
      %v2136 = vunpack.c.l.b16 %v2066
      %v2137 = vunpack.c.l.b16 %v2067
      %v2138 = vunpack.c.l.b16 %v2068
      %v2139 = vunpack.c.l.b16 %v2069
      %v2140 = vunpack.c.l.b16 %v2070
      %v2141 = vunpack.c.l.b16 %v2071
      %v2142 = vpack.c.b16 %v2127, %v2126
      %v2143 = vpack.c.b16 %v2129, %v2128
      %v2144 = vpack.c.b16 %v2131, %v2130
      %v2145 = vpack.c.b16 %v2133, %v2132
      %v2146 = vpack.c.b16 %v2135, %v2134
      %v2147 = vpack.c.b16 %v2137, %v2136
      %v2148 = vpack.c.b16 %v2139, %v2138
      %v2149 = vpack.c.b16 %v2141, %v2140
      %2158 = vmatprep.subr.bf16.mxu0 0
      %2159 = vmatpush1.bf16.msra.mxu0 %v2142
      %2160 = vmatprep.subr.bf16.mxu0 0
      %2161 = vmatpush1.bf16.msra.mxu0 %v2143
      %2162 = vmatprep.subr.bf16.mxu0 0
      %2163 = vmatpush1.bf16.msra.mxu0 %v2144
      %2164 = vmatprep.subr.bf16.mxu0 0
      %2165 = vmatpush1.bf16.msra.mxu0 %v2145
      %2166 = vmatprep.subr.bf16.mxu0 0
      %2167 = vmatpush1.bf16.msra.mxu0 %v2146
      %2168 = vmatprep.subr.bf16.mxu0 0
      %2169 = vmatpush1.bf16.msra.mxu0 %v2147
      %2170 = vmatprep.subr.bf16.mxu0 0
      %2171 = vmatpush1.bf16.msra.mxu0 %v2148
      %2172 = vmatprep.subr.bf16.mxu0 0
      %2173 = vmatpush1.bf16.msra.mxu0 %v2149
      %2174 = vmatprep.subr.bf16.mxu0 0
      %2175 = vmatpush1.bf16.msra.mxu0 0
      %2176 = vmatprep.subr.bf16.mxu0 0
      %2177 = vmatpush1.bf16.msra.mxu0 0
      %2178 = vmatprep.subr.bf16.mxu0 0
      %2179 = vmatpush1.bf16.msra.mxu0 0
      %2180 = vmatprep.subr.bf16.mxu0 0
      %2181 = vmatpush1.bf16.msra.mxu0 0
      %2182 = vmatprep.subr.bf16.mxu0 0
      %2183 = vmatpush1.bf16.msra.mxu0 0
      %2184 = vmatprep.subr.bf16.mxu0 0
      %2185 = vmatpush1.bf16.msra.mxu0 0
      %2186 = vmatprep.subr.bf16.mxu0 0
      %2187 = vmatpush1.bf16.msra.mxu0 0
      %2188 = vmatprep.subr.bf16.mxu0 0
      %2189 = vmatpush1.bf16.msra.mxu0 0
      %2190 = vmatprep.mubr.bf16.mxu0 0
      %2191 = vmatmul.mubr.bf16.gmra.mrb[0].mxu0 %v2086
      %v2192 = vpop.f32.mrb[0].mxu0
      %v2193 = vadd.f32 0.0, %v2192
      %v2194 = vpop.f32.mrb[0].mxu0
      %v2195 = vpop.f32.mrb[0].mxu0
      %v2196 = vadd.f32 0.0, %v2195
      %v2197 = vpop.f32.mrb[0].mxu0
      %2198 = vmatprep.mubr.bf16.mxu0 0
      %2199 = vmatmul.mubr.bf16.gmra.mrb[0].mxu0 %v2094
      %v2200 = vpop.f32.mrb[0].mxu0
      %v2201 = vadd.f32 0.0, %v2200
      %v2202 = vpop.f32.mrb[0].mxu0
      %v2203 = vpop.f32.mrb[0].mxu0
      %v2204 = vadd.f32 0.0, %v2203
      %v2205 = vpop.f32.mrb[0].mxu0
      %2206 = vmatprep.mubr.bf16.mxu0 0
      %2207 = vmatmul.mubr.bf16.gmra.mrb[0].mxu0 %v2102
      %v2208 = vpop.f32.mrb[0].mxu0
      %v2209 = vadd.f32 0.0, %v2208
      %v2210 = vpop.f32.mrb[0].mxu0
      %v2211 = vpop.f32.mrb[0].mxu0
      %v2212 = vadd.f32 0.0, %v2211
      %v2213 = vpop.f32.mrb[0].mxu0
      %2214 = vmatprep.mubr.bf16.mxu0 0
      %2215 = vmatmul.mubr.bf16.gmra.mrb[0].mxu0 %v2105
      %v2216 = vpop.f32.mrb[0].mxu0
      %v2217 = vadd.f32 0.0, %v2216
      %v2218 = vpop.f32.mrb[0].mxu0
      %v2219 = vpop.f32.mrb[0].mxu0
      %v2220 = vpop.f32.mrb[0].mxu0
      %2221 = vdwg.mxu0
      %v2222 = vadd.f32 %v2047, %v2193
      %v2223 = vadd.f32 %v2048, %v2196
      %v2224 = vadd.f32 %v2049, %v2201
      %v2225 = vadd.f32 %v2050, %v2204
      %v2226 = vadd.f32 %v2051, %v2209
      %v2227 = vadd.f32 %v2052, %v2212
      %v2228 = vadd.f32 %v2053, %v2217
      %v2229 = vld [vmem:[%s192 + $0x10] sm:$0xf]
      %v2230 = vld [vmem:[%s192 + $0x14] sm:$0xf]
      %v2231 = vld [vmem:[%s192 + $0x18] sm:$0xf]
      %v2232 = vld [vmem:[%s192 + $0x1c] sm:$0xf]
      %v2233 = vld [vmem:[%s192 + $0x20] sm:$0xf]
      %v2234 = vld [vmem:[%s192 + $0x24] sm:$0xf]
      %v2235 = vld [vmem:[%s192 + $0x28] sm:$0x7]
      %s2236 = scalar_lea.vmem %s1, 768
      %v2237 = vld [vmem:[%s2236] sm:$0xf]
      %v2238 = vld [vmem:[%s2236 + $0x4] sm:$0xf]
      %v2239 = vld [vmem:[%s2236 + $0x8] sm:$0xf]
      %v2240 = vld [vmem:[%s2236 + $0xc] sm:$0xf]
      %v2241 = vld [vmem:[%s2236 + $0x10] sm:$0xf]
      %v2242 = vld [vmem:[%s2236 + $0x14] sm:$0xf]
      %v2243 = vld [vmem:[%s2236 + $0x18] sm:$0xf]
      %v2244 = vld [vmem:[%s2236 + $0x1c] sm:$0xf]
      %v2245 = vld [vmem:[%s2236 + $0x20] sm:$0xf]
      %v2246 = vld [vmem:[%s2236 + $0x24] sm:$0xf]
      %v2247 = vld [vmem:[%s2236 + $0x28] sm:$0xf]
      %v2248 = vld [vmem:[%s2236 + $0x2c] sm:$0xf]
      %v2249 = vld [vmem:[%s2236 + $0x30] sm:$0xf]
      %v2250 = vld [vmem:[%s2236 + $0x34] sm:$0xf]
      %v2251 = vld [vmem:[%s2236 + $0x38] sm:$0xf]
      %v2252 = vld [vmem:[%s2236 + $0x3c] sm:$0xf]
      %v2260 = vunpack.c.l.b16 %v2229
      %v2261 = vunpack.c.l.b16 %v2230
      %v2262 = vunpack.c.l.b16 %v2231
      %v2263 = vunpack.c.l.b16 %v2232
      %v2264 = vunpack.c.l.b16 %v2233
      %v2265 = vunpack.c.l.b16 %v2234
      %v2266 = vunpack.c.l.b16 %v2235
      %v2267 = vpack.c.b16 %v2261, %v2260
      %v2268 = vpack.c.b16 %v2263, %v2262
      %v2269 = vpack.c.b16 %v2265, %v2264
      %v2270 = vpack.c.b16 %v2266, %v2266
      %v2272 = vshrl.u32 %v2267, 16
      %v2274 = vshll.u32 %v2267, 16
      %v2276 = vrot.slane %v2274, 1
      %v2277 = vor.u32 %v2272, %v2276
      %v2279 = vshll.u32 %v2268, 16
      %v2281 = vrot.slane %v2279, 1
      %v2282 = vsel %vm258, %v2277, %v2281
      %v2283 = vshrl.u32 %v2268, 16
      %v2285 = vor.u32 %v2283, %v2281
      %v2287 = vshll.u32 %v2269, 16
      %v2289 = vrot.slane %v2287, 1
      %v2290 = vsel %vm258, %v2285, %v2289
      %v2291 = vshrl.u32 %v2269, 16
      %v2293 = vor.u32 %v2291, %v2289
      %v2295 = vshll.u32 %v2270, 16
      %v2297 = vrot.slane %v2295, 1
      %v2298 = vsel %vm258, %v2293, %v2297
      %v2299 = vshrl.u32 %v2270, 16
      %v2301 = vor.u32 %v2299, %v2297
      %v2322 = vunpack.c.l.b16 %v2237
      %v2323 = vunpack.c.l.b16 %v2238
      %v2324 = vunpack.c.l.b16 %v2239
      %v2325 = vunpack.c.l.b16 %v2240
      %v2326 = vunpack.c.l.b16 %v2241
      %v2327 = vunpack.c.l.b16 %v2242
      %v2328 = vunpack.c.l.b16 %v2243
      %v2329 = vunpack.c.l.b16 %v2244
      %v2330 = vunpack.c.l.b16 %v2245
      %v2331 = vunpack.c.l.b16 %v2246
      %v2332 = vunpack.c.l.b16 %v2247
      %v2333 = vunpack.c.l.b16 %v2248
      %v2334 = vunpack.c.l.b16 %v2249
      %v2335 = vunpack.c.l.b16 %v2250
      %v2336 = vunpack.c.l.b16 %v2251
      %v2337 = vunpack.c.l.b16 %v2252
      %v2338 = vpack.c.b16 %v2323, %v2322
      %v2339 = vpack.c.b16 %v2325, %v2324
      %v2340 = vpack.c.b16 %v2327, %v2326
      %v2341 = vpack.c.b16 %v2329, %v2328
      %v2342 = vpack.c.b16 %v2331, %v2330
      %v2343 = vpack.c.b16 %v2333, %v2332
      %v2344 = vpack.c.b16 %v2335, %v2334
      %v2345 = vpack.c.b16 %v2337, %v2336
      %2354 = vmatprep.subr.bf16.mxu0 0
      %2355 = vmatpush1.bf16.msra.mxu0 %v2338
      %2356 = vmatprep.subr.bf16.mxu0 0
      %2357 = vmatpush1.bf16.msra.mxu0 %v2339
      %2358 = vmatprep.subr.bf16.mxu0 0
      %2359 = vmatpush1.bf16.msra.mxu0 %v2340
      %2360 = vmatprep.subr.bf16.mxu0 0
      %2361 = vmatpush1.bf16.msra.mxu0 %v2341
      %2362 = vmatprep.subr.bf16.mxu0 0
      %2363 = vmatpush1.bf16.msra.mxu0 %v2342
      %2364 = vmatprep.subr.bf16.mxu0 0
      %2365 = vmatpush1.bf16.msra.mxu0 %v2343
      %2366 = vmatprep.subr.bf16.mxu0 0
      %2367 = vmatpush1.bf16.msra.mxu0 %v2344
      %2368 = vmatprep.subr.bf16.mxu0 0
      %2369 = vmatpush1.bf16.msra.mxu0 %v2345
      %2370 = vmatprep.subr.bf16.mxu0 0
      %2371 = vmatpush1.bf16.msra.mxu0 0
      %2372 = vmatprep.subr.bf16.mxu0 0
      %2373 = vmatpush1.bf16.msra.mxu0 0
      %2374 = vmatprep.subr.bf16.mxu0 0
      %2375 = vmatpush1.bf16.msra.mxu0 0
      %2376 = vmatprep.subr.bf16.mxu0 0
      %2377 = vmatpush1.bf16.msra.mxu0 0
      %2378 = vmatprep.subr.bf16.mxu0 0
      %2379 = vmatpush1.bf16.msra.mxu0 0
      %2380 = vmatprep.subr.bf16.mxu0 0
      %2381 = vmatpush1.bf16.msra.mxu0 0
      %2382 = vmatprep.subr.bf16.mxu0 0
      %2383 = vmatpush1.bf16.msra.mxu0 0
      %2384 = vmatprep.subr.bf16.mxu0 0
      %2385 = vmatpush1.bf16.msra.mxu0 0
      %2386 = vmatprep.mubr.bf16.mxu0 0
      %2387 = vmatmul.mubr.bf16.gmra.mrb[0].mxu0 %v2282
      %v2388 = vpop.f32.mrb[0].mxu0
      %v2389 = vadd.f32 0.0, %v2388
      %v2390 = vpop.f32.mrb[0].mxu0
      %v2391 = vpop.f32.mrb[0].mxu0
      %v2392 = vadd.f32 0.0, %v2391
      %v2393 = vpop.f32.mrb[0].mxu0
      %2394 = vmatprep.mubr.bf16.mxu0 0
      %2395 = vmatmul.mubr.bf16.gmra.mrb[0].mxu0 %v2290
      %v2396 = vpop.f32.mrb[0].mxu0
      %v2397 = vadd.f32 0.0, %v2396
      %v2398 = vpop.f32.mrb[0].mxu0
      %v2399 = vpop.f32.mrb[0].mxu0
      %v2400 = vadd.f32 0.0, %v2399
      %v2401 = vpop.f32.mrb[0].mxu0
      %2402 = vmatprep.mubr.bf16.mxu0 0
      %2403 = vmatmul.mubr.bf16.gmra.mrb[0].mxu0 %v2298
      %v2404 = vpop.f32.mrb[0].mxu0
      %v2405 = vadd.f32 0.0, %v2404
      %v2406 = vpop.f32.mrb[0].mxu0
      %v2407 = vpop.f32.mrb[0].mxu0
      %v2408 = vadd.f32 0.0, %v2407
      %v2409 = vpop.f32.mrb[0].mxu0
      %2410 = vmatprep.mubr.bf16.mxu0 0
      %2411 = vmatmul.mubr.bf16.gmra.mrb[0].mxu0 %v2301
      %v2412 = vpop.f32.mrb[0].mxu0
      %v2413 = vadd.f32 0.0, %v2412
      %v2414 = vpop.f32.mrb[0].mxu0
      %v2415 = vpop.f32.mrb[0].mxu0
      %v2416 = vpop.f32.mrb[0].mxu0
      %2417 = vdwg.mxu0
      %v2418 = vadd.f32 %v2222, %v2389
      %v2419 = vadd.f32 %v2223, %v2392
      %v2420 = vadd.f32 %v2224, %v2397
      %v2421 = vadd.f32 %v2225, %v2400
      %v2422 = vadd.f32 %v2226, %v2405
      %v2423 = vadd.f32 %v2227, %v2408
      %v2424 = vadd.f32 %v2228, %v2413
      %v2425 = vld [vmem:[%s192 + $0x10] sm:$0xe]
      %s2426 = scalar_lea.vmem %s1, 832
      %v2427 = vld [vmem:[%s2426] sm:$0xf]
      %v2428 = vld [vmem:[%s2426 + $0x4] sm:$0xf]
      %v2429 = vld [vmem:[%s2426 + $0x8] sm:$0xf]
      %v2430 = vld [vmem:[%s2426 + $0xc] sm:$0xf]
      %v2431 = vld [vmem:[%s2426 + $0x10] sm:$0xf]
      %v2432 = vld [vmem:[%s2426 + $0x14] sm:$0xf]
      %v2433 = vld [vmem:[%s2426 + $0x18] sm:$0xf]
      %v2434 = vld [vmem:[%s2426 + $0x1c] sm:$0xf]
      %v2435 = vld [vmem:[%s2426 + $0x20] sm:$0xf]
      %v2436 = vld [vmem:[%s2426 + $0x24] sm:$0xf]
      %v2437 = vld [vmem:[%s2426 + $0x28] sm:$0xf]
      %v2438 = vld [vmem:[%s2426 + $0x2c] sm:$0xf]
      %v2439 = vld [vmem:[%s2426 + $0x30] sm:$0xf]
      %v2440 = vld [vmem:[%s2426 + $0x34] sm:$0xf]
      %v2441 = vld [vmem:[%s2426 + $0x38] sm:$0xf]
      %v2442 = vld [vmem:[%s2426 + $0x3c] sm:$0xf]
      %v2444 = vunpack.c.l.b16 %v2425
      %v2445 = vpack.c.b16 %v2261, %v2444
      %v2446 = vrot.slane %v2445, 1
      %v2447 = vrot.slane %v2268, 1
      %v2448 = vsel %vm546, %v2446, %v2447
      %v2449 = vrot.slane %v2269, 1
      %v2450 = vsel %vm546, %v2447, %v2449
      %v2451 = vrot.slane %v2270, 1
      %v2452 = vsel %vm546, %v2449, %v2451
      %v2473 = vunpack.c.l.b16 %v2427
      %v2474 = vunpack.c.l.b16 %v2428
      %v2475 = vunpack.c.l.b16 %v2429
      %v2476 = vunpack.c.l.b16 %v2430
      %v2477 = vunpack.c.l.b16 %v2431
      %v2478 = vunpack.c.l.b16 %v2432
      %v2479 = vunpack.c.l.b16 %v2433
      %v2480 = vunpack.c.l.b16 %v2434
      %v2481 = vunpack.c.l.b16 %v2435
      %v2482 = vunpack.c.l.b16 %v2436
      %v2483 = vunpack.c.l.b16 %v2437
      %v2484 = vunpack.c.l.b16 %v2438
      %v2485 = vunpack.c.l.b16 %v2439
      %v2486 = vunpack.c.l.b16 %v2440
      %v2487 = vunpack.c.l.b16 %v2441
      %v2488 = vunpack.c.l.b16 %v2442
      %v2489 = vpack.c.b16 %v2474, %v2473
      %v2490 = vpack.c.b16 %v2476, %v2475
      %v2491 = vpack.c.b16 %v2478, %v2477
      %v2492 = vpack.c.b16 %v2480, %v2479
      %v2493 = vpack.c.b16 %v2482, %v2481
      %v2494 = vpack.c.b16 %v2484, %v2483
      %v2495 = vpack.c.b16 %v2486, %v2485
      %v2496 = vpack.c.b16 %v2488, %v2487
      %2505 = vmatprep.subr.bf16.mxu0 0
      %2506 = vmatpush1.bf16.msra.mxu0 %v2489
      %2507 = vmatprep.subr.bf16.mxu0 0
      %2508 = vmatpush1.bf16.msra.mxu0 %v2490
      %2509 = vmatprep.subr.bf16.mxu0 0
      %2510 = vmatpush1.bf16.msra.mxu0 %v2491
      %2511 = vmatprep.subr.bf16.mxu0 0
      %2512 = vmatpush1.bf16.msra.mxu0 %v2492
      %2513 = vmatprep.subr.bf16.mxu0 0
      %2514 = vmatpush1.bf16.msra.mxu0 %v2493
      %2515 = vmatprep.subr.bf16.mxu0 0
      %2516 = vmatpush1.bf16.msra.mxu0 %v2494
      %2517 = vmatprep.subr.bf16.mxu0 0
      %2518 = vmatpush1.bf16.msra.mxu0 %v2495
      %2519 = vmatprep.subr.bf16.mxu0 0
      %2520 = vmatpush1.bf16.msra.mxu0 %v2496
      %2521 = vmatprep.subr.bf16.mxu0 0
      %2522 = vmatpush1.bf16.msra.mxu0 0
      %2523 = vmatprep.subr.bf16.mxu0 0
      %2524 = vmatpush1.bf16.msra.mxu0 0
      %2525 = vmatprep.subr.bf16.mxu0 0
      %2526 = vmatpush1.bf16.msra.mxu0 0
      %2527 = vmatprep.subr.bf16.mxu0 0
      %2528 = vmatpush1.bf16.msra.mxu0 0
      %2529 = vmatprep.subr.bf16.mxu0 0
      %2530 = vmatpush1.bf16.msra.mxu0 0
      %2531 = vmatprep.subr.bf16.mxu0 0
      %2532 = vmatpush1.bf16.msra.mxu0 0
      %2533 = vmatprep.subr.bf16.mxu0 0
      %2534 = vmatpush1.bf16.msra.mxu0 0
      %2535 = vmatprep.subr.bf16.mxu0 0
      %2536 = vmatpush1.bf16.msra.mxu0 0
      %2537 = vmatprep.mubr.bf16.mxu0 0
      %2538 = vmatmul.mubr.bf16.gmra.mrb[0].mxu0 %v2448
      %v2539 = vpop.f32.mrb[0].mxu0
      %v2540 = vadd.f32 0.0, %v2539
      %v2541 = vpop.f32.mrb[0].mxu0
      %v2542 = vpop.f32.mrb[0].mxu0
      %v2543 = vadd.f32 0.0, %v2542
      %v2544 = vpop.f32.mrb[0].mxu0
      %2545 = vmatprep.mubr.bf16.mxu0 0
      %2546 = vmatmul.mubr.bf16.gmra.mrb[0].mxu0 %v2450
      %v2547 = vpop.f32.mrb[0].mxu0
      %v2548 = vadd.f32 0.0, %v2547
      %v2549 = vpop.f32.mrb[0].mxu0
      %v2550 = vpop.f32.mrb[0].mxu0
      %v2551 = vadd.f32 0.0, %v2550
      %v2552 = vpop.f32.mrb[0].mxu0
      %2553 = vmatprep.mubr.bf16.mxu0 0
      %2554 = vmatmul.mubr.bf16.gmra.mrb[0].mxu0 %v2452
      %v2555 = vpop.f32.mrb[0].mxu0
      %v2556 = vadd.f32 0.0, %v2555
      %v2557 = vpop.f32.mrb[0].mxu0
      %v2558 = vpop.f32.mrb[0].mxu0
      %v2559 = vadd.f32 0.0, %v2558
      %v2560 = vpop.f32.mrb[0].mxu0
      %2561 = vmatprep.mubr.bf16.mxu0 0
      %2562 = vmatmul.mubr.bf16.gmra.mrb[0].mxu0 %v2451
      %v2563 = vpop.f32.mrb[0].mxu0
      %v2564 = vadd.f32 0.0, %v2563
      %v2565 = vpop.f32.mrb[0].mxu0
      %v2566 = vpop.f32.mrb[0].mxu0
      %v2567 = vpop.f32.mrb[0].mxu0
      %2568 = vdwg.mxu0
      %v2569 = vadd.f32 %v2418, %v2540
      %v2570 = vadd.f32 %v2419, %v2543
      %v2571 = vadd.f32 %v2420, %v2548
      %v2572 = vadd.f32 %v2421, %v2551
      %v2573 = vadd.f32 %v2422, %v2556
      %v2574 = vadd.f32 %v2423, %v2559
      %v2575 = vadd.f32 %v2424, %v2564
      %v2576 = vld [vmem:[%s192 + $0x28] sm:$0xf]
      %s2577 = scalar_lea.vmem %s1, 896
      %v2578 = vld [vmem:[%s2577] sm:$0xf]
      %v2579 = vld [vmem:[%s2577 + $0x4] sm:$0xf]
      %v2580 = vld [vmem:[%s2577 + $0x8] sm:$0xf]
      %v2581 = vld [vmem:[%s2577 + $0xc] sm:$0xf]
      %v2582 = vld [vmem:[%s2577 + $0x10] sm:$0xf]
      %v2583 = vld [vmem:[%s2577 + $0x14] sm:$0xf]
      %v2584 = vld [vmem:[%s2577 + $0x18] sm:$0xf]
      %v2585 = vld [vmem:[%s2577 + $0x1c] sm:$0xf]
      %v2586 = vld [vmem:[%s2577 + $0x20] sm:$0xf]
      %v2587 = vld [vmem:[%s2577 + $0x24] sm:$0xf]
      %v2588 = vld [vmem:[%s2577 + $0x28] sm:$0xf]
      %v2589 = vld [vmem:[%s2577 + $0x2c] sm:$0xf]
      %v2590 = vld [vmem:[%s2577 + $0x30] sm:$0xf]
      %v2591 = vld [vmem:[%s2577 + $0x34] sm:$0xf]
      %v2592 = vld [vmem:[%s2577 + $0x38] sm:$0xf]
      %v2593 = vld [vmem:[%s2577 + $0x3c] sm:$0xf]
      %v2595 = vunpack.c.l.b16 %v2576
      %v2596 = vpack.c.b16 %v2595, %v2595
      %v2598 = vshrl.u32 %v2445, 16
      %v2600 = vrot.slane %v2598, 1
      %v2601 = vshll.u32 %v2445, 16
      %v2603 = vrot.slane %v2601, 2
      %v2604 = vor.u32 %v2600, %v2603
      %v2605 = vrot.slane %v2283, 1
      %v2606 = vrot.slane %v2279, 2
      %v2607 = vor.u32 %v2605, %v2606
      %v2608 = vsel %vm698, %v2604, %v2607
      %v2609 = vrot.slane %v2291, 1
      %v2610 = vrot.slane %v2287, 2
      %v2611 = vor.u32 %v2609, %v2610
      %v2612 = vsel %vm698, %v2607, %v2611
      %v2614 = vshrl.u32 %v2596, 16
      %v2616 = vrot.slane %v2614, 1
      %v2617 = vshll.u32 %v2596, 16
      %v2619 = vrot.slane %v2617, 2
      %v2620 = vor.u32 %v2616, %v2619
      %v2621 = vsel %vm698, %v2611, %v2620
      %v2642 = vunpack.c.l.b16 %v2578
      %v2643 = vunpack.c.l.b16 %v2579
      %v2644 = vunpack.c.l.b16 %v2580
      %v2645 = vunpack.c.l.b16 %v2581
      %v2646 = vunpack.c.l.b16 %v2582
      %v2647 = vunpack.c.l.b16 %v2583
      %v2648 = vunpack.c.l.b16 %v2584
      %v2649 = vunpack.c.l.b16 %v2585
      %v2650 = vunpack.c.l.b16 %v2586
      %v2651 = vunpack.c.l.b16 %v2587
      %v2652 = vunpack.c.l.b16 %v2588
      %v2653 = vunpack.c.l.b16 %v2589
      %v2654 = vunpack.c.l.b16 %v2590
      %v2655 = vunpack.c.l.b16 %v2591
      %v2656 = vunpack.c.l.b16 %v2592
      %v2657 = vunpack.c.l.b16 %v2593
      %v2658 = vpack.c.b16 %v2643, %v2642
      %v2659 = vpack.c.b16 %v2645, %v2644
      %v2660 = vpack.c.b16 %v2647, %v2646
      %v2661 = vpack.c.b16 %v2649, %v2648
      %v2662 = vpack.c.b16 %v2651, %v2650
      %v2663 = vpack.c.b16 %v2653, %v2652
      %v2664 = vpack.c.b16 %v2655, %v2654
      %v2665 = vpack.c.b16 %v2657, %v2656
      %2674 = vmatprep.subr.bf16.mxu0 0
      %2675 = vmatpush1.bf16.msra.mxu0 %v2658
      %2676 = vmatprep.subr.bf16.mxu0 0
      %2677 = vmatpush1.bf16.msra.mxu0 %v2659
      %2678 = vmatprep.subr.bf16.mxu0 0
      %2679 = vmatpush1.bf16.msra.mxu0 %v2660
      %2680 = vmatprep.subr.bf16.mxu0 0
      %2681 = vmatpush1.bf16.msra.mxu0 %v2661
      %2682 = vmatprep.subr.bf16.mxu0 0
      %2683 = vmatpush1.bf16.msra.mxu0 %v2662
      %2684 = vmatprep.subr.bf16.mxu0 0
      %2685 = vmatpush1.bf16.msra.mxu0 %v2663
      %2686 = vmatprep.subr.bf16.mxu0 0
      %2687 = vmatpush1.bf16.msra.mxu0 %v2664
      %2688 = vmatprep.subr.bf16.mxu0 0
      %2689 = vmatpush1.bf16.msra.mxu0 %v2665
      %2690 = vmatprep.subr.bf16.mxu0 0
      %2691 = vmatpush1.bf16.msra.mxu0 0
      %2692 = vmatprep.subr.bf16.mxu0 0
      %2693 = vmatpush1.bf16.msra.mxu0 0
      %2694 = vmatprep.subr.bf16.mxu0 0
      %2695 = vmatpush1.bf16.msra.mxu0 0
      %2696 = vmatprep.subr.bf16.mxu0 0
      %2697 = vmatpush1.bf16.msra.mxu0 0
      %2698 = vmatprep.subr.bf16.mxu0 0
      %2699 = vmatpush1.bf16.msra.mxu0 0
      %2700 = vmatprep.subr.bf16.mxu0 0
      %2701 = vmatpush1.bf16.msra.mxu0 0
      %2702 = vmatprep.subr.bf16.mxu0 0
      %2703 = vmatpush1.bf16.msra.mxu0 0
      %2704 = vmatprep.subr.bf16.mxu0 0
      %2705 = vmatpush1.bf16.msra.mxu0 0
      %2706 = vmatprep.mubr.bf16.mxu0 0
      %2707 = vmatmul.mubr.bf16.gmra.mrb[0].mxu0 %v2608
      %v2708 = vpop.f32.mrb[0].mxu0
      %v2709 = vadd.f32 0.0, %v2708
      %v2710 = vpop.f32.mrb[0].mxu0
      %v2711 = vpop.f32.mrb[0].mxu0
      %v2712 = vadd.f32 0.0, %v2711
      %v2713 = vpop.f32.mrb[0].mxu0
      %2714 = vmatprep.mubr.bf16.mxu0 0
      %2715 = vmatmul.mubr.bf16.gmra.mrb[0].mxu0 %v2612
      %v2716 = vpop.f32.mrb[0].mxu0
      %v2717 = vadd.f32 0.0, %v2716
      %v2718 = vpop.f32.mrb[0].mxu0
      %v2719 = vpop.f32.mrb[0].mxu0
      %v2720 = vadd.f32 0.0, %v2719
      %v2721 = vpop.f32.mrb[0].mxu0
      %2722 = vmatprep.mubr.bf16.mxu0 0
      %2723 = vmatmul.mubr.bf16.gmra.mrb[0].mxu0 %v2621
      %v2724 = vpop.f32.mrb[0].mxu0
      %v2725 = vadd.f32 0.0, %v2724
      %v2726 = vpop.f32.mrb[0].mxu0
      %v2727 = vpop.f32.mrb[0].mxu0
      %v2728 = vadd.f32 0.0, %v2727
      %v2729 = vpop.f32.mrb[0].mxu0
      %2730 = vmatprep.mubr.bf16.mxu0 0
      %2731 = vmatmul.mubr.bf16.gmra.mrb[0].mxu0 %v2620
      %v2732 = vpop.f32.mrb[0].mxu0
      %v2733 = vadd.f32 0.0, %v2732
      %v2734 = vpop.f32.mrb[0].mxu0
      %v2735 = vpop.f32.mrb[0].mxu0
      %v2736 = vpop.f32.mrb[0].mxu0
      %2737 = vdwg.mxu0
      %v2738 = vadd.f32 %v2569, %v2709
      %v2739 = vadd.f32 %v2570, %v2712
      %v2740 = vadd.f32 %v2571, %v2717
      %v2741 = vadd.f32 %v2572, %v2720
      %v2742 = vadd.f32 %v2573, %v2725
      %v2743 = vadd.f32 %v2574, %v2728
      %v2744 = vadd.f32 %v2575, %v2733
      %v2745 = vld [vmem:[%s192 + $0x10] sm:$0xc]
      %s2746 = scalar_lea.vmem %s1, 960
      %v2747 = vld [vmem:[%s2746] sm:$0xf]
      %v2748 = vld [vmem:[%s2746 + $0x4] sm:$0xf]
      %v2749 = vld [vmem:[%s2746 + $0x8] sm:$0xf]
      %v2750 = vld [vmem:[%s2746 + $0xc] sm:$0xf]
      %v2751 = vld [vmem:[%s2746 + $0x10] sm:$0xf]
      %v2752 = vld [vmem:[%s2746 + $0x14] sm:$0xf]
      %v2753 = vld [vmem:[%s2746 + $0x18] sm:$0xf]
      %v2754 = vld [vmem:[%s2746 + $0x1c] sm:$0xf]
      %v2755 = vld [vmem:[%s2746 + $0x20] sm:$0xf]
      %v2756 = vld [vmem:[%s2746 + $0x24] sm:$0xf]
      %v2757 = vld [vmem:[%s2746 + $0x28] sm:$0xf]
      %v2758 = vld [vmem:[%s2746 + $0x2c] sm:$0xf]
      %v2759 = vld [vmem:[%s2746 + $0x30] sm:$0xf]
      %v2760 = vld [vmem:[%s2746 + $0x34] sm:$0xf]
      %v2761 = vld [vmem:[%s2746 + $0x38] sm:$0xf]
      %v2762 = vld [vmem:[%s2746 + $0x3c] sm:$0xf]
      %v2764 = vunpack.c.l.b16 %v2745
      %v2765 = vpack.c.b16 %v2261, %v2764
      %v2766 = vrot.slane %v2765, 2
      %v2767 = vrot.slane %v2268, 2
      %v2768 = vsel %vm1068, %v2766, %v2767
      %v2769 = vrot.slane %v2269, 2
      %v2770 = vsel %vm1068, %v2767, %v2769
      %v2771 = vrot.slane %v2596, 2
      %v2772 = vsel %vm1068, %v2769, %v2771
      %v2793 = vunpack.c.l.b16 %v2747
      %v2794 = vunpack.c.l.b16 %v2748
      %v2795 = vunpack.c.l.b16 %v2749
      %v2796 = vunpack.c.l.b16 %v2750
      %v2797 = vunpack.c.l.b16 %v2751
      %v2798 = vunpack.c.l.b16 %v2752
      %v2799 = vunpack.c.l.b16 %v2753
      %v2800 = vunpack.c.l.b16 %v2754
      %v2801 = vunpack.c.l.b16 %v2755
      %v2802 = vunpack.c.l.b16 %v2756
      %v2803 = vunpack.c.l.b16 %v2757
      %v2804 = vunpack.c.l.b16 %v2758
      %v2805 = vunpack.c.l.b16 %v2759
      %v2806 = vunpack.c.l.b16 %v2760
      %v2807 = vunpack.c.l.b16 %v2761
      %v2808 = vunpack.c.l.b16 %v2762
      %v2809 = vpack.c.b16 %v2794, %v2793
      %v2810 = vpack.c.b16 %v2796, %v2795
      %v2811 = vpack.c.b16 %v2798, %v2797
      %v2812 = vpack.c.b16 %v2800, %v2799
      %v2813 = vpack.c.b16 %v2802, %v2801
      %v2814 = vpack.c.b16 %v2804, %v2803
      %v2815 = vpack.c.b16 %v2806, %v2805
      %v2816 = vpack.c.b16 %v2808, %v2807
      %2825 = vmatprep.subr.bf16.mxu0 0
      %2826 = vmatpush1.bf16.msra.mxu0 %v2809
      %2827 = vmatprep.subr.bf16.mxu0 0
      %2828 = vmatpush1.bf16.msra.mxu0 %v2810
      %2829 = vmatprep.subr.bf16.mxu0 0
      %2830 = vmatpush1.bf16.msra.mxu0 %v2811
      %2831 = vmatprep.subr.bf16.mxu0 0
      %2832 = vmatpush1.bf16.msra.mxu0 %v2812
      %2833 = vmatprep.subr.bf16.mxu0 0
      %2834 = vmatpush1.bf16.msra.mxu0 %v2813
      %2835 = vmatprep.subr.bf16.mxu0 0
      %2836 = vmatpush1.bf16.msra.mxu0 %v2814
      %2837 = vmatprep.subr.bf16.mxu0 0
      %2838 = vmatpush1.bf16.msra.mxu0 %v2815
      %2839 = vmatprep.subr.bf16.mxu0 0
      %2840 = vmatpush1.bf16.msra.mxu0 %v2816
      %2841 = vmatprep.subr.bf16.mxu0 0
      %2842 = vmatpush1.bf16.msra.mxu0 0
      %2843 = vmatprep.subr.bf16.mxu0 0
      %2844 = vmatpush1.bf16.msra.mxu0 0
      %2845 = vmatprep.subr.bf16.mxu0 0
      %2846 = vmatpush1.bf16.msra.mxu0 0
      %2847 = vmatprep.subr.bf16.mxu0 0
      %2848 = vmatpush1.bf16.msra.mxu0 0
      %2849 = vmatprep.subr.bf16.mxu0 0
      %2850 = vmatpush1.bf16.msra.mxu0 0
      %2851 = vmatprep.subr.bf16.mxu0 0
      %2852 = vmatpush1.bf16.msra.mxu0 0
      %2853 = vmatprep.subr.bf16.mxu0 0
      %2854 = vmatpush1.bf16.msra.mxu0 0
      %2855 = vmatprep.subr.bf16.mxu0 0
      %2856 = vmatpush1.bf16.msra.mxu0 0
      %2857 = vmatprep.mubr.bf16.mxu0 0
      %2858 = vmatmul.mubr.bf16.gmra.mrb[0].mxu0 %v2768
      %v2859 = vpop.f32.mrb[0].mxu0
      %v2860 = vadd.f32 0.0, %v2859
      %v2861 = vpop.f32.mrb[0].mxu0
      %v2862 = vpop.f32.mrb[0].mxu0
      %v2863 = vadd.f32 0.0, %v2862
      %v2864 = vpop.f32.mrb[0].mxu0
      %2865 = vmatprep.mubr.bf16.mxu0 0
      %2866 = vmatmul.mubr.bf16.gmra.mrb[0].mxu0 %v2770
      %v2867 = vpop.f32.mrb[0].mxu0
      %v2868 = vadd.f32 0.0, %v2867
      %v2869 = vpop.f32.mrb[0].mxu0
      %v2870 = vpop.f32.mrb[0].mxu0
      %v2871 = vadd.f32 0.0, %v2870
      %v2872 = vpop.f32.mrb[0].mxu0
      %2873 = vmatprep.mubr.bf16.mxu0 0
      %2874 = vmatmul.mubr.bf16.gmra.mrb[0].mxu0 %v2772
      %v2875 = vpop.f32.mrb[0].mxu0
      %v2876 = vadd.f32 0.0, %v2875
      %v2877 = vpop.f32.mrb[0].mxu0
      %v2878 = vpop.f32.mrb[0].mxu0
      %v2879 = vadd.f32 0.0, %v2878
      %v2880 = vpop.f32.mrb[0].mxu0
      %2881 = vmatprep.mubr.bf16.mxu0 0
      %2882 = vmatmul.mubr.bf16.gmra.mrb[0].mxu0 %v2771
      %v2883 = vpop.f32.mrb[0].mxu0
      %v2884 = vadd.f32 0.0, %v2883
      %v2885 = vpop.f32.mrb[0].mxu0
      %v2886 = vpop.f32.mrb[0].mxu0
      %v2887 = vpop.f32.mrb[0].mxu0
      %2888 = vdwg.mxu0
      %v2889 = vadd.f32 %v2738, %v2860
      %v2890 = vadd.f32 %v2739, %v2863
      %v2891 = vadd.f32 %v2740, %v2868
      %v2892 = vadd.f32 %v2741, %v2871
      %v2893 = vadd.f32 %v2742, %v2876
      %v2894 = vadd.f32 %v2743, %v2879
      %v2895 = vadd.f32 %v2744, %v2884
      %v2896 = vld [vmem:[%s2] sm:$0x1]
      %v2898 = vlaneseq
      %v2899 = vshrl.u32 %v2898, 7
      %v2900 = vsub.s32 0, %v2899
      %v2901 = vrot.slane %v2896, %v2900
      %v2903 = vmul.f32 %v2889, %v2901
      %v2904 = vmul.f32 %v2890, %v2901
      %v2905 = vmul.f32 %v2891, %v2901
      %v2906 = vmul.f32 %v2892, %v2901
      %v2907 = vmul.f32 %v2893, %v2901
      %v2908 = vmul.f32 %v2894, %v2901
      %v2909 = vmul.f32 %v2895, %v2901
      %v2910 = vld [vmem:[%s3] sm:$0x1]
      %v2912 = vlaneseq
      %v2913 = vshrl.u32 %v2912, 7
      %v2914 = vsub.s32 0, %v2913
      %v2915 = vrot.slane %v2910, %v2914
      %v2917 = vadd.f32 %v2903, %v2915
      %v2918 = vadd.f32 %v2904, %v2915
      %v2919 = vadd.f32 %v2905, %v2915
      %v2920 = vadd.f32 %v2906, %v2915
      %v2921 = vadd.f32 %v2907, %v2915
      %v2922 = vadd.f32 %v2908, %v2915
      %v2923 = vadd.f32 %v2909, %v2915
      %2924 = vst [vmem:[%s197] sm:$0xff] %v2917
      %2925 = vst [vmem:[%s197 + $0x8] sm:$0xff] %v2918
      %2926 = vst [vmem:[%s197 + $0x10] sm:$0xff] %v2919
      %2927 = vst [vmem:[%s197 + $0x18] sm:$0xff] %v2920
      %2928 = vst [vmem:[%s197 + $0x20] sm:$0xff] %v2921
      %2929 = vst [vmem:[%s197 + $0x28] sm:$0xff] %v2922
      %2930 = vst [vmem:[%s197 + $0x30] sm:$0xf] %v2923
      %p2931 = scmp.lt.s32.totalorder %s15, 1
      %s2932 = scalar_select %p2931, %s15, 1
      %s2933 = smul.addr %s2932, 7
      %s2934 = smul.addr %s2933, 8
      %s2935 = scalar_lea.vmem %s4, %s2934
      // Predicated region
      $region37: #{nlayer_discriminator_forward.9} parent=35 // pred_check
        %p2936 = pneg %p122
      $region38: #{nlayer_discriminator_forward.9} parent=35 // pred_check_branch
        %2938 = sbr.rel (%p2936) target = $region40
      $region39: #{nlayer_discriminator_forward.9} parent=35 // pred_region
        _
      $region40: #{nlayer_discriminator_forward.9} parent=35 // pred_fallthru
        _
    $region36: #{nlayer_discriminator_forward.9} parent=5 // pred_fallthru
      _
    %p2939 = scmp.le.s32.totalorder 2, %s10
    // Predicated region
    $region41: #{nlayer_discriminator_forward.9} parent=5 // pred_check
      %p2940 = pneg %p2939
    $region42: #{nlayer_discriminator_forward.9} parent=5 // pred_check_branch
      %2942 = sbr.rel (%p2940) target = $region44
    $region43: #{nlayer_discriminator_forward.9} parent=5 // pred_region
      %s2943 = ssub.s32 %s10, 2
      // Predicated region
      $region45: #{nlayer_discriminator_forward.9} parent=43 // pred_check
        %p2944 = pneg %p128
      $region46: #{nlayer_discriminator_forward.9} parent=43 // pred_check_branch
        %2946 = sbr.rel (%p2944) target = $region48
      $region47: #{nlayer_discriminator_forward.9} parent=43 // pred_region
        %p2947 = scmp.lt.s32.totalorder %s16, 1
        %s2948 = scalar_select %p2947, %s16, 1
        %s2949 = smul.addr %s2948, 7
        %s2950 = smul.addr %s2949, 8
        %s2951 = scalar_lea.vmem %s4, %s2950
      $region48: #{nlayer_discriminator_forward.9} parent=43 // pred_fallthru
        _
    $region44: #{nlayer_discriminator_forward.9} parent=5 // pred_fallthru
      _
  $region6: #{nlayer_discriminator_forward.9} parent=0 // loop_footer
    %s14 = sadd.s32 1, %s10
  $region7: #{nlayer_discriminator_forward.9} parent=0 // loop_footer_branch
    %9 = sbr.rel target = $region3
  $region8: #{nlayer_discriminator_forward.9} parent=0 // loop_exit
    _

</llo_original>
